<compile_context>
chip_gen: v7x
topology: tpu7x:2x2x1
jax: 0.10.0
libtpu: 0.0.40
codegen_flags: <defaults>
</compile_context>

<pallas_src>
import jax
import jax.numpy as jnp
from jax import lax
from jax.experimental import pallas as pl
from jax.experimental.pallas import tpu as pltpu

EPS = 1e-5
LANE = 128


def basic_block_kernel(x_ref, w1_ref, g1_ref, b1_ref, w2_ref, g2_ref, b2_ref,
                       out_ref, xpad_ref, col_ref):
    N, H, W, Cp = x_ref.shape
    Hp, Wp = H + 2, W + 2
    P = N * H * W
    bf16 = xpad_ref.dtype

    # ---- zero only the 1-pixel border of the shared pad scratch; the interior
    # is fully overwritten below and the border stays zero for both convs. ----
    xpad_ref[:, 0:1, :, :] = jnp.zeros((N, 1, Wp, Cp), bf16)
    xpad_ref[:, Hp - 1:Hp, :, :] = jnp.zeros((N, 1, Wp, Cp), bf16)
    xpad_ref[:, :, 0:1, :] = jnp.zeros((N, Hp, 1, Cp), bf16)
    xpad_ref[:, :, Wp - 1:Wp, :] = jnp.zeros((N, Hp, 1, Cp), bf16)

    def conv3x3(w_ref):
        # im2col: 9 lane-aligned 128-wide column-block writes, then ONE matmul
        # (bf16 operands, f32 accumulation) on the MXU.
        src = xpad_ref[...]
        for k in range(9):
            dy, dx = k // 3, k % 3
            col_ref[:, k * Cp:(k + 1) * Cp] = (
                src[:, dy:dy + H, dx:dx + W, :].reshape(P, Cp))
        return jnp.dot(col_ref[...], w_ref[...],
                       preferred_element_type=jnp.float32)

    def batchnorm(acc, g_ref, b_ref):
        # One-pass training-mode batch statistics (biased variance), all f32.
        m = jnp.sum(acc, axis=0, keepdims=True) / P
        v = jnp.sum(acc * acc, axis=0, keepdims=True) / P - m * m
        scale = lax.rsqrt(v + EPS) * g_ref[...]
        return acc * scale + (b_ref[...] - m * scale)

    # ---- conv1 -> bn1 -> relu ----
    xpad_ref[:, 1:H + 1, 1:W + 1, :] = x_ref[...].astype(bf16)
    y = jnp.maximum(batchnorm(conv3x3(w1_ref), g1_ref, b1_ref), 0.0)

    # ---- conv2 -> bn2 (reuse the pad scratch; border is already zero) ----
    xpad_ref[:, 1:H + 1, 1:W + 1, :] = y.reshape(N, H, W, Cp).astype(bf16)
    z = batchnorm(conv3x3(w2_ref), g2_ref, b2_ref)

    # ---- residual add (f32, straight from the input ref) + relu ----
    z = z + x_ref[...].reshape(P, Cp)
    out_ref[...] = jnp.maximum(z, 0.0)            # lane-dense (P, Cp) store


def basic_block_pallas(x_nchw, w1_hwio, g1, b1, w2_hwio, g2, b2):
    """x_nchw: (N, C, H, W) float32; conv weights in HWIO (3, 3, Cin, Cout)."""
    N, C, H, W = x_nchw.shape
    assert w1_hwio.shape[-1] == C, "identity residual needs inplanes == planes"
    Cp = ((C + LANE - 1) // LANE) * LANE          # lane-dense channel padding
    P = N * H * W

    # NCHW -> NHWC + channel pad (layout plumbing; an NHWC model skips this).
    x_nhwc = jnp.transpose(x_nchw, (0, 2, 3, 1)).astype(jnp.float32)
    x_p = jnp.pad(x_nhwc, ((0, 0), (0, 0), (0, 0), (0, Cp - C)))

    def w_mat(w):   # HWIO (3,3,C,C) -> im2col weight matrix (9*Cp, Cp), bf16
        wp = jnp.pad(w.astype(jnp.float32),
                     ((0, 0), (0, 0), (0, Cp - C), (0, Cp - C)))
        return wp.reshape(9 * Cp, Cp).astype(jnp.bfloat16)

    def vec(v, fill):
        return jnp.pad(v.astype(jnp.float32).reshape(1, C),
                       ((0, 0), (0, Cp - C)), constant_values=fill)

    args = (x_p, w_mat(w1_hwio), vec(g1, 1.0), vec(b1, 0.0),
            w_mat(w2_hwio), vec(g2, 1.0), vec(b2, 0.0))

    flops = 2 * (2 * P * (9 * Cp) * Cp) + 12 * P * Cp
    bytes_accessed = (2 * P * Cp * 4            # input + output
                      + 2 * 9 * Cp * Cp * 2     # two im2col weight matrices
                      + 4 * Cp * 4)             # gammas / betas
    vmem = pl.BlockSpec(memory_space=pltpu.MemorySpace.VMEM)

    out2d = pl.pallas_call(
        basic_block_kernel,
        out_shape=jax.ShapeDtypeStruct((P, Cp), jnp.float32),
        in_specs=[vmem] * 7,
        out_specs=vmem,
        scratch_shapes=[
            pltpu.VMEM((N, H + 2, W + 2, Cp), jnp.bfloat16),  # shared pad buf
            pltpu.VMEM((P, 9 * Cp), jnp.bfloat16),            # im2col matrix
        ],
        compiler_params=pltpu.CompilerParams(vmem_limit_bytes=32 * 1024 * 1024),
        cost_estimate=pl.CostEstimate(flops=flops, transcendentals=2 * Cp,
                                      bytes_accessed=bytes_accessed),
    )(*args)

    out = out2d.reshape(N, H, W, Cp)[..., :C]
    return jnp.transpose(out, (0, 3, 1, 2))


def basic_block_ref(x_nchw, w1_hwio, g1, b1, w2_hwio, g2, b2):
    """Pure-JAX reference mirroring the PyTorch forward (training-mode BN)."""
    def conv(x, w_hwio):
        w_oihw = jnp.transpose(w_hwio, (3, 2, 0, 1))
        return lax.conv_general_dilated(
            x, w_oihw, window_strides=(1, 1), padding=((1, 1), (1, 1)),
            dimension_numbers=('NCHW', 'OIHW', 'NCHW'))

    def bn(x, g, b):
        m = x.mean(axis=(0, 2, 3), keepdims=True)
        v = ((x - m) ** 2).mean(axis=(0, 2, 3), keepdims=True)
        return (x - m) * lax.rsqrt(v + EPS) * g.reshape(1, -1, 1, 1) \
               + b.reshape(1, -1, 1, 1)

    out = jnp.maximum(bn(conv(x_nchw, w1_hwio), g1, b1), 0.0)
    out = bn(conv(out, w2_hwio), g2, b2)
    out = out + x_nchw
    return jnp.maximum(out, 0.0)


if __name__ == "__main__":
    N, C, H, W = 2, 4, 16, 16     # inplanes = planes = 4, stride = 1
    key = jax.random.PRNGKey(0)
    kx, kw1, kw2, kg1, kb1, kg2, kb2 = jax.random.split(key, 7)

    x = jax.random.normal(kx, (N, C, H, W), jnp.float32)
    fan_in = C * 9
    w1 = jax.random.normal(kw1, (3, 3, C, C), jnp.float32) * (2.0 / fan_in) ** 0.5
    w2 = jax.random.normal(kw2, (3, 3, C, C), jnp.float32) * (2.0 / fan_in) ** 0.5
    g1 = 1.0 + 0.1 * jax.random.normal(kg1, (C,), jnp.float32)
    b1 = 0.1 * jax.random.normal(kb1, (C,), jnp.float32)
    g2 = 1.0 + 0.1 * jax.random.normal(kg2, (C,), jnp.float32)
    b2 = 0.1 * jax.random.normal(kb2, (C,), jnp.float32)

    out = jax.block_until_ready(basic_block_pallas(x, w1, g1, b1, w2, g2, b2))
    ref = basic_block_ref(x, w1, g1, b1, w2, g2, b2)

    assert out.shape == (N, C, H, W)
    err = float(jnp.max(jnp.abs(out - ref)))
    # bf16 MXU operands (f32 accumulation / BN / residual) give ~1e-3 relative
    # error through two chained convs; 2e-2 leaves comfortable margin.
    assert jnp.allclose(out, ref, atol=2e-2, rtol=2e-2), err

    print("KERNEL_OK")
</pallas_src>

<mosaic_0001>
module attributes {stable_mosaic.version = 11 : i64} {
  func.func @basic_block_kernel(%arg0: memref<2x16x16x128xf32, #tpu.memory_space<vmem>>, %arg1: memref<1152x128xbf16, #tpu.memory_space<vmem>>, %arg2: memref<1x128xf32, #tpu.memory_space<vmem>>, %arg3: memref<1x128xf32, #tpu.memory_space<vmem>>, %arg4: memref<1152x128xbf16, #tpu.memory_space<vmem>>, %arg5: memref<1x128xf32, #tpu.memory_space<vmem>>, %arg6: memref<1x128xf32, #tpu.memory_space<vmem>>, %arg7: memref<512x128xf32, #tpu.memory_space<vmem>>, %arg8: memref<2x18x18x128xbf16, #tpu.memory_space<vmem>>, %arg9: memref<512x1152xbf16, #tpu.memory_space<vmem>>) attributes {dimension_semantics = [], scalar_prefetch = 0 : i64, scratch_operands = 2 : i64, tpu.core_type = #tpu.core_type<tc>} {
    %cst = arith.constant 0.000000e+00 : bf16
    %0 = vector.broadcast %cst : bf16 to vector<2x1x18x128xbf16>
    %c0 = arith.constant 0 : index
    %c0_0 = arith.constant 0 : index
    %c0_1 = arith.constant 0 : index
    %c0_2 = arith.constant 0 : index
    %1 = vector.load %arg8[%c0, %c0_0, %c0_1, %c0_2] : memref<2x18x18x128xbf16, #tpu.memory_space<vmem>>, vector<2x1x18x128xbf16>
    tpu.vector_store %arg8[%c0, %c0_0, %c0_1, %c0_2], %0 {strides = array<i32>} : memref<2x18x18x128xbf16, #tpu.memory_space<vmem>>, vector<2x1x18x128xbf16>,
    %cst_3 = arith.constant 0.000000e+00 : bf16
    %2 = vector.broadcast %cst_3 : bf16 to vector<2x1x18x128xbf16>
    %c0_4 = arith.constant 0 : index
    %c17 = arith.constant 17 : index
    %c0_5 = arith.constant 0 : index
    %c0_6 = arith.constant 0 : index
    %3 = vector.load %arg8[%c0_4, %c17, %c0_5, %c0_6] : memref<2x18x18x128xbf16, #tpu.memory_space<vmem>>, vector<2x1x18x128xbf16>
    tpu.vector_store %arg8[%c0_4, %c17, %c0_5, %c0_6], %2 {strides = array<i32>} : memref<2x18x18x128xbf16, #tpu.memory_space<vmem>>, vector<2x1x18x128xbf16>,
    %cst_7 = arith.constant 0.000000e+00 : bf16
    %4 = vector.broadcast %cst_7 : bf16 to vector<2x18x1x128xbf16>
    %c0_8 = arith.constant 0 : index
    %c0_9 = arith.constant 0 : index
    %c0_10 = arith.constant 0 : index
    %c0_11 = arith.constant 0 : index
    %5 = vector.load %arg8[%c0_8, %c0_9, %c0_10, %c0_11] : memref<2x18x18x128xbf16, #tpu.memory_space<vmem>>, vector<2x18x1x128xbf16>
    tpu.vector_store %arg8[%c0_8, %c0_9, %c0_10, %c0_11], %4 {strides = array<i32>} : memref<2x18x18x128xbf16, #tpu.memory_space<vmem>>, vector<2x18x1x128xbf16>,
    %cst_12 = arith.constant 0.000000e+00 : bf16
    %6 = vector.broadcast %cst_12 : bf16 to vector<2x18x1x128xbf16>
    %c0_13 = arith.constant 0 : index
    %c0_14 = arith.constant 0 : index
    %c17_15 = arith.constant 17 : index
    %c0_16 = arith.constant 0 : index
    %7 = vector.load %arg8[%c0_13, %c0_14, %c17_15, %c0_16] : memref<2x18x18x128xbf16, #tpu.memory_space<vmem>>, vector<2x18x1x128xbf16>
    tpu.vector_store %arg8[%c0_13, %c0_14, %c17_15, %c0_16], %6 {strides = array<i32>} : memref<2x18x18x128xbf16, #tpu.memory_space<vmem>>, vector<2x18x1x128xbf16>,
    %c0_17 = arith.constant 0 : index
    %c0_18 = arith.constant 0 : index
    %c0_19 = arith.constant 0 : index
    %c0_20 = arith.constant 0 : index
    %8 = vector.load %arg0[%c0_17, %c0_18, %c0_19, %c0_20] : memref<2x16x16x128xf32, #tpu.memory_space<vmem>>, vector<2x16x16x128xf32>
    %9 = arith.truncf %8 : vector<2x16x16x128xf32> to vector<2x16x16x128xbf16>
    %c0_21 = arith.constant 0 : index
    %c1 = arith.constant 1 : index
    %c1_22 = arith.constant 1 : index
    %c0_23 = arith.constant 0 : index
    %10 = vector.load %arg8[%c0_21, %c1, %c1_22, %c0_23] : memref<2x18x18x128xbf16, #tpu.memory_space<vmem>>, vector<2x16x16x128xbf16>
    tpu.vector_store %arg8[%c0_21, %c1, %c1_22, %c0_23], %9 {strides = array<i32>} : memref<2x18x18x128xbf16, #tpu.memory_space<vmem>>, vector<2x16x16x128xbf16>,
    %c0_24 = arith.constant 0 : index
    %c0_25 = arith.constant 0 : index
    %c0_26 = arith.constant 0 : index
    %c0_27 = arith.constant 0 : index
    %11 = vector.load %arg8[%c0_24, %c0_25, %c0_26, %c0_27] : memref<2x18x18x128xbf16, #tpu.memory_space<vmem>>, vector<2x18x18x128xbf16>
    %12 = vector.extract_strided_slice %11 {offsets = [0, 0, 0, 0], sizes = [2, 16, 16, 128], strides = [1, 1, 1, 1]} : vector<2x18x18x128xbf16> to vector<2x16x16x128xbf16>
    %13 = vector.shape_cast %12 : vector<2x16x16x128xbf16> to vector<512x128xbf16>
    %c0_28 = arith.constant 0 : index
    %c0_29 = arith.constant 0 : index
    %14 = vector.load %arg9[%c0_28, %c0_29] : memref<512x1152xbf16, #tpu.memory_space<vmem>>, vector<512x128xbf16>
    tpu.vector_store %arg9[%c0_28, %c0_29], %13 {strides = array<i32>} : memref<512x1152xbf16, #tpu.memory_space<vmem>>, vector<512x128xbf16>,
    %15 = vector.extract_strided_slice %11 {offsets = [0, 0, 1, 0], sizes = [2, 16, 16, 128], strides = [1, 1, 1, 1]} : vector<2x18x18x128xbf16> to vector<2x16x16x128xbf16>
    %16 = vector.shape_cast %15 : vector<2x16x16x128xbf16> to vector<512x128xbf16>
    %c0_30 = arith.constant 0 : index
    %c128 = arith.constant 128 : index
    %17 = vector.load %arg9[%c0_30, %c128] : memref<512x1152xbf16, #tpu.memory_space<vmem>>, vector<512x128xbf16>
    tpu.vector_store %arg9[%c0_30, %c128], %16 {strides = array<i32>} : memref<512x1152xbf16, #tpu.memory_space<vmem>>, vector<512x128xbf16>,
    %18 = vector.extract_strided_slice %11 {offsets = [0, 0, 2, 0], sizes = [2, 16, 16, 128], strides = [1, 1, 1, 1]} : vector<2x18x18x128xbf16> to vector<2x16x16x128xbf16>
    %19 = vector.shape_cast %18 : vector<2x16x16x128xbf16> to vector<512x128xbf16>
    %c0_31 = arith.constant 0 : index
    %c256 = arith.constant 256 : index
    %20 = vector.load %arg9[%c0_31, %c256] : memref<512x1152xbf16, #tpu.memory_space<vmem>>, vector<512x128xbf16>
    tpu.vector_store %arg9[%c0_31, %c256], %19 {strides = array<i32>} : memref<512x1152xbf16, #tpu.memory_space<vmem>>, vector<512x128xbf16>,
    %21 = vector.extract_strided_slice %11 {offsets = [0, 1, 0, 0], sizes = [2, 16, 16, 128], strides = [1, 1, 1, 1]} : vector<2x18x18x128xbf16> to vector<2x16x16x128xbf16>
    %22 = vector.shape_cast %21 : vector<2x16x16x128xbf16> to vector<512x128xbf16>
    %c0_32 = arith.constant 0 : index
    %c384 = arith.constant 384 : index
    %23 = vector.load %arg9[%c0_32, %c384] : memref<512x1152xbf16, #tpu.memory_space<vmem>>, vector<512x128xbf16>
    tpu.vector_store %arg9[%c0_32, %c384], %22 {strides = array<i32>} : memref<512x1152xbf16, #tpu.memory_space<vmem>>, vector<512x128xbf16>,
    %24 = vector.extract_strided_slice %11 {offsets = [0, 1, 1, 0], sizes = [2, 16, 16, 128], strides = [1, 1, 1, 1]} : vector<2x18x18x128xbf16> to vector<2x16x16x128xbf16>
    %25 = vector.shape_cast %24 : vector<2x16x16x128xbf16> to vector<512x128xbf16>
    %c0_33 = arith.constant 0 : index
    %c512 = arith.constant 512 : index
    %26 = vector.load %arg9[%c0_33, %c512] : memref<512x1152xbf16, #tpu.memory_space<vmem>>, vector<512x128xbf16>
    tpu.vector_store %arg9[%c0_33, %c512], %25 {strides = array<i32>} : memref<512x1152xbf16, #tpu.memory_space<vmem>>, vector<512x128xbf16>,
    %27 = vector.extract_strided_slice %11 {offsets = [0, 1, 2, 0], sizes = [2, 16, 16, 128], strides = [1, 1, 1, 1]} : vector<2x18x18x128xbf16> to vector<2x16x16x128xbf16>
    %28 = vector.shape_cast %27 : vector<2x16x16x128xbf16> to vector<512x128xbf16>
    %c0_34 = arith.constant 0 : index
    %c640 = arith.constant 640 : index
    %29 = vector.load %arg9[%c0_34, %c640] : memref<512x1152xbf16, #tpu.memory_space<vmem>>, vector<512x128xbf16>
    tpu.vector_store %arg9[%c0_34, %c640], %28 {strides = array<i32>} : memref<512x1152xbf16, #tpu.memory_space<vmem>>, vector<512x128xbf16>,
    %30 = vector.extract_strided_slice %11 {offsets = [0, 2, 0, 0], sizes = [2, 16, 16, 128], strides = [1, 1, 1, 1]} : vector<2x18x18x128xbf16> to vector<2x16x16x128xbf16>
    %31 = vector.shape_cast %30 : vector<2x16x16x128xbf16> to vector<512x128xbf16>
    %c0_35 = arith.constant 0 : index
    %c768 = arith.constant 768 : index
    %32 = vector.load %arg9[%c0_35, %c768] : memref<512x1152xbf16, #tpu.memory_space<vmem>>, vector<512x128xbf16>
    tpu.vector_store %arg9[%c0_35, %c768], %31 {strides = array<i32>} : memref<512x1152xbf16, #tpu.memory_space<vmem>>, vector<512x128xbf16>,
    %33 = vector.extract_strided_slice %11 {offsets = [0, 2, 1, 0], sizes = [2, 16, 16, 128], strides = [1, 1, 1, 1]} : vector<2x18x18x128xbf16> to vector<2x16x16x128xbf16>
    %34 = vector.shape_cast %33 : vector<2x16x16x128xbf16> to vector<512x128xbf16>
    %c0_36 = arith.constant 0 : index
    %c896 = arith.constant 896 : index
    %35 = vector.load %arg9[%c0_36, %c896] : memref<512x1152xbf16, #tpu.memory_space<vmem>>, vector<512x128xbf16>
    tpu.vector_store %arg9[%c0_36, %c896], %34 {strides = array<i32>} : memref<512x1152xbf16, #tpu.memory_space<vmem>>, vector<512x128xbf16>,
    %36 = vector.extract_strided_slice %11 {offsets = [0, 2, 2, 0], sizes = [2, 16, 16, 128], strides = [1, 1, 1, 1]} : vector<2x18x18x128xbf16> to vector<2x16x16x128xbf16>
    %37 = vector.shape_cast %36 : vector<2x16x16x128xbf16> to vector<512x128xbf16>
    %c0_37 = arith.constant 0 : index
    %c1024 = arith.constant 1024 : index
    %38 = vector.load %arg9[%c0_37, %c1024] : memref<512x1152xbf16, #tpu.memory_space<vmem>>, vector<512x128xbf16>
    tpu.vector_store %arg9[%c0_37, %c1024], %37 {strides = array<i32>} : memref<512x1152xbf16, #tpu.memory_space<vmem>>, vector<512x128xbf16>,
    %c0_38 = arith.constant 0 : index
    %c0_39 = arith.constant 0 : index
    %39 = vector.load %arg9[%c0_38, %c0_39] : memref<512x1152xbf16, #tpu.memory_space<vmem>>, vector<512x1152xbf16>
    %c0_40 = arith.constant 0 : index
    %c0_41 = arith.constant 0 : index
    %40 = vector.load %arg1[%c0_40, %c0_41] : memref<1152x128xbf16, #tpu.memory_space<vmem>>, vector<1152x128xbf16>
    %cst_42 = arith.constant dense<0.000000e+00> : vector<512x128xf32>
    %41 = tpu.matmul %39, %40, %cst_42 {dimension_numbers = #tpu.dot_dimension_numbers<[1], [0], [0], [1], [0, 0, 1, 1], [], []>} : vector<512x1152xbf16>, vector<1152x128xbf16>, vector<512x128xf32> -> vector<512x128xf32>
    %cst_43 = arith.constant dense<0.000000e+00> : vector<128xf32>
    %42 = vector.multi_reduction <add>, %41, %cst_43 [0] : vector<512x128xf32> to vector<128xf32>
    %43 = vector.shape_cast %42 : vector<128xf32> to vector<1x128xf32>
    %cst_44 = arith.constant 5.120000e+02 : f32
    %44 = vector.broadcast %cst_44 : f32 to vector<1x128xf32>
    %45 = arith.divf %43, %44 : vector<1x128xf32>
    %46 = arith.mulf %41, %41 : vector<512x128xf32>
    %cst_45 = arith.constant dense<0.000000e+00> : vector<128xf32>
    %47 = vector.multi_reduction <add>, %46, %cst_45 [0] : vector<512x128xf32> to vector<128xf32>
    %48 = vector.shape_cast %47 : vector<128xf32> to vector<1x128xf32>
    %cst_46 = arith.constant 5.120000e+02 : f32
    %49 = vector.broadcast %cst_46 : f32 to vector<1x128xf32>
    %50 = arith.divf %48, %49 : vector<1x128xf32>
    %51 = arith.mulf %45, %45 : vector<1x128xf32>
    %52 = arith.subf %50, %51 : vector<1x128xf32>
    %cst_47 = arith.constant 9.99999974E-6 : f32
    %53 = vector.broadcast %cst_47 : f32 to vector<1x128xf32>
    %54 = arith.addf %52, %53 : vector<1x128xf32>
    %55 = math.rsqrt %54 : vector<1x128xf32>
    %c0_48 = arith.constant 0 : index
    %c0_49 = arith.constant 0 : index
    %56 = vector.load %arg2[%c0_48, %c0_49] : memref<1x128xf32, #tpu.memory_space<vmem>>, vector<1x128xf32>
    %57 = arith.mulf %55, %56 : vector<1x128xf32>
    %58 = vector.broadcast %57 : vector<1x128xf32> to vector<512x128xf32>
    %59 = arith.mulf %41, %58 : vector<512x128xf32>
    %c0_50 = arith.constant 0 : index
    %c0_51 = arith.constant 0 : index
    %60 = vector.load %arg3[%c0_50, %c0_51] : memref<1x128xf32, #tpu.memory_space<vmem>>, vector<1x128xf32>
    %61 = arith.mulf %45, %57 : vector<1x128xf32>
    %62 = arith.subf %60, %61 : vector<1x128xf32>
    %63 = vector.broadcast %62 : vector<1x128xf32> to vector<512x128xf32>
    %64 = arith.addf %59, %63 : vector<512x128xf32>
    %cst_52 = arith.constant 0.000000e+00 : f32
    %65 = vector.broadcast %cst_52 : f32 to vector<512x128xf32>
    %66 = arith.maximumf %64, %65 : vector<512x128xf32>
    %67 = vector.shape_cast %66 : vector<512x128xf32> to vector<2x16x16x128xf32>
    %68 = arith.truncf %67 : vector<2x16x16x128xf32> to vector<2x16x16x128xbf16>
    %c0_53 = arith.constant 0 : index
    %c1_54 = arith.constant 1 : index
    %c1_55 = arith.constant 1 : index
    %c0_56 = arith.constant 0 : index
    %69 = vector.load %arg8[%c0_53, %c1_54, %c1_55, %c0_56] : memref<2x18x18x128xbf16, #tpu.memory_space<vmem>>, vector<2x16x16x128xbf16>
    tpu.vector_store %arg8[%c0_53, %c1_54, %c1_55, %c0_56], %68 {strides = array<i32>} : memref<2x18x18x128xbf16, #tpu.memory_space<vmem>>, vector<2x16x16x128xbf16>,
    %c0_57 = arith.constant 0 : index
    %c0_58 = arith.constant 0 : index
    %c0_59 = arith.constant 0 : index
    %c0_60 = arith.constant 0 : index
    %70 = vector.load %arg8[%c0_57, %c0_58, %c0_59, %c0_60] : memref<2x18x18x128xbf16, #tpu.memory_space<vmem>>, vector<2x18x18x128xbf16>
    %71 = vector.extract_strided_slice %70 {offsets = [0, 0, 0, 0], sizes = [2, 16, 16, 128], strides = [1, 1, 1, 1]} : vector<2x18x18x128xbf16> to vector<2x16x16x128xbf16>
    %72 = vector.shape_cast %71 : vector<2x16x16x128xbf16> to vector<512x128xbf16>
    %c0_61 = arith.constant 0 : index
    %c0_62 = arith.constant 0 : index
    %73 = vector.load %arg9[%c0_61, %c0_62] : memref<512x1152xbf16, #tpu.memory_space<vmem>>, vector<512x128xbf16>
    tpu.vector_store %arg9[%c0_61, %c0_62], %72 {strides = array<i32>} : memref<512x1152xbf16, #tpu.memory_space<vmem>>, vector<512x128xbf16>,
    %74 = vector.extract_strided_slice %70 {offsets = [0, 0, 1, 0], sizes = [2, 16, 16, 128], strides = [1, 1, 1, 1]} : vector<2x18x18x128xbf16> to vector<2x16x16x128xbf16>
    %75 = vector.shape_cast %74 : vector<2x16x16x128xbf16> to vector<512x128xbf16>
    %c0_63 = arith.constant 0 : index
    %c128_64 = arith.constant 128 : index
    %76 = vector.load %arg9[%c0_63, %c128_64] : memref<512x1152xbf16, #tpu.memory_space<vmem>>, vector<512x128xbf16>
    tpu.vector_store %arg9[%c0_63, %c128_64], %75 {strides = array<i32>} : memref<512x1152xbf16, #tpu.memory_space<vmem>>, vector<512x128xbf16>,
    %77 = vector.extract_strided_slice %70 {offsets = [0, 0, 2, 0], sizes = [2, 16, 16, 128], strides = [1, 1, 1, 1]} : vector<2x18x18x128xbf16> to vector<2x16x16x128xbf16>
    %78 = vector.shape_cast %77 : vector<2x16x16x128xbf16> to vector<512x128xbf16>
    %c0_65 = arith.constant 0 : index
    %c256_66 = arith.constant 256 : index
    %79 = vector.load %arg9[%c0_65, %c256_66] : memref<512x1152xbf16, #tpu.memory_space<vmem>>, vector<512x128xbf16>
    tpu.vector_store %arg9[%c0_65, %c256_66], %78 {strides = array<i32>} : memref<512x1152xbf16, #tpu.memory_space<vmem>>, vector<512x128xbf16>,
    %80 = vector.extract_strided_slice %70 {offsets = [0, 1, 0, 0], sizes = [2, 16, 16, 128], strides = [1, 1, 1, 1]} : vector<2x18x18x128xbf16> to vector<2x16x16x128xbf16>
    %81 = vector.shape_cast %80 : vector<2x16x16x128xbf16> to vector<512x128xbf16>
    %c0_67 = arith.constant 0 : index
    %c384_68 = arith.constant 384 : index
    %82 = vector.load %arg9[%c0_67, %c384_68] : memref<512x1152xbf16, #tpu.memory_space<vmem>>, vector<512x128xbf16>
    tpu.vector_store %arg9[%c0_67, %c384_68], %81 {strides = array<i32>} : memref<512x1152xbf16, #tpu.memory_space<vmem>>, vector<512x128xbf16>,
    %83 = vector.extract_strided_slice %70 {offsets = [0, 1, 1, 0], sizes = [2, 16, 16, 128], strides = [1, 1, 1, 1]} : vector<2x18x18x128xbf16> to vector<2x16x16x128xbf16>
    %84 = vector.shape_cast %83 : vector<2x16x16x128xbf16> to vector<512x128xbf16>
    %c0_69 = arith.constant 0 : index
    %c512_70 = arith.constant 512 : index
    %85 = vector.load %arg9[%c0_69, %c512_70] : memref<512x1152xbf16, #tpu.memory_space<vmem>>, vector<512x128xbf16>
    tpu.vector_store %arg9[%c0_69, %c512_70], %84 {strides = array<i32>} : memref<512x1152xbf16, #tpu.memory_space<vmem>>, vector<512x128xbf16>,
    %86 = vector.extract_strided_slice %70 {offsets = [0, 1, 2, 0], sizes = [2, 16, 16, 128], strides = [1, 1, 1, 1]} : vector<2x18x18x128xbf16> to vector<2x16x16x128xbf16>
    %87 = vector.shape_cast %86 : vector<2x16x16x128xbf16> to vector<512x128xbf16>
    %c0_71 = arith.constant 0 : index
    %c640_72 = arith.constant 640 : index
    %88 = vector.load %arg9[%c0_71, %c640_72] : memref<512x1152xbf16, #tpu.memory_space<vmem>>, vector<512x128xbf16>
    tpu.vector_store %arg9[%c0_71, %c640_72], %87 {strides = array<i32>} : memref<512x1152xbf16, #tpu.memory_space<vmem>>, vector<512x128xbf16>,
    %89 = vector.extract_strided_slice %70 {offsets = [0, 2, 0, 0], sizes = [2, 16, 16, 128], strides = [1, 1, 1, 1]} : vector<2x18x18x128xbf16> to vector<2x16x16x128xbf16>
    %90 = vector.shape_cast %89 : vector<2x16x16x128xbf16> to vector<512x128xbf16>
    %c0_73 = arith.constant 0 : index
    %c768_74 = arith.constant 768 : index
    %91 = vector.load %arg9[%c0_73, %c768_74] : memref<512x1152xbf16, #tpu.memory_space<vmem>>, vector<512x128xbf16>
    tpu.vector_store %arg9[%c0_73, %c768_74], %90 {strides = array<i32>} : memref<512x1152xbf16, #tpu.memory_space<vmem>>, vector<512x128xbf16>,
    %92 = vector.extract_strided_slice %70 {offsets = [0, 2, 1, 0], sizes = [2, 16, 16, 128], strides = [1, 1, 1, 1]} : vector<2x18x18x128xbf16> to vector<2x16x16x128xbf16>
    %93 = vector.shape_cast %92 : vector<2x16x16x128xbf16> to vector<512x128xbf16>
    %c0_75 = arith.constant 0 : index
    %c896_76 = arith.constant 896 : index
    %94 = vector.load %arg9[%c0_75, %c896_76] : memref<512x1152xbf16, #tpu.memory_space<vmem>>, vector<512x128xbf16>
    tpu.vector_store %arg9[%c0_75, %c896_76], %93 {strides = array<i32>} : memref<512x1152xbf16, #tpu.memory_space<vmem>>, vector<512x128xbf16>,
    %95 = vector.extract_strided_slice %70 {offsets = [0, 2, 2, 0], sizes = [2, 16, 16, 128], strides = [1, 1, 1, 1]} : vector<2x18x18x128xbf16> to vector<2x16x16x128xbf16>
    %96 = vector.shape_cast %95 : vector<2x16x16x128xbf16> to vector<512x128xbf16>
    %c0_77 = arith.constant 0 : index
    %c1024_78 = arith.constant 1024 : index
    %97 = vector.load %arg9[%c0_77, %c1024_78] : memref<512x1152xbf16, #tpu.memory_space<vmem>>, vector<512x128xbf16>
    tpu.vector_store %arg9[%c0_77, %c1024_78], %96 {strides = array<i32>} : memref<512x1152xbf16, #tpu.memory_space<vmem>>, vector<512x128xbf16>,
    %c0_79 = arith.constant 0 : index
    %c0_80 = arith.constant 0 : index
    %98 = vector.load %arg9[%c0_79, %c0_80] : memref<512x1152xbf16, #tpu.memory_space<vmem>>, vector<512x1152xbf16>
    %c0_81 = arith.constant 0 : index
    %c0_82 = arith.constant 0 : index
    %99 = vector.load %arg4[%c0_81, %c0_82] : memref<1152x128xbf16, #tpu.memory_space<vmem>>, vector<1152x128xbf16>
    %cst_83 = arith.constant dense<0.000000e+00> : vector<512x128xf32>
    %100 = tpu.matmul %98, %99, %cst_83 {dimension_numbers = #tpu.dot_dimension_numbers<[1], [0], [0], [1], [0, 0, 1, 1], [], []>} : vector<512x1152xbf16>, vector<1152x128xbf16>, vector<512x128xf32> -> vector<512x128xf32>
    %cst_84 = arith.constant dense<0.000000e+00> : vector<128xf32>
    %101 = vector.multi_reduction <add>, %100, %cst_84 [0] : vector<512x128xf32> to vector<128xf32>
    %102 = vector.shape_cast %101 : vector<128xf32> to vector<1x128xf32>
    %cst_85 = arith.constant 5.120000e+02 : f32
    %103 = vector.broadcast %cst_85 : f32 to vector<1x128xf32>
    %104 = arith.divf %102, %103 : vector<1x128xf32>
    %105 = arith.mulf %100, %100 : vector<512x128xf32>
    %cst_86 = arith.constant dense<0.000000e+00> : vector<128xf32>
    %106 = vector.multi_reduction <add>, %105, %cst_86 [0] : vector<512x128xf32> to vector<128xf32>
    %107 = vector.shape_cast %106 : vector<128xf32> to vector<1x128xf32>
    %cst_87 = arith.constant 5.120000e+02 : f32
    %108 = vector.broadcast %cst_87 : f32 to vector<1x128xf32>
    %109 = arith.divf %107, %108 : vector<1x128xf32>
    %110 = arith.mulf %104, %104 : vector<1x128xf32>
    %111 = arith.subf %109, %110 : vector<1x128xf32>
    %cst_88 = arith.constant 9.99999974E-6 : f32
    %112 = vector.broadcast %cst_88 : f32 to vector<1x128xf32>
    %113 = arith.addf %111, %112 : vector<1x128xf32>
    %114 = math.rsqrt %113 : vector<1x128xf32>
    %c0_89 = arith.constant 0 : index
    %c0_90 = arith.constant 0 : index
    %115 = vector.load %arg5[%c0_89, %c0_90] : memref<1x128xf32, #tpu.memory_space<vmem>>, vector<1x128xf32>
    %116 = arith.mulf %114, %115 : vector<1x128xf32>
    %117 = vector.broadcast %116 : vector<1x128xf32> to vector<512x128xf32>
    %118 = arith.mulf %100, %117 : vector<512x128xf32>
    %c0_91 = arith.constant 0 : index
    %c0_92 = arith.constant 0 : index
    %119 = vector.load %arg6[%c0_91, %c0_92] : memref<1x128xf32, #tpu.memory_space<vmem>>, vector<1x128xf32>
    %120 = arith.mulf %104, %116 : vector<1x128xf32>
    %121 = arith.subf %119, %120 : vector<1x128xf32>
    %122 = vector.broadcast %121 : vector<1x128xf32> to vector<512x128xf32>
    %123 = arith.addf %118, %122 : vector<512x128xf32>
    %c0_93 = arith.constant 0 : index
    %c0_94 = arith.constant 0 : index
    %c0_95 = arith.constant 0 : index
    %c0_96 = arith.constant 0 : index
    %124 = vector.load %arg0[%c0_93, %c0_94, %c0_95, %c0_96] : memref<2x16x16x128xf32, #tpu.memory_space<vmem>>, vector<2x16x16x128xf32>
    %125 = vector.shape_cast %124 : vector<2x16x16x128xf32> to vector<512x128xf32>
    %126 = arith.addf %123, %125 : vector<512x128xf32>
    %cst_97 = arith.constant 0.000000e+00 : f32
    %127 = vector.broadcast %cst_97 : f32 to vector<512x128xf32>
    %128 = arith.maximumf %126, %127 : vector<512x128xf32>
    %c0_98 = arith.constant 0 : index
    %c0_99 = arith.constant 0 : index
    %129 = vector.load %arg7[%c0_98, %c0_99] : memref<512x128xf32, #tpu.memory_space<vmem>>, vector<512x128xf32>
    tpu.vector_store %arg7[%c0_98, %c0_99], %128 {strides = array<i32>} : memref<512x128xf32, #tpu.memory_space<vmem>>, vector<512x128xf32>,
    return
  }
}

</mosaic_0001>

<llo_original>
// kernel: tpu_custom_call.1
$region0: #{tpu_custom_call.1}
  #allocation0 [shape = 'u32[]', space=smem, size = 0x4, offset = 0x4, fixed_abs, tag = 'smem constant byte address 0x4 - core index']
  #allocation1 [shape = 'u32[144,128]{1,0:T(1,128)}', space=vmem, size = 0x12000, scoped, tag = 'internal scratch']
  #allocation2 [shape = 'bf16[2,18,18,128]{3,2,1,0:T(8,128)(2,1)}', space=vmem, size = 0x36000, scoped, tag = 'scratch operand']
  #allocation3 [shape = 'bf16[512,1152]{1,0:T(16,128)(2,1)}', space=vmem, size = 0x120000, scoped, tag = 'scratch operand']
  %s0 = inlined_call_operand.hbm [shape: f32[2,16,16,128], index: 0, kind: input, shape index: {}]
  %s1 = inlined_call_operand.hbm [shape: bf16[1152,128], index: 1, kind: input, shape index: {}]
  %s2 = inlined_call_operand.vmem [shape: f32[1,128], index: 2, kind: input, shape index: {}]
  %s3 = inlined_call_operand.vmem [shape: f32[1,128], index: 3, kind: input, shape index: {}]
  %s4 = inlined_call_operand.hbm [shape: bf16[1152,128], index: 4, kind: input, shape index: {}]
  %s5 = inlined_call_operand.vmem [shape: f32[1,128], index: 5, kind: input, shape index: {}]
  %s6 = inlined_call_operand.vmem [shape: f32[1,128], index: 6, kind: input, shape index: {}]
  %s7 = inlined_call_operand.hbm [shape: f32[512,128], index: 7, kind: output, shape index: {}]
  %s8 = sld [smem:[#allocation0]]
  $region50: #{tpu_custom_call.1} parent=0
    _
  %s10 = ssub.s32 1, %s8
  %s11 = scalar_select 0, %s10, %s8
  $region1: #{tpu_custom_call.1} parent=0
    #allocation4 [shape = 'u8[262144]{0}', space=vmem, size = 0x40000, scoped, tag = 'input window, operand 0, single buffered']
    #allocation5 [shape = 's32[1]{0}', space=sflag, size = 0x4, scoped, tag = 'scoped memory for tpu_custom_call.1']
    #allocation6 [shape = 's32[1]{0}', space=sflag, size = 0x4, scoped, tag = 'scoped memory for tpu_custom_call.1']
    #allocation7 [shape = 'u8[294912]{0}', space=vmem, size = 0x48000, scoped, tag = 'input window, operand 1, single buffered']
    #allocation8 [shape = 's32[1]{0}', space=sflag, size = 0x4, scoped, tag = 'scoped memory for tpu_custom_call.1']
    #allocation9 [shape = 'u8[294912]{0}', space=vmem, size = 0x48000, scoped, tag = 'input window, operand 4, single buffered']
    #allocation10 [shape = 'u8[262144]{0}', space=vmem, size = 0x40000, scoped, tag = 'output window, operand 0, single buffered']
    %12 = vsyncpa [#allocation5], 0
    %13 = vsyncpa [#allocation8], 0
    %14 = vsyncpa [#allocation6], 0
    // Predicated region
    $region2: #{tpu_custom_call.1} parent=1 // pred_check
      _
    $region3: #{tpu_custom_call.1} parent=1 // pred_check_branch
      %16 = sbr.rel (0) target = $region5
    $region4: #{tpu_custom_call.1} parent=1 // pred_region
      %s18 = ssub.s32 8192, 8192
      %19 = vsyncadd [#allocation5], %s18
      %s20 = sshll.u32 [#allocation4], 4
      %s21 = int_to_ptr.vmem [resolvable:$true] %s20
      %26 = dma.hbm_to_vmem [thread:$0]  %s0, 8192, %s21, [#allocation5], 128, 128, 8
    $region5: #{tpu_custom_call.1} parent=1 // pred_fallthru
      _
    // Predicated region
    $region6: #{tpu_custom_call.1} parent=1 // pred_check
      _
    $region7: #{tpu_custom_call.1} parent=1 // pred_check_branch
      %28 = sbr.rel (0) target = $region9
    $region8: #{tpu_custom_call.1} parent=1 // pred_region
      %s30 = ssub.s32 9216, 9216
      %31 = vsyncadd [#allocation8], %s30
      %s32 = sshll.u32 [#allocation7], 4
      %s33 = int_to_ptr.vmem [resolvable:$true] %s32
      %38 = dma.hbm_to_vmem [thread:$0]  %s1, 9216, %s33, [#allocation8], 64, 64, 4
    $region9: #{tpu_custom_call.1} parent=1 // pred_fallthru
      _
    // Predicated region
    $region10: #{tpu_custom_call.1} parent=1 // pred_check
      _
    $region11: #{tpu_custom_call.1} parent=1 // pred_check_branch
      %40 = sbr.rel (0) target = $region13
    $region12: #{tpu_custom_call.1} parent=1 // pred_region
      _
    $region13: #{tpu_custom_call.1} parent=1 // pred_fallthru
      _
    // Predicated region
    $region14: #{tpu_custom_call.1} parent=1 // pred_check
      _
    $region15: #{tpu_custom_call.1} parent=1 // pred_check_branch
      %42 = sbr.rel (0) target = $region17
    $region16: #{tpu_custom_call.1} parent=1 // pred_region
      _
    $region17: #{tpu_custom_call.1} parent=1 // pred_fallthru
      _
    // Predicated region
    $region18: #{tpu_custom_call.1} parent=1 // pred_check
      _
    $region19: #{tpu_custom_call.1} parent=1 // pred_check_branch
      %44 = sbr.rel (0) target = $region21
    $region20: #{tpu_custom_call.1} parent=1 // pred_region
      %s46 = ssub.s32 9216, 9216
      %47 = vsyncadd [#allocation8], %s46
      %s48 = sshll.u32 [#allocation9], 4
      %s49 = int_to_ptr.vmem [resolvable:$true] %s48
      %54 = dma.hbm_to_vmem [thread:$0]  %s4, 9216, %s49, [#allocation8], 64, 64, 4
    $region21: #{tpu_custom_call.1} parent=1 // pred_fallthru
      _
    // Predicated region
    $region22: #{tpu_custom_call.1} parent=1 // pred_check
      _
    $region23: #{tpu_custom_call.1} parent=1 // pred_check_branch
      %56 = sbr.rel (0) target = $region25
    $region24: #{tpu_custom_call.1} parent=1 // pred_region
      _
    $region25: #{tpu_custom_call.1} parent=1 // pred_fallthru
      _
    // Predicated region
    $region26: #{tpu_custom_call.1} parent=1 // pred_check
      _
    $region27: #{tpu_custom_call.1} parent=1 // pred_check_branch
      %58 = sbr.rel (0) target = $region29
    $region28: #{tpu_custom_call.1} parent=1 // pred_region
      _
    $region29: #{tpu_custom_call.1} parent=1 // pred_fallthru
      _
    // Predicated region
    $region30: #{tpu_custom_call.1} parent=1 // pred_check
      _
    $region31: #{tpu_custom_call.1} parent=1 // pred_check_branch
      %60 = sbr.rel (0) target = $region33
    $region32: #{tpu_custom_call.1} parent=1 // pred_region
      %61 = dma.done [#allocation5], 8192
    $region33: #{tpu_custom_call.1} parent=1 // pred_fallthru
      _
    // Predicated region
    $region34: #{tpu_custom_call.1} parent=1 // pred_check
      _
    $region35: #{tpu_custom_call.1} parent=1 // pred_check_branch
      %63 = sbr.rel (0) target = $region37
    $region36: #{tpu_custom_call.1} parent=1 // pred_region
      %64 = dma.done [#allocation8], 9216
    $region37: #{tpu_custom_call.1} parent=1 // pred_fallthru
      _
    // Predicated region
    $region38: #{tpu_custom_call.1} parent=1 // pred_check
      _
    $region39: #{tpu_custom_call.1} parent=1 // pred_check_branch
      %66 = sbr.rel (0) target = $region41
    $region40: #{tpu_custom_call.1} parent=1 // pred_region
      %67 = dma.done [#allocation8], 9216
    $region41: #{tpu_custom_call.1} parent=1 // pred_fallthru
      _
    %69 = vst [vmem:[#allocation2] sm:$0xf] 0
    %70 = vst [vmem:[#allocation2 + $0x4] sm:$0xf] 0
    %71 = vst [vmem:[#allocation2 + $0x8] sm:$0x1] 0
    %72 = vst [vmem:[#allocation2 + $0xd8] sm:$0xf] 0
    %73 = vst [vmem:[#allocation2 + $0xdc] sm:$0xf] 0
    %74 = vst [vmem:[#allocation2 + $0xe0] sm:$0x1] 0
    %s75 = scalar_lea.vmem [#allocation2], 204
    %76 = vst [vmem:[%s75] sm:$0xf] 0
    %77 = vst [vmem:[%s75 + $0x4] sm:$0xf] 0
    %78 = vst [vmem:[%s75 + $0x8] sm:$0x1] 0
    %79 = vst [vmem:[%s75 + $0xd8] sm:$0xf] 0
    %80 = vst [vmem:[%s75 + $0xdc] sm:$0xf] 0
    %81 = vst [vmem:[%s75 + $0xe0] sm:$0x1] 0
    %vm82 = vcmask 1040384
    %vm83 = vsmask.f32 256
    %vm84 = vmand %vm82, %vm83
    %v85 = vld [vmem:[#allocation2] sm:$0x1]
    %v86 = vsel %vm84, 0, %v85
    %87 = vst [vmem:[#allocation2] sm:$0x1] %v86
    %v88 = vld [vmem:[#allocation2 + $0xc] sm:$0x1]
    %v89 = vsel %vm84, 0, %v88
    %90 = vst [vmem:[#allocation2 + $0xc] sm:$0x1] %v89
    %v91 = vld [vmem:[#allocation2 + $0x18] sm:$0x1]
    %v92 = vsel %vm84, 0, %v91
    %93 = vst [vmem:[#allocation2 + $0x18] sm:$0x1] %v92
    %v94 = vld [vmem:[#allocation2 + $0x24] sm:$0x1]
    %v95 = vsel %vm84, 0, %v94
    %96 = vst [vmem:[#allocation2 + $0x24] sm:$0x1] %v95
    %v97 = vld [vmem:[#allocation2 + $0x30] sm:$0x1]
    %v98 = vsel %vm84, 0, %v97
    %99 = vst [vmem:[#allocation2 + $0x30] sm:$0x1] %v98
    %v100 = vld [vmem:[#allocation2 + $0x3c] sm:$0x1]
    %v101 = vsel %vm84, 0, %v100
    %102 = vst [vmem:[#allocation2 + $0x3c] sm:$0x1] %v101
    %v103 = vld [vmem:[#allocation2 + $0x48] sm:$0x1]
    %v104 = vsel %vm84, 0, %v103
    %105 = vst [vmem:[#allocation2 + $0x48] sm:$0x1] %v104
    %v106 = vld [vmem:[#allocation2 + $0x54] sm:$0x1]
    %v107 = vsel %vm84, 0, %v106
    %108 = vst [vmem:[#allocation2 + $0x54] sm:$0x1] %v107
    %v109 = vld [vmem:[#allocation2 + $0x60] sm:$0x1]
    %v110 = vsel %vm84, 0, %v109
    %111 = vst [vmem:[#allocation2 + $0x60] sm:$0x1] %v110
    %v112 = vld [vmem:[#allocation2 + $0x6c] sm:$0x1]
    %v113 = vsel %vm84, 0, %v112
    %114 = vst [vmem:[#allocation2 + $0x6c] sm:$0x1] %v113
    %v115 = vld [vmem:[#allocation2 + $0x78] sm:$0x1]
    %v116 = vsel %vm84, 0, %v115
    %117 = vst [vmem:[#allocation2 + $0x78] sm:$0x1] %v116
    %v118 = vld [vmem:[#allocation2 + $0x84] sm:$0x1]
    %v119 = vsel %vm84, 0, %v118
    %120 = vst [vmem:[#allocation2 + $0x84] sm:$0x1] %v119
    %v121 = vld [vmem:[#allocation2 + $0x90] sm:$0x1]
    %v122 = vsel %vm84, 0, %v121
    %123 = vst [vmem:[#allocation2 + $0x90] sm:$0x1] %v122
    %v124 = vld [vmem:[#allocation2 + $0x9c] sm:$0x1]
    %v125 = vsel %vm84, 0, %v124
    %126 = vst [vmem:[#allocation2 + $0x9c] sm:$0x1] %v125
    %v127 = vld [vmem:[#allocation2 + $0xa8] sm:$0x1]
    %v128 = vsel %vm84, 0, %v127
    %129 = vst [vmem:[#allocation2 + $0xa8] sm:$0x1] %v128
    %v130 = vld [vmem:[#allocation2 + $0xb4] sm:$0x1]
    %v131 = vsel %vm84, 0, %v130
    %132 = vst [vmem:[#allocation2 + $0xb4] sm:$0x1] %v131
    %v133 = vld [vmem:[#allocation2 + $0xc0] sm:$0x1]
    %v134 = vsel %vm84, 0, %v133
    %135 = vst [vmem:[#allocation2 + $0xc0] sm:$0x1] %v134
    %v136 = vld [vmem:[#allocation2 + $0xcc] sm:$0x1]
    %v137 = vsel %vm84, 0, %v136
    %138 = vst [vmem:[#allocation2 + $0xcc] sm:$0x1] %v137
    %v139 = vld [vmem:[#allocation2 + $0xd8] sm:$0x1]
    %v140 = vsel %vm84, 0, %v139
    %141 = vst [vmem:[#allocation2 + $0xd8] sm:$0x1] %v140
    %v142 = vld [vmem:[#allocation2 + $0xe4] sm:$0x1]
    %v143 = vsel %vm84, 0, %v142
    %144 = vst [vmem:[#allocation2 + $0xe4] sm:$0x1] %v143
    %v145 = vld [vmem:[#allocation2 + $0xf0] sm:$0x1]
    %v146 = vsel %vm84, 0, %v145
    %147 = vst [vmem:[#allocation2 + $0xf0] sm:$0x1] %v146
    %v148 = vld [vmem:[#allocation2 + $0xfc] sm:$0x1]
    %v149 = vsel %vm84, 0, %v148
    %150 = vst [vmem:[#allocation2 + $0xfc] sm:$0x1] %v149
    %v151 = vld [vmem:[#allocation2 + $0x108] sm:$0x1]
    %v152 = vsel %vm84, 0, %v151
    %153 = vst [vmem:[#allocation2 + $0x108] sm:$0x1] %v152
    %v154 = vld [vmem:[#allocation2 + $0x114] sm:$0x1]
    %v155 = vsel %vm84, 0, %v154
    %156 = vst [vmem:[#allocation2 + $0x114] sm:$0x1] %v155
    %v157 = vld [vmem:[#allocation2 + $0x120] sm:$0x1]
    %v158 = vsel %vm84, 0, %v157
    %159 = vst [vmem:[#allocation2 + $0x120] sm:$0x1] %v158
    %v160 = vld [vmem:[#allocation2 + $0x12c] sm:$0x1]
    %v161 = vsel %vm84, 0, %v160
    %162 = vst [vmem:[#allocation2 + $0x12c] sm:$0x1] %v161
    %v163 = vld [vmem:[#allocation2 + $0x138] sm:$0x1]
    %v164 = vsel %vm84, 0, %v163
    %165 = vst [vmem:[#allocation2 + $0x138] sm:$0x1] %v164
    %v166 = vld [vmem:[#allocation2 + $0x144] sm:$0x1]
    %v167 = vsel %vm84, 0, %v166
    %168 = vst [vmem:[#allocation2 + $0x144] sm:$0x1] %v167
    %v169 = vld [vmem:[#allocation2 + $0x150] sm:$0x1]
    %v170 = vsel %vm84, 0, %v169
    %171 = vst [vmem:[#allocation2 + $0x150] sm:$0x1] %v170
    %v172 = vld [vmem:[#allocation2 + $0x15c] sm:$0x1]
    %v173 = vsel %vm84, 0, %v172
    %174 = vst [vmem:[#allocation2 + $0x15c] sm:$0x1] %v173
    %v175 = vld [vmem:[#allocation2 + $0x168] sm:$0x1]
    %v176 = vsel %vm84, 0, %v175
    %177 = vst [vmem:[#allocation2 + $0x168] sm:$0x1] %v176
    %v178 = vld [vmem:[#allocation2 + $0x174] sm:$0x1]
    %v179 = vsel %vm84, 0, %v178
    %180 = vst [vmem:[#allocation2 + $0x174] sm:$0x1] %v179
    %v181 = vld [vmem:[#allocation2 + $0x180] sm:$0x1]
    %v182 = vsel %vm84, 0, %v181
    %183 = vst [vmem:[#allocation2 + $0x180] sm:$0x1] %v182
    %v184 = vld [vmem:[#allocation2 + $0x18c] sm:$0x1]
    %v185 = vsel %vm84, 0, %v184
    %186 = vst [vmem:[#allocation2 + $0x18c] sm:$0x1] %v185
    %v187 = vld [vmem:[#allocation2 + $0x198] sm:$0x1]
    %v188 = vsel %vm84, 0, %v187
    %189 = vst [vmem:[#allocation2 + $0x198] sm:$0x1] %v188
    %v190 = vld [vmem:[#allocation2 + $0x1a4] sm:$0x1]
    %v191 = vsel %vm84, 0, %v190
    %192 = vst [vmem:[#allocation2 + $0x1a4] sm:$0x1] %v191
    %vm193 = vsmask.f32 7938
    %vm194 = vmand %vm82, %vm193
    %v195 = vld [vmem:[#allocation2 + $0x8] sm:$0x1]
    %v196 = vsel %vm194, 0, %v195
    %197 = vst [vmem:[#allocation2 + $0x8] sm:$0x1] %v196
    %v198 = vld [vmem:[#allocation2 + $0x14] sm:$0x1]
    %v199 = vsel %vm194, 0, %v198
    %200 = vst [vmem:[#allocation2 + $0x14] sm:$0x1] %v199
    %v201 = vld [vmem:[#allocation2 + $0x20] sm:$0x1]
    %v202 = vsel %vm194, 0, %v201
    %203 = vst [vmem:[#allocation2 + $0x20] sm:$0x1] %v202
    %v204 = vld [vmem:[#allocation2 + $0x2c] sm:$0x1]
    %v205 = vsel %vm194, 0, %v204
    %206 = vst [vmem:[#allocation2 + $0x2c] sm:$0x1] %v205
    %v207 = vld [vmem:[#allocation2 + $0x38] sm:$0x1]
    %v208 = vsel %vm194, 0, %v207
    %209 = vst [vmem:[#allocation2 + $0x38] sm:$0x1] %v208
    %v210 = vld [vmem:[#allocation2 + $0x44] sm:$0x1]
    %v211 = vsel %vm194, 0, %v210
    %212 = vst [vmem:[#allocation2 + $0x44] sm:$0x1] %v211
    %v213 = vld [vmem:[#allocation2 + $0x50] sm:$0x1]
    %v214 = vsel %vm194, 0, %v213
    %215 = vst [vmem:[#allocation2 + $0x50] sm:$0x1] %v214
    %v216 = vld [vmem:[#allocation2 + $0x5c] sm:$0x1]
    %v217 = vsel %vm194, 0, %v216
    %218 = vst [vmem:[#allocation2 + $0x5c] sm:$0x1] %v217
    %v219 = vld [vmem:[#allocation2 + $0x68] sm:$0x1]
    %v220 = vsel %vm194, 0, %v219
    %221 = vst [vmem:[#allocation2 + $0x68] sm:$0x1] %v220
    %v222 = vld [vmem:[#allocation2 + $0x74] sm:$0x1]
    %v223 = vsel %vm194, 0, %v222
    %224 = vst [vmem:[#allocation2 + $0x74] sm:$0x1] %v223
    %v225 = vld [vmem:[#allocation2 + $0x80] sm:$0x1]
    %v226 = vsel %vm194, 0, %v225
    %227 = vst [vmem:[#allocation2 + $0x80] sm:$0x1] %v226
    %v228 = vld [vmem:[#allocation2 + $0x8c] sm:$0x1]
    %v229 = vsel %vm194, 0, %v228
    %230 = vst [vmem:[#allocation2 + $0x8c] sm:$0x1] %v229
    %v231 = vld [vmem:[#allocation2 + $0x98] sm:$0x1]
    %v232 = vsel %vm194, 0, %v231
    %233 = vst [vmem:[#allocation2 + $0x98] sm:$0x1] %v232
    %v234 = vld [vmem:[#allocation2 + $0xa4] sm:$0x1]
    %v235 = vsel %vm194, 0, %v234
    %236 = vst [vmem:[#allocation2 + $0xa4] sm:$0x1] %v235
    %v237 = vld [vmem:[#allocation2 + $0xb0] sm:$0x1]
    %v238 = vsel %vm194, 0, %v237
    %239 = vst [vmem:[#allocation2 + $0xb0] sm:$0x1] %v238
    %v240 = vld [vmem:[#allocation2 + $0xbc] sm:$0x1]
    %v241 = vsel %vm194, 0, %v240
    %242 = vst [vmem:[#allocation2 + $0xbc] sm:$0x1] %v241
    %v243 = vld [vmem:[#allocation2 + $0xc8] sm:$0x1]
    %v244 = vsel %vm194, 0, %v243
    %245 = vst [vmem:[#allocation2 + $0xc8] sm:$0x1] %v244
    %v246 = vld [vmem:[#allocation2 + $0xd4] sm:$0x1]
    %v247 = vsel %vm194, 0, %v246
    %248 = vst [vmem:[#allocation2 + $0xd4] sm:$0x1] %v247
    %v249 = vld [vmem:[#allocation2 + $0xe0] sm:$0x1]
    %v250 = vsel %vm194, 0, %v249
    %251 = vst [vmem:[#allocation2 + $0xe0] sm:$0x1] %v250
    %v252 = vld [vmem:[#allocation2 + $0xec] sm:$0x1]
    %v253 = vsel %vm194, 0, %v252
    %254 = vst [vmem:[#allocation2 + $0xec] sm:$0x1] %v253
    %v255 = vld [vmem:[#allocation2 + $0xf8] sm:$0x1]
    %v256 = vsel %vm194, 0, %v255
    %257 = vst [vmem:[#allocation2 + $0xf8] sm:$0x1] %v256
    %v258 = vld [vmem:[#allocation2 + $0x104] sm:$0x1]
    %v259 = vsel %vm194, 0, %v258
    %260 = vst [vmem:[#allocation2 + $0x104] sm:$0x1] %v259
    %v261 = vld [vmem:[#allocation2 + $0x110] sm:$0x1]
    %v262 = vsel %vm194, 0, %v261
    %263 = vst [vmem:[#allocation2 + $0x110] sm:$0x1] %v262
    %v264 = vld [vmem:[#allocation2 + $0x11c] sm:$0x1]
    %v265 = vsel %vm194, 0, %v264
    %266 = vst [vmem:[#allocation2 + $0x11c] sm:$0x1] %v265
    %v267 = vld [vmem:[#allocation2 + $0x128] sm:$0x1]
    %v268 = vsel %vm194, 0, %v267
    %269 = vst [vmem:[#allocation2 + $0x128] sm:$0x1] %v268
    %v270 = vld [vmem:[#allocation2 + $0x134] sm:$0x1]
    %v271 = vsel %vm194, 0, %v270
    %272 = vst [vmem:[#allocation2 + $0x134] sm:$0x1] %v271
    %v273 = vld [vmem:[#allocation2 + $0x140] sm:$0x1]
    %v274 = vsel %vm194, 0, %v273
    %275 = vst [vmem:[#allocation2 + $0x140] sm:$0x1] %v274
    %v276 = vld [vmem:[#allocation2 + $0x14c] sm:$0x1]
    %v277 = vsel %vm194, 0, %v276
    %278 = vst [vmem:[#allocation2 + $0x14c] sm:$0x1] %v277
    %v279 = vld [vmem:[#allocation2 + $0x158] sm:$0x1]
    %v280 = vsel %vm194, 0, %v279
    %281 = vst [vmem:[#allocation2 + $0x158] sm:$0x1] %v280
    %v282 = vld [vmem:[#allocation2 + $0x164] sm:$0x1]
    %v283 = vsel %vm194, 0, %v282
    %284 = vst [vmem:[#allocation2 + $0x164] sm:$0x1] %v283
    %v285 = vld [vmem:[#allocation2 + $0x170] sm:$0x1]
    %v286 = vsel %vm194, 0, %v285
    %287 = vst [vmem:[#allocation2 + $0x170] sm:$0x1] %v286
    %v288 = vld [vmem:[#allocation2 + $0x17c] sm:$0x1]
    %v289 = vsel %vm194, 0, %v288
    %290 = vst [vmem:[#allocation2 + $0x17c] sm:$0x1] %v289
    %v291 = vld [vmem:[#allocation2 + $0x188] sm:$0x1]
    %v292 = vsel %vm194, 0, %v291
    %293 = vst [vmem:[#allocation2 + $0x188] sm:$0x1] %v292
    %v294 = vld [vmem:[#allocation2 + $0x194] sm:$0x1]
    %v295 = vsel %vm194, 0, %v294
    %296 = vst [vmem:[#allocation2 + $0x194] sm:$0x1] %v295
    %v297 = vld [vmem:[#allocation2 + $0x1a0] sm:$0x1]
    %v298 = vsel %vm194, 0, %v297
    %299 = vst [vmem:[#allocation2 + $0x1a0] sm:$0x1] %v298
    %v300 = vld [vmem:[#allocation2 + $0x1ac] sm:$0x1]
    %v301 = vsel %vm194, 0, %v300
    %302 = vst [vmem:[#allocation2 + $0x1ac] sm:$0x1] %v301
    %v303 = vld [vmem:[#allocation4] sm:$0xff]
    %v304 = vld [vmem:[#allocation4 + $0x8] sm:$0xff]
    %v305 = vld [vmem:[#allocation4 + $0x10] sm:$0xff]
    %v306 = vld [vmem:[#allocation4 + $0x18] sm:$0xff]
    %v307 = vld [vmem:[#allocation4 + $0x20] sm:$0xff]
    %v308 = vld [vmem:[#allocation4 + $0x28] sm:$0xff]
    %v309 = vld [vmem:[#allocation4 + $0x30] sm:$0xff]
    %v310 = vld [vmem:[#allocation4 + $0x38] sm:$0xff]
    %v311 = vld [vmem:[#allocation4 + $0x40] sm:$0xff]
    %v312 = vld [vmem:[#allocation4 + $0x48] sm:$0xff]
    %v313 = vld [vmem:[#allocation4 + $0x50] sm:$0xff]
    %v314 = vld [vmem:[#allocation4 + $0x58] sm:$0xff]
    %v315 = vld [vmem:[#allocation4 + $0x60] sm:$0xff]
    %v316 = vld [vmem:[#allocation4 + $0x68] sm:$0xff]
    %v317 = vld [vmem:[#allocation4 + $0x70] sm:$0xff]
    %v318 = vld [vmem:[#allocation4 + $0x78] sm:$0xff]
    %v319 = vld [vmem:[#allocation4 + $0x80] sm:$0xff]
    %v320 = vld [vmem:[#allocation4 + $0x88] sm:$0xff]
    %v321 = vld [vmem:[#allocation4 + $0x90] sm:$0xff]
    %v322 = vld [vmem:[#allocation4 + $0x98] sm:$0xff]
    %v323 = vld [vmem:[#allocation4 + $0xa0] sm:$0xff]
    %v324 = vld [vmem:[#allocation4 + $0xa8] sm:$0xff]
    %v325 = vld [vmem:[#allocation4 + $0xb0] sm:$0xff]
    %v326 = vld [vmem:[#allocation4 + $0xb8] sm:$0xff]
    %v327 = vld [vmem:[#allocation4 + $0xc0] sm:$0xff]
    %v328 = vld [vmem:[#allocation4 + $0xc8] sm:$0xff]
    %v329 = vld [vmem:[#allocation4 + $0xd0] sm:$0xff]
    %v330 = vld [vmem:[#allocation4 + $0xd8] sm:$0xff]
    %v331 = vld [vmem:[#allocation4 + $0xe0] sm:$0xff]
    %v332 = vld [vmem:[#allocation4 + $0xe8] sm:$0xff]
    %v333 = vld [vmem:[#allocation4 + $0xf0] sm:$0xff]
    %v334 = vld [vmem:[#allocation4 + $0xf8] sm:$0xff]
    %v335 = vld [vmem:[#allocation4 + $0x100] sm:$0xff]
    %v336 = vld [vmem:[#allocation4 + $0x108] sm:$0xff]
    %v337 = vld [vmem:[#allocation4 + $0x110] sm:$0xff]
    %v338 = vld [vmem:[#allocation4 + $0x118] sm:$0xff]
    %v339 = vld [vmem:[#allocation4 + $0x120] sm:$0xff]
    %v340 = vld [vmem:[#allocation4 + $0x128] sm:$0xff]
    %v341 = vld [vmem:[#allocation4 + $0x130] sm:$0xff]
    %v342 = vld [vmem:[#allocation4 + $0x138] sm:$0xff]
    %v343 = vld [vmem:[#allocation4 + $0x140] sm:$0xff]
    %v344 = vld [vmem:[#allocation4 + $0x148] sm:$0xff]
    %v345 = vld [vmem:[#allocation4 + $0x150] sm:$0xff]
    %v346 = vld [vmem:[#allocation4 + $0x158] sm:$0xff]
    %v347 = vld [vmem:[#allocation4 + $0x160] sm:$0xff]
    %v348 = vld [vmem:[#allocation4 + $0x168] sm:$0xff]
    %v349 = vld [vmem:[#allocation4 + $0x170] sm:$0xff]
    %v350 = vld [vmem:[#allocation4 + $0x178] sm:$0xff]
    %v351 = vld [vmem:[#allocation4 + $0x180] sm:$0xff]
    %v352 = vld [vmem:[#allocation4 + $0x188] sm:$0xff]
    %v353 = vld [vmem:[#allocation4 + $0x190] sm:$0xff]
    %v354 = vld [vmem:[#allocation4 + $0x198] sm:$0xff]
    %v355 = vld [vmem:[#allocation4 + $0x1a0] sm:$0xff]
    %v356 = vld [vmem:[#allocation4 + $0x1a8] sm:$0xff]
    %v357 = vld [vmem:[#allocation4 + $0x1b0] sm:$0xff]
    %v358 = vld [vmem:[#allocation4 + $0x1b8] sm:$0xff]
    %v359 = vld [vmem:[#allocation4 + $0x1c0] sm:$0xff]
    %v360 = vld [vmem:[#allocation4 + $0x1c8] sm:$0xff]
    %v361 = vld [vmem:[#allocation4 + $0x1d0] sm:$0xff]
    %v362 = vld [vmem:[#allocation4 + $0x1d8] sm:$0xff]
    %v363 = vld [vmem:[#allocation4 + $0x1e0] sm:$0xff]
    %v364 = vld [vmem:[#allocation4 + $0x1e8] sm:$0xff]
    %v365 = vld [vmem:[#allocation4 + $0x1f0] sm:$0xff]
    %v366 = vld [vmem:[#allocation4 + $0x1f8] sm:$0xff]
    %v367 = vpack.c.bf16 %v304, %v303
    %v368 = vpack.c.bf16 %v306, %v305
    %v369 = vpack.c.bf16 %v308, %v307
    %v370 = vpack.c.bf16 %v310, %v309
    %v371 = vpack.c.bf16 %v312, %v311
    %v372 = vpack.c.bf16 %v314, %v313
    %v373 = vpack.c.bf16 %v316, %v315
    %v374 = vpack.c.bf16 %v318, %v317
    %v375 = vpack.c.bf16 %v320, %v319
    %v376 = vpack.c.bf16 %v322, %v321
    %v377 = vpack.c.bf16 %v324, %v323
    %v378 = vpack.c.bf16 %v326, %v325
    %v379 = vpack.c.bf16 %v328, %v327
    %v380 = vpack.c.bf16 %v330, %v329
    %v381 = vpack.c.bf16 %v332, %v331
    %v382 = vpack.c.bf16 %v334, %v333
    %v383 = vpack.c.bf16 %v336, %v335
    %v384 = vpack.c.bf16 %v338, %v337
    %v385 = vpack.c.bf16 %v340, %v339
    %v386 = vpack.c.bf16 %v342, %v341
    %v387 = vpack.c.bf16 %v344, %v343
    %v388 = vpack.c.bf16 %v346, %v345
    %v389 = vpack.c.bf16 %v348, %v347
    %v390 = vpack.c.bf16 %v350, %v349
    %v391 = vpack.c.bf16 %v352, %v351
    %v392 = vpack.c.bf16 %v354, %v353
    %v393 = vpack.c.bf16 %v356, %v355
    %v394 = vpack.c.bf16 %v358, %v357
    %v395 = vpack.c.bf16 %v360, %v359
    %v396 = vpack.c.bf16 %v362, %v361
    %v397 = vpack.c.bf16 %v364, %v363
    %v398 = vpack.c.bf16 %v366, %v365
    %v431 = vunpack.c.l.b16 %v367
    %v432 = vunpack.c.h.b16 %v367
    %v433 = vunpack.c.l.b16 %v368
    %v434 = vunpack.c.h.b16 %v368
    %v435 = vunpack.c.l.b16 %v369
    %v436 = vunpack.c.h.b16 %v369
    %v437 = vunpack.c.l.b16 %v370
    %v438 = vunpack.c.h.b16 %v370
    %v439 = vunpack.c.l.b16 %v371
    %v440 = vunpack.c.h.b16 %v371
    %v441 = vunpack.c.l.b16 %v372
    %v442 = vunpack.c.h.b16 %v372
    %v443 = vunpack.c.l.b16 %v373
    %v444 = vunpack.c.h.b16 %v373
    %v445 = vunpack.c.l.b16 %v374
    %v446 = vunpack.c.h.b16 %v374
    %v447 = vunpack.c.l.b16 %v375
    %v448 = vunpack.c.h.b16 %v375
    %v449 = vunpack.c.l.b16 %v376
    %v450 = vunpack.c.h.b16 %v376
    %v451 = vunpack.c.l.b16 %v377
    %v452 = vunpack.c.h.b16 %v377
    %v453 = vunpack.c.l.b16 %v378
    %v454 = vunpack.c.h.b16 %v378
    %v455 = vunpack.c.l.b16 %v379
    %v456 = vunpack.c.h.b16 %v379
    %v457 = vunpack.c.l.b16 %v380
    %v458 = vunpack.c.h.b16 %v380
    %v459 = vunpack.c.l.b16 %v381
    %v460 = vunpack.c.h.b16 %v381
    %v461 = vunpack.c.l.b16 %v382
    %v462 = vunpack.c.h.b16 %v382
    %v463 = vunpack.c.l.b16 %v383
    %v464 = vunpack.c.h.b16 %v383
    %v465 = vunpack.c.l.b16 %v384
    %v466 = vunpack.c.h.b16 %v384
    %v467 = vunpack.c.l.b16 %v385
    %v468 = vunpack.c.h.b16 %v385
    %v469 = vunpack.c.l.b16 %v386
    %v470 = vunpack.c.h.b16 %v386
    %v471 = vunpack.c.l.b16 %v387
    %v472 = vunpack.c.h.b16 %v387
    %v473 = vunpack.c.l.b16 %v388
    %v474 = vunpack.c.h.b16 %v388
    %v475 = vunpack.c.l.b16 %v389
    %v476 = vunpack.c.h.b16 %v389
    %v477 = vunpack.c.l.b16 %v390
    %v478 = vunpack.c.h.b16 %v390
    %v479 = vunpack.c.l.b16 %v391
    %v480 = vunpack.c.h.b16 %v391
    %v481 = vunpack.c.l.b16 %v392
    %v482 = vunpack.c.h.b16 %v392
    %v483 = vunpack.c.l.b16 %v393
    %v484 = vunpack.c.h.b16 %v393
    %v485 = vunpack.c.l.b16 %v394
    %v486 = vunpack.c.h.b16 %v394
    %v487 = vunpack.c.l.b16 %v395
    %v488 = vunpack.c.h.b16 %v395
    %v489 = vunpack.c.l.b16 %v396
    %v490 = vunpack.c.h.b16 %v396
    %v491 = vunpack.c.l.b16 %v397
    %v492 = vunpack.c.h.b16 %v397
    %v493 = vunpack.c.l.b16 %v398
    %v494 = vunpack.c.h.b16 %v398
    %v495 = vpack.c.b16 %v431, %v431
    %v496 = vpack.c.b16 %v432, %v432
    %v497 = vpack.c.b16 %v433, %v433
    %v498 = vpack.c.b16 %v434, %v434
    %v499 = vpack.c.b16 %v435, %v435
    %v500 = vpack.c.b16 %v436, %v436
    %v501 = vpack.c.b16 %v437, %v437
    %v502 = vpack.c.b16 %v438, %v438
    %v503 = vpack.c.b16 %v439, %v439
    %v504 = vpack.c.b16 %v440, %v440
    %v505 = vpack.c.b16 %v441, %v441
    %v506 = vpack.c.b16 %v442, %v442
    %v507 = vpack.c.b16 %v443, %v443
    %v508 = vpack.c.b16 %v444, %v444
    %v509 = vpack.c.b16 %v445, %v445
    %v510 = vpack.c.b16 %v446, %v446
    %v511 = vpack.c.b16 %v447, %v447
    %v512 = vpack.c.b16 %v448, %v448
    %v513 = vpack.c.b16 %v449, %v449
    %v514 = vpack.c.b16 %v450, %v450
    %v515 = vpack.c.b16 %v451, %v451
    %v516 = vpack.c.b16 %v452, %v452
    %v517 = vpack.c.b16 %v453, %v453
    %v518 = vpack.c.b16 %v454, %v454
    %v519 = vpack.c.b16 %v455, %v455
    %v520 = vpack.c.b16 %v456, %v456
    %v521 = vpack.c.b16 %v457, %v457
    %v522 = vpack.c.b16 %v458, %v458
    %v523 = vpack.c.b16 %v459, %v459
    %v524 = vpack.c.b16 %v460, %v460
    %v525 = vpack.c.b16 %v461, %v461
    %v526 = vpack.c.b16 %v462, %v462
    %v527 = vpack.c.b16 %v463, %v463
    %v528 = vpack.c.b16 %v464, %v464
    %v529 = vpack.c.b16 %v465, %v465
    %v530 = vpack.c.b16 %v466, %v466
    %v531 = vpack.c.b16 %v467, %v467
    %v532 = vpack.c.b16 %v468, %v468
    %v533 = vpack.c.b16 %v469, %v469
    %v534 = vpack.c.b16 %v470, %v470
    %v535 = vpack.c.b16 %v471, %v471
    %v536 = vpack.c.b16 %v472, %v472
    %v537 = vpack.c.b16 %v473, %v473
    %v538 = vpack.c.b16 %v474, %v474
    %v539 = vpack.c.b16 %v475, %v475
    %v540 = vpack.c.b16 %v476, %v476
    %v541 = vpack.c.b16 %v477, %v477
    %v542 = vpack.c.b16 %v478, %v478
    %v543 = vpack.c.b16 %v479, %v479
    %v544 = vpack.c.b16 %v480, %v480
    %v545 = vpack.c.b16 %v481, %v481
    %v546 = vpack.c.b16 %v482, %v482
    %v547 = vpack.c.b16 %v483, %v483
    %v548 = vpack.c.b16 %v484, %v484
    %v549 = vpack.c.b16 %v485, %v485
    %v550 = vpack.c.b16 %v486, %v486
    %v551 = vpack.c.b16 %v487, %v487
    %v552 = vpack.c.b16 %v488, %v488
    %v553 = vpack.c.b16 %v489, %v489
    %v554 = vpack.c.b16 %v490, %v490
    %v555 = vpack.c.b16 %v491, %v491
    %v556 = vpack.c.b16 %v492, %v492
    %v557 = vpack.c.b16 %v493, %v493
    %v558 = vpack.c.b16 %v494, %v494
    %vm559 = vsmask.f32 4368
    %vm560 = vmor %vm83, %vm559
    %v562 = vshrl.u32 %v495, 16
    %v564 = vrot.slane %v562, 7
    %v565 = vshll.u32 %v495, 16
    %v567 = vor.u32 %v564, %v565
    %v568 = vrot.slane %v564, 4
    %v570 = vshrl.u32 %v496, 16
    %v572 = vrot.slane %v570, 7
    %v573 = vshll.u32 %v496, 16
    %v575 = vor.u32 %v572, %v573
    %v576 = vsel %vm560, %v568, %v575
    %v577 = vrot.slane %v572, 4
    %v579 = vshrl.u32 %v497, 16
    %v581 = vrot.slane %v579, 7
    %v582 = vshll.u32 %v497, 16
    %v584 = vor.u32 %v581, %v582
    %v585 = vrot.slane %v581, 4
    %v587 = vshrl.u32 %v498, 16
    %v589 = vrot.slane %v587, 7
    %v590 = vshll.u32 %v498, 16
    %v592 = vor.u32 %v589, %v590
    %v593 = vsel %vm560, %v585, %v592
    %v594 = vrot.slane %v589, 4
    %v596 = vshrl.u32 %v499, 16
    %v598 = vrot.slane %v596, 7
    %v599 = vshll.u32 %v499, 16
    %v601 = vor.u32 %v598, %v599
    %v602 = vrot.slane %v598, 4
    %v604 = vshrl.u32 %v500, 16
    %v606 = vrot.slane %v604, 7
    %v607 = vshll.u32 %v500, 16
    %v609 = vor.u32 %v606, %v607
    %v610 = vsel %vm560, %v602, %v609
    %v611 = vrot.slane %v606, 4
    %v613 = vshrl.u32 %v501, 16
    %v615 = vrot.slane %v613, 7
    %v616 = vshll.u32 %v501, 16
    %v618 = vor.u32 %v615, %v616
    %v619 = vrot.slane %v615, 4
    %v621 = vshrl.u32 %v502, 16
    %v623 = vrot.slane %v621, 7
    %v624 = vshll.u32 %v502, 16
    %v626 = vor.u32 %v623, %v624
    %v627 = vsel %vm560, %v619, %v626
    %v628 = vrot.slane %v623, 4
    %v630 = vshrl.u32 %v503, 16
    %v632 = vrot.slane %v630, 7
    %v633 = vshll.u32 %v503, 16
    %v635 = vor.u32 %v632, %v633
    %v636 = vrot.slane %v632, 4
    %v638 = vshrl.u32 %v504, 16
    %v640 = vrot.slane %v638, 7
    %v641 = vshll.u32 %v504, 16
    %v643 = vor.u32 %v640, %v641
    %v644 = vsel %vm560, %v636, %v643
    %v645 = vrot.slane %v640, 4
    %v647 = vshrl.u32 %v505, 16
    %v649 = vrot.slane %v647, 7
    %v650 = vshll.u32 %v505, 16
    %v652 = vor.u32 %v649, %v650
    %v653 = vrot.slane %v649, 4
    %v655 = vshrl.u32 %v506, 16
    %v657 = vrot.slane %v655, 7
    %v658 = vshll.u32 %v506, 16
    %v660 = vor.u32 %v657, %v658
    %v661 = vsel %vm560, %v653, %v660
    %v662 = vrot.slane %v657, 4
    %v664 = vshrl.u32 %v507, 16
    %v666 = vrot.slane %v664, 7
    %v667 = vshll.u32 %v507, 16
    %v669 = vor.u32 %v666, %v667
    %v670 = vrot.slane %v666, 4
    %v672 = vshrl.u32 %v508, 16
    %v674 = vrot.slane %v672, 7
    %v675 = vshll.u32 %v508, 16
    %v677 = vor.u32 %v674, %v675
    %v678 = vsel %vm560, %v670, %v677
    %v679 = vrot.slane %v674, 4
    %v681 = vshrl.u32 %v509, 16
    %v683 = vrot.slane %v681, 7
    %v684 = vshll.u32 %v509, 16
    %v686 = vor.u32 %v683, %v684
    %v687 = vrot.slane %v683, 4
    %v689 = vshrl.u32 %v510, 16
    %v691 = vrot.slane %v689, 7
    %v692 = vshll.u32 %v510, 16
    %v694 = vor.u32 %v691, %v692
    %v695 = vsel %vm560, %v687, %v694
    %v696 = vrot.slane %v691, 4
    %v698 = vshrl.u32 %v511, 16
    %v700 = vrot.slane %v698, 7
    %v701 = vshll.u32 %v511, 16
    %v703 = vor.u32 %v700, %v701
    %v704 = vrot.slane %v700, 4
    %v706 = vshrl.u32 %v512, 16
    %v708 = vrot.slane %v706, 7
    %v709 = vshll.u32 %v512, 16
    %v711 = vor.u32 %v708, %v709
    %v712 = vsel %vm560, %v704, %v711
    %v713 = vrot.slane %v708, 4
    %v715 = vshrl.u32 %v513, 16
    %v717 = vrot.slane %v715, 7
    %v718 = vshll.u32 %v513, 16
    %v720 = vor.u32 %v717, %v718
    %v721 = vrot.slane %v717, 4
    %v723 = vshrl.u32 %v514, 16
    %v725 = vrot.slane %v723, 7
    %v726 = vshll.u32 %v514, 16
    %v728 = vor.u32 %v725, %v726
    %v729 = vsel %vm560, %v721, %v728
    %v730 = vrot.slane %v725, 4
    %v732 = vshrl.u32 %v515, 16
    %v734 = vrot.slane %v732, 7
    %v735 = vshll.u32 %v515, 16
    %v737 = vor.u32 %v734, %v735
    %v738 = vrot.slane %v734, 4
    %v740 = vshrl.u32 %v516, 16
    %v742 = vrot.slane %v740, 7
    %v743 = vshll.u32 %v516, 16
    %v745 = vor.u32 %v742, %v743
    %v746 = vsel %vm560, %v738, %v745
    %v747 = vrot.slane %v742, 4
    %v749 = vshrl.u32 %v517, 16
    %v751 = vrot.slane %v749, 7
    %v752 = vshll.u32 %v517, 16
    %v754 = vor.u32 %v751, %v752
    %v755 = vrot.slane %v751, 4
    %v757 = vshrl.u32 %v518, 16
    %v759 = vrot.slane %v757, 7
    %v760 = vshll.u32 %v518, 16
    %v762 = vor.u32 %v759, %v760
    %v763 = vsel %vm560, %v755, %v762
    %v764 = vrot.slane %v759, 4
    %v766 = vshrl.u32 %v519, 16
    %v768 = vrot.slane %v766, 7
    %v769 = vshll.u32 %v519, 16
    %v771 = vor.u32 %v768, %v769
    %v772 = vrot.slane %v768, 4
    %v774 = vshrl.u32 %v520, 16
    %v776 = vrot.slane %v774, 7
    %v777 = vshll.u32 %v520, 16
    %v779 = vor.u32 %v776, %v777
    %v780 = vsel %vm560, %v772, %v779
    %v781 = vrot.slane %v776, 4
    %v783 = vshrl.u32 %v521, 16
    %v785 = vrot.slane %v783, 7
    %v786 = vshll.u32 %v521, 16
    %v788 = vor.u32 %v785, %v786
    %v789 = vrot.slane %v785, 4
    %v791 = vshrl.u32 %v522, 16
    %v793 = vrot.slane %v791, 7
    %v794 = vshll.u32 %v522, 16
    %v796 = vor.u32 %v793, %v794
    %v797 = vsel %vm560, %v789, %v796
    %v798 = vrot.slane %v793, 4
    %v800 = vshrl.u32 %v523, 16
    %v802 = vrot.slane %v800, 7
    %v803 = vshll.u32 %v523, 16
    %v805 = vor.u32 %v802, %v803
    %v806 = vrot.slane %v802, 4
    %v808 = vshrl.u32 %v524, 16
    %v810 = vrot.slane %v808, 7
    %v811 = vshll.u32 %v524, 16
    %v813 = vor.u32 %v810, %v811
    %v814 = vsel %vm560, %v806, %v813
    %v815 = vrot.slane %v810, 4
    %v817 = vshrl.u32 %v525, 16
    %v819 = vrot.slane %v817, 7
    %v820 = vshll.u32 %v525, 16
    %v822 = vor.u32 %v819, %v820
    %v823 = vrot.slane %v819, 4
    %v825 = vshrl.u32 %v526, 16
    %v827 = vrot.slane %v825, 7
    %v828 = vshll.u32 %v526, 16
    %v830 = vor.u32 %v827, %v828
    %v831 = vsel %vm560, %v823, %v830
    %v832 = vrot.slane %v827, 4
    %v834 = vshrl.u32 %v527, 16
    %v836 = vrot.slane %v834, 7
    %v837 = vshll.u32 %v527, 16
    %v839 = vor.u32 %v836, %v837
    %v840 = vrot.slane %v836, 4
    %v842 = vshrl.u32 %v528, 16
    %v844 = vrot.slane %v842, 7
    %v845 = vshll.u32 %v528, 16
    %v847 = vor.u32 %v844, %v845
    %v848 = vsel %vm560, %v840, %v847
    %v849 = vrot.slane %v844, 4
    %v851 = vshrl.u32 %v529, 16
    %v853 = vrot.slane %v851, 7
    %v854 = vshll.u32 %v529, 16
    %v856 = vor.u32 %v853, %v854
    %v857 = vrot.slane %v853, 4
    %v859 = vshrl.u32 %v530, 16
    %v861 = vrot.slane %v859, 7
    %v862 = vshll.u32 %v530, 16
    %v864 = vor.u32 %v861, %v862
    %v865 = vsel %vm560, %v857, %v864
    %v866 = vrot.slane %v861, 4
    %v868 = vshrl.u32 %v531, 16
    %v870 = vrot.slane %v868, 7
    %v871 = vshll.u32 %v531, 16
    %v873 = vor.u32 %v870, %v871
    %v874 = vrot.slane %v870, 4
    %v876 = vshrl.u32 %v532, 16
    %v878 = vrot.slane %v876, 7
    %v879 = vshll.u32 %v532, 16
    %v881 = vor.u32 %v878, %v879
    %v882 = vsel %vm560, %v874, %v881
    %v883 = vrot.slane %v878, 4
    %v885 = vshrl.u32 %v533, 16
    %v887 = vrot.slane %v885, 7
    %v888 = vshll.u32 %v533, 16
    %v890 = vor.u32 %v887, %v888
    %v891 = vrot.slane %v887, 4
    %v893 = vshrl.u32 %v534, 16
    %v895 = vrot.slane %v893, 7
    %v896 = vshll.u32 %v534, 16
    %v898 = vor.u32 %v895, %v896
    %v899 = vsel %vm560, %v891, %v898
    %v900 = vrot.slane %v895, 4
    %v902 = vshrl.u32 %v535, 16
    %v904 = vrot.slane %v902, 7
    %v905 = vshll.u32 %v535, 16
    %v907 = vor.u32 %v904, %v905
    %v908 = vrot.slane %v904, 4
    %v910 = vshrl.u32 %v536, 16
    %v912 = vrot.slane %v910, 7
    %v913 = vshll.u32 %v536, 16
    %v915 = vor.u32 %v912, %v913
    %v916 = vsel %vm560, %v908, %v915
    %v917 = vrot.slane %v912, 4
    %v919 = vshrl.u32 %v537, 16
    %v921 = vrot.slane %v919, 7
    %v922 = vshll.u32 %v537, 16
    %v924 = vor.u32 %v921, %v922
    %v925 = vrot.slane %v921, 4
    %v927 = vshrl.u32 %v538, 16
    %v929 = vrot.slane %v927, 7
    %v930 = vshll.u32 %v538, 16
    %v932 = vor.u32 %v929, %v930
    %v933 = vsel %vm560, %v925, %v932
    %v934 = vrot.slane %v929, 4
    %v936 = vshrl.u32 %v539, 16
    %v938 = vrot.slane %v936, 7
    %v939 = vshll.u32 %v539, 16
    %v941 = vor.u32 %v938, %v939
    %v942 = vrot.slane %v938, 4
    %v944 = vshrl.u32 %v540, 16
    %v946 = vrot.slane %v944, 7
    %v947 = vshll.u32 %v540, 16
    %v949 = vor.u32 %v946, %v947
    %v950 = vsel %vm560, %v942, %v949
    %v951 = vrot.slane %v946, 4
    %v953 = vshrl.u32 %v541, 16
    %v955 = vrot.slane %v953, 7
    %v956 = vshll.u32 %v541, 16
    %v958 = vor.u32 %v955, %v956
    %v959 = vrot.slane %v955, 4
    %v961 = vshrl.u32 %v542, 16
    %v963 = vrot.slane %v961, 7
    %v964 = vshll.u32 %v542, 16
    %v966 = vor.u32 %v963, %v964
    %v967 = vsel %vm560, %v959, %v966
    %v968 = vrot.slane %v963, 4
    %v970 = vshrl.u32 %v543, 16
    %v972 = vrot.slane %v970, 7
    %v973 = vshll.u32 %v543, 16
    %v975 = vor.u32 %v972, %v973
    %v976 = vrot.slane %v972, 4
    %v978 = vshrl.u32 %v544, 16
    %v980 = vrot.slane %v978, 7
    %v981 = vshll.u32 %v544, 16
    %v983 = vor.u32 %v980, %v981
    %v984 = vsel %vm560, %v976, %v983
    %v985 = vrot.slane %v980, 4
    %v987 = vshrl.u32 %v545, 16
    %v989 = vrot.slane %v987, 7
    %v990 = vshll.u32 %v545, 16
    %v992 = vor.u32 %v989, %v990
    %v993 = vrot.slane %v989, 4
    %v995 = vshrl.u32 %v546, 16
    %v997 = vrot.slane %v995, 7
    %v998 = vshll.u32 %v546, 16
    %v1000 = vor.u32 %v997, %v998
    %v1001 = vsel %vm560, %v993, %v1000
    %v1002 = vrot.slane %v997, 4
    %v1004 = vshrl.u32 %v547, 16
    %v1006 = vrot.slane %v1004, 7
    %v1007 = vshll.u32 %v547, 16
    %v1009 = vor.u32 %v1006, %v1007
    %v1010 = vrot.slane %v1006, 4
    %v1012 = vshrl.u32 %v548, 16
    %v1014 = vrot.slane %v1012, 7
    %v1015 = vshll.u32 %v548, 16
    %v1017 = vor.u32 %v1014, %v1015
    %v1018 = vsel %vm560, %v1010, %v1017
    %v1019 = vrot.slane %v1014, 4
    %v1021 = vshrl.u32 %v549, 16
    %v1023 = vrot.slane %v1021, 7
    %v1024 = vshll.u32 %v549, 16
    %v1026 = vor.u32 %v1023, %v1024
    %v1027 = vrot.slane %v1023, 4
    %v1029 = vshrl.u32 %v550, 16
    %v1031 = vrot.slane %v1029, 7
    %v1032 = vshll.u32 %v550, 16
    %v1034 = vor.u32 %v1031, %v1032
    %v1035 = vsel %vm560, %v1027, %v1034
    %v1036 = vrot.slane %v1031, 4
    %v1038 = vshrl.u32 %v551, 16
    %v1040 = vrot.slane %v1038, 7
    %v1041 = vshll.u32 %v551, 16
    %v1043 = vor.u32 %v1040, %v1041
    %v1044 = vrot.slane %v1040, 4
    %v1046 = vshrl.u32 %v552, 16
    %v1048 = vrot.slane %v1046, 7
    %v1049 = vshll.u32 %v552, 16
    %v1051 = vor.u32 %v1048, %v1049
    %v1052 = vsel %vm560, %v1044, %v1051
    %v1053 = vrot.slane %v1048, 4
    %v1055 = vshrl.u32 %v553, 16
    %v1057 = vrot.slane %v1055, 7
    %v1058 = vshll.u32 %v553, 16
    %v1060 = vor.u32 %v1057, %v1058
    %v1061 = vrot.slane %v1057, 4
    %v1063 = vshrl.u32 %v554, 16
    %v1065 = vrot.slane %v1063, 7
    %v1066 = vshll.u32 %v554, 16
    %v1068 = vor.u32 %v1065, %v1066
    %v1069 = vsel %vm560, %v1061, %v1068
    %v1070 = vrot.slane %v1065, 4
    %v1072 = vshrl.u32 %v555, 16
    %v1074 = vrot.slane %v1072, 7
    %v1075 = vshll.u32 %v555, 16
    %v1077 = vor.u32 %v1074, %v1075
    %v1078 = vrot.slane %v1074, 4
    %v1080 = vshrl.u32 %v556, 16
    %v1082 = vrot.slane %v1080, 7
    %v1083 = vshll.u32 %v556, 16
    %v1085 = vor.u32 %v1082, %v1083
    %v1086 = vsel %vm560, %v1078, %v1085
    %v1087 = vrot.slane %v1082, 4
    %v1089 = vshrl.u32 %v557, 16
    %v1091 = vrot.slane %v1089, 7
    %v1092 = vshll.u32 %v557, 16
    %v1094 = vor.u32 %v1091, %v1092
    %v1095 = vrot.slane %v1091, 4
    %v1097 = vshrl.u32 %v558, 16
    %v1099 = vrot.slane %v1097, 7
    %v1100 = vshll.u32 %v558, 16
    %v1102 = vor.u32 %v1099, %v1100
    %v1103 = vsel %vm560, %v1095, %v1102
    %v1104 = vrot.slane %v1099, 4
    %s1201 = scalar_lea.vmem [#allocation2], 12
    %vm1202 = vcmask 1043456
    %vm1203 = vmand %vm1202, %vm193
    %v1204 = vld [vmem:[%s1201] sm:$0xf]
    %v1205 = vsel %vm1203, %v567, %v1204
    %1206 = vst [vmem:[%s1201] sm:$0xf] %v1205
    %1207 = vst [vmem:[%s1201 + $0x4] sm:$0xf] %v576
    %v1208 = vld [vmem:[%s1201 + $0x8] sm:$0x1]
    %v1209 = vsel %vm84, %v577, %v1208
    %1210 = vst [vmem:[%s1201 + $0x8] sm:$0x1] %v1209
    %v1211 = vld [vmem:[%s1201 + $0xc] sm:$0xf]
    %v1212 = vsel %vm1203, %v584, %v1211
    %1213 = vst [vmem:[%s1201 + $0xc] sm:$0xf] %v1212
    %1214 = vst [vmem:[%s1201 + $0x10] sm:$0xf] %v593
    %v1215 = vld [vmem:[%s1201 + $0x14] sm:$0x1]
    %v1216 = vsel %vm84, %v594, %v1215
    %1217 = vst [vmem:[%s1201 + $0x14] sm:$0x1] %v1216
    %v1218 = vld [vmem:[%s1201 + $0x18] sm:$0xf]
    %v1219 = vsel %vm1203, %v601, %v1218
    %1220 = vst [vmem:[%s1201 + $0x18] sm:$0xf] %v1219
    %1221 = vst [vmem:[%s1201 + $0x1c] sm:$0xf] %v610
    %v1222 = vld [vmem:[%s1201 + $0x20] sm:$0x1]
    %v1223 = vsel %vm84, %v611, %v1222
    %1224 = vst [vmem:[%s1201 + $0x20] sm:$0x1] %v1223
    %v1225 = vld [vmem:[%s1201 + $0x24] sm:$0xf]
    %v1226 = vsel %vm1203, %v618, %v1225
    %1227 = vst [vmem:[%s1201 + $0x24] sm:$0xf] %v1226
    %1228 = vst [vmem:[%s1201 + $0x28] sm:$0xf] %v627
    %v1229 = vld [vmem:[%s1201 + $0x2c] sm:$0x1]
    %v1230 = vsel %vm84, %v628, %v1229
    %1231 = vst [vmem:[%s1201 + $0x2c] sm:$0x1] %v1230
    %v1232 = vld [vmem:[%s1201 + $0x30] sm:$0xf]
    %v1233 = vsel %vm1203, %v635, %v1232
    %1234 = vst [vmem:[%s1201 + $0x30] sm:$0xf] %v1233
    %1235 = vst [vmem:[%s1201 + $0x34] sm:$0xf] %v644
    %v1236 = vld [vmem:[%s1201 + $0x38] sm:$0x1]
    %v1237 = vsel %vm84, %v645, %v1236
    %1238 = vst [vmem:[%s1201 + $0x38] sm:$0x1] %v1237
    %v1239 = vld [vmem:[%s1201 + $0x3c] sm:$0xf]
    %v1240 = vsel %vm1203, %v652, %v1239
    %1241 = vst [vmem:[%s1201 + $0x3c] sm:$0xf] %v1240
    %1242 = vst [vmem:[%s1201 + $0x40] sm:$0xf] %v661
    %v1243 = vld [vmem:[%s1201 + $0x44] sm:$0x1]
    %v1244 = vsel %vm84, %v662, %v1243
    %1245 = vst [vmem:[%s1201 + $0x44] sm:$0x1] %v1244
    %v1246 = vld [vmem:[%s1201 + $0x48] sm:$0xf]
    %v1247 = vsel %vm1203, %v669, %v1246
    %1248 = vst [vmem:[%s1201 + $0x48] sm:$0xf] %v1247
    %1249 = vst [vmem:[%s1201 + $0x4c] sm:$0xf] %v678
    %v1250 = vld [vmem:[%s1201 + $0x50] sm:$0x1]
    %v1251 = vsel %vm84, %v679, %v1250
    %1252 = vst [vmem:[%s1201 + $0x50] sm:$0x1] %v1251
    %v1253 = vld [vmem:[%s1201 + $0x54] sm:$0xf]
    %v1254 = vsel %vm1203, %v686, %v1253
    %1255 = vst [vmem:[%s1201 + $0x54] sm:$0xf] %v1254
    %1256 = vst [vmem:[%s1201 + $0x58] sm:$0xf] %v695
    %v1257 = vld [vmem:[%s1201 + $0x5c] sm:$0x1]
    %v1258 = vsel %vm84, %v696, %v1257
    %1259 = vst [vmem:[%s1201 + $0x5c] sm:$0x1] %v1258
    %v1260 = vld [vmem:[%s1201 + $0x60] sm:$0xf]
    %v1261 = vsel %vm1203, %v703, %v1260
    %1262 = vst [vmem:[%s1201 + $0x60] sm:$0xf] %v1261
    %1263 = vst [vmem:[%s1201 + $0x64] sm:$0xf] %v712
    %v1264 = vld [vmem:[%s1201 + $0x68] sm:$0x1]
    %v1265 = vsel %vm84, %v713, %v1264
    %1266 = vst [vmem:[%s1201 + $0x68] sm:$0x1] %v1265
    %v1267 = vld [vmem:[%s1201 + $0x6c] sm:$0xf]
    %v1268 = vsel %vm1203, %v720, %v1267
    %1269 = vst [vmem:[%s1201 + $0x6c] sm:$0xf] %v1268
    %1270 = vst [vmem:[%s1201 + $0x70] sm:$0xf] %v729
    %v1271 = vld [vmem:[%s1201 + $0x74] sm:$0x1]
    %v1272 = vsel %vm84, %v730, %v1271
    %1273 = vst [vmem:[%s1201 + $0x74] sm:$0x1] %v1272
    %v1274 = vld [vmem:[%s1201 + $0x78] sm:$0xf]
    %v1275 = vsel %vm1203, %v737, %v1274
    %1276 = vst [vmem:[%s1201 + $0x78] sm:$0xf] %v1275
    %1277 = vst [vmem:[%s1201 + $0x7c] sm:$0xf] %v746
    %v1278 = vld [vmem:[%s1201 + $0x80] sm:$0x1]
    %v1279 = vsel %vm84, %v747, %v1278
    %1280 = vst [vmem:[%s1201 + $0x80] sm:$0x1] %v1279
    %v1281 = vld [vmem:[%s1201 + $0x84] sm:$0xf]
    %v1282 = vsel %vm1203, %v754, %v1281
    %1283 = vst [vmem:[%s1201 + $0x84] sm:$0xf] %v1282
    %1284 = vst [vmem:[%s1201 + $0x88] sm:$0xf] %v763
    %v1285 = vld [vmem:[%s1201 + $0x8c] sm:$0x1]
    %v1286 = vsel %vm84, %v764, %v1285
    %1287 = vst [vmem:[%s1201 + $0x8c] sm:$0x1] %v1286
    %v1288 = vld [vmem:[%s1201 + $0x90] sm:$0xf]
    %v1289 = vsel %vm1203, %v771, %v1288
    %1290 = vst [vmem:[%s1201 + $0x90] sm:$0xf] %v1289
    %1291 = vst [vmem:[%s1201 + $0x94] sm:$0xf] %v780
    %v1292 = vld [vmem:[%s1201 + $0x98] sm:$0x1]
    %v1293 = vsel %vm84, %v781, %v1292
    %1294 = vst [vmem:[%s1201 + $0x98] sm:$0x1] %v1293
    %v1295 = vld [vmem:[%s1201 + $0x9c] sm:$0xf]
    %v1296 = vsel %vm1203, %v788, %v1295
    %1297 = vst [vmem:[%s1201 + $0x9c] sm:$0xf] %v1296
    %1298 = vst [vmem:[%s1201 + $0xa0] sm:$0xf] %v797
    %v1299 = vld [vmem:[%s1201 + $0xa4] sm:$0x1]
    %v1300 = vsel %vm84, %v798, %v1299
    %1301 = vst [vmem:[%s1201 + $0xa4] sm:$0x1] %v1300
    %v1302 = vld [vmem:[%s1201 + $0xa8] sm:$0xf]
    %v1303 = vsel %vm1203, %v805, %v1302
    %1304 = vst [vmem:[%s1201 + $0xa8] sm:$0xf] %v1303
    %1305 = vst [vmem:[%s1201 + $0xac] sm:$0xf] %v814
    %v1306 = vld [vmem:[%s1201 + $0xb0] sm:$0x1]
    %v1307 = vsel %vm84, %v815, %v1306
    %1308 = vst [vmem:[%s1201 + $0xb0] sm:$0x1] %v1307
    %v1309 = vld [vmem:[%s1201 + $0xb4] sm:$0xf]
    %v1310 = vsel %vm1203, %v822, %v1309
    %1311 = vst [vmem:[%s1201 + $0xb4] sm:$0xf] %v1310
    %1312 = vst [vmem:[%s1201 + $0xb8] sm:$0xf] %v831
    %v1313 = vld [vmem:[%s1201 + $0xbc] sm:$0x1]
    %v1314 = vsel %vm84, %v832, %v1313
    %1315 = vst [vmem:[%s1201 + $0xbc] sm:$0x1] %v1314
    %v1316 = vld [vmem:[%s1201 + $0xd8] sm:$0xf]
    %v1317 = vsel %vm1203, %v839, %v1316
    %1318 = vst [vmem:[%s1201 + $0xd8] sm:$0xf] %v1317
    %1319 = vst [vmem:[%s1201 + $0xdc] sm:$0xf] %v848
    %v1320 = vld [vmem:[%s1201 + $0xe0] sm:$0x1]
    %v1321 = vsel %vm84, %v849, %v1320
    %1322 = vst [vmem:[%s1201 + $0xe0] sm:$0x1] %v1321
    %v1323 = vld [vmem:[%s1201 + $0xe4] sm:$0xf]
    %v1324 = vsel %vm1203, %v856, %v1323
    %1325 = vst [vmem:[%s1201 + $0xe4] sm:$0xf] %v1324
    %1326 = vst [vmem:[%s1201 + $0xe8] sm:$0xf] %v865
    %v1327 = vld [vmem:[%s1201 + $0xec] sm:$0x1]
    %v1328 = vsel %vm84, %v866, %v1327
    %1329 = vst [vmem:[%s1201 + $0xec] sm:$0x1] %v1328
    %v1330 = vld [vmem:[%s1201 + $0xf0] sm:$0xf]
    %v1331 = vsel %vm1203, %v873, %v1330
    %1332 = vst [vmem:[%s1201 + $0xf0] sm:$0xf] %v1331
    %1333 = vst [vmem:[%s1201 + $0xf4] sm:$0xf] %v882
    %v1334 = vld [vmem:[%s1201 + $0xf8] sm:$0x1]
    %v1335 = vsel %vm84, %v883, %v1334
    %1336 = vst [vmem:[%s1201 + $0xf8] sm:$0x1] %v1335
    %v1337 = vld [vmem:[%s1201 + $0xfc] sm:$0xf]
    %v1338 = vsel %vm1203, %v890, %v1337
    %1339 = vst [vmem:[%s1201 + $0xfc] sm:$0xf] %v1338
    %1340 = vst [vmem:[%s1201 + $0x100] sm:$0xf] %v899
    %v1341 = vld [vmem:[%s1201 + $0x104] sm:$0x1]
    %v1342 = vsel %vm84, %v900, %v1341
    %1343 = vst [vmem:[%s1201 + $0x104] sm:$0x1] %v1342
    %v1344 = vld [vmem:[%s1201 + $0x108] sm:$0xf]
    %v1345 = vsel %vm1203, %v907, %v1344
    %1346 = vst [vmem:[%s1201 + $0x108] sm:$0xf] %v1345
    %1347 = vst [vmem:[%s1201 + $0x10c] sm:$0xf] %v916
    %v1348 = vld [vmem:[%s1201 + $0x110] sm:$0x1]
    %v1349 = vsel %vm84, %v917, %v1348
    %1350 = vst [vmem:[%s1201 + $0x110] sm:$0x1] %v1349
    %v1351 = vld [vmem:[%s1201 + $0x114] sm:$0xf]
    %v1352 = vsel %vm1203, %v924, %v1351
    %1353 = vst [vmem:[%s1201 + $0x114] sm:$0xf] %v1352
    %1354 = vst [vmem:[%s1201 + $0x118] sm:$0xf] %v933
    %v1355 = vld [vmem:[%s1201 + $0x11c] sm:$0x1]
    %v1356 = vsel %vm84, %v934, %v1355
    %1357 = vst [vmem:[%s1201 + $0x11c] sm:$0x1] %v1356
    %v1358 = vld [vmem:[%s1201 + $0x120] sm:$0xf]
    %v1359 = vsel %vm1203, %v941, %v1358
    %1360 = vst [vmem:[%s1201 + $0x120] sm:$0xf] %v1359
    %1361 = vst [vmem:[%s1201 + $0x124] sm:$0xf] %v950
    %v1362 = vld [vmem:[%s1201 + $0x128] sm:$0x1]
    %v1363 = vsel %vm84, %v951, %v1362
    %1364 = vst [vmem:[%s1201 + $0x128] sm:$0x1] %v1363
    %v1365 = vld [vmem:[%s1201 + $0x12c] sm:$0xf]
    %v1366 = vsel %vm1203, %v958, %v1365
    %1367 = vst [vmem:[%s1201 + $0x12c] sm:$0xf] %v1366
    %1368 = vst [vmem:[%s1201 + $0x130] sm:$0xf] %v967
    %v1369 = vld [vmem:[%s1201 + $0x134] sm:$0x1]
    %v1370 = vsel %vm84, %v968, %v1369
    %1371 = vst [vmem:[%s1201 + $0x134] sm:$0x1] %v1370
    %v1372 = vld [vmem:[%s1201 + $0x138] sm:$0xf]
    %v1373 = vsel %vm1203, %v975, %v1372
    %1374 = vst [vmem:[%s1201 + $0x138] sm:$0xf] %v1373
    %1375 = vst [vmem:[%s1201 + $0x13c] sm:$0xf] %v984
    %v1376 = vld [vmem:[%s1201 + $0x140] sm:$0x1]
    %v1377 = vsel %vm84, %v985, %v1376
    %1378 = vst [vmem:[%s1201 + $0x140] sm:$0x1] %v1377
    %v1379 = vld [vmem:[%s1201 + $0x144] sm:$0xf]
    %v1380 = vsel %vm1203, %v992, %v1379
    %1381 = vst [vmem:[%s1201 + $0x144] sm:$0xf] %v1380
    %1382 = vst [vmem:[%s1201 + $0x148] sm:$0xf] %v1001
    %v1383 = vld [vmem:[%s1201 + $0x14c] sm:$0x1]
    %v1384 = vsel %vm84, %v1002, %v1383
    %1385 = vst [vmem:[%s1201 + $0x14c] sm:$0x1] %v1384
    %v1386 = vld [vmem:[%s1201 + $0x150] sm:$0xf]
    %v1387 = vsel %vm1203, %v1009, %v1386
    %1388 = vst [vmem:[%s1201 + $0x150] sm:$0xf] %v1387
    %1389 = vst [vmem:[%s1201 + $0x154] sm:$0xf] %v1018
    %v1390 = vld [vmem:[%s1201 + $0x158] sm:$0x1]
    %v1391 = vsel %vm84, %v1019, %v1390
    %1392 = vst [vmem:[%s1201 + $0x158] sm:$0x1] %v1391
    %v1393 = vld [vmem:[%s1201 + $0x15c] sm:$0xf]
    %v1394 = vsel %vm1203, %v1026, %v1393
    %1395 = vst [vmem:[%s1201 + $0x15c] sm:$0xf] %v1394
    %1396 = vst [vmem:[%s1201 + $0x160] sm:$0xf] %v1035
    %v1397 = vld [vmem:[%s1201 + $0x164] sm:$0x1]
    %v1398 = vsel %vm84, %v1036, %v1397
    %1399 = vst [vmem:[%s1201 + $0x164] sm:$0x1] %v1398
    %v1400 = vld [vmem:[%s1201 + $0x168] sm:$0xf]
    %v1401 = vsel %vm1203, %v1043, %v1400
    %1402 = vst [vmem:[%s1201 + $0x168] sm:$0xf] %v1401
    %1403 = vst [vmem:[%s1201 + $0x16c] sm:$0xf] %v1052
    %v1404 = vld [vmem:[%s1201 + $0x170] sm:$0x1]
    %v1405 = vsel %vm84, %v1053, %v1404
    %1406 = vst [vmem:[%s1201 + $0x170] sm:$0x1] %v1405
    %v1407 = vld [vmem:[%s1201 + $0x174] sm:$0xf]
    %v1408 = vsel %vm1203, %v1060, %v1407
    %1409 = vst [vmem:[%s1201 + $0x174] sm:$0xf] %v1408
    %1410 = vst [vmem:[%s1201 + $0x178] sm:$0xf] %v1069
    %v1411 = vld [vmem:[%s1201 + $0x17c] sm:$0x1]
    %v1412 = vsel %vm84, %v1070, %v1411
    %1413 = vst [vmem:[%s1201 + $0x17c] sm:$0x1] %v1412
    %v1414 = vld [vmem:[%s1201 + $0x180] sm:$0xf]
    %v1415 = vsel %vm1203, %v1077, %v1414
    %1416 = vst [vmem:[%s1201 + $0x180] sm:$0xf] %v1415
    %1417 = vst [vmem:[%s1201 + $0x184] sm:$0xf] %v1086
    %v1418 = vld [vmem:[%s1201 + $0x188] sm:$0x1]
    %v1419 = vsel %vm84, %v1087, %v1418
    %1420 = vst [vmem:[%s1201 + $0x188] sm:$0x1] %v1419
    %v1421 = vld [vmem:[%s1201 + $0x18c] sm:$0xf]
    %v1422 = vsel %vm1203, %v1094, %v1421
    %1423 = vst [vmem:[%s1201 + $0x18c] sm:$0xf] %v1422
    %1424 = vst [vmem:[%s1201 + $0x190] sm:$0xf] %v1103
    %v1425 = vld [vmem:[%s1201 + $0x194] sm:$0x1]
    %v1426 = vsel %vm84, %v1104, %v1425
    %1427 = vst [vmem:[%s1201 + $0x194] sm:$0x1] %v1426
    %v1428 = vld [vmem:[#allocation2] sm:$0xf]
    %v1429 = vld [vmem:[#allocation2 + $0x4] sm:$0xf]
    %v1430 = vld [vmem:[#allocation2 + $0x8] sm:$0x1]
    %v1431 = vld [vmem:[#allocation2 + $0xc] sm:$0xf]
    %v1432 = vld [vmem:[#allocation2 + $0x10] sm:$0xf]
    %v1433 = vld [vmem:[#allocation2 + $0x14] sm:$0x1]
    %v1434 = vld [vmem:[#allocation2 + $0x18] sm:$0xf]
    %v1435 = vld [vmem:[#allocation2 + $0x1c] sm:$0xf]
    %v1436 = vld [vmem:[#allocation2 + $0x20] sm:$0x1]
    %v1437 = vld [vmem:[#allocation2 + $0x24] sm:$0xf]
    %v1438 = vld [vmem:[#allocation2 + $0x28] sm:$0xf]
    %v1439 = vld [vmem:[#allocation2 + $0x2c] sm:$0x1]
    %v1440 = vld [vmem:[#allocation2 + $0x30] sm:$0xf]
    %v1441 = vld [vmem:[#allocation2 + $0x34] sm:$0xf]
    %v1442 = vld [vmem:[#allocation2 + $0x38] sm:$0x1]
    %v1443 = vld [vmem:[#allocation2 + $0x3c] sm:$0xf]
    %v1444 = vld [vmem:[#allocation2 + $0x40] sm:$0xf]
    %v1445 = vld [vmem:[#allocation2 + $0x44] sm:$0x1]
    %v1446 = vld [vmem:[#allocation2 + $0x48] sm:$0xf]
    %v1447 = vld [vmem:[#allocation2 + $0x4c] sm:$0xf]
    %v1448 = vld [vmem:[#allocation2 + $0x50] sm:$0x1]
    %v1449 = vld [vmem:[#allocation2 + $0x54] sm:$0xf]
    %v1450 = vld [vmem:[#allocation2 + $0x58] sm:$0xf]
    %v1451 = vld [vmem:[#allocation2 + $0x5c] sm:$0x1]
    %v1452 = vld [vmem:[#allocation2 + $0x60] sm:$0xf]
    %v1453 = vld [vmem:[#allocation2 + $0x64] sm:$0xf]
    %v1454 = vld [vmem:[#allocation2 + $0x68] sm:$0x1]
    %v1455 = vld [vmem:[#allocation2 + $0x6c] sm:$0xf]
    %v1456 = vld [vmem:[#allocation2 + $0x70] sm:$0xf]
    %v1457 = vld [vmem:[#allocation2 + $0x74] sm:$0x1]
    %v1458 = vld [vmem:[#allocation2 + $0x78] sm:$0xf]
    %v1459 = vld [vmem:[#allocation2 + $0x7c] sm:$0xf]
    %v1460 = vld [vmem:[#allocation2 + $0x80] sm:$0x1]
    %v1461 = vld [vmem:[#allocation2 + $0x84] sm:$0xf]
    %v1462 = vld [vmem:[#allocation2 + $0x88] sm:$0xf]
    %v1463 = vld [vmem:[#allocation2 + $0x8c] sm:$0x1]
    %v1464 = vld [vmem:[#allocation2 + $0x90] sm:$0xf]
    %v1465 = vld [vmem:[#allocation2 + $0x94] sm:$0xf]
    %v1466 = vld [vmem:[#allocation2 + $0x98] sm:$0x1]
    %v1467 = vld [vmem:[#allocation2 + $0x9c] sm:$0xf]
    %v1468 = vld [vmem:[#allocation2 + $0xa0] sm:$0xf]
    %v1469 = vld [vmem:[#allocation2 + $0xa4] sm:$0x1]
    %v1470 = vld [vmem:[#allocation2 + $0xa8] sm:$0xf]
    %v1471 = vld [vmem:[#allocation2 + $0xac] sm:$0xf]
    %v1472 = vld [vmem:[#allocation2 + $0xb0] sm:$0x1]
    %v1473 = vld [vmem:[#allocation2 + $0xb4] sm:$0xf]
    %v1474 = vld [vmem:[#allocation2 + $0xb8] sm:$0xf]
    %v1475 = vld [vmem:[#allocation2 + $0xbc] sm:$0x1]
    %v1476 = vld [vmem:[#allocation2 + $0xc0] sm:$0xf]
    %v1477 = vld [vmem:[#allocation2 + $0xc4] sm:$0xf]
    %v1478 = vld [vmem:[#allocation2 + $0xc8] sm:$0x1]
    %v1479 = vld [vmem:[#allocation2 + $0xcc] sm:$0xf]
    %v1480 = vld [vmem:[#allocation2 + $0xd0] sm:$0xf]
    %v1481 = vld [vmem:[#allocation2 + $0xd4] sm:$0x1]
    %v1482 = vld [vmem:[#allocation2 + $0xd8] sm:$0xf]
    %v1483 = vld [vmem:[#allocation2 + $0xdc] sm:$0xf]
    %v1484 = vld [vmem:[#allocation2 + $0xe0] sm:$0x1]
    %v1485 = vld [vmem:[#allocation2 + $0xe4] sm:$0xf]
    %v1486 = vld [vmem:[#allocation2 + $0xe8] sm:$0xf]
    %v1487 = vld [vmem:[#allocation2 + $0xec] sm:$0x1]
    %v1488 = vld [vmem:[#allocation2 + $0xf0] sm:$0xf]
    %v1489 = vld [vmem:[#allocation2 + $0xf4] sm:$0xf]
    %v1490 = vld [vmem:[#allocation2 + $0xf8] sm:$0x1]
    %v1491 = vld [vmem:[#allocation2 + $0xfc] sm:$0xf]
    %v1492 = vld [vmem:[#allocation2 + $0x100] sm:$0xf]
    %v1493 = vld [vmem:[#allocation2 + $0x104] sm:$0x1]
    %v1494 = vld [vmem:[#allocation2 + $0x108] sm:$0xf]
    %v1495 = vld [vmem:[#allocation2 + $0x10c] sm:$0xf]
    %v1496 = vld [vmem:[#allocation2 + $0x110] sm:$0x1]
    %v1497 = vld [vmem:[#allocation2 + $0x114] sm:$0xf]
    %v1498 = vld [vmem:[#allocation2 + $0x118] sm:$0xf]
    %v1499 = vld [vmem:[#allocation2 + $0x11c] sm:$0x1]
    %v1500 = vld [vmem:[#allocation2 + $0x120] sm:$0xf]
    %v1501 = vld [vmem:[#allocation2 + $0x124] sm:$0xf]
    %v1502 = vld [vmem:[#allocation2 + $0x128] sm:$0x1]
    %v1503 = vld [vmem:[#allocation2 + $0x12c] sm:$0xf]
    %v1504 = vld [vmem:[#allocation2 + $0x130] sm:$0xf]
    %v1505 = vld [vmem:[#allocation2 + $0x134] sm:$0x1]
    %v1506 = vld [vmem:[#allocation2 + $0x138] sm:$0xf]
    %v1507 = vld [vmem:[#allocation2 + $0x13c] sm:$0xf]
    %v1508 = vld [vmem:[#allocation2 + $0x140] sm:$0x1]
    %v1509 = vld [vmem:[#allocation2 + $0x144] sm:$0xf]
    %v1510 = vld [vmem:[#allocation2 + $0x148] sm:$0xf]
    %v1511 = vld [vmem:[#allocation2 + $0x14c] sm:$0x1]
    %v1512 = vld [vmem:[#allocation2 + $0x150] sm:$0xf]
    %v1513 = vld [vmem:[#allocation2 + $0x154] sm:$0xf]
    %v1514 = vld [vmem:[#allocation2 + $0x158] sm:$0x1]
    %v1515 = vld [vmem:[#allocation2 + $0x15c] sm:$0xf]
    %v1516 = vld [vmem:[#allocation2 + $0x160] sm:$0xf]
    %v1517 = vld [vmem:[#allocation2 + $0x164] sm:$0x1]
    %v1518 = vld [vmem:[#allocation2 + $0x168] sm:$0xf]
    %v1519 = vld [vmem:[#allocation2 + $0x16c] sm:$0xf]
    %v1520 = vld [vmem:[#allocation2 + $0x170] sm:$0x1]
    %v1521 = vld [vmem:[#allocation2 + $0x174] sm:$0xf]
    %v1522 = vld [vmem:[#allocation2 + $0x178] sm:$0xf]
    %v1523 = vld [vmem:[#allocation2 + $0x17c] sm:$0x1]
    %v1524 = vld [vmem:[#allocation2 + $0x180] sm:$0xf]
    %v1525 = vld [vmem:[#allocation2 + $0x184] sm:$0xf]
    %v1526 = vld [vmem:[#allocation2 + $0x188] sm:$0x1]
    %v1527 = vld [vmem:[#allocation2 + $0x18c] sm:$0xf]
    %v1528 = vld [vmem:[#allocation2 + $0x190] sm:$0xf]
    %v1529 = vld [vmem:[#allocation2 + $0x194] sm:$0x1]
    %v1530 = vld [vmem:[#allocation2 + $0x198] sm:$0xf]
    %v1531 = vld [vmem:[#allocation2 + $0x19c] sm:$0xf]
    %v1532 = vld [vmem:[#allocation2 + $0x1a0] sm:$0x1]
    %v1533 = vld [vmem:[#allocation2 + $0x1a4] sm:$0xf]
    %v1534 = vld [vmem:[#allocation2 + $0x1a8] sm:$0xf]
    %v1535 = vld [vmem:[#allocation2 + $0x1ac] sm:$0x1]
    %v1600 = vunpack.c.l.b16 %v1428
    %v1601 = vunpack.c.l.b16 %v1429
    %v1602 = vunpack.c.l.b16 %v1431
    %v1603 = vunpack.c.l.b16 %v1432
    %v1604 = vunpack.c.l.b16 %v1434
    %v1605 = vunpack.c.l.b16 %v1435
    %v1606 = vunpack.c.l.b16 %v1437
    %v1607 = vunpack.c.l.b16 %v1438
    %v1608 = vunpack.c.l.b16 %v1440
    %v1609 = vunpack.c.l.b16 %v1441
    %v1610 = vunpack.c.l.b16 %v1443
    %v1611 = vunpack.c.l.b16 %v1444
    %v1612 = vunpack.c.l.b16 %v1446
    %v1613 = vunpack.c.l.b16 %v1447
    %v1614 = vunpack.c.l.b16 %v1449
    %v1615 = vunpack.c.l.b16 %v1450
    %v1616 = vunpack.c.l.b16 %v1452
    %v1617 = vunpack.c.l.b16 %v1453
    %v1618 = vunpack.c.l.b16 %v1455
    %v1619 = vunpack.c.l.b16 %v1456
    %v1620 = vunpack.c.l.b16 %v1458
    %v1621 = vunpack.c.l.b16 %v1459
    %v1622 = vunpack.c.l.b16 %v1461
    %v1623 = vunpack.c.l.b16 %v1462
    %v1624 = vunpack.c.l.b16 %v1464
    %v1625 = vunpack.c.l.b16 %v1465
    %v1626 = vunpack.c.l.b16 %v1467
    %v1627 = vunpack.c.l.b16 %v1468
    %v1628 = vunpack.c.l.b16 %v1470
    %v1629 = vunpack.c.l.b16 %v1471
    %v1630 = vunpack.c.l.b16 %v1473
    %v1631 = vunpack.c.l.b16 %v1474
    %v1632 = vunpack.c.l.b16 %v1482
    %v1633 = vunpack.c.l.b16 %v1483
    %v1634 = vunpack.c.l.b16 %v1485
    %v1635 = vunpack.c.l.b16 %v1486
    %v1636 = vunpack.c.l.b16 %v1488
    %v1637 = vunpack.c.l.b16 %v1489
    %v1638 = vunpack.c.l.b16 %v1491
    %v1639 = vunpack.c.l.b16 %v1492
    %v1640 = vunpack.c.l.b16 %v1494
    %v1641 = vunpack.c.l.b16 %v1495
    %v1642 = vunpack.c.l.b16 %v1497
    %v1643 = vunpack.c.l.b16 %v1498
    %v1644 = vunpack.c.l.b16 %v1500
    %v1645 = vunpack.c.l.b16 %v1501
    %v1646 = vunpack.c.l.b16 %v1503
    %v1647 = vunpack.c.l.b16 %v1504
    %v1648 = vunpack.c.l.b16 %v1506
    %v1649 = vunpack.c.l.b16 %v1507
    %v1650 = vunpack.c.l.b16 %v1509
    %v1651 = vunpack.c.l.b16 %v1510
    %v1652 = vunpack.c.l.b16 %v1512
    %v1653 = vunpack.c.l.b16 %v1513
    %v1654 = vunpack.c.l.b16 %v1515
    %v1655 = vunpack.c.l.b16 %v1516
    %v1656 = vunpack.c.l.b16 %v1518
    %v1657 = vunpack.c.l.b16 %v1519
    %v1658 = vunpack.c.l.b16 %v1521
    %v1659 = vunpack.c.l.b16 %v1522
    %v1660 = vunpack.c.l.b16 %v1524
    %v1661 = vunpack.c.l.b16 %v1525
    %v1662 = vunpack.c.l.b16 %v1527
    %v1663 = vunpack.c.l.b16 %v1528
    %v1664 = vpack.c.b16 %v1601, %v1600
    %v1665 = vpack.c.b16 %v1603, %v1602
    %v1666 = vpack.c.b16 %v1605, %v1604
    %v1667 = vpack.c.b16 %v1607, %v1606
    %v1668 = vpack.c.b16 %v1609, %v1608
    %v1669 = vpack.c.b16 %v1611, %v1610
    %v1670 = vpack.c.b16 %v1613, %v1612
    %v1671 = vpack.c.b16 %v1615, %v1614
    %v1672 = vpack.c.b16 %v1617, %v1616
    %v1673 = vpack.c.b16 %v1619, %v1618
    %v1674 = vpack.c.b16 %v1621, %v1620
    %v1675 = vpack.c.b16 %v1623, %v1622
    %v1676 = vpack.c.b16 %v1625, %v1624
    %v1677 = vpack.c.b16 %v1627, %v1626
    %v1678 = vpack.c.b16 %v1629, %v1628
    %v1679 = vpack.c.b16 %v1631, %v1630
    %v1680 = vpack.c.b16 %v1633, %v1632
    %v1681 = vpack.c.b16 %v1635, %v1634
    %v1682 = vpack.c.b16 %v1637, %v1636
    %v1683 = vpack.c.b16 %v1639, %v1638
    %v1684 = vpack.c.b16 %v1641, %v1640
    %v1685 = vpack.c.b16 %v1643, %v1642
    %v1686 = vpack.c.b16 %v1645, %v1644
    %v1687 = vpack.c.b16 %v1647, %v1646
    %v1688 = vpack.c.b16 %v1649, %v1648
    %v1689 = vpack.c.b16 %v1651, %v1650
    %v1690 = vpack.c.b16 %v1653, %v1652
    %v1691 = vpack.c.b16 %v1655, %v1654
    %v1692 = vpack.c.b16 %v1657, %v1656
    %v1693 = vpack.c.b16 %v1659, %v1658
    %v1694 = vpack.c.b16 %v1661, %v1660
    %v1695 = vpack.c.b16 %v1663, %v1662
    %1728 = vst [vmem:[#allocation3] sm:$0xff] %v1664
    %1729 = vst [vmem:[#allocation3 + $0x48] sm:$0xff] %v1665
    %1730 = vst [vmem:[#allocation3 + $0x90] sm:$0xff] %v1666
    %1731 = vst [vmem:[#allocation3 + $0xd8] sm:$0xff] %v1667
    %1732 = vst [vmem:[#allocation3 + $0x120] sm:$0xff] %v1668
    %1733 = vst [vmem:[#allocation3 + $0x168] sm:$0xff] %v1669
    %1734 = vst [vmem:[#allocation3 + $0x1b0] sm:$0xff] %v1670
    %1735 = vst [vmem:[#allocation3 + $0x1f8] sm:$0xff] %v1671
    %1736 = vst [vmem:[#allocation3 + $0x240] sm:$0xff] %v1672
    %1737 = vst [vmem:[#allocation3 + $0x288] sm:$0xff] %v1673
    %1738 = vst [vmem:[#allocation3 + $0x2d0] sm:$0xff] %v1674
    %1739 = vst [vmem:[#allocation3 + $0x318] sm:$0xff] %v1675
    %1740 = vst [vmem:[#allocation3 + $0x360] sm:$0xff] %v1676
    %1741 = vst [vmem:[#allocation3 + $0x3a8] sm:$0xff] %v1677
    %1742 = vst [vmem:[#allocation3 + $0x3f0] sm:$0xff] %v1678
    %1743 = vst [vmem:[#allocation3 + $0x438] sm:$0xff] %v1679
    %1744 = vst [vmem:[#allocation3 + $0x480] sm:$0xff] %v1680
    %1745 = vst [vmem:[#allocation3 + $0x4c8] sm:$0xff] %v1681
    %1746 = vst [vmem:[#allocation3 + $0x510] sm:$0xff] %v1682
    %1747 = vst [vmem:[#allocation3 + $0x558] sm:$0xff] %v1683
    %1748 = vst [vmem:[#allocation3 + $0x5a0] sm:$0xff] %v1684
    %1749 = vst [vmem:[#allocation3 + $0x5e8] sm:$0xff] %v1685
    %1750 = vst [vmem:[#allocation3 + $0x630] sm:$0xff] %v1686
    %1751 = vst [vmem:[#allocation3 + $0x678] sm:$0xff] %v1687
    %1752 = vst [vmem:[#allocation3 + $0x6c0] sm:$0xff] %v1688
    %1753 = vst [vmem:[#allocation3 + $0x708] sm:$0xff] %v1689
    %1754 = vst [vmem:[#allocation3 + $0x750] sm:$0xff] %v1690
    %1755 = vst [vmem:[#allocation3 + $0x798] sm:$0xff] %v1691
    %1756 = vst [vmem:[#allocation3 + $0x7e0] sm:$0xff] %v1692
    %1757 = vst [vmem:[#allocation3 + $0x828] sm:$0xff] %v1693
    %1758 = vst [vmem:[#allocation3 + $0x870] sm:$0xff] %v1694
    %1759 = vst [vmem:[#allocation3 + $0x8b8] sm:$0xff] %v1695
    %vm1760 = vsmask.f32 3328
    %vm1761 = vsmask.f32 7440
    %vm1762 = vmor %vm1760, %vm1761
    %v1764 = vshrl.u32 %v1428, 16
    %v1766 = vrot.slane %v1764, 4
    %v1767 = vshll.u32 %v1428, 16
    %v1769 = vrot.slane %v1767, 5
    %v1770 = vor.u32 %v1766, %v1769
    %v1771 = vrot.slane %v1770, 4
    %v1773 = vshll.u32 %v1429, 16
    %v1775 = vrot.slane %v1773, 5
    %v1776 = vsel %vm1762, %v1771, %v1775
    %v1777 = vshrl.u32 %v1429, 16
    %v1779 = vrot.slane %v1777, 4
    %v1780 = vor.u32 %v1779, %v1775
    %v1781 = vrot.slane %v1780, 4
    %v1783 = vshll.u32 %v1430, 16
    %v1785 = vrot.slane %v1783, 5
    %v1786 = vsel %vm1762, %v1781, %v1785
    %v1788 = vshrl.u32 %v1431, 16
    %v1790 = vrot.slane %v1788, 4
    %v1791 = vshll.u32 %v1431, 16
    %v1793 = vrot.slane %v1791, 5
    %v1794 = vor.u32 %v1790, %v1793
    %v1795 = vrot.slane %v1794, 4
    %v1797 = vshll.u32 %v1432, 16
    %v1799 = vrot.slane %v1797, 5
    %v1800 = vsel %vm1762, %v1795, %v1799
    %v1801 = vshrl.u32 %v1432, 16
    %v1803 = vrot.slane %v1801, 4
    %v1804 = vor.u32 %v1803, %v1799
    %v1805 = vrot.slane %v1804, 4
    %v1807 = vshll.u32 %v1433, 16
    %v1809 = vrot.slane %v1807, 5
    %v1810 = vsel %vm1762, %v1805, %v1809
    %v1812 = vshrl.u32 %v1434, 16
    %v1814 = vrot.slane %v1812, 4
    %v1815 = vshll.u32 %v1434, 16
    %v1817 = vrot.slane %v1815, 5
    %v1818 = vor.u32 %v1814, %v1817
    %v1819 = vrot.slane %v1818, 4
    %v1821 = vshll.u32 %v1435, 16
    %v1823 = vrot.slane %v1821, 5
    %v1824 = vsel %vm1762, %v1819, %v1823
    %v1825 = vshrl.u32 %v1435, 16
    %v1827 = vrot.slane %v1825, 4
    %v1828 = vor.u32 %v1827, %v1823
    %v1829 = vrot.slane %v1828, 4
    %v1831 = vshll.u32 %v1436, 16
    %v1833 = vrot.slane %v1831, 5
    %v1834 = vsel %vm1762, %v1829, %v1833
    %v1836 = vshrl.u32 %v1437, 16
    %v1838 = vrot.slane %v1836, 4
    %v1839 = vshll.u32 %v1437, 16
    %v1841 = vrot.slane %v1839, 5
    %v1842 = vor.u32 %v1838, %v1841
    %v1843 = vrot.slane %v1842, 4
    %v1845 = vshll.u32 %v1438, 16
    %v1847 = vrot.slane %v1845, 5
    %v1848 = vsel %vm1762, %v1843, %v1847
    %v1849 = vshrl.u32 %v1438, 16
    %v1851 = vrot.slane %v1849, 4
    %v1852 = vor.u32 %v1851, %v1847
    %v1853 = vrot.slane %v1852, 4
    %v1855 = vshll.u32 %v1439, 16
    %v1857 = vrot.slane %v1855, 5
    %v1858 = vsel %vm1762, %v1853, %v1857
    %v1860 = vshrl.u32 %v1440, 16
    %v1862 = vrot.slane %v1860, 4
    %v1863 = vshll.u32 %v1440, 16
    %v1865 = vrot.slane %v1863, 5
    %v1866 = vor.u32 %v1862, %v1865
    %v1867 = vrot.slane %v1866, 4
    %v1869 = vshll.u32 %v1441, 16
    %v1871 = vrot.slane %v1869, 5
    %v1872 = vsel %vm1762, %v1867, %v1871
    %v1873 = vshrl.u32 %v1441, 16
    %v1875 = vrot.slane %v1873, 4
    %v1876 = vor.u32 %v1875, %v1871
    %v1877 = vrot.slane %v1876, 4
    %v1879 = vshll.u32 %v1442, 16
    %v1881 = vrot.slane %v1879, 5
    %v1882 = vsel %vm1762, %v1877, %v1881
    %v1884 = vshrl.u32 %v1443, 16
    %v1886 = vrot.slane %v1884, 4
    %v1887 = vshll.u32 %v1443, 16
    %v1889 = vrot.slane %v1887, 5
    %v1890 = vor.u32 %v1886, %v1889
    %v1891 = vrot.slane %v1890, 4
    %v1893 = vshll.u32 %v1444, 16
    %v1895 = vrot.slane %v1893, 5
    %v1896 = vsel %vm1762, %v1891, %v1895
    %v1897 = vshrl.u32 %v1444, 16
    %v1899 = vrot.slane %v1897, 4
    %v1900 = vor.u32 %v1899, %v1895
    %v1901 = vrot.slane %v1900, 4
    %v1903 = vshll.u32 %v1445, 16
    %v1905 = vrot.slane %v1903, 5
    %v1906 = vsel %vm1762, %v1901, %v1905
    %v1908 = vshrl.u32 %v1446, 16
    %v1910 = vrot.slane %v1908, 4
    %v1911 = vshll.u32 %v1446, 16
    %v1913 = vrot.slane %v1911, 5
    %v1914 = vor.u32 %v1910, %v1913
    %v1915 = vrot.slane %v1914, 4
    %v1917 = vshll.u32 %v1447, 16
    %v1919 = vrot.slane %v1917, 5
    %v1920 = vsel %vm1762, %v1915, %v1919
    %v1921 = vshrl.u32 %v1447, 16
    %v1923 = vrot.slane %v1921, 4
    %v1924 = vor.u32 %v1923, %v1919
    %v1925 = vrot.slane %v1924, 4
    %v1927 = vshll.u32 %v1448, 16
    %v1929 = vrot.slane %v1927, 5
    %v1930 = vsel %vm1762, %v1925, %v1929
    %v1932 = vshrl.u32 %v1449, 16
    %v1934 = vrot.slane %v1932, 4
    %v1935 = vshll.u32 %v1449, 16
    %v1937 = vrot.slane %v1935, 5
    %v1938 = vor.u32 %v1934, %v1937
    %v1939 = vrot.slane %v1938, 4
    %v1941 = vshll.u32 %v1450, 16
    %v1943 = vrot.slane %v1941, 5
    %v1944 = vsel %vm1762, %v1939, %v1943
    %v1945 = vshrl.u32 %v1450, 16
    %v1947 = vrot.slane %v1945, 4
    %v1948 = vor.u32 %v1947, %v1943
    %v1949 = vrot.slane %v1948, 4
    %v1951 = vshll.u32 %v1451, 16
    %v1953 = vrot.slane %v1951, 5
    %v1954 = vsel %vm1762, %v1949, %v1953
    %v1956 = vshrl.u32 %v1452, 16
    %v1958 = vrot.slane %v1956, 4
    %v1959 = vshll.u32 %v1452, 16
    %v1961 = vrot.slane %v1959, 5
    %v1962 = vor.u32 %v1958, %v1961
    %v1963 = vrot.slane %v1962, 4
    %v1965 = vshll.u32 %v1453, 16
    %v1967 = vrot.slane %v1965, 5
    %v1968 = vsel %vm1762, %v1963, %v1967
    %v1969 = vshrl.u32 %v1453, 16
    %v1971 = vrot.slane %v1969, 4
    %v1972 = vor.u32 %v1971, %v1967
    %v1973 = vrot.slane %v1972, 4
    %v1975 = vshll.u32 %v1454, 16
    %v1977 = vrot.slane %v1975, 5
    %v1978 = vsel %vm1762, %v1973, %v1977
    %v1980 = vshrl.u32 %v1455, 16
    %v1982 = vrot.slane %v1980, 4
    %v1983 = vshll.u32 %v1455, 16
    %v1985 = vrot.slane %v1983, 5
    %v1986 = vor.u32 %v1982, %v1985
    %v1987 = vrot.slane %v1986, 4
    %v1989 = vshll.u32 %v1456, 16
    %v1991 = vrot.slane %v1989, 5
    %v1992 = vsel %vm1762, %v1987, %v1991
    %v1993 = vshrl.u32 %v1456, 16
    %v1995 = vrot.slane %v1993, 4
    %v1996 = vor.u32 %v1995, %v1991
    %v1997 = vrot.slane %v1996, 4
    %v1999 = vshll.u32 %v1457, 16
    %v2001 = vrot.slane %v1999, 5
    %v2002 = vsel %vm1762, %v1997, %v2001
    %v2004 = vshrl.u32 %v1458, 16
    %v2006 = vrot.slane %v2004, 4
    %v2007 = vshll.u32 %v1458, 16
    %v2009 = vrot.slane %v2007, 5
    %v2010 = vor.u32 %v2006, %v2009
    %v2011 = vrot.slane %v2010, 4
    %v2013 = vshll.u32 %v1459, 16
    %v2015 = vrot.slane %v2013, 5
    %v2016 = vsel %vm1762, %v2011, %v2015
    %v2017 = vshrl.u32 %v1459, 16
    %v2019 = vrot.slane %v2017, 4
    %v2020 = vor.u32 %v2019, %v2015
    %v2021 = vrot.slane %v2020, 4
    %v2023 = vshll.u32 %v1460, 16
    %v2025 = vrot.slane %v2023, 5
    %v2026 = vsel %vm1762, %v2021, %v2025
    %v2028 = vshrl.u32 %v1461, 16
    %v2030 = vrot.slane %v2028, 4
    %v2031 = vshll.u32 %v1461, 16
    %v2033 = vrot.slane %v2031, 5
    %v2034 = vor.u32 %v2030, %v2033
    %v2035 = vrot.slane %v2034, 4
    %v2037 = vshll.u32 %v1462, 16
    %v2039 = vrot.slane %v2037, 5
    %v2040 = vsel %vm1762, %v2035, %v2039
    %v2041 = vshrl.u32 %v1462, 16
    %v2043 = vrot.slane %v2041, 4
    %v2044 = vor.u32 %v2043, %v2039
    %v2045 = vrot.slane %v2044, 4
    %v2047 = vshll.u32 %v1463, 16
    %v2049 = vrot.slane %v2047, 5
    %v2050 = vsel %vm1762, %v2045, %v2049
    %v2052 = vshrl.u32 %v1464, 16
    %v2054 = vrot.slane %v2052, 4
    %v2055 = vshll.u32 %v1464, 16
    %v2057 = vrot.slane %v2055, 5
    %v2058 = vor.u32 %v2054, %v2057
    %v2059 = vrot.slane %v2058, 4
    %v2061 = vshll.u32 %v1465, 16
    %v2063 = vrot.slane %v2061, 5
    %v2064 = vsel %vm1762, %v2059, %v2063
    %v2065 = vshrl.u32 %v1465, 16
    %v2067 = vrot.slane %v2065, 4
    %v2068 = vor.u32 %v2067, %v2063
    %v2069 = vrot.slane %v2068, 4
    %v2071 = vshll.u32 %v1466, 16
    %v2073 = vrot.slane %v2071, 5
    %v2074 = vsel %vm1762, %v2069, %v2073
    %v2076 = vshrl.u32 %v1467, 16
    %v2078 = vrot.slane %v2076, 4
    %v2079 = vshll.u32 %v1467, 16
    %v2081 = vrot.slane %v2079, 5
    %v2082 = vor.u32 %v2078, %v2081
    %v2083 = vrot.slane %v2082, 4
    %v2085 = vshll.u32 %v1468, 16
    %v2087 = vrot.slane %v2085, 5
    %v2088 = vsel %vm1762, %v2083, %v2087
    %v2089 = vshrl.u32 %v1468, 16
    %v2091 = vrot.slane %v2089, 4
    %v2092 = vor.u32 %v2091, %v2087
    %v2093 = vrot.slane %v2092, 4
    %v2095 = vshll.u32 %v1469, 16
    %v2097 = vrot.slane %v2095, 5
    %v2098 = vsel %vm1762, %v2093, %v2097
    %v2100 = vshrl.u32 %v1470, 16
    %v2102 = vrot.slane %v2100, 4
    %v2103 = vshll.u32 %v1470, 16
    %v2105 = vrot.slane %v2103, 5
    %v2106 = vor.u32 %v2102, %v2105
    %v2107 = vrot.slane %v2106, 4
    %v2109 = vshll.u32 %v1471, 16
    %v2111 = vrot.slane %v2109, 5
    %v2112 = vsel %vm1762, %v2107, %v2111
    %v2113 = vshrl.u32 %v1471, 16
    %v2115 = vrot.slane %v2113, 4
    %v2116 = vor.u32 %v2115, %v2111
    %v2117 = vrot.slane %v2116, 4
    %v2119 = vshll.u32 %v1472, 16
    %v2121 = vrot.slane %v2119, 5
    %v2122 = vsel %vm1762, %v2117, %v2121
    %v2124 = vshrl.u32 %v1473, 16
    %v2126 = vrot.slane %v2124, 4
    %v2127 = vshll.u32 %v1473, 16
    %v2129 = vrot.slane %v2127, 5
    %v2130 = vor.u32 %v2126, %v2129
    %v2131 = vrot.slane %v2130, 4
    %v2133 = vshll.u32 %v1474, 16
    %v2135 = vrot.slane %v2133, 5
    %v2136 = vsel %vm1762, %v2131, %v2135
    %v2137 = vshrl.u32 %v1474, 16
    %v2139 = vrot.slane %v2137, 4
    %v2140 = vor.u32 %v2139, %v2135
    %v2141 = vrot.slane %v2140, 4
    %v2143 = vshll.u32 %v1475, 16
    %v2145 = vrot.slane %v2143, 5
    %v2146 = vsel %vm1762, %v2141, %v2145
    %v2148 = vshrl.u32 %v1482, 16
    %v2150 = vrot.slane %v2148, 4
    %v2151 = vshll.u32 %v1482, 16
    %v2153 = vrot.slane %v2151, 5
    %v2154 = vor.u32 %v2150, %v2153
    %v2155 = vrot.slane %v2154, 4
    %v2157 = vshll.u32 %v1483, 16
    %v2159 = vrot.slane %v2157, 5
    %v2160 = vsel %vm1762, %v2155, %v2159
    %v2161 = vshrl.u32 %v1483, 16
    %v2163 = vrot.slane %v2161, 4
    %v2164 = vor.u32 %v2163, %v2159
    %v2165 = vrot.slane %v2164, 4
    %v2167 = vshll.u32 %v1484, 16
    %v2169 = vrot.slane %v2167, 5
    %v2170 = vsel %vm1762, %v2165, %v2169
    %v2172 = vshrl.u32 %v1485, 16
    %v2174 = vrot.slane %v2172, 4
    %v2175 = vshll.u32 %v1485, 16
    %v2177 = vrot.slane %v2175, 5
    %v2178 = vor.u32 %v2174, %v2177
    %v2179 = vrot.slane %v2178, 4
    %v2181 = vshll.u32 %v1486, 16
    %v2183 = vrot.slane %v2181, 5
    %v2184 = vsel %vm1762, %v2179, %v2183
    %v2185 = vshrl.u32 %v1486, 16
    %v2187 = vrot.slane %v2185, 4
    %v2188 = vor.u32 %v2187, %v2183
    %v2189 = vrot.slane %v2188, 4
    %v2191 = vshll.u32 %v1487, 16
    %v2193 = vrot.slane %v2191, 5
    %v2194 = vsel %vm1762, %v2189, %v2193
    %v2196 = vshrl.u32 %v1488, 16
    %v2198 = vrot.slane %v2196, 4
    %v2199 = vshll.u32 %v1488, 16
    %v2201 = vrot.slane %v2199, 5
    %v2202 = vor.u32 %v2198, %v2201
    %v2203 = vrot.slane %v2202, 4
    %v2205 = vshll.u32 %v1489, 16
    %v2207 = vrot.slane %v2205, 5
    %v2208 = vsel %vm1762, %v2203, %v2207
    %v2209 = vshrl.u32 %v1489, 16
    %v2211 = vrot.slane %v2209, 4
    %v2212 = vor.u32 %v2211, %v2207
    %v2213 = vrot.slane %v2212, 4
    %v2215 = vshll.u32 %v1490, 16
    %v2217 = vrot.slane %v2215, 5
    %v2218 = vsel %vm1762, %v2213, %v2217
    %v2220 = vshrl.u32 %v1491, 16
    %v2222 = vrot.slane %v2220, 4
    %v2223 = vshll.u32 %v1491, 16
    %v2225 = vrot.slane %v2223, 5
    %v2226 = vor.u32 %v2222, %v2225
    %v2227 = vrot.slane %v2226, 4
    %v2229 = vshll.u32 %v1492, 16
    %v2231 = vrot.slane %v2229, 5
    %v2232 = vsel %vm1762, %v2227, %v2231
    %v2233 = vshrl.u32 %v1492, 16
    %v2235 = vrot.slane %v2233, 4
    %v2236 = vor.u32 %v2235, %v2231
    %v2237 = vrot.slane %v2236, 4
    %v2239 = vshll.u32 %v1493, 16
    %v2241 = vrot.slane %v2239, 5
    %v2242 = vsel %vm1762, %v2237, %v2241
    %v2244 = vshrl.u32 %v1494, 16
    %v2246 = vrot.slane %v2244, 4
    %v2247 = vshll.u32 %v1494, 16
    %v2249 = vrot.slane %v2247, 5
    %v2250 = vor.u32 %v2246, %v2249
    %v2251 = vrot.slane %v2250, 4
    %v2253 = vshll.u32 %v1495, 16
    %v2255 = vrot.slane %v2253, 5
    %v2256 = vsel %vm1762, %v2251, %v2255
    %v2257 = vshrl.u32 %v1495, 16
    %v2259 = vrot.slane %v2257, 4
    %v2260 = vor.u32 %v2259, %v2255
    %v2261 = vrot.slane %v2260, 4
    %v2263 = vshll.u32 %v1496, 16
    %v2265 = vrot.slane %v2263, 5
    %v2266 = vsel %vm1762, %v2261, %v2265
    %v2268 = vshrl.u32 %v1497, 16
    %v2270 = vrot.slane %v2268, 4
    %v2271 = vshll.u32 %v1497, 16
    %v2273 = vrot.slane %v2271, 5
    %v2274 = vor.u32 %v2270, %v2273
    %v2275 = vrot.slane %v2274, 4
    %v2277 = vshll.u32 %v1498, 16
    %v2279 = vrot.slane %v2277, 5
    %v2280 = vsel %vm1762, %v2275, %v2279
    %v2281 = vshrl.u32 %v1498, 16
    %v2283 = vrot.slane %v2281, 4
    %v2284 = vor.u32 %v2283, %v2279
    %v2285 = vrot.slane %v2284, 4
    %v2287 = vshll.u32 %v1499, 16
    %v2289 = vrot.slane %v2287, 5
    %v2290 = vsel %vm1762, %v2285, %v2289
    %v2292 = vshrl.u32 %v1500, 16
    %v2294 = vrot.slane %v2292, 4
    %v2295 = vshll.u32 %v1500, 16
    %v2297 = vrot.slane %v2295, 5
    %v2298 = vor.u32 %v2294, %v2297
    %v2299 = vrot.slane %v2298, 4
    %v2301 = vshll.u32 %v1501, 16
    %v2303 = vrot.slane %v2301, 5
    %v2304 = vsel %vm1762, %v2299, %v2303
    %v2305 = vshrl.u32 %v1501, 16
    %v2307 = vrot.slane %v2305, 4
    %v2308 = vor.u32 %v2307, %v2303
    %v2309 = vrot.slane %v2308, 4
    %v2311 = vshll.u32 %v1502, 16
    %v2313 = vrot.slane %v2311, 5
    %v2314 = vsel %vm1762, %v2309, %v2313
    %v2316 = vshrl.u32 %v1503, 16
    %v2318 = vrot.slane %v2316, 4
    %v2319 = vshll.u32 %v1503, 16
    %v2321 = vrot.slane %v2319, 5
    %v2322 = vor.u32 %v2318, %v2321
    %v2323 = vrot.slane %v2322, 4
    %v2325 = vshll.u32 %v1504, 16
    %v2327 = vrot.slane %v2325, 5
    %v2328 = vsel %vm1762, %v2323, %v2327
    %v2329 = vshrl.u32 %v1504, 16
    %v2331 = vrot.slane %v2329, 4
    %v2332 = vor.u32 %v2331, %v2327
    %v2333 = vrot.slane %v2332, 4
    %v2335 = vshll.u32 %v1505, 16
    %v2337 = vrot.slane %v2335, 5
    %v2338 = vsel %vm1762, %v2333, %v2337
    %v2340 = vshrl.u32 %v1506, 16
    %v2342 = vrot.slane %v2340, 4
    %v2343 = vshll.u32 %v1506, 16
    %v2345 = vrot.slane %v2343, 5
    %v2346 = vor.u32 %v2342, %v2345
    %v2347 = vrot.slane %v2346, 4
    %v2349 = vshll.u32 %v1507, 16
    %v2351 = vrot.slane %v2349, 5
    %v2352 = vsel %vm1762, %v2347, %v2351
    %v2353 = vshrl.u32 %v1507, 16
    %v2355 = vrot.slane %v2353, 4
    %v2356 = vor.u32 %v2355, %v2351
    %v2357 = vrot.slane %v2356, 4
    %v2359 = vshll.u32 %v1508, 16
    %v2361 = vrot.slane %v2359, 5
    %v2362 = vsel %vm1762, %v2357, %v2361
    %v2364 = vshrl.u32 %v1509, 16
    %v2366 = vrot.slane %v2364, 4
    %v2367 = vshll.u32 %v1509, 16
    %v2369 = vrot.slane %v2367, 5
    %v2370 = vor.u32 %v2366, %v2369
    %v2371 = vrot.slane %v2370, 4
    %v2373 = vshll.u32 %v1510, 16
    %v2375 = vrot.slane %v2373, 5
    %v2376 = vsel %vm1762, %v2371, %v2375
    %v2377 = vshrl.u32 %v1510, 16
    %v2379 = vrot.slane %v2377, 4
    %v2380 = vor.u32 %v2379, %v2375
    %v2381 = vrot.slane %v2380, 4
    %v2383 = vshll.u32 %v1511, 16
    %v2385 = vrot.slane %v2383, 5
    %v2386 = vsel %vm1762, %v2381, %v2385
    %v2388 = vshrl.u32 %v1512, 16
    %v2390 = vrot.slane %v2388, 4
    %v2391 = vshll.u32 %v1512, 16
    %v2393 = vrot.slane %v2391, 5
    %v2394 = vor.u32 %v2390, %v2393
    %v2395 = vrot.slane %v2394, 4
    %v2397 = vshll.u32 %v1513, 16
    %v2399 = vrot.slane %v2397, 5
    %v2400 = vsel %vm1762, %v2395, %v2399
    %v2401 = vshrl.u32 %v1513, 16
    %v2403 = vrot.slane %v2401, 4
    %v2404 = vor.u32 %v2403, %v2399
    %v2405 = vrot.slane %v2404, 4
    %v2407 = vshll.u32 %v1514, 16
    %v2409 = vrot.slane %v2407, 5
    %v2410 = vsel %vm1762, %v2405, %v2409
    %v2412 = vshrl.u32 %v1515, 16
    %v2414 = vrot.slane %v2412, 4
    %v2415 = vshll.u32 %v1515, 16
    %v2417 = vrot.slane %v2415, 5
    %v2418 = vor.u32 %v2414, %v2417
    %v2419 = vrot.slane %v2418, 4
    %v2421 = vshll.u32 %v1516, 16
    %v2423 = vrot.slane %v2421, 5
    %v2424 = vsel %vm1762, %v2419, %v2423
    %v2425 = vshrl.u32 %v1516, 16
    %v2427 = vrot.slane %v2425, 4
    %v2428 = vor.u32 %v2427, %v2423
    %v2429 = vrot.slane %v2428, 4
    %v2431 = vshll.u32 %v1517, 16
    %v2433 = vrot.slane %v2431, 5
    %v2434 = vsel %vm1762, %v2429, %v2433
    %v2436 = vshrl.u32 %v1518, 16
    %v2438 = vrot.slane %v2436, 4
    %v2439 = vshll.u32 %v1518, 16
    %v2441 = vrot.slane %v2439, 5
    %v2442 = vor.u32 %v2438, %v2441
    %v2443 = vrot.slane %v2442, 4
    %v2445 = vshll.u32 %v1519, 16
    %v2447 = vrot.slane %v2445, 5
    %v2448 = vsel %vm1762, %v2443, %v2447
    %v2449 = vshrl.u32 %v1519, 16
    %v2451 = vrot.slane %v2449, 4
    %v2452 = vor.u32 %v2451, %v2447
    %v2453 = vrot.slane %v2452, 4
    %v2455 = vshll.u32 %v1520, 16
    %v2457 = vrot.slane %v2455, 5
    %v2458 = vsel %vm1762, %v2453, %v2457
    %v2460 = vshrl.u32 %v1521, 16
    %v2462 = vrot.slane %v2460, 4
    %v2463 = vshll.u32 %v1521, 16
    %v2465 = vrot.slane %v2463, 5
    %v2466 = vor.u32 %v2462, %v2465
    %v2467 = vrot.slane %v2466, 4
    %v2469 = vshll.u32 %v1522, 16
    %v2471 = vrot.slane %v2469, 5
    %v2472 = vsel %vm1762, %v2467, %v2471
    %v2473 = vshrl.u32 %v1522, 16
    %v2475 = vrot.slane %v2473, 4
    %v2476 = vor.u32 %v2475, %v2471
    %v2477 = vrot.slane %v2476, 4
    %v2479 = vshll.u32 %v1523, 16
    %v2481 = vrot.slane %v2479, 5
    %v2482 = vsel %vm1762, %v2477, %v2481
    %v2484 = vshrl.u32 %v1524, 16
    %v2486 = vrot.slane %v2484, 4
    %v2487 = vshll.u32 %v1524, 16
    %v2489 = vrot.slane %v2487, 5
    %v2490 = vor.u32 %v2486, %v2489
    %v2491 = vrot.slane %v2490, 4
    %v2493 = vshll.u32 %v1525, 16
    %v2495 = vrot.slane %v2493, 5
    %v2496 = vsel %vm1762, %v2491, %v2495
    %v2497 = vshrl.u32 %v1525, 16
    %v2499 = vrot.slane %v2497, 4
    %v2500 = vor.u32 %v2499, %v2495
    %v2501 = vrot.slane %v2500, 4
    %v2503 = vshll.u32 %v1526, 16
    %v2505 = vrot.slane %v2503, 5
    %v2506 = vsel %vm1762, %v2501, %v2505
    %v2508 = vshrl.u32 %v1527, 16
    %v2510 = vrot.slane %v2508, 4
    %v2511 = vshll.u32 %v1527, 16
    %v2513 = vrot.slane %v2511, 5
    %v2514 = vor.u32 %v2510, %v2513
    %v2515 = vrot.slane %v2514, 4
    %v2517 = vshll.u32 %v1528, 16
    %v2519 = vrot.slane %v2517, 5
    %v2520 = vsel %vm1762, %v2515, %v2519
    %v2521 = vshrl.u32 %v1528, 16
    %v2523 = vrot.slane %v2521, 4
    %v2524 = vor.u32 %v2523, %v2519
    %v2525 = vrot.slane %v2524, 4
    %v2527 = vshll.u32 %v1529, 16
    %v2529 = vrot.slane %v2527, 5
    %v2530 = vsel %vm1762, %v2525, %v2529
    %v2531 = vunpack.c.l.b16 %v1776
    %v2532 = vunpack.c.l.b16 %v1786
    %v2533 = vunpack.c.l.b16 %v1800
    %v2534 = vunpack.c.l.b16 %v1810
    %v2535 = vunpack.c.l.b16 %v1824
    %v2536 = vunpack.c.l.b16 %v1834
    %v2537 = vunpack.c.l.b16 %v1848
    %v2538 = vunpack.c.l.b16 %v1858
    %v2539 = vunpack.c.l.b16 %v1872
    %v2540 = vunpack.c.l.b16 %v1882
    %v2541 = vunpack.c.l.b16 %v1896
    %v2542 = vunpack.c.l.b16 %v1906
    %v2543 = vunpack.c.l.b16 %v1920
    %v2544 = vunpack.c.l.b16 %v1930
    %v2545 = vunpack.c.l.b16 %v1944
    %v2546 = vunpack.c.l.b16 %v1954
    %v2547 = vunpack.c.l.b16 %v1968
    %v2548 = vunpack.c.l.b16 %v1978
    %v2549 = vunpack.c.l.b16 %v1992
    %v2550 = vunpack.c.l.b16 %v2002
    %v2551 = vunpack.c.l.b16 %v2016
    %v2552 = vunpack.c.l.b16 %v2026
    %v2553 = vunpack.c.l.b16 %v2040
    %v2554 = vunpack.c.l.b16 %v2050
    %v2555 = vunpack.c.l.b16 %v2064
    %v2556 = vunpack.c.l.b16 %v2074
    %v2557 = vunpack.c.l.b16 %v2088
    %v2558 = vunpack.c.l.b16 %v2098
    %v2559 = vunpack.c.l.b16 %v2112
    %v2560 = vunpack.c.l.b16 %v2122
    %v2561 = vunpack.c.l.b16 %v2136
    %v2562 = vunpack.c.l.b16 %v2146
    %v2563 = vunpack.c.l.b16 %v2160
    %v2564 = vunpack.c.l.b16 %v2170
    %v2565 = vunpack.c.l.b16 %v2184
    %v2566 = vunpack.c.l.b16 %v2194
    %v2567 = vunpack.c.l.b16 %v2208
    %v2568 = vunpack.c.l.b16 %v2218
    %v2569 = vunpack.c.l.b16 %v2232
    %v2570 = vunpack.c.l.b16 %v2242
    %v2571 = vunpack.c.l.b16 %v2256
    %v2572 = vunpack.c.l.b16 %v2266
    %v2573 = vunpack.c.l.b16 %v2280
    %v2574 = vunpack.c.l.b16 %v2290
    %v2575 = vunpack.c.l.b16 %v2304
    %v2576 = vunpack.c.l.b16 %v2314
    %v2577 = vunpack.c.l.b16 %v2328
    %v2578 = vunpack.c.l.b16 %v2338
    %v2579 = vunpack.c.l.b16 %v2352
    %v2580 = vunpack.c.l.b16 %v2362
    %v2581 = vunpack.c.l.b16 %v2376
    %v2582 = vunpack.c.l.b16 %v2386
    %v2583 = vunpack.c.l.b16 %v2400
    %v2584 = vunpack.c.l.b16 %v2410
    %v2585 = vunpack.c.l.b16 %v2424
    %v2586 = vunpack.c.l.b16 %v2434
    %v2587 = vunpack.c.l.b16 %v2448
    %v2588 = vunpack.c.l.b16 %v2458
    %v2589 = vunpack.c.l.b16 %v2472
    %v2590 = vunpack.c.l.b16 %v2482
    %v2591 = vunpack.c.l.b16 %v2496
    %v2592 = vunpack.c.l.b16 %v2506
    %v2593 = vunpack.c.l.b16 %v2520
    %v2594 = vunpack.c.l.b16 %v2530
    %v2595 = vpack.c.b16 %v2532, %v2531
    %v2596 = vpack.c.b16 %v2534, %v2533
    %v2597 = vpack.c.b16 %v2536, %v2535
    %v2598 = vpack.c.b16 %v2538, %v2537
    %v2599 = vpack.c.b16 %v2540, %v2539
    %v2600 = vpack.c.b16 %v2542, %v2541
    %v2601 = vpack.c.b16 %v2544, %v2543
    %v2602 = vpack.c.b16 %v2546, %v2545
    %v2603 = vpack.c.b16 %v2548, %v2547
    %v2604 = vpack.c.b16 %v2550, %v2549
    %v2605 = vpack.c.b16 %v2552, %v2551
    %v2606 = vpack.c.b16 %v2554, %v2553
    %v2607 = vpack.c.b16 %v2556, %v2555
    %v2608 = vpack.c.b16 %v2558, %v2557
    %v2609 = vpack.c.b16 %v2560, %v2559
    %v2610 = vpack.c.b16 %v2562, %v2561
    %v2611 = vpack.c.b16 %v2564, %v2563
    %v2612 = vpack.c.b16 %v2566, %v2565
    %v2613 = vpack.c.b16 %v2568, %v2567
    %v2614 = vpack.c.b16 %v2570, %v2569
    %v2615 = vpack.c.b16 %v2572, %v2571
    %v2616 = vpack.c.b16 %v2574, %v2573
    %v2617 = vpack.c.b16 %v2576, %v2575
    %v2618 = vpack.c.b16 %v2578, %v2577
    %v2619 = vpack.c.b16 %v2580, %v2579
    %v2620 = vpack.c.b16 %v2582, %v2581
    %v2621 = vpack.c.b16 %v2584, %v2583
    %v2622 = vpack.c.b16 %v2586, %v2585
    %v2623 = vpack.c.b16 %v2588, %v2587
    %v2624 = vpack.c.b16 %v2590, %v2589
    %v2625 = vpack.c.b16 %v2592, %v2591
    %v2626 = vpack.c.b16 %v2594, %v2593
    %2659 = vst [vmem:[#allocation3 + $0x8] sm:$0xff] %v2595
    %2660 = vst [vmem:[#allocation3 + $0x50] sm:$0xff] %v2596
    %2661 = vst [vmem:[#allocation3 + $0x98] sm:$0xff] %v2597
    %2662 = vst [vmem:[#allocation3 + $0xe0] sm:$0xff] %v2598
    %2663 = vst [vmem:[#allocation3 + $0x128] sm:$0xff] %v2599
    %2664 = vst [vmem:[#allocation3 + $0x170] sm:$0xff] %v2600
    %2665 = vst [vmem:[#allocation3 + $0x1b8] sm:$0xff] %v2601
    %2666 = vst [vmem:[#allocation3 + $0x200] sm:$0xff] %v2602
    %2667 = vst [vmem:[#allocation3 + $0x248] sm:$0xff] %v2603
    %2668 = vst [vmem:[#allocation3 + $0x290] sm:$0xff] %v2604
    %2669 = vst [vmem:[#allocation3 + $0x2d8] sm:$0xff] %v2605
    %2670 = vst [vmem:[#allocation3 + $0x320] sm:$0xff] %v2606
    %2671 = vst [vmem:[#allocation3 + $0x368] sm:$0xff] %v2607
    %2672 = vst [vmem:[#allocation3 + $0x3b0] sm:$0xff] %v2608
    %2673 = vst [vmem:[#allocation3 + $0x3f8] sm:$0xff] %v2609
    %2674 = vst [vmem:[#allocation3 + $0x440] sm:$0xff] %v2610
    %2675 = vst [vmem:[#allocation3 + $0x488] sm:$0xff] %v2611
    %2676 = vst [vmem:[#allocation3 + $0x4d0] sm:$0xff] %v2612
    %2677 = vst [vmem:[#allocation3 + $0x518] sm:$0xff] %v2613
    %2678 = vst [vmem:[#allocation3 + $0x560] sm:$0xff] %v2614
    %2679 = vst [vmem:[#allocation3 + $0x5a8] sm:$0xff] %v2615
    %2680 = vst [vmem:[#allocation3 + $0x5f0] sm:$0xff] %v2616
    %2681 = vst [vmem:[#allocation3 + $0x638] sm:$0xff] %v2617
    %2682 = vst [vmem:[#allocation3 + $0x680] sm:$0xff] %v2618
    %2683 = vst [vmem:[#allocation3 + $0x6c8] sm:$0xff] %v2619
    %2684 = vst [vmem:[#allocation3 + $0x710] sm:$0xff] %v2620
    %2685 = vst [vmem:[#allocation3 + $0x758] sm:$0xff] %v2621
    %2686 = vst [vmem:[#allocation3 + $0x7a0] sm:$0xff] %v2622
    %2687 = vst [vmem:[#allocation3 + $0x7e8] sm:$0xff] %v2623
    %2688 = vst [vmem:[#allocation3 + $0x830] sm:$0xff] %v2624
    %2689 = vst [vmem:[#allocation3 + $0x878] sm:$0xff] %v2625
    %2690 = vst [vmem:[#allocation3 + $0x8c0] sm:$0xff] %v2626
    %vm2723 = vcmask 1042432
    %vm2724 = vcmask 1046532
    %vm2725 = vmor %vm2723, %vm2724
    %v2726 = vrot.slane %v1428, 5
    %v2727 = vrot.slane %v2726, 4
    %v2728 = vrot.slane %v1429, 5
    %v2729 = vsel %vm2725, %v2727, %v2728
    %v2730 = vrot.slane %v2728, 4
    %v2731 = vrot.slane %v1430, 5
    %v2732 = vsel %vm2725, %v2730, %v2731
    %v2733 = vrot.slane %v1431, 5
    %v2734 = vrot.slane %v2733, 4
    %v2735 = vrot.slane %v1432, 5
    %v2736 = vsel %vm2725, %v2734, %v2735
    %v2737 = vrot.slane %v2735, 4
    %v2738 = vrot.slane %v1433, 5
    %v2739 = vsel %vm2725, %v2737, %v2738
    %v2740 = vrot.slane %v1434, 5
    %v2741 = vrot.slane %v2740, 4
    %v2742 = vrot.slane %v1435, 5
    %v2743 = vsel %vm2725, %v2741, %v2742
    %v2744 = vrot.slane %v2742, 4
    %v2745 = vrot.slane %v1436, 5
    %v2746 = vsel %vm2725, %v2744, %v2745
    %v2747 = vrot.slane %v1437, 5
    %v2748 = vrot.slane %v2747, 4
    %v2749 = vrot.slane %v1438, 5
    %v2750 = vsel %vm2725, %v2748, %v2749
    %v2751 = vrot.slane %v2749, 4
    %v2752 = vrot.slane %v1439, 5
    %v2753 = vsel %vm2725, %v2751, %v2752
    %v2754 = vrot.slane %v1440, 5
    %v2755 = vrot.slane %v2754, 4
    %v2756 = vrot.slane %v1441, 5
    %v2757 = vsel %vm2725, %v2755, %v2756
    %v2758 = vrot.slane %v2756, 4
    %v2759 = vrot.slane %v1442, 5
    %v2760 = vsel %vm2725, %v2758, %v2759
    %v2761 = vrot.slane %v1443, 5
    %v2762 = vrot.slane %v2761, 4
    %v2763 = vrot.slane %v1444, 5
    %v2764 = vsel %vm2725, %v2762, %v2763
    %v2765 = vrot.slane %v2763, 4
    %v2766 = vrot.slane %v1445, 5
    %v2767 = vsel %vm2725, %v2765, %v2766
    %v2768 = vrot.slane %v1446, 5
    %v2769 = vrot.slane %v2768, 4
    %v2770 = vrot.slane %v1447, 5
    %v2771 = vsel %vm2725, %v2769, %v2770
    %v2772 = vrot.slane %v2770, 4
    %v2773 = vrot.slane %v1448, 5
    %v2774 = vsel %vm2725, %v2772, %v2773
    %v2775 = vrot.slane %v1449, 5
    %v2776 = vrot.slane %v2775, 4
    %v2777 = vrot.slane %v1450, 5
    %v2778 = vsel %vm2725, %v2776, %v2777
    %v2779 = vrot.slane %v2777, 4
    %v2780 = vrot.slane %v1451, 5
    %v2781 = vsel %vm2725, %v2779, %v2780
    %v2782 = vrot.slane %v1452, 5
    %v2783 = vrot.slane %v2782, 4
    %v2784 = vrot.slane %v1453, 5
    %v2785 = vsel %vm2725, %v2783, %v2784
    %v2786 = vrot.slane %v2784, 4
    %v2787 = vrot.slane %v1454, 5
    %v2788 = vsel %vm2725, %v2786, %v2787
    %v2789 = vrot.slane %v1455, 5
    %v2790 = vrot.slane %v2789, 4
    %v2791 = vrot.slane %v1456, 5
    %v2792 = vsel %vm2725, %v2790, %v2791
    %v2793 = vrot.slane %v2791, 4
    %v2794 = vrot.slane %v1457, 5
    %v2795 = vsel %vm2725, %v2793, %v2794
    %v2796 = vrot.slane %v1458, 5
    %v2797 = vrot.slane %v2796, 4
    %v2798 = vrot.slane %v1459, 5
    %v2799 = vsel %vm2725, %v2797, %v2798
    %v2800 = vrot.slane %v2798, 4
    %v2801 = vrot.slane %v1460, 5
    %v2802 = vsel %vm2725, %v2800, %v2801
    %v2803 = vrot.slane %v1461, 5
    %v2804 = vrot.slane %v2803, 4
    %v2805 = vrot.slane %v1462, 5
    %v2806 = vsel %vm2725, %v2804, %v2805
    %v2807 = vrot.slane %v2805, 4
    %v2808 = vrot.slane %v1463, 5
    %v2809 = vsel %vm2725, %v2807, %v2808
    %v2810 = vrot.slane %v1464, 5
    %v2811 = vrot.slane %v2810, 4
    %v2812 = vrot.slane %v1465, 5
    %v2813 = vsel %vm2725, %v2811, %v2812
    %v2814 = vrot.slane %v2812, 4
    %v2815 = vrot.slane %v1466, 5
    %v2816 = vsel %vm2725, %v2814, %v2815
    %v2817 = vrot.slane %v1467, 5
    %v2818 = vrot.slane %v2817, 4
    %v2819 = vrot.slane %v1468, 5
    %v2820 = vsel %vm2725, %v2818, %v2819
    %v2821 = vrot.slane %v2819, 4
    %v2822 = vrot.slane %v1469, 5
    %v2823 = vsel %vm2725, %v2821, %v2822
    %v2824 = vrot.slane %v1470, 5
    %v2825 = vrot.slane %v2824, 4
    %v2826 = vrot.slane %v1471, 5
    %v2827 = vsel %vm2725, %v2825, %v2826
    %v2828 = vrot.slane %v2826, 4
    %v2829 = vrot.slane %v1472, 5
    %v2830 = vsel %vm2725, %v2828, %v2829
    %v2831 = vrot.slane %v1473, 5
    %v2832 = vrot.slane %v2831, 4
    %v2833 = vrot.slane %v1474, 5
    %v2834 = vsel %vm2725, %v2832, %v2833
    %v2835 = vrot.slane %v2833, 4
    %v2836 = vrot.slane %v1475, 5
    %v2837 = vsel %vm2725, %v2835, %v2836
    %v2838 = vrot.slane %v1482, 5
    %v2839 = vrot.slane %v2838, 4
    %v2840 = vrot.slane %v1483, 5
    %v2841 = vsel %vm2725, %v2839, %v2840
    %v2842 = vrot.slane %v2840, 4
    %v2843 = vrot.slane %v1484, 5
    %v2844 = vsel %vm2725, %v2842, %v2843
    %v2845 = vrot.slane %v1485, 5
    %v2846 = vrot.slane %v2845, 4
    %v2847 = vrot.slane %v1486, 5
    %v2848 = vsel %vm2725, %v2846, %v2847
    %v2849 = vrot.slane %v2847, 4
    %v2850 = vrot.slane %v1487, 5
    %v2851 = vsel %vm2725, %v2849, %v2850
    %v2852 = vrot.slane %v1488, 5
    %v2853 = vrot.slane %v2852, 4
    %v2854 = vrot.slane %v1489, 5
    %v2855 = vsel %vm2725, %v2853, %v2854
    %v2856 = vrot.slane %v2854, 4
    %v2857 = vrot.slane %v1490, 5
    %v2858 = vsel %vm2725, %v2856, %v2857
    %v2859 = vrot.slane %v1491, 5
    %v2860 = vrot.slane %v2859, 4
    %v2861 = vrot.slane %v1492, 5
    %v2862 = vsel %vm2725, %v2860, %v2861
    %v2863 = vrot.slane %v2861, 4
    %v2864 = vrot.slane %v1493, 5
    %v2865 = vsel %vm2725, %v2863, %v2864
    %v2866 = vrot.slane %v1494, 5
    %v2867 = vrot.slane %v2866, 4
    %v2868 = vrot.slane %v1495, 5
    %v2869 = vsel %vm2725, %v2867, %v2868
    %v2870 = vrot.slane %v2868, 4
    %v2871 = vrot.slane %v1496, 5
    %v2872 = vsel %vm2725, %v2870, %v2871
    %v2873 = vrot.slane %v1497, 5
    %v2874 = vrot.slane %v2873, 4
    %v2875 = vrot.slane %v1498, 5
    %v2876 = vsel %vm2725, %v2874, %v2875
    %v2877 = vrot.slane %v2875, 4
    %v2878 = vrot.slane %v1499, 5
    %v2879 = vsel %vm2725, %v2877, %v2878
    %v2880 = vrot.slane %v1500, 5
    %v2881 = vrot.slane %v2880, 4
    %v2882 = vrot.slane %v1501, 5
    %v2883 = vsel %vm2725, %v2881, %v2882
    %v2884 = vrot.slane %v2882, 4
    %v2885 = vrot.slane %v1502, 5
    %v2886 = vsel %vm2725, %v2884, %v2885
    %v2887 = vrot.slane %v1503, 5
    %v2888 = vrot.slane %v2887, 4
    %v2889 = vrot.slane %v1504, 5
    %v2890 = vsel %vm2725, %v2888, %v2889
    %v2891 = vrot.slane %v2889, 4
    %v2892 = vrot.slane %v1505, 5
    %v2893 = vsel %vm2725, %v2891, %v2892
    %v2894 = vrot.slane %v1506, 5
    %v2895 = vrot.slane %v2894, 4
    %v2896 = vrot.slane %v1507, 5
    %v2897 = vsel %vm2725, %v2895, %v2896
    %v2898 = vrot.slane %v2896, 4
    %v2899 = vrot.slane %v1508, 5
    %v2900 = vsel %vm2725, %v2898, %v2899
    %v2901 = vrot.slane %v1509, 5
    %v2902 = vrot.slane %v2901, 4
    %v2903 = vrot.slane %v1510, 5
    %v2904 = vsel %vm2725, %v2902, %v2903
    %v2905 = vrot.slane %v2903, 4
    %v2906 = vrot.slane %v1511, 5
    %v2907 = vsel %vm2725, %v2905, %v2906
    %v2908 = vrot.slane %v1512, 5
    %v2909 = vrot.slane %v2908, 4
    %v2910 = vrot.slane %v1513, 5
    %v2911 = vsel %vm2725, %v2909, %v2910
    %v2912 = vrot.slane %v2910, 4
    %v2913 = vrot.slane %v1514, 5
    %v2914 = vsel %vm2725, %v2912, %v2913
    %v2915 = vrot.slane %v1515, 5
    %v2916 = vrot.slane %v2915, 4
    %v2917 = vrot.slane %v1516, 5
    %v2918 = vsel %vm2725, %v2916, %v2917
    %v2919 = vrot.slane %v2917, 4
    %v2920 = vrot.slane %v1517, 5
    %v2921 = vsel %vm2725, %v2919, %v2920
    %v2922 = vrot.slane %v1518, 5
    %v2923 = vrot.slane %v2922, 4
    %v2924 = vrot.slane %v1519, 5
    %v2925 = vsel %vm2725, %v2923, %v2924
    %v2926 = vrot.slane %v2924, 4
    %v2927 = vrot.slane %v1520, 5
    %v2928 = vsel %vm2725, %v2926, %v2927
    %v2929 = vrot.slane %v1521, 5
    %v2930 = vrot.slane %v2929, 4
    %v2931 = vrot.slane %v1522, 5
    %v2932 = vsel %vm2725, %v2930, %v2931
    %v2933 = vrot.slane %v2931, 4
    %v2934 = vrot.slane %v1523, 5
    %v2935 = vsel %vm2725, %v2933, %v2934
    %v2936 = vrot.slane %v1524, 5
    %v2937 = vrot.slane %v2936, 4
    %v2938 = vrot.slane %v1525, 5
    %v2939 = vsel %vm2725, %v2937, %v2938
    %v2940 = vrot.slane %v2938, 4
    %v2941 = vrot.slane %v1526, 5
    %v2942 = vsel %vm2725, %v2940, %v2941
    %v2943 = vrot.slane %v1527, 5
    %v2944 = vrot.slane %v2943, 4
    %v2945 = vrot.slane %v1528, 5
    %v2946 = vsel %vm2725, %v2944, %v2945
    %v2947 = vrot.slane %v2945, 4
    %v2948 = vrot.slane %v1529, 5
    %v2949 = vsel %vm2725, %v2947, %v2948
    %v2950 = vunpack.c.l.b16 %v2729
    %v2951 = vunpack.c.l.b16 %v2732
    %v2952 = vunpack.c.l.b16 %v2736
    %v2953 = vunpack.c.l.b16 %v2739
    %v2954 = vunpack.c.l.b16 %v2743
    %v2955 = vunpack.c.l.b16 %v2746
    %v2956 = vunpack.c.l.b16 %v2750
    %v2957 = vunpack.c.l.b16 %v2753
    %v2958 = vunpack.c.l.b16 %v2757
    %v2959 = vunpack.c.l.b16 %v2760
    %v2960 = vunpack.c.l.b16 %v2764
    %v2961 = vunpack.c.l.b16 %v2767
    %v2962 = vunpack.c.l.b16 %v2771
    %v2963 = vunpack.c.l.b16 %v2774
    %v2964 = vunpack.c.l.b16 %v2778
    %v2965 = vunpack.c.l.b16 %v2781
    %v2966 = vunpack.c.l.b16 %v2785
    %v2967 = vunpack.c.l.b16 %v2788
    %v2968 = vunpack.c.l.b16 %v2792
    %v2969 = vunpack.c.l.b16 %v2795
    %v2970 = vunpack.c.l.b16 %v2799
    %v2971 = vunpack.c.l.b16 %v2802
    %v2972 = vunpack.c.l.b16 %v2806
    %v2973 = vunpack.c.l.b16 %v2809
    %v2974 = vunpack.c.l.b16 %v2813
    %v2975 = vunpack.c.l.b16 %v2816
    %v2976 = vunpack.c.l.b16 %v2820
    %v2977 = vunpack.c.l.b16 %v2823
    %v2978 = vunpack.c.l.b16 %v2827
    %v2979 = vunpack.c.l.b16 %v2830
    %v2980 = vunpack.c.l.b16 %v2834
    %v2981 = vunpack.c.l.b16 %v2837
    %v2982 = vunpack.c.l.b16 %v2841
    %v2983 = vunpack.c.l.b16 %v2844
    %v2984 = vunpack.c.l.b16 %v2848
    %v2985 = vunpack.c.l.b16 %v2851
    %v2986 = vunpack.c.l.b16 %v2855
    %v2987 = vunpack.c.l.b16 %v2858
    %v2988 = vunpack.c.l.b16 %v2862
    %v2989 = vunpack.c.l.b16 %v2865
    %v2990 = vunpack.c.l.b16 %v2869
    %v2991 = vunpack.c.l.b16 %v2872
    %v2992 = vunpack.c.l.b16 %v2876
    %v2993 = vunpack.c.l.b16 %v2879
    %v2994 = vunpack.c.l.b16 %v2883
    %v2995 = vunpack.c.l.b16 %v2886
    %v2996 = vunpack.c.l.b16 %v2890
    %v2997 = vunpack.c.l.b16 %v2893
    %v2998 = vunpack.c.l.b16 %v2897
    %v2999 = vunpack.c.l.b16 %v2900
    %v3000 = vunpack.c.l.b16 %v2904
    %v3001 = vunpack.c.l.b16 %v2907
    %v3002 = vunpack.c.l.b16 %v2911
    %v3003 = vunpack.c.l.b16 %v2914
    %v3004 = vunpack.c.l.b16 %v2918
    %v3005 = vunpack.c.l.b16 %v2921
    %v3006 = vunpack.c.l.b16 %v2925
    %v3007 = vunpack.c.l.b16 %v2928
    %v3008 = vunpack.c.l.b16 %v2932
    %v3009 = vunpack.c.l.b16 %v2935
    %v3010 = vunpack.c.l.b16 %v2939
    %v3011 = vunpack.c.l.b16 %v2942
    %v3012 = vunpack.c.l.b16 %v2946
    %v3013 = vunpack.c.l.b16 %v2949
    %v3014 = vpack.c.b16 %v2951, %v2950
    %v3015 = vpack.c.b16 %v2953, %v2952
    %v3016 = vpack.c.b16 %v2955, %v2954
    %v3017 = vpack.c.b16 %v2957, %v2956
    %v3018 = vpack.c.b16 %v2959, %v2958
    %v3019 = vpack.c.b16 %v2961, %v2960
    %v3020 = vpack.c.b16 %v2963, %v2962
    %v3021 = vpack.c.b16 %v2965, %v2964
    %v3022 = vpack.c.b16 %v2967, %v2966
    %v3023 = vpack.c.b16 %v2969, %v2968
    %v3024 = vpack.c.b16 %v2971, %v2970
    %v3025 = vpack.c.b16 %v2973, %v2972
    %v3026 = vpack.c.b16 %v2975, %v2974
    %v3027 = vpack.c.b16 %v2977, %v2976
    %v3028 = vpack.c.b16 %v2979, %v2978
    %v3029 = vpack.c.b16 %v2981, %v2980
    %v3030 = vpack.c.b16 %v2983, %v2982
    %v3031 = vpack.c.b16 %v2985, %v2984
    %v3032 = vpack.c.b16 %v2987, %v2986
    %v3033 = vpack.c.b16 %v2989, %v2988
    %v3034 = vpack.c.b16 %v2991, %v2990
    %v3035 = vpack.c.b16 %v2993, %v2992
    %v3036 = vpack.c.b16 %v2995, %v2994
    %v3037 = vpack.c.b16 %v2997, %v2996
    %v3038 = vpack.c.b16 %v2999, %v2998
    %v3039 = vpack.c.b16 %v3001, %v3000
    %v3040 = vpack.c.b16 %v3003, %v3002
    %v3041 = vpack.c.b16 %v3005, %v3004
    %v3042 = vpack.c.b16 %v3007, %v3006
    %v3043 = vpack.c.b16 %v3009, %v3008
    %v3044 = vpack.c.b16 %v3011, %v3010
    %v3045 = vpack.c.b16 %v3013, %v3012
    %3078 = vst [vmem:[#allocation3 + $0x10] sm:$0xff] %v3014
    %3079 = vst [vmem:[#allocation3 + $0x58] sm:$0xff] %v3015
    %3080 = vst [vmem:[#allocation3 + $0xa0] sm:$0xff] %v3016
    %3081 = vst [vmem:[#allocation3 + $0xe8] sm:$0xff] %v3017
    %3082 = vst [vmem:[#allocation3 + $0x130] sm:$0xff] %v3018
    %3083 = vst [vmem:[#allocation3 + $0x178] sm:$0xff] %v3019
    %3084 = vst [vmem:[#allocation3 + $0x1c0] sm:$0xff] %v3020
    %3085 = vst [vmem:[#allocation3 + $0x208] sm:$0xff] %v3021
    %3086 = vst [vmem:[#allocation3 + $0x250] sm:$0xff] %v3022
    %3087 = vst [vmem:[#allocation3 + $0x298] sm:$0xff] %v3023
    %3088 = vst [vmem:[#allocation3 + $0x2e0] sm:$0xff] %v3024
    %3089 = vst [vmem:[#allocation3 + $0x328] sm:$0xff] %v3025
    %3090 = vst [vmem:[#allocation3 + $0x370] sm:$0xff] %v3026
    %3091 = vst [vmem:[#allocation3 + $0x3b8] sm:$0xff] %v3027
    %3092 = vst [vmem:[#allocation3 + $0x400] sm:$0xff] %v3028
    %3093 = vst [vmem:[#allocation3 + $0x448] sm:$0xff] %v3029
    %3094 = vst [vmem:[#allocation3 + $0x490] sm:$0xff] %v3030
    %3095 = vst [vmem:[#allocation3 + $0x4d8] sm:$0xff] %v3031
    %3096 = vst [vmem:[#allocation3 + $0x520] sm:$0xff] %v3032
    %3097 = vst [vmem:[#allocation3 + $0x568] sm:$0xff] %v3033
    %3098 = vst [vmem:[#allocation3 + $0x5b0] sm:$0xff] %v3034
    %3099 = vst [vmem:[#allocation3 + $0x5f8] sm:$0xff] %v3035
    %3100 = vst [vmem:[#allocation3 + $0x640] sm:$0xff] %v3036
    %3101 = vst [vmem:[#allocation3 + $0x688] sm:$0xff] %v3037
    %3102 = vst [vmem:[#allocation3 + $0x6d0] sm:$0xff] %v3038
    %3103 = vst [vmem:[#allocation3 + $0x718] sm:$0xff] %v3039
    %3104 = vst [vmem:[#allocation3 + $0x760] sm:$0xff] %v3040
    %3105 = vst [vmem:[#allocation3 + $0x7a8] sm:$0xff] %v3041
    %3106 = vst [vmem:[#allocation3 + $0x7f0] sm:$0xff] %v3042
    %3107 = vst [vmem:[#allocation3 + $0x838] sm:$0xff] %v3043
    %3108 = vst [vmem:[#allocation3 + $0x880] sm:$0xff] %v3044
    %3109 = vst [vmem:[#allocation3 + $0x8c8] sm:$0xff] %v3045
    %v3114 = vunpack.c.l.b16 %v1476
    %v3115 = vunpack.c.l.b16 %v1477
    %v3116 = vunpack.c.l.b16 %v1530
    %v3117 = vunpack.c.l.b16 %v1531
    %v3118 = vpack.c.b16 %v3115, %v3114
    %v3119 = vpack.c.b16 %v3117, %v3116
    %3122 = vst [vmem:[#allocation3 + $0x18] sm:$0xff] %v1665
    %3123 = vst [vmem:[#allocation3 + $0x60] sm:$0xff] %v1666
    %3124 = vst [vmem:[#allocation3 + $0xa8] sm:$0xff] %v1667
    %3125 = vst [vmem:[#allocation3 + $0xf0] sm:$0xff] %v1668
    %3126 = vst [vmem:[#allocation3 + $0x138] sm:$0xff] %v1669
    %3127 = vst [vmem:[#allocation3 + $0x180] sm:$0xff] %v1670
    %3128 = vst [vmem:[#allocation3 + $0x1c8] sm:$0xff] %v1671
    %3129 = vst [vmem:[#allocation3 + $0x210] sm:$0xff] %v1672
    %3130 = vst [vmem:[#allocation3 + $0x258] sm:$0xff] %v1673
    %3131 = vst [vmem:[#allocation3 + $0x2a0] sm:$0xff] %v1674
    %3132 = vst [vmem:[#allocation3 + $0x2e8] sm:$0xff] %v1675
    %3133 = vst [vmem:[#allocation3 + $0x330] sm:$0xff] %v1676
    %3134 = vst [vmem:[#allocation3 + $0x378] sm:$0xff] %v1677
    %3135 = vst [vmem:[#allocation3 + $0x3c0] sm:$0xff] %v1678
    %3136 = vst [vmem:[#allocation3 + $0x408] sm:$0xff] %v1679
    %3137 = vst [vmem:[#allocation3 + $0x450] sm:$0xff] %v3118
    %3138 = vst [vmem:[#allocation3 + $0x498] sm:$0xff] %v1681
    %3139 = vst [vmem:[#allocation3 + $0x4e0] sm:$0xff] %v1682
    %3140 = vst [vmem:[#allocation3 + $0x528] sm:$0xff] %v1683
    %3141 = vst [vmem:[#allocation3 + $0x570] sm:$0xff] %v1684
    %3142 = vst [vmem:[#allocation3 + $0x5b8] sm:$0xff] %v1685
    %3143 = vst [vmem:[#allocation3 + $0x600] sm:$0xff] %v1686
    %3144 = vst [vmem:[#allocation3 + $0x648] sm:$0xff] %v1687
    %3145 = vst [vmem:[#allocation3 + $0x690] sm:$0xff] %v1688
    %3146 = vst [vmem:[#allocation3 + $0x6d8] sm:$0xff] %v1689
    %3147 = vst [vmem:[#allocation3 + $0x720] sm:$0xff] %v1690
    %3148 = vst [vmem:[#allocation3 + $0x768] sm:$0xff] %v1691
    %3149 = vst [vmem:[#allocation3 + $0x7b0] sm:$0xff] %v1692
    %3150 = vst [vmem:[#allocation3 + $0x7f8] sm:$0xff] %v1693
    %3151 = vst [vmem:[#allocation3 + $0x840] sm:$0xff] %v1694
    %3152 = vst [vmem:[#allocation3 + $0x888] sm:$0xff] %v1695
    %3153 = vst [vmem:[#allocation3 + $0x8d0] sm:$0xff] %v3119
    %v3155 = vshrl.u32 %v1476, 16
    %v3157 = vrot.slane %v3155, 4
    %v3158 = vshll.u32 %v1476, 16
    %v3160 = vrot.slane %v3158, 5
    %v3161 = vor.u32 %v3157, %v3160
    %v3162 = vrot.slane %v3161, 4
    %v3164 = vshll.u32 %v1477, 16
    %v3166 = vrot.slane %v3164, 5
    %v3167 = vsel %vm1762, %v3162, %v3166
    %v3168 = vshrl.u32 %v1477, 16
    %v3170 = vrot.slane %v3168, 4
    %v3171 = vor.u32 %v3170, %v3166
    %v3172 = vrot.slane %v3171, 4
    %v3174 = vshll.u32 %v1478, 16
    %v3176 = vrot.slane %v3174, 5
    %v3177 = vsel %vm1762, %v3172, %v3176
    %v3179 = vshrl.u32 %v1530, 16
    %v3181 = vrot.slane %v3179, 4
    %v3182 = vshll.u32 %v1530, 16
    %v3184 = vrot.slane %v3182, 5
    %v3185 = vor.u32 %v3181, %v3184
    %v3186 = vrot.slane %v3185, 4
    %v3188 = vshll.u32 %v1531, 16
    %v3190 = vrot.slane %v3188, 5
    %v3191 = vsel %vm1762, %v3186, %v3190
    %v3192 = vshrl.u32 %v1531, 16
    %v3194 = vrot.slane %v3192, 4
    %v3195 = vor.u32 %v3194, %v3190
    %v3196 = vrot.slane %v3195, 4
    %v3198 = vshll.u32 %v1532, 16
    %v3200 = vrot.slane %v3198, 5
    %v3201 = vsel %vm1762, %v3196, %v3200
    %v3202 = vunpack.c.l.b16 %v3167
    %v3203 = vunpack.c.l.b16 %v3177
    %v3204 = vunpack.c.l.b16 %v3191
    %v3205 = vunpack.c.l.b16 %v3201
    %v3206 = vpack.c.b16 %v3203, %v3202
    %v3207 = vpack.c.b16 %v3205, %v3204
    %3210 = vst [vmem:[#allocation3 + $0x20] sm:$0xff] %v2596
    %3211 = vst [vmem:[#allocation3 + $0x68] sm:$0xff] %v2597
    %3212 = vst [vmem:[#allocation3 + $0xb0] sm:$0xff] %v2598
    %3213 = vst [vmem:[#allocation3 + $0xf8] sm:$0xff] %v2599
    %3214 = vst [vmem:[#allocation3 + $0x140] sm:$0xff] %v2600
    %3215 = vst [vmem:[#allocation3 + $0x188] sm:$0xff] %v2601
    %3216 = vst [vmem:[#allocation3 + $0x1d0] sm:$0xff] %v2602
    %3217 = vst [vmem:[#allocation3 + $0x218] sm:$0xff] %v2603
    %3218 = vst [vmem:[#allocation3 + $0x260] sm:$0xff] %v2604
    %3219 = vst [vmem:[#allocation3 + $0x2a8] sm:$0xff] %v2605
    %3220 = vst [vmem:[#allocation3 + $0x2f0] sm:$0xff] %v2606
    %3221 = vst [vmem:[#allocation3 + $0x338] sm:$0xff] %v2607
    %3222 = vst [vmem:[#allocation3 + $0x380] sm:$0xff] %v2608
    %3223 = vst [vmem:[#allocation3 + $0x3c8] sm:$0xff] %v2609
    %3224 = vst [vmem:[#allocation3 + $0x410] sm:$0xff] %v2610
    %3225 = vst [vmem:[#allocation3 + $0x458] sm:$0xff] %v3206
    %3226 = vst [vmem:[#allocation3 + $0x4a0] sm:$0xff] %v2612
    %3227 = vst [vmem:[#allocation3 + $0x4e8] sm:$0xff] %v2613
    %3228 = vst [vmem:[#allocation3 + $0x530] sm:$0xff] %v2614
    %3229 = vst [vmem:[#allocation3 + $0x578] sm:$0xff] %v2615
    %3230 = vst [vmem:[#allocation3 + $0x5c0] sm:$0xff] %v2616
    %3231 = vst [vmem:[#allocation3 + $0x608] sm:$0xff] %v2617
    %3232 = vst [vmem:[#allocation3 + $0x650] sm:$0xff] %v2618
    %3233 = vst [vmem:[#allocation3 + $0x698] sm:$0xff] %v2619
    %3234 = vst [vmem:[#allocation3 + $0x6e0] sm:$0xff] %v2620
    %3235 = vst [vmem:[#allocation3 + $0x728] sm:$0xff] %v2621
    %3236 = vst [vmem:[#allocation3 + $0x770] sm:$0xff] %v2622
    %3237 = vst [vmem:[#allocation3 + $0x7b8] sm:$0xff] %v2623
    %3238 = vst [vmem:[#allocation3 + $0x800] sm:$0xff] %v2624
    %3239 = vst [vmem:[#allocation3 + $0x848] sm:$0xff] %v2625
    %3240 = vst [vmem:[#allocation3 + $0x890] sm:$0xff] %v2626
    %3241 = vst [vmem:[#allocation3 + $0x8d8] sm:$0xff] %v3207
    %v3244 = vrot.slane %v1476, 5
    %v3245 = vrot.slane %v3244, 4
    %v3246 = vrot.slane %v1477, 5
    %v3247 = vsel %vm2725, %v3245, %v3246
    %v3248 = vrot.slane %v3246, 4
    %v3249 = vrot.slane %v1478, 5
    %v3250 = vsel %vm2725, %v3248, %v3249
    %v3251 = vrot.slane %v1530, 5
    %v3252 = vrot.slane %v3251, 4
    %v3253 = vrot.slane %v1531, 5
    %v3254 = vsel %vm2725, %v3252, %v3253
    %v3255 = vrot.slane %v3253, 4
    %v3256 = vrot.slane %v1532, 5
    %v3257 = vsel %vm2725, %v3255, %v3256
    %v3258 = vunpack.c.l.b16 %v3247
    %v3259 = vunpack.c.l.b16 %v3250
    %v3260 = vunpack.c.l.b16 %v3254
    %v3261 = vunpack.c.l.b16 %v3257
    %v3262 = vpack.c.b16 %v3259, %v3258
    %v3263 = vpack.c.b16 %v3261, %v3260
    %3266 = vst [vmem:[#allocation3 + $0x28] sm:$0xff] %v3015
    %3267 = vst [vmem:[#allocation3 + $0x70] sm:$0xff] %v3016
    %3268 = vst [vmem:[#allocation3 + $0xb8] sm:$0xff] %v3017
    %3269 = vst [vmem:[#allocation3 + $0x100] sm:$0xff] %v3018
    %3270 = vst [vmem:[#allocation3 + $0x148] sm:$0xff] %v3019
    %3271 = vst [vmem:[#allocation3 + $0x190] sm:$0xff] %v3020
    %3272 = vst [vmem:[#allocation3 + $0x1d8] sm:$0xff] %v3021
    %3273 = vst [vmem:[#allocation3 + $0x220] sm:$0xff] %v3022
    %3274 = vst [vmem:[#allocation3 + $0x268] sm:$0xff] %v3023
    %3275 = vst [vmem:[#allocation3 + $0x2b0] sm:$0xff] %v3024
    %3276 = vst [vmem:[#allocation3 + $0x2f8] sm:$0xff] %v3025
    %3277 = vst [vmem:[#allocation3 + $0x340] sm:$0xff] %v3026
    %3278 = vst [vmem:[#allocation3 + $0x388] sm:$0xff] %v3027
    %3279 = vst [vmem:[#allocation3 + $0x3d0] sm:$0xff] %v3028
    %3280 = vst [vmem:[#allocation3 + $0x418] sm:$0xff] %v3029
    %3281 = vst [vmem:[#allocation3 + $0x460] sm:$0xff] %v3262
    %3282 = vst [vmem:[#allocation3 + $0x4a8] sm:$0xff] %v3031
    %3283 = vst [vmem:[#allocation3 + $0x4f0] sm:$0xff] %v3032
    %3284 = vst [vmem:[#allocation3 + $0x538] sm:$0xff] %v3033
    %3285 = vst [vmem:[#allocation3 + $0x580] sm:$0xff] %v3034
    %3286 = vst [vmem:[#allocation3 + $0x5c8] sm:$0xff] %v3035
    %3287 = vst [vmem:[#allocation3 + $0x610] sm:$0xff] %v3036
    %3288 = vst [vmem:[#allocation3 + $0x658] sm:$0xff] %v3037
    %3289 = vst [vmem:[#allocation3 + $0x6a0] sm:$0xff] %v3038
    %3290 = vst [vmem:[#allocation3 + $0x6e8] sm:$0xff] %v3039
    %3291 = vst [vmem:[#allocation3 + $0x730] sm:$0xff] %v3040
    %3292 = vst [vmem:[#allocation3 + $0x778] sm:$0xff] %v3041
    %3293 = vst [vmem:[#allocation3 + $0x7c0] sm:$0xff] %v3042
    %3294 = vst [vmem:[#allocation3 + $0x808] sm:$0xff] %v3043
    %3295 = vst [vmem:[#allocation3 + $0x850] sm:$0xff] %v3044
    %3296 = vst [vmem:[#allocation3 + $0x898] sm:$0xff] %v3045
    %3297 = vst [vmem:[#allocation3 + $0x8e0] sm:$0xff] %v3263
    %v3302 = vunpack.c.l.b16 %v1479
    %v3303 = vunpack.c.l.b16 %v1480
    %v3304 = vunpack.c.l.b16 %v1533
    %v3305 = vunpack.c.l.b16 %v1534
    %v3306 = vpack.c.b16 %v3303, %v3302
    %v3307 = vpack.c.b16 %v3305, %v3304
    %3310 = vst [vmem:[#allocation3 + $0x30] sm:$0xff] %v1666
    %3311 = vst [vmem:[#allocation3 + $0x78] sm:$0xff] %v1667
    %3312 = vst [vmem:[#allocation3 + $0xc0] sm:$0xff] %v1668
    %3313 = vst [vmem:[#allocation3 + $0x108] sm:$0xff] %v1669
    %3314 = vst [vmem:[#allocation3 + $0x150] sm:$0xff] %v1670
    %3315 = vst [vmem:[#allocation3 + $0x198] sm:$0xff] %v1671
    %3316 = vst [vmem:[#allocation3 + $0x1e0] sm:$0xff] %v1672
    %3317 = vst [vmem:[#allocation3 + $0x228] sm:$0xff] %v1673
    %3318 = vst [vmem:[#allocation3 + $0x270] sm:$0xff] %v1674
    %3319 = vst [vmem:[#allocation3 + $0x2b8] sm:$0xff] %v1675
    %3320 = vst [vmem:[#allocation3 + $0x300] sm:$0xff] %v1676
    %3321 = vst [vmem:[#allocation3 + $0x348] sm:$0xff] %v1677
    %3322 = vst [vmem:[#allocation3 + $0x390] sm:$0xff] %v1678
    %3323 = vst [vmem:[#allocation3 + $0x3d8] sm:$0xff] %v1679
    %3324 = vst [vmem:[#allocation3 + $0x420] sm:$0xff] %v3118
    %3325 = vst [vmem:[#allocation3 + $0x468] sm:$0xff] %v3306
    %3326 = vst [vmem:[#allocation3 + $0x4b0] sm:$0xff] %v1682
    %3327 = vst [vmem:[#allocation3 + $0x4f8] sm:$0xff] %v1683
    %3328 = vst [vmem:[#allocation3 + $0x540] sm:$0xff] %v1684
    %3329 = vst [vmem:[#allocation3 + $0x588] sm:$0xff] %v1685
    %3330 = vst [vmem:[#allocation3 + $0x5d0] sm:$0xff] %v1686
    %3331 = vst [vmem:[#allocation3 + $0x618] sm:$0xff] %v1687
    %3332 = vst [vmem:[#allocation3 + $0x660] sm:$0xff] %v1688
    %3333 = vst [vmem:[#allocation3 + $0x6a8] sm:$0xff] %v1689
    %3334 = vst [vmem:[#allocation3 + $0x6f0] sm:$0xff] %v1690
    %3335 = vst [vmem:[#allocation3 + $0x738] sm:$0xff] %v1691
    %3336 = vst [vmem:[#allocation3 + $0x780] sm:$0xff] %v1692
    %3337 = vst [vmem:[#allocation3 + $0x7c8] sm:$0xff] %v1693
    %3338 = vst [vmem:[#allocation3 + $0x810] sm:$0xff] %v1694
    %3339 = vst [vmem:[#allocation3 + $0x858] sm:$0xff] %v1695
    %3340 = vst [vmem:[#allocation3 + $0x8a0] sm:$0xff] %v3119
    %3341 = vst [vmem:[#allocation3 + $0x8e8] sm:$0xff] %v3307
    %v3343 = vshrl.u32 %v1479, 16
    %v3345 = vrot.slane %v3343, 4
    %v3346 = vshll.u32 %v1479, 16
    %v3348 = vrot.slane %v3346, 5
    %v3349 = vor.u32 %v3345, %v3348
    %v3350 = vrot.slane %v3349, 4
    %v3352 = vshll.u32 %v1480, 16
    %v3354 = vrot.slane %v3352, 5
    %v3355 = vsel %vm1762, %v3350, %v3354
    %v3356 = vshrl.u32 %v1480, 16
    %v3358 = vrot.slane %v3356, 4
    %v3359 = vor.u32 %v3358, %v3354
    %v3360 = vrot.slane %v3359, 4
    %v3362 = vshll.u32 %v1481, 16
    %v3364 = vrot.slane %v3362, 5
    %v3365 = vsel %vm1762, %v3360, %v3364
    %v3367 = vshrl.u32 %v1533, 16
    %v3369 = vrot.slane %v3367, 4
    %v3370 = vshll.u32 %v1533, 16
    %v3372 = vrot.slane %v3370, 5
    %v3373 = vor.u32 %v3369, %v3372
    %v3374 = vrot.slane %v3373, 4
    %v3376 = vshll.u32 %v1534, 16
    %v3378 = vrot.slane %v3376, 5
    %v3379 = vsel %vm1762, %v3374, %v3378
    %v3380 = vshrl.u32 %v1534, 16
    %v3382 = vrot.slane %v3380, 4
    %v3383 = vor.u32 %v3382, %v3378
    %v3384 = vrot.slane %v3383, 4
    %v3386 = vshll.u32 %v1535, 16
    %v3388 = vrot.slane %v3386, 5
    %v3389 = vsel %vm1762, %v3384, %v3388
    %v3390 = vunpack.c.l.b16 %v3355
    %v3391 = vunpack.c.l.b16 %v3365
    %v3392 = vunpack.c.l.b16 %v3379
    %v3393 = vunpack.c.l.b16 %v3389
    %v3394 = vpack.c.b16 %v3391, %v3390
    %v3395 = vpack.c.b16 %v3393, %v3392
    %3398 = vst [vmem:[#allocation3 + $0x38] sm:$0xff] %v2597
    %3399 = vst [vmem:[#allocation3 + $0x80] sm:$0xff] %v2598
    %3400 = vst [vmem:[#allocation3 + $0xc8] sm:$0xff] %v2599
    %3401 = vst [vmem:[#allocation3 + $0x110] sm:$0xff] %v2600
    %3402 = vst [vmem:[#allocation3 + $0x158] sm:$0xff] %v2601
    %3403 = vst [vmem:[#allocation3 + $0x1a0] sm:$0xff] %v2602
    %3404 = vst [vmem:[#allocation3 + $0x1e8] sm:$0xff] %v2603
    %3405 = vst [vmem:[#allocation3 + $0x230] sm:$0xff] %v2604
    %3406 = vst [vmem:[#allocation3 + $0x278] sm:$0xff] %v2605
    %3407 = vst [vmem:[#allocation3 + $0x2c0] sm:$0xff] %v2606
    %3408 = vst [vmem:[#allocation3 + $0x308] sm:$0xff] %v2607
    %3409 = vst [vmem:[#allocation3 + $0x350] sm:$0xff] %v2608
    %3410 = vst [vmem:[#allocation3 + $0x398] sm:$0xff] %v2609
    %3411 = vst [vmem:[#allocation3 + $0x3e0] sm:$0xff] %v2610
    %3412 = vst [vmem:[#allocation3 + $0x428] sm:$0xff] %v3206
    %3413 = vst [vmem:[#allocation3 + $0x470] sm:$0xff] %v3394
    %3414 = vst [vmem:[#allocation3 + $0x4b8] sm:$0xff] %v2613
    %3415 = vst [vmem:[#allocation3 + $0x500] sm:$0xff] %v2614
    %3416 = vst [vmem:[#allocation3 + $0x548] sm:$0xff] %v2615
    %3417 = vst [vmem:[#allocation3 + $0x590] sm:$0xff] %v2616
    %3418 = vst [vmem:[#allocation3 + $0x5d8] sm:$0xff] %v2617
    %3419 = vst [vmem:[#allocation3 + $0x620] sm:$0xff] %v2618
    %3420 = vst [vmem:[#allocation3 + $0x668] sm:$0xff] %v2619
    %3421 = vst [vmem:[#allocation3 + $0x6b0] sm:$0xff] %v2620
    %3422 = vst [vmem:[#allocation3 + $0x6f8] sm:$0xff] %v2621
    %3423 = vst [vmem:[#allocation3 + $0x740] sm:$0xff] %v2622
    %3424 = vst [vmem:[#allocation3 + $0x788] sm:$0xff] %v2623
    %3425 = vst [vmem:[#allocation3 + $0x7d0] sm:$0xff] %v2624
    %3426 = vst [vmem:[#allocation3 + $0x818] sm:$0xff] %v2625
    %3427 = vst [vmem:[#allocation3 + $0x860] sm:$0xff] %v2626
    %3428 = vst [vmem:[#allocation3 + $0x8a8] sm:$0xff] %v3207
    %3429 = vst [vmem:[#allocation3 + $0x8f0] sm:$0xff] %v3395
    %v3432 = vrot.slane %v1479, 5
    %v3433 = vrot.slane %v3432, 4
    %v3434 = vrot.slane %v1480, 5
    %v3435 = vsel %vm2725, %v3433, %v3434
    %v3436 = vrot.slane %v3434, 4
    %v3437 = vrot.slane %v1481, 5
    %v3438 = vsel %vm2725, %v3436, %v3437
    %v3439 = vrot.slane %v1533, 5
    %v3440 = vrot.slane %v3439, 4
    %v3441 = vrot.slane %v1534, 5
    %v3442 = vsel %vm2725, %v3440, %v3441
    %v3443 = vrot.slane %v3441, 4
    %v3444 = vrot.slane %v1535, 5
    %v3445 = vsel %vm2725, %v3443, %v3444
    %v3446 = vunpack.c.l.b16 %v3435
    %v3447 = vunpack.c.l.b16 %v3438
    %v3448 = vunpack.c.l.b16 %v3442
    %v3449 = vunpack.c.l.b16 %v3445
    %v3450 = vpack.c.b16 %v3447, %v3446
    %v3451 = vpack.c.b16 %v3449, %v3448
    %3454 = vst [vmem:[#allocation3 + $0x40] sm:$0xff] %v3016
    %3455 = vst [vmem:[#allocation3 + $0x88] sm:$0xff] %v3017
    %3456 = vst [vmem:[#allocation3 + $0xd0] sm:$0xff] %v3018
    %3457 = vst [vmem:[#allocation3 + $0x118] sm:$0xff] %v3019
    %3458 = vst [vmem:[#allocation3 + $0x160] sm:$0xff] %v3020
    %3459 = vst [vmem:[#allocation3 + $0x1a8] sm:$0xff] %v3021
    %3460 = vst [vmem:[#allocation3 + $0x1f0] sm:$0xff] %v3022
    %3461 = vst [vmem:[#allocation3 + $0x238] sm:$0xff] %v3023
    %3462 = vst [vmem:[#allocation3 + $0x280] sm:$0xff] %v3024
    %3463 = vst [vmem:[#allocation3 + $0x2c8] sm:$0xff] %v3025
    %3464 = vst [vmem:[#allocation3 + $0x310] sm:$0xff] %v3026
    %3465 = vst [vmem:[#allocation3 + $0x358] sm:$0xff] %v3027
    %3466 = vst [vmem:[#allocation3 + $0x3a0] sm:$0xff] %v3028
    %3467 = vst [vmem:[#allocation3 + $0x3e8] sm:$0xff] %v3029
    %3468 = vst [vmem:[#allocation3 + $0x430] sm:$0xff] %v3262
    %3469 = vst [vmem:[#allocation3 + $0x478] sm:$0xff] %v3450
    %3470 = vst [vmem:[#allocation3 + $0x4c0] sm:$0xff] %v3032
    %3471 = vst [vmem:[#allocation3 + $0x508] sm:$0xff] %v3033
    %3472 = vst [vmem:[#allocation3 + $0x550] sm:$0xff] %v3034
    %3473 = vst [vmem:[#allocation3 + $0x598] sm:$0xff] %v3035
    %3474 = vst [vmem:[#allocation3 + $0x5e0] sm:$0xff] %v3036
    %3475 = vst [vmem:[#allocation3 + $0x628] sm:$0xff] %v3037
    %3476 = vst [vmem:[#allocation3 + $0x670] sm:$0xff] %v3038
    %3477 = vst [vmem:[#allocation3 + $0x6b8] sm:$0xff] %v3039
    %3478 = vst [vmem:[#allocation3 + $0x700] sm:$0xff] %v3040
    %3479 = vst [vmem:[#allocation3 + $0x748] sm:$0xff] %v3041
    %3480 = vst [vmem:[#allocation3 + $0x790] sm:$0xff] %v3042
    %3481 = vst [vmem:[#allocation3 + $0x7d8] sm:$0xff] %v3043
    %3482 = vst [vmem:[#allocation3 + $0x820] sm:$0xff] %v3044
    %3483 = vst [vmem:[#allocation3 + $0x868] sm:$0xff] %v3045
    %3484 = vst [vmem:[#allocation3 + $0x8b0] sm:$0xff] %v3263
    %3485 = vst [vmem:[#allocation3 + $0x8f8] sm:$0xff] %v3451
    %v3486 = vld [vmem:[#allocation3] sm:$0xff]
    %v3487 = vld [vmem:[#allocation3 + $0x8] sm:$0xff]
    %v3488 = vld [vmem:[#allocation3 + $0x10] sm:$0xff]
    %v3489 = vld [vmem:[#allocation3 + $0x18] sm:$0xff]
    %v3490 = vld [vmem:[#allocation3 + $0x20] sm:$0xff]
    %v3491 = vld [vmem:[#allocation3 + $0x28] sm:$0xff]
    %v3492 = vld [vmem:[#allocation3 + $0x30] sm:$0xff]
    %v3493 = vld [vmem:[#allocation3 + $0x38] sm:$0xff]
    %v3494 = vld [vmem:[#allocation3 + $0x40] sm:$0xff]
    %v3495 = vld [vmem:[#allocation3 + $0x48] sm:$0xff]
    %v3496 = vld [vmem:[#allocation3 + $0x50] sm:$0xff]
    %v3497 = vld [vmem:[#allocation3 + $0x58] sm:$0xff]
    %v3498 = vld [vmem:[#allocation3 + $0x60] sm:$0xff]
    %v3499 = vld [vmem:[#allocation3 + $0x68] sm:$0xff]
    %v3500 = vld [vmem:[#allocation3 + $0x70] sm:$0xff]
    %v3501 = vld [vmem:[#allocation3 + $0x78] sm:$0xff]
    %v3502 = vld [vmem:[#allocation3 + $0x80] sm:$0xff]
    %v3503 = vld [vmem:[#allocation3 + $0x88] sm:$0xff]
    %v3504 = vld [vmem:[#allocation3 + $0x90] sm:$0xff]
    %v3505 = vld [vmem:[#allocation3 + $0x98] sm:$0xff]
    %v3506 = vld [vmem:[#allocation3 + $0xa0] sm:$0xff]
    %v3507 = vld [vmem:[#allocation3 + $0xa8] sm:$0xff]
    %v3508 = vld [vmem:[#allocation3 + $0xb0] sm:$0xff]
    %v3509 = vld [vmem:[#allocation3 + $0xb8] sm:$0xff]
    %v3510 = vld [vmem:[#allocation3 + $0xc0] sm:$0xff]
    %v3511 = vld [vmem:[#allocation3 + $0xc8] sm:$0xff]
    %v3512 = vld [vmem:[#allocation3 + $0xd0] sm:$0xff]
    %v3513 = vld [vmem:[#allocation3 + $0xd8] sm:$0xff]
    %v3514 = vld [vmem:[#allocation3 + $0xe0] sm:$0xff]
    %v3515 = vld [vmem:[#allocation3 + $0xe8] sm:$0xff]
    %v3516 = vld [vmem:[#allocation3 + $0xf0] sm:$0xff]
    %v3517 = vld [vmem:[#allocation3 + $0xf8] sm:$0xff]
    %v3518 = vld [vmem:[#allocation3 + $0x100] sm:$0xff]
    %v3519 = vld [vmem:[#allocation3 + $0x108] sm:$0xff]
    %v3520 = vld [vmem:[#allocation3 + $0x110] sm:$0xff]
    %v3521 = vld [vmem:[#allocation3 + $0x118] sm:$0xff]
    %v3522 = vld [vmem:[#allocation3 + $0x120] sm:$0xff]
    %v3523 = vld [vmem:[#allocation3 + $0x128] sm:$0xff]
    %v3524 = vld [vmem:[#allocation3 + $0x130] sm:$0xff]
    %v3525 = vld [vmem:[#allocation3 + $0x138] sm:$0xff]
    %v3526 = vld [vmem:[#allocation3 + $0x140] sm:$0xff]
    %v3527 = vld [vmem:[#allocation3 + $0x148] sm:$0xff]
    %v3528 = vld [vmem:[#allocation3 + $0x150] sm:$0xff]
    %v3529 = vld [vmem:[#allocation3 + $0x158] sm:$0xff]
    %v3530 = vld [vmem:[#allocation3 + $0x160] sm:$0xff]
    %v3531 = vld [vmem:[#allocation3 + $0x168] sm:$0xff]
    %v3532 = vld [vmem:[#allocation3 + $0x170] sm:$0xff]
    %v3533 = vld [vmem:[#allocation3 + $0x178] sm:$0xff]
    %v3534 = vld [vmem:[#allocation3 + $0x180] sm:$0xff]
    %v3535 = vld [vmem:[#allocation3 + $0x188] sm:$0xff]
    %v3536 = vld [vmem:[#allocation3 + $0x190] sm:$0xff]
    %v3537 = vld [vmem:[#allocation3 + $0x198] sm:$0xff]
    %v3538 = vld [vmem:[#allocation3 + $0x1a0] sm:$0xff]
    %v3539 = vld [vmem:[#allocation3 + $0x1a8] sm:$0xff]
    %v3540 = vld [vmem:[#allocation3 + $0x1b0] sm:$0xff]
    %v3541 = vld [vmem:[#allocation3 + $0x1b8] sm:$0xff]
    %v3542 = vld [vmem:[#allocation3 + $0x1c0] sm:$0xff]
    %v3543 = vld [vmem:[#allocation3 + $0x1c8] sm:$0xff]
    %v3544 = vld [vmem:[#allocation3 + $0x1d0] sm:$0xff]
    %v3545 = vld [vmem:[#allocation3 + $0x1d8] sm:$0xff]
    %v3546 = vld [vmem:[#allocation3 + $0x1e0] sm:$0xff]
    %v3547 = vld [vmem:[#allocation3 + $0x1e8] sm:$0xff]
    %v3548 = vld [vmem:[#allocation3 + $0x1f0] sm:$0xff]
    %v3549 = vld [vmem:[#allocation3 + $0x1f8] sm:$0xff]
    %v3550 = vld [vmem:[#allocation3 + $0x200] sm:$0xff]
    %v3551 = vld [vmem:[#allocation3 + $0x208] sm:$0xff]
    %v3552 = vld [vmem:[#allocation3 + $0x210] sm:$0xff]
    %v3553 = vld [vmem:[#allocation3 + $0x218] sm:$0xff]
    %v3554 = vld [vmem:[#allocation3 + $0x220] sm:$0xff]
    %v3555 = vld [vmem:[#allocation3 + $0x228] sm:$0xff]
    %v3556 = vld [vmem:[#allocation3 + $0x230] sm:$0xff]
    %v3557 = vld [vmem:[#allocation3 + $0x238] sm:$0xff]
    %v3558 = vld [vmem:[#allocation3 + $0x240] sm:$0xff]
    %v3559 = vld [vmem:[#allocation3 + $0x248] sm:$0xff]
    %v3560 = vld [vmem:[#allocation3 + $0x250] sm:$0xff]
    %v3561 = vld [vmem:[#allocation3 + $0x258] sm:$0xff]
    %v3562 = vld [vmem:[#allocation3 + $0x260] sm:$0xff]
    %v3563 = vld [vmem:[#allocation3 + $0x268] sm:$0xff]
    %v3564 = vld [vmem:[#allocation3 + $0x270] sm:$0xff]
    %v3565 = vld [vmem:[#allocation3 + $0x278] sm:$0xff]
    %v3566 = vld [vmem:[#allocation3 + $0x280] sm:$0xff]
    %v3567 = vld [vmem:[#allocation3 + $0x288] sm:$0xff]
    %v3568 = vld [vmem:[#allocation3 + $0x290] sm:$0xff]
    %v3569 = vld [vmem:[#allocation3 + $0x298] sm:$0xff]
    %v3570 = vld [vmem:[#allocation3 + $0x2a0] sm:$0xff]
    %v3571 = vld [vmem:[#allocation3 + $0x2a8] sm:$0xff]
    %v3572 = vld [vmem:[#allocation3 + $0x2b0] sm:$0xff]
    %v3573 = vld [vmem:[#allocation3 + $0x2b8] sm:$0xff]
    %v3574 = vld [vmem:[#allocation3 + $0x2c0] sm:$0xff]
    %v3575 = vld [vmem:[#allocation3 + $0x2c8] sm:$0xff]
    %v3576 = vld [vmem:[#allocation3 + $0x2d0] sm:$0xff]
    %v3577 = vld [vmem:[#allocation3 + $0x2d8] sm:$0xff]
    %v3578 = vld [vmem:[#allocation3 + $0x2e0] sm:$0xff]
    %v3579 = vld [vmem:[#allocation3 + $0x2e8] sm:$0xff]
    %v3580 = vld [vmem:[#allocation3 + $0x2f0] sm:$0xff]
    %v3581 = vld [vmem:[#allocation3 + $0x2f8] sm:$0xff]
    %v3582 = vld [vmem:[#allocation3 + $0x300] sm:$0xff]
    %v3583 = vld [vmem:[#allocation3 + $0x308] sm:$0xff]
    %v3584 = vld [vmem:[#allocation3 + $0x310] sm:$0xff]
    %v3585 = vld [vmem:[#allocation3 + $0x318] sm:$0xff]
    %v3586 = vld [vmem:[#allocation3 + $0x320] sm:$0xff]
    %v3587 = vld [vmem:[#allocation3 + $0x328] sm:$0xff]
    %v3588 = vld [vmem:[#allocation3 + $0x330] sm:$0xff]
    %v3589 = vld [vmem:[#allocation3 + $0x338] sm:$0xff]
    %v3590 = vld [vmem:[#allocation3 + $0x340] sm:$0xff]
    %v3591 = vld [vmem:[#allocation3 + $0x348] sm:$0xff]
    %v3592 = vld [vmem:[#allocation3 + $0x350] sm:$0xff]
    %v3593 = vld [vmem:[#allocation3 + $0x358] sm:$0xff]
    %v3594 = vld [vmem:[#allocation3 + $0x360] sm:$0xff]
    %v3595 = vld [vmem:[#allocation3 + $0x368] sm:$0xff]
    %v3596 = vld [vmem:[#allocation3 + $0x370] sm:$0xff]
    %v3597 = vld [vmem:[#allocation3 + $0x378] sm:$0xff]
    %v3598 = vld [vmem:[#allocation3 + $0x380] sm:$0xff]
    %v3599 = vld [vmem:[#allocation3 + $0x388] sm:$0xff]
    %v3600 = vld [vmem:[#allocation3 + $0x390] sm:$0xff]
    %v3601 = vld [vmem:[#allocation3 + $0x398] sm:$0xff]
    %v3602 = vld [vmem:[#allocation3 + $0x3a0] sm:$0xff]
    %v3603 = vld [vmem:[#allocation3 + $0x3a8] sm:$0xff]
    %v3604 = vld [vmem:[#allocation3 + $0x3b0] sm:$0xff]
    %v3605 = vld [vmem:[#allocation3 + $0x3b8] sm:$0xff]
    %v3606 = vld [vmem:[#allocation3 + $0x3c0] sm:$0xff]
    %v3607 = vld [vmem:[#allocation3 + $0x3c8] sm:$0xff]
    %v3608 = vld [vmem:[#allocation3 + $0x3d0] sm:$0xff]
    %v3609 = vld [vmem:[#allocation3 + $0x3d8] sm:$0xff]
    %v3610 = vld [vmem:[#allocation3 + $0x3e0] sm:$0xff]
    %v3611 = vld [vmem:[#allocation3 + $0x3e8] sm:$0xff]
    %v3612 = vld [vmem:[#allocation3 + $0x3f0] sm:$0xff]
    %v3613 = vld [vmem:[#allocation3 + $0x3f8] sm:$0xff]
    %v3614 = vld [vmem:[#allocation3 + $0x400] sm:$0xff]
    %v3615 = vld [vmem:[#allocation3 + $0x408] sm:$0xff]
    %v3616 = vld [vmem:[#allocation3 + $0x410] sm:$0xff]
    %v3617 = vld [vmem:[#allocation3 + $0x418] sm:$0xff]
    %v3618 = vld [vmem:[#allocation3 + $0x420] sm:$0xff]
    %v3619 = vld [vmem:[#allocation3 + $0x428] sm:$0xff]
    %v3620 = vld [vmem:[#allocation3 + $0x430] sm:$0xff]
    %v3621 = vld [vmem:[#allocation3 + $0x438] sm:$0xff]
    %v3622 = vld [vmem:[#allocation3 + $0x440] sm:$0xff]
    %v3623 = vld [vmem:[#allocation3 + $0x448] sm:$0xff]
    %v3624 = vld [vmem:[#allocation3 + $0x450] sm:$0xff]
    %v3625 = vld [vmem:[#allocation3 + $0x458] sm:$0xff]
    %v3626 = vld [vmem:[#allocation3 + $0x460] sm:$0xff]
    %v3627 = vld [vmem:[#allocation3 + $0x468] sm:$0xff]
    %v3628 = vld [vmem:[#allocation3 + $0x470] sm:$0xff]
    %v3629 = vld [vmem:[#allocation3 + $0x478] sm:$0xff]
    %v3630 = vld [vmem:[#allocation3 + $0x480] sm:$0xff]
    %v3631 = vld [vmem:[#allocation3 + $0x488] sm:$0xff]
    %v3632 = vld [vmem:[#allocation3 + $0x490] sm:$0xff]
    %v3633 = vld [vmem:[#allocation3 + $0x498] sm:$0xff]
    %v3634 = vld [vmem:[#allocation3 + $0x4a0] sm:$0xff]
    %v3635 = vld [vmem:[#allocation3 + $0x4a8] sm:$0xff]
    %v3636 = vld [vmem:[#allocation3 + $0x4b0] sm:$0xff]
    %v3637 = vld [vmem:[#allocation3 + $0x4b8] sm:$0xff]
    %v3638 = vld [vmem:[#allocation3 + $0x4c0] sm:$0xff]
    %v3639 = vld [vmem:[#allocation3 + $0x4c8] sm:$0xff]
    %v3640 = vld [vmem:[#allocation3 + $0x4d0] sm:$0xff]
    %v3641 = vld [vmem:[#allocation3 + $0x4d8] sm:$0xff]
    %v3642 = vld [vmem:[#allocation3 + $0x4e0] sm:$0xff]
    %v3643 = vld [vmem:[#allocation3 + $0x4e8] sm:$0xff]
    %v3644 = vld [vmem:[#allocation3 + $0x4f0] sm:$0xff]
    %v3645 = vld [vmem:[#allocation3 + $0x4f8] sm:$0xff]
    %v3646 = vld [vmem:[#allocation3 + $0x500] sm:$0xff]
    %v3647 = vld [vmem:[#allocation3 + $0x508] sm:$0xff]
    %v3648 = vld [vmem:[#allocation3 + $0x510] sm:$0xff]
    %v3649 = vld [vmem:[#allocation3 + $0x518] sm:$0xff]
    %v3650 = vld [vmem:[#allocation3 + $0x520] sm:$0xff]
    %v3651 = vld [vmem:[#allocation3 + $0x528] sm:$0xff]
    %v3652 = vld [vmem:[#allocation3 + $0x530] sm:$0xff]
    %v3653 = vld [vmem:[#allocation3 + $0x538] sm:$0xff]
    %v3654 = vld [vmem:[#allocation3 + $0x540] sm:$0xff]
    %v3655 = vld [vmem:[#allocation3 + $0x548] sm:$0xff]
    %v3656 = vld [vmem:[#allocation3 + $0x550] sm:$0xff]
    %v3657 = vld [vmem:[#allocation3 + $0x558] sm:$0xff]
    %v3658 = vld [vmem:[#allocation3 + $0x560] sm:$0xff]
    %v3659 = vld [vmem:[#allocation3 + $0x568] sm:$0xff]
    %v3660 = vld [vmem:[#allocation3 + $0x570] sm:$0xff]
    %v3661 = vld [vmem:[#allocation3 + $0x578] sm:$0xff]
    %v3662 = vld [vmem:[#allocation3 + $0x580] sm:$0xff]
    %v3663 = vld [vmem:[#allocation3 + $0x588] sm:$0xff]
    %v3664 = vld [vmem:[#allocation3 + $0x590] sm:$0xff]
    %v3665 = vld [vmem:[#allocation3 + $0x598] sm:$0xff]
    %v3666 = vld [vmem:[#allocation3 + $0x5a0] sm:$0xff]
    %v3667 = vld [vmem:[#allocation3 + $0x5a8] sm:$0xff]
    %v3668 = vld [vmem:[#allocation3 + $0x5b0] sm:$0xff]
    %v3669 = vld [vmem:[#allocation3 + $0x5b8] sm:$0xff]
    %v3670 = vld [vmem:[#allocation3 + $0x5c0] sm:$0xff]
    %v3671 = vld [vmem:[#allocation3 + $0x5c8] sm:$0xff]
    %v3672 = vld [vmem:[#allocation3 + $0x5d0] sm:$0xff]
    %v3673 = vld [vmem:[#allocation3 + $0x5d8] sm:$0xff]
    %v3674 = vld [vmem:[#allocation3 + $0x5e0] sm:$0xff]
    %v3675 = vld [vmem:[#allocation3 + $0x5e8] sm:$0xff]
    %v3676 = vld [vmem:[#allocation3 + $0x5f0] sm:$0xff]
    %v3677 = vld [vmem:[#allocation3 + $0x5f8] sm:$0xff]
    %v3678 = vld [vmem:[#allocation3 + $0x600] sm:$0xff]
    %v3679 = vld [vmem:[#allocation3 + $0x608] sm:$0xff]
    %v3680 = vld [vmem:[#allocation3 + $0x610] sm:$0xff]
    %v3681 = vld [vmem:[#allocation3 + $0x618] sm:$0xff]
    %v3682 = vld [vmem:[#allocation3 + $0x620] sm:$0xff]
    %v3683 = vld [vmem:[#allocation3 + $0x628] sm:$0xff]
    %v3684 = vld [vmem:[#allocation3 + $0x630] sm:$0xff]
    %v3685 = vld [vmem:[#allocation3 + $0x638] sm:$0xff]
    %v3686 = vld [vmem:[#allocation3 + $0x640] sm:$0xff]
    %v3687 = vld [vmem:[#allocation3 + $0x648] sm:$0xff]
    %v3688 = vld [vmem:[#allocation3 + $0x650] sm:$0xff]
    %v3689 = vld [vmem:[#allocation3 + $0x658] sm:$0xff]
    %v3690 = vld [vmem:[#allocation3 + $0x660] sm:$0xff]
    %v3691 = vld [vmem:[#allocation3 + $0x668] sm:$0xff]
    %v3692 = vld [vmem:[#allocation3 + $0x670] sm:$0xff]
    %v3693 = vld [vmem:[#allocation3 + $0x678] sm:$0xff]
    %v3694 = vld [vmem:[#allocation3 + $0x680] sm:$0xff]
    %v3695 = vld [vmem:[#allocation3 + $0x688] sm:$0xff]
    %v3696 = vld [vmem:[#allocation3 + $0x690] sm:$0xff]
    %v3697 = vld [vmem:[#allocation3 + $0x698] sm:$0xff]
    %v3698 = vld [vmem:[#allocation3 + $0x6a0] sm:$0xff]
    %v3699 = vld [vmem:[#allocation3 + $0x6a8] sm:$0xff]
    %v3700 = vld [vmem:[#allocation3 + $0x6b0] sm:$0xff]
    %v3701 = vld [vmem:[#allocation3 + $0x6b8] sm:$0xff]
    %v3702 = vld [vmem:[#allocation3 + $0x6c0] sm:$0xff]
    %v3703 = vld [vmem:[#allocation3 + $0x6c8] sm:$0xff]
    %v3704 = vld [vmem:[#allocation3 + $0x6d0] sm:$0xff]
    %v3705 = vld [vmem:[#allocation3 + $0x6d8] sm:$0xff]
    %v3706 = vld [vmem:[#allocation3 + $0x6e0] sm:$0xff]
    %v3707 = vld [vmem:[#allocation3 + $0x6e8] sm:$0xff]
    %v3708 = vld [vmem:[#allocation3 + $0x6f0] sm:$0xff]
    %v3709 = vld [vmem:[#allocation3 + $0x6f8] sm:$0xff]
    %v3710 = vld [vmem:[#allocation3 + $0x700] sm:$0xff]
    %v3711 = vld [vmem:[#allocation3 + $0x708] sm:$0xff]
    %v3712 = vld [vmem:[#allocation3 + $0x710] sm:$0xff]
    %v3713 = vld [vmem:[#allocation3 + $0x718] sm:$0xff]
    %v3714 = vld [vmem:[#allocation3 + $0x720] sm:$0xff]
    %v3715 = vld [vmem:[#allocation3 + $0x728] sm:$0xff]
    %v3716 = vld [vmem:[#allocation3 + $0x730] sm:$0xff]
    %v3717 = vld [vmem:[#allocation3 + $0x738] sm:$0xff]
    %v3718 = vld [vmem:[#allocation3 + $0x740] sm:$0xff]
    %v3719 = vld [vmem:[#allocation3 + $0x748] sm:$0xff]
    %v3720 = vld [vmem:[#allocation3 + $0x750] sm:$0xff]
    %v3721 = vld [vmem:[#allocation3 + $0x758] sm:$0xff]
    %v3722 = vld [vmem:[#allocation3 + $0x760] sm:$0xff]
    %v3723 = vld [vmem:[#allocation3 + $0x768] sm:$0xff]
    %v3724 = vld [vmem:[#allocation3 + $0x770] sm:$0xff]
    %v3725 = vld [vmem:[#allocation3 + $0x778] sm:$0xff]
    %v3726 = vld [vmem:[#allocation3 + $0x780] sm:$0xff]
    %v3727 = vld [vmem:[#allocation3 + $0x788] sm:$0xff]
    %v3728 = vld [vmem:[#allocation3 + $0x790] sm:$0xff]
    %v3729 = vld [vmem:[#allocation3 + $0x798] sm:$0xff]
    %v3730 = vld [vmem:[#allocation3 + $0x7a0] sm:$0xff]
    %v3731 = vld [vmem:[#allocation3 + $0x7a8] sm:$0xff]
    %v3732 = vld [vmem:[#allocation3 + $0x7b0] sm:$0xff]
    %v3733 = vld [vmem:[#allocation3 + $0x7b8] sm:$0xff]
    %v3734 = vld [vmem:[#allocation3 + $0x7c0] sm:$0xff]
    %v3735 = vld [vmem:[#allocation3 + $0x7c8] sm:$0xff]
    %v3736 = vld [vmem:[#allocation3 + $0x7d0] sm:$0xff]
    %v3737 = vld [vmem:[#allocation3 + $0x7d8] sm:$0xff]
    %v3738 = vld [vmem:[#allocation3 + $0x7e0] sm:$0xff]
    %v3739 = vld [vmem:[#allocation3 + $0x7e8] sm:$0xff]
    %v3740 = vld [vmem:[#allocation3 + $0x7f0] sm:$0xff]
    %v3741 = vld [vmem:[#allocation3 + $0x7f8] sm:$0xff]
    %v3742 = vld [vmem:[#allocation3 + $0x800] sm:$0xff]
    %v3743 = vld [vmem:[#allocation3 + $0x808] sm:$0xff]
    %v3744 = vld [vmem:[#allocation3 + $0x810] sm:$0xff]
    %v3745 = vld [vmem:[#allocation3 + $0x818] sm:$0xff]
    %v3746 = vld [vmem:[#allocation3 + $0x820] sm:$0xff]
    %v3747 = vld [vmem:[#allocation3 + $0x828] sm:$0xff]
    %v3748 = vld [vmem:[#allocation3 + $0x830] sm:$0xff]
    %v3749 = vld [vmem:[#allocation3 + $0x838] sm:$0xff]
    %v3750 = vld [vmem:[#allocation3 + $0x840] sm:$0xff]
    %v3751 = vld [vmem:[#allocation3 + $0x848] sm:$0xff]
    %v3752 = vld [vmem:[#allocation3 + $0x850] sm:$0xff]
    %v3753 = vld [vmem:[#allocation3 + $0x858] sm:$0xff]
    %v3754 = vld [vmem:[#allocation3 + $0x860] sm:$0xff]
    %v3755 = vld [vmem:[#allocation3 + $0x868] sm:$0xff]
    %v3756 = vld [vmem:[#allocation3 + $0x870] sm:$0xff]
    %v3757 = vld [vmem:[#allocation3 + $0x878] sm:$0xff]
    %v3758 = vld [vmem:[#allocation3 + $0x880] sm:$0xff]
    %v3759 = vld [vmem:[#allocation3 + $0x888] sm:$0xff]
    %v3760 = vld [vmem:[#allocation3 + $0x890] sm:$0xff]
    %v3761 = vld [vmem:[#allocation3 + $0x898] sm:$0xff]
    %v3762 = vld [vmem:[#allocation3 + $0x8a0] sm:$0xff]
    %v3763 = vld [vmem:[#allocation3 + $0x8a8] sm:$0xff]
    %v3764 = vld [vmem:[#allocation3 + $0x8b0] sm:$0xff]
    %v3765 = vld [vmem:[#allocation3 + $0x8b8] sm:$0xff]
    %v3766 = vld [vmem:[#allocation3 + $0x8c0] sm:$0xff]
    %v3767 = vld [vmem:[#allocation3 + $0x8c8] sm:$0xff]
    %v3768 = vld [vmem:[#allocation3 + $0x8d0] sm:$0xff]
    %v3769 = vld [vmem:[#allocation3 + $0x8d8] sm:$0xff]
    %v3770 = vld [vmem:[#allocation3 + $0x8e0] sm:$0xff]
    %v3771 = vld [vmem:[#allocation3 + $0x8e8] sm:$0xff]
    %v3772 = vld [vmem:[#allocation3 + $0x8f0] sm:$0xff]
    %v3773 = vld [vmem:[#allocation3 + $0x8f8] sm:$0xff]
    %v3774 = vld [vmem:[#allocation7] sm:$0xf]
    %v3775 = vld [vmem:[#allocation7 + $0x4] sm:$0xf]
    %v3776 = vld [vmem:[#allocation7 + $0x8] sm:$0xf]
    %v3777 = vld [vmem:[#allocation7 + $0xc] sm:$0xf]
    %v3778 = vld [vmem:[#allocation7 + $0x10] sm:$0xf]
    %v3779 = vld [vmem:[#allocation7 + $0x14] sm:$0xf]
    %v3780 = vld [vmem:[#allocation7 + $0x18] sm:$0xf]
    %v3781 = vld [vmem:[#allocation7 + $0x1c] sm:$0xf]
    %v3782 = vld [vmem:[#allocation7 + $0x20] sm:$0xf]
    %v3783 = vld [vmem:[#allocation7 + $0x24] sm:$0xf]
    %v3784 = vld [vmem:[#allocation7 + $0x28] sm:$0xf]
    %v3785 = vld [vmem:[#allocation7 + $0x2c] sm:$0xf]
    %v3786 = vld [vmem:[#allocation7 + $0x30] sm:$0xf]
    %v3787 = vld [vmem:[#allocation7 + $0x34] sm:$0xf]
    %v3788 = vld [vmem:[#allocation7 + $0x38] sm:$0xf]
    %v3789 = vld [vmem:[#allocation7 + $0x3c] sm:$0xf]
    %v3790 = vld [vmem:[#allocation7 + $0x40] sm:$0xf]
    %v3791 = vld [vmem:[#allocation7 + $0x44] sm:$0xf]
    %v3792 = vld [vmem:[#allocation7 + $0x48] sm:$0xf]
    %v3793 = vld [vmem:[#allocation7 + $0x4c] sm:$0xf]
    %v3794 = vld [vmem:[#allocation7 + $0x50] sm:$0xf]
    %v3795 = vld [vmem:[#allocation7 + $0x54] sm:$0xf]
    %v3796 = vld [vmem:[#allocation7 + $0x58] sm:$0xf]
    %v3797 = vld [vmem:[#allocation7 + $0x5c] sm:$0xf]
    %v3798 = vld [vmem:[#allocation7 + $0x60] sm:$0xf]
    %v3799 = vld [vmem:[#allocation7 + $0x64] sm:$0xf]
    %v3800 = vld [vmem:[#allocation7 + $0x68] sm:$0xf]
    %v3801 = vld [vmem:[#allocation7 + $0x6c] sm:$0xf]
    %v3802 = vld [vmem:[#allocation7 + $0x70] sm:$0xf]
    %v3803 = vld [vmem:[#allocation7 + $0x74] sm:$0xf]
    %v3804 = vld [vmem:[#allocation7 + $0x78] sm:$0xf]
    %v3805 = vld [vmem:[#allocation7 + $0x7c] sm:$0xf]
    %v3806 = vld [vmem:[#allocation7 + $0x80] sm:$0xf]
    %v3807 = vld [vmem:[#allocation7 + $0x84] sm:$0xf]
    %v3808 = vld [vmem:[#allocation7 + $0x88] sm:$0xf]
    %v3809 = vld [vmem:[#allocation7 + $0x8c] sm:$0xf]
    %v3810 = vld [vmem:[#allocation7 + $0x90] sm:$0xf]
    %v3811 = vld [vmem:[#allocation7 + $0x94] sm:$0xf]
    %v3812 = vld [vmem:[#allocation7 + $0x98] sm:$0xf]
    %v3813 = vld [vmem:[#allocation7 + $0x9c] sm:$0xf]
    %v3814 = vld [vmem:[#allocation7 + $0xa0] sm:$0xf]
    %v3815 = vld [vmem:[#allocation7 + $0xa4] sm:$0xf]
    %v3816 = vld [vmem:[#allocation7 + $0xa8] sm:$0xf]
    %v3817 = vld [vmem:[#allocation7 + $0xac] sm:$0xf]
    %v3818 = vld [vmem:[#allocation7 + $0xb0] sm:$0xf]
    %v3819 = vld [vmem:[#allocation7 + $0xb4] sm:$0xf]
    %v3820 = vld [vmem:[#allocation7 + $0xb8] sm:$0xf]
    %v3821 = vld [vmem:[#allocation7 + $0xbc] sm:$0xf]
    %v3822 = vld [vmem:[#allocation7 + $0xc0] sm:$0xf]
    %v3823 = vld [vmem:[#allocation7 + $0xc4] sm:$0xf]
    %v3824 = vld [vmem:[#allocation7 + $0xc8] sm:$0xf]
    %v3825 = vld [vmem:[#allocation7 + $0xcc] sm:$0xf]
    %v3826 = vld [vmem:[#allocation7 + $0xd0] sm:$0xf]
    %v3827 = vld [vmem:[#allocation7 + $0xd4] sm:$0xf]
    %v3828 = vld [vmem:[#allocation7 + $0xd8] sm:$0xf]
    %v3829 = vld [vmem:[#allocation7 + $0xdc] sm:$0xf]
    %v3830 = vld [vmem:[#allocation7 + $0xe0] sm:$0xf]
    %v3831 = vld [vmem:[#allocation7 + $0xe4] sm:$0xf]
    %v3832 = vld [vmem:[#allocation7 + $0xe8] sm:$0xf]
    %v3833 = vld [vmem:[#allocation7 + $0xec] sm:$0xf]
    %v3834 = vld [vmem:[#allocation7 + $0xf0] sm:$0xf]
    %v3835 = vld [vmem:[#allocation7 + $0xf4] sm:$0xf]
    %v3836 = vld [vmem:[#allocation7 + $0xf8] sm:$0xf]
    %v3837 = vld [vmem:[#allocation7 + $0xfc] sm:$0xf]
    %v3838 = vld [vmem:[#allocation7 + $0x100] sm:$0xf]
    %v3839 = vld [vmem:[#allocation7 + $0x104] sm:$0xf]
    %v3840 = vld [vmem:[#allocation7 + $0x108] sm:$0xf]
    %v3841 = vld [vmem:[#allocation7 + $0x10c] sm:$0xf]
    %v3842 = vld [vmem:[#allocation7 + $0x110] sm:$0xf]
    %v3843 = vld [vmem:[#allocation7 + $0x114] sm:$0xf]
    %v3844 = vld [vmem:[#allocation7 + $0x118] sm:$0xf]
    %v3845 = vld [vmem:[#allocation7 + $0x11c] sm:$0xf]
    %v3846 = vld [vmem:[#allocation7 + $0x120] sm:$0xf]
    %v3847 = vld [vmem:[#allocation7 + $0x124] sm:$0xf]
    %v3848 = vld [vmem:[#allocation7 + $0x128] sm:$0xf]
    %v3849 = vld [vmem:[#allocation7 + $0x12c] sm:$0xf]
    %v3850 = vld [vmem:[#allocation7 + $0x130] sm:$0xf]
    %v3851 = vld [vmem:[#allocation7 + $0x134] sm:$0xf]
    %v3852 = vld [vmem:[#allocation7 + $0x138] sm:$0xf]
    %v3853 = vld [vmem:[#allocation7 + $0x13c] sm:$0xf]
    %v3854 = vld [vmem:[#allocation7 + $0x140] sm:$0xf]
    %v3855 = vld [vmem:[#allocation7 + $0x144] sm:$0xf]
    %v3856 = vld [vmem:[#allocation7 + $0x148] sm:$0xf]
    %v3857 = vld [vmem:[#allocation7 + $0x14c] sm:$0xf]
    %v3858 = vld [vmem:[#allocation7 + $0x150] sm:$0xf]
    %v3859 = vld [vmem:[#allocation7 + $0x154] sm:$0xf]
    %v3860 = vld [vmem:[#allocation7 + $0x158] sm:$0xf]
    %v3861 = vld [vmem:[#allocation7 + $0x15c] sm:$0xf]
    %v3862 = vld [vmem:[#allocation7 + $0x160] sm:$0xf]
    %v3863 = vld [vmem:[#allocation7 + $0x164] sm:$0xf]
    %v3864 = vld [vmem:[#allocation7 + $0x168] sm:$0xf]
    %v3865 = vld [vmem:[#allocation7 + $0x16c] sm:$0xf]
    %v3866 = vld [vmem:[#allocation7 + $0x170] sm:$0xf]
    %v3867 = vld [vmem:[#allocation7 + $0x174] sm:$0xf]
    %v3868 = vld [vmem:[#allocation7 + $0x178] sm:$0xf]
    %v3869 = vld [vmem:[#allocation7 + $0x17c] sm:$0xf]
    %v3870 = vld [vmem:[#allocation7 + $0x180] sm:$0xf]
    %v3871 = vld [vmem:[#allocation7 + $0x184] sm:$0xf]
    %v3872 = vld [vmem:[#allocation7 + $0x188] sm:$0xf]
    %v3873 = vld [vmem:[#allocation7 + $0x18c] sm:$0xf]
    %v3874 = vld [vmem:[#allocation7 + $0x190] sm:$0xf]
    %v3875 = vld [vmem:[#allocation7 + $0x194] sm:$0xf]
    %v3876 = vld [vmem:[#allocation7 + $0x198] sm:$0xf]
    %v3877 = vld [vmem:[#allocation7 + $0x19c] sm:$0xf]
    %v3878 = vld [vmem:[#allocation7 + $0x1a0] sm:$0xf]
    %v3879 = vld [vmem:[#allocation7 + $0x1a4] sm:$0xf]
    %v3880 = vld [vmem:[#allocation7 + $0x1a8] sm:$0xf]
    %v3881 = vld [vmem:[#allocation7 + $0x1ac] sm:$0xf]
    %v3882 = vld [vmem:[#allocation7 + $0x1b0] sm:$0xf]
    %v3883 = vld [vmem:[#allocation7 + $0x1b4] sm:$0xf]
    %v3884 = vld [vmem:[#allocation7 + $0x1b8] sm:$0xf]
    %v3885 = vld [vmem:[#allocation7 + $0x1bc] sm:$0xf]
    %v3886 = vld [vmem:[#allocation7 + $0x1c0] sm:$0xf]
    %v3887 = vld [vmem:[#allocation7 + $0x1c4] sm:$0xf]
    %v3888 = vld [vmem:[#allocation7 + $0x1c8] sm:$0xf]
    %v3889 = vld [vmem:[#allocation7 + $0x1cc] sm:$0xf]
    %v3890 = vld [vmem:[#allocation7 + $0x1d0] sm:$0xf]
    %v3891 = vld [vmem:[#allocation7 + $0x1d4] sm:$0xf]
    %v3892 = vld [vmem:[#allocation7 + $0x1d8] sm:$0xf]
    %v3893 = vld [vmem:[#allocation7 + $0x1dc] sm:$0xf]
    %v3894 = vld [vmem:[#allocation7 + $0x1e0] sm:$0xf]
    %v3895 = vld [vmem:[#allocation7 + $0x1e4] sm:$0xf]
    %v3896 = vld [vmem:[#allocation7 + $0x1e8] sm:$0xf]
    %v3897 = vld [vmem:[#allocation7 + $0x1ec] sm:$0xf]
    %v3898 = vld [vmem:[#allocation7 + $0x1f0] sm:$0xf]
    %v3899 = vld [vmem:[#allocation7 + $0x1f4] sm:$0xf]
    %v3900 = vld [vmem:[#allocation7 + $0x1f8] sm:$0xf]
    %v3901 = vld [vmem:[#allocation7 + $0x1fc] sm:$0xf]
    %v3902 = vld [vmem:[#allocation7 + $0x200] sm:$0xf]
    %v3903 = vld [vmem:[#allocation7 + $0x204] sm:$0xf]
    %v3904 = vld [vmem:[#allocation7 + $0x208] sm:$0xf]
    %v3905 = vld [vmem:[#allocation7 + $0x20c] sm:$0xf]
    %v3906 = vld [vmem:[#allocation7 + $0x210] sm:$0xf]
    %v3907 = vld [vmem:[#allocation7 + $0x214] sm:$0xf]
    %v3908 = vld [vmem:[#allocation7 + $0x218] sm:$0xf]
    %v3909 = vld [vmem:[#allocation7 + $0x21c] sm:$0xf]
    %v3910 = vld [vmem:[#allocation7 + $0x220] sm:$0xf]
    %v3911 = vld [vmem:[#allocation7 + $0x224] sm:$0xf]
    %v3912 = vld [vmem:[#allocation7 + $0x228] sm:$0xf]
    %v3913 = vld [vmem:[#allocation7 + $0x22c] sm:$0xf]
    %v3914 = vld [vmem:[#allocation7 + $0x230] sm:$0xf]
    %v3915 = vld [vmem:[#allocation7 + $0x234] sm:$0xf]
    %v3916 = vld [vmem:[#allocation7 + $0x238] sm:$0xf]
    %v3917 = vld [vmem:[#allocation7 + $0x23c] sm:$0xf]
    %v4062 = vunpack.c.l.b16 %v3774
    %v4063 = vunpack.c.l.b16 %v3775
    %v4064 = vunpack.c.l.b16 %v3776
    %v4065 = vunpack.c.l.b16 %v3777
    %v4066 = vunpack.c.l.b16 %v3778
    %v4067 = vunpack.c.l.b16 %v3779
    %v4068 = vunpack.c.l.b16 %v3780
    %v4069 = vunpack.c.l.b16 %v3781
    %v4070 = vunpack.c.l.b16 %v3782
    %v4071 = vunpack.c.l.b16 %v3783
    %v4072 = vunpack.c.l.b16 %v3784
    %v4073 = vunpack.c.l.b16 %v3785
    %v4074 = vunpack.c.l.b16 %v3786
    %v4075 = vunpack.c.l.b16 %v3787
    %v4076 = vunpack.c.l.b16 %v3788
    %v4077 = vunpack.c.l.b16 %v3789
    %v4078 = vunpack.c.l.b16 %v3790
    %v4079 = vunpack.c.l.b16 %v3791
    %v4080 = vunpack.c.l.b16 %v3792
    %v4081 = vunpack.c.l.b16 %v3793
    %v4082 = vunpack.c.l.b16 %v3794
    %v4083 = vunpack.c.l.b16 %v3795
    %v4084 = vunpack.c.l.b16 %v3796
    %v4085 = vunpack.c.l.b16 %v3797
    %v4086 = vunpack.c.l.b16 %v3798
    %v4087 = vunpack.c.l.b16 %v3799
    %v4088 = vunpack.c.l.b16 %v3800
    %v4089 = vunpack.c.l.b16 %v3801
    %v4090 = vunpack.c.l.b16 %v3802
    %v4091 = vunpack.c.l.b16 %v3803
    %v4092 = vunpack.c.l.b16 %v3804
    %v4093 = vunpack.c.l.b16 %v3805
    %v4094 = vunpack.c.l.b16 %v3806
    %v4095 = vunpack.c.l.b16 %v3807
    %v4096 = vunpack.c.l.b16 %v3808
    %v4097 = vunpack.c.l.b16 %v3809
    %v4098 = vunpack.c.l.b16 %v3810
    %v4099 = vunpack.c.l.b16 %v3811
    %v4100 = vunpack.c.l.b16 %v3812
    %v4101 = vunpack.c.l.b16 %v3813
    %v4102 = vunpack.c.l.b16 %v3814
    %v4103 = vunpack.c.l.b16 %v3815
    %v4104 = vunpack.c.l.b16 %v3816
    %v4105 = vunpack.c.l.b16 %v3817
    %v4106 = vunpack.c.l.b16 %v3818
    %v4107 = vunpack.c.l.b16 %v3819
    %v4108 = vunpack.c.l.b16 %v3820
    %v4109 = vunpack.c.l.b16 %v3821
    %v4110 = vunpack.c.l.b16 %v3822
    %v4111 = vunpack.c.l.b16 %v3823
    %v4112 = vunpack.c.l.b16 %v3824
    %v4113 = vunpack.c.l.b16 %v3825
    %v4114 = vunpack.c.l.b16 %v3826
    %v4115 = vunpack.c.l.b16 %v3827
    %v4116 = vunpack.c.l.b16 %v3828
    %v4117 = vunpack.c.l.b16 %v3829
    %v4118 = vunpack.c.l.b16 %v3830
    %v4119 = vunpack.c.l.b16 %v3831
    %v4120 = vunpack.c.l.b16 %v3832
    %v4121 = vunpack.c.l.b16 %v3833
    %v4122 = vunpack.c.l.b16 %v3834
    %v4123 = vunpack.c.l.b16 %v3835
    %v4124 = vunpack.c.l.b16 %v3836
    %v4125 = vunpack.c.l.b16 %v3837
    %v4126 = vunpack.c.l.b16 %v3838
    %v4127 = vunpack.c.l.b16 %v3839
    %v4128 = vunpack.c.l.b16 %v3840
    %v4129 = vunpack.c.l.b16 %v3841
    %v4130 = vunpack.c.l.b16 %v3842
    %v4131 = vunpack.c.l.b16 %v3843
    %v4132 = vunpack.c.l.b16 %v3844
    %v4133 = vunpack.c.l.b16 %v3845
    %v4134 = vunpack.c.l.b16 %v3846
    %v4135 = vunpack.c.l.b16 %v3847
    %v4136 = vunpack.c.l.b16 %v3848
    %v4137 = vunpack.c.l.b16 %v3849
    %v4138 = vunpack.c.l.b16 %v3850
    %v4139 = vunpack.c.l.b16 %v3851
    %v4140 = vunpack.c.l.b16 %v3852
    %v4141 = vunpack.c.l.b16 %v3853
    %v4142 = vunpack.c.l.b16 %v3854
    %v4143 = vunpack.c.l.b16 %v3855
    %v4144 = vunpack.c.l.b16 %v3856
    %v4145 = vunpack.c.l.b16 %v3857
    %v4146 = vunpack.c.l.b16 %v3858
    %v4147 = vunpack.c.l.b16 %v3859
    %v4148 = vunpack.c.l.b16 %v3860
    %v4149 = vunpack.c.l.b16 %v3861
    %v4150 = vunpack.c.l.b16 %v3862
    %v4151 = vunpack.c.l.b16 %v3863
    %v4152 = vunpack.c.l.b16 %v3864
    %v4153 = vunpack.c.l.b16 %v3865
    %v4154 = vunpack.c.l.b16 %v3866
    %v4155 = vunpack.c.l.b16 %v3867
    %v4156 = vunpack.c.l.b16 %v3868
    %v4157 = vunpack.c.l.b16 %v3869
    %v4158 = vunpack.c.l.b16 %v3870
    %v4159 = vunpack.c.l.b16 %v3871
    %v4160 = vunpack.c.l.b16 %v3872
    %v4161 = vunpack.c.l.b16 %v3873
    %v4162 = vunpack.c.l.b16 %v3874
    %v4163 = vunpack.c.l.b16 %v3875
    %v4164 = vunpack.c.l.b16 %v3876
    %v4165 = vunpack.c.l.b16 %v3877
    %v4166 = vunpack.c.l.b16 %v3878
    %v4167 = vunpack.c.l.b16 %v3879
    %v4168 = vunpack.c.l.b16 %v3880
    %v4169 = vunpack.c.l.b16 %v3881
    %v4170 = vunpack.c.l.b16 %v3882
    %v4171 = vunpack.c.l.b16 %v3883
    %v4172 = vunpack.c.l.b16 %v3884
    %v4173 = vunpack.c.l.b16 %v3885
    %v4174 = vunpack.c.l.b16 %v3886
    %v4175 = vunpack.c.l.b16 %v3887
    %v4176 = vunpack.c.l.b16 %v3888
    %v4177 = vunpack.c.l.b16 %v3889
    %v4178 = vunpack.c.l.b16 %v3890
    %v4179 = vunpack.c.l.b16 %v3891
    %v4180 = vunpack.c.l.b16 %v3892
    %v4181 = vunpack.c.l.b16 %v3893
    %v4182 = vunpack.c.l.b16 %v3894
    %v4183 = vunpack.c.l.b16 %v3895
    %v4184 = vunpack.c.l.b16 %v3896
    %v4185 = vunpack.c.l.b16 %v3897
    %v4186 = vunpack.c.l.b16 %v3898
    %v4187 = vunpack.c.l.b16 %v3899
    %v4188 = vunpack.c.l.b16 %v3900
    %v4189 = vunpack.c.l.b16 %v3901
    %v4190 = vunpack.c.l.b16 %v3902
    %v4191 = vunpack.c.l.b16 %v3903
    %v4192 = vunpack.c.l.b16 %v3904
    %v4193 = vunpack.c.l.b16 %v3905
    %v4194 = vunpack.c.l.b16 %v3906
    %v4195 = vunpack.c.l.b16 %v3907
    %v4196 = vunpack.c.l.b16 %v3908
    %v4197 = vunpack.c.l.b16 %v3909
    %v4198 = vunpack.c.l.b16 %v3910
    %v4199 = vunpack.c.l.b16 %v3911
    %v4200 = vunpack.c.l.b16 %v3912
    %v4201 = vunpack.c.l.b16 %v3913
    %v4202 = vunpack.c.l.b16 %v3914
    %v4203 = vunpack.c.l.b16 %v3915
    %v4204 = vunpack.c.l.b16 %v3916
    %v4205 = vunpack.c.l.b16 %v3917
    %v4206 = vpack.c.b16 %v4063, %v4062
    %v4207 = vpack.c.b16 %v4065, %v4064
    %v4208 = vpack.c.b16 %v4067, %v4066
    %v4209 = vpack.c.b16 %v4069, %v4068
    %v4210 = vpack.c.b16 %v4071, %v4070
    %v4211 = vpack.c.b16 %v4073, %v4072
    %v4212 = vpack.c.b16 %v4075, %v4074
    %v4213 = vpack.c.b16 %v4077, %v4076
    %v4214 = vpack.c.b16 %v4079, %v4078
    %v4215 = vpack.c.b16 %v4081, %v4080
    %v4216 = vpack.c.b16 %v4083, %v4082
    %v4217 = vpack.c.b16 %v4085, %v4084
    %v4218 = vpack.c.b16 %v4087, %v4086
    %v4219 = vpack.c.b16 %v4089, %v4088
    %v4220 = vpack.c.b16 %v4091, %v4090
    %v4221 = vpack.c.b16 %v4093, %v4092
    %v4222 = vpack.c.b16 %v4095, %v4094
    %v4223 = vpack.c.b16 %v4097, %v4096
    %v4224 = vpack.c.b16 %v4099, %v4098
    %v4225 = vpack.c.b16 %v4101, %v4100
    %v4226 = vpack.c.b16 %v4103, %v4102
    %v4227 = vpack.c.b16 %v4105, %v4104
    %v4228 = vpack.c.b16 %v4107, %v4106
    %v4229 = vpack.c.b16 %v4109, %v4108
    %v4230 = vpack.c.b16 %v4111, %v4110
    %v4231 = vpack.c.b16 %v4113, %v4112
    %v4232 = vpack.c.b16 %v4115, %v4114
    %v4233 = vpack.c.b16 %v4117, %v4116
    %v4234 = vpack.c.b16 %v4119, %v4118
    %v4235 = vpack.c.b16 %v4121, %v4120
    %v4236 = vpack.c.b16 %v4123, %v4122
    %v4237 = vpack.c.b16 %v4125, %v4124
    %v4238 = vpack.c.b16 %v4127, %v4126
    %v4239 = vpack.c.b16 %v4129, %v4128
    %v4240 = vpack.c.b16 %v4131, %v4130
    %v4241 = vpack.c.b16 %v4133, %v4132
    %v4242 = vpack.c.b16 %v4135, %v4134
    %v4243 = vpack.c.b16 %v4137, %v4136
    %v4244 = vpack.c.b16 %v4139, %v4138
    %v4245 = vpack.c.b16 %v4141, %v4140
    %v4246 = vpack.c.b16 %v4143, %v4142
    %v4247 = vpack.c.b16 %v4145, %v4144
    %v4248 = vpack.c.b16 %v4147, %v4146
    %v4249 = vpack.c.b16 %v4149, %v4148
    %v4250 = vpack.c.b16 %v4151, %v4150
    %v4251 = vpack.c.b16 %v4153, %v4152
    %v4252 = vpack.c.b16 %v4155, %v4154
    %v4253 = vpack.c.b16 %v4157, %v4156
    %v4254 = vpack.c.b16 %v4159, %v4158
    %v4255 = vpack.c.b16 %v4161, %v4160
    %v4256 = vpack.c.b16 %v4163, %v4162
    %v4257 = vpack.c.b16 %v4165, %v4164
    %v4258 = vpack.c.b16 %v4167, %v4166
    %v4259 = vpack.c.b16 %v4169, %v4168
    %v4260 = vpack.c.b16 %v4171, %v4170
    %v4261 = vpack.c.b16 %v4173, %v4172
    %v4262 = vpack.c.b16 %v4175, %v4174
    %v4263 = vpack.c.b16 %v4177, %v4176
    %v4264 = vpack.c.b16 %v4179, %v4178
    %v4265 = vpack.c.b16 %v4181, %v4180
    %v4266 = vpack.c.b16 %v4183, %v4182
    %v4267 = vpack.c.b16 %v4185, %v4184
    %v4268 = vpack.c.b16 %v4187, %v4186
    %v4269 = vpack.c.b16 %v4189, %v4188
    %v4270 = vpack.c.b16 %v4191, %v4190
    %v4271 = vpack.c.b16 %v4193, %v4192
    %v4272 = vpack.c.b16 %v4195, %v4194
    %v4273 = vpack.c.b16 %v4197, %v4196
    %v4274 = vpack.c.b16 %v4199, %v4198
    %v4275 = vpack.c.b16 %v4201, %v4200
    %v4276 = vpack.c.b16 %v4203, %v4202
    %v4277 = vpack.c.b16 %v4205, %v4204
    %4350 = vmatprep.subr.bf16.mxu0 0
    %4351 = vmatpush1.bf16.msra.mxu0 %v4206
    %4352 = vmatprep.subr.bf16.mxu0 0
    %4353 = vmatpush1.bf16.msra.mxu0 %v4207
    %4354 = vmatprep.subr.bf16.mxu0 0
    %4355 = vmatpush1.bf16.msra.mxu0 %v4208
    %4356 = vmatprep.subr.bf16.mxu0 0
    %4357 = vmatpush1.bf16.msra.mxu0 %v4209
    %4358 = vmatprep.subr.bf16.mxu0 0
    %4359 = vmatpush1.bf16.msra.mxu0 %v4210
    %4360 = vmatprep.subr.bf16.mxu0 0
    %4361 = vmatpush1.bf16.msra.mxu0 %v4211
    %4362 = vmatprep.subr.bf16.mxu0 0
    %4363 = vmatpush1.bf16.msra.mxu0 %v4212
    %4364 = vmatprep.subr.bf16.mxu0 0
    %4365 = vmatpush1.bf16.msra.mxu0 %v4213
    %4366 = vmatprep.subr.bf16.mxu0 0
    %4367 = vmatpush1.bf16.msra.mxu0 %v4214
    %4368 = vmatprep.subr.bf16.mxu0 0
    %4369 = vmatpush1.bf16.msra.mxu0 %v4215
    %4370 = vmatprep.subr.bf16.mxu0 0
    %4371 = vmatpush1.bf16.msra.mxu0 %v4216
    %4372 = vmatprep.subr.bf16.mxu0 0
    %4373 = vmatpush1.bf16.msra.mxu0 %v4217
    %4374 = vmatprep.subr.bf16.mxu0 0
    %4375 = vmatpush1.bf16.msra.mxu0 %v4218
    %4376 = vmatprep.subr.bf16.mxu0 0
    %4377 = vmatpush1.bf16.msra.mxu0 %v4219
    %4378 = vmatprep.subr.bf16.mxu0 0
    %4379 = vmatpush1.bf16.msra.mxu0 %v4220
    %4380 = vmatprep.subr.bf16.mxu0 0
    %4381 = vmatpush1.bf16.msra.mxu0 %v4221
    %4382 = vmatprep.mubr.bf16.mxu0 %v3487
    %4383 = vmatmul.mubr.bf16.gmra.mrb[0].mxu0 %v3486
    %v4384 = vpop.f32.mrb[0].mxu0
    %v4385 = vadd.f32 0.0, %v4384
    %v4386 = vpop.f32.mrb[0].mxu0
    %v4387 = vpop.f32.mrb[0].mxu0
    %v4388 = vadd.f32 0.0, %v4387
    %v4389 = vpop.f32.mrb[0].mxu0
    %4390 = vmatprep.mubr.bf16.mxu0 %v3496
    %4391 = vmatmul.mubr.bf16.gmra.mrb[0].mxu0 %v3495
    %v4392 = vpop.f32.mrb[0].mxu0
    %v4393 = vadd.f32 0.0, %v4392
    %v4394 = vpop.f32.mrb[0].mxu0
    %v4395 = vpop.f32.mrb[0].mxu0
    %v4396 = vadd.f32 0.0, %v4395
    %v4397 = vpop.f32.mrb[0].mxu0
    %4398 = vmatprep.mubr.bf16.mxu0 %v3505
    %4399 = vmatmul.mubr.bf16.gmra.mrb[0].mxu0 %v3504
    %v4400 = vpop.f32.mrb[0].mxu0
    %v4401 = vadd.f32 0.0, %v4400
    %v4402 = vpop.f32.mrb[0].mxu0
    %v4403 = vpop.f32.mrb[0].mxu0
    %v4404 = vadd.f32 0.0, %v4403
    %v4405 = vpop.f32.mrb[0].mxu0
    %4406 = vmatprep.mubr.bf16.mxu0 %v3514
    %4407 = vmatmul.mubr.bf16.gmra.mrb[0].mxu0 %v3513
    %v4408 = vpop.f32.mrb[0].mxu0
    %v4409 = vadd.f32 0.0, %v4408
    %v4410 = vpop.f32.mrb[0].mxu0
    %v4411 = vpop.f32.mrb[0].mxu0
    %v4412 = vadd.f32 0.0, %v4411
    %v4413 = vpop.f32.mrb[0].mxu0
    %4414 = vmatprep.mubr.bf16.mxu0 %v3523
    %4415 = vmatmul.mubr.bf16.gmra.mrb[0].mxu0 %v3522
    %v4416 = vpop.f32.mrb[0].mxu0
    %v4417 = vadd.f32 0.0, %v4416
    %v4418 = vpop.f32.mrb[0].mxu0
    %v4419 = vpop.f32.mrb[0].mxu0
    %v4420 = vadd.f32 0.0, %v4419
    %v4421 = vpop.f32.mrb[0].mxu0
    %4422 = vmatprep.mubr.bf16.mxu0 %v3532
    %4423 = vmatmul.mubr.bf16.gmra.mrb[0].mxu0 %v3531
    %v4424 = vpop.f32.mrb[0].mxu0
    %v4425 = vadd.f32 0.0, %v4424
    %v4426 = vpop.f32.mrb[0].mxu0
    %v4427 = vpop.f32.mrb[0].mxu0
    %v4428 = vadd.f32 0.0, %v4427
    %v4429 = vpop.f32.mrb[0].mxu0
    %4430 = vmatprep.mubr.bf16.mxu0 %v3541
    %4431 = vmatmul.mubr.bf16.gmra.mrb[0].mxu0 %v3540
    %v4432 = vpop.f32.mrb[0].mxu0
    %v4433 = vadd.f32 0.0, %v4432
    %v4434 = vpop.f32.mrb[0].mxu0
    %v4435 = vpop.f32.mrb[0].mxu0
    %v4436 = vadd.f32 0.0, %v4435
    %v4437 = vpop.f32.mrb[0].mxu0
    %4438 = vmatprep.mubr.bf16.mxu0 %v3550
    %4439 = vmatmul.mubr.bf16.gmra.mrb[0].mxu0 %v3549
    %v4440 = vpop.f32.mrb[0].mxu0
    %v4441 = vadd.f32 0.0, %v4440
    %v4442 = vpop.f32.mrb[0].mxu0
    %v4443 = vpop.f32.mrb[0].mxu0
    %v4444 = vadd.f32 0.0, %v4443
    %v4445 = vpop.f32.mrb[0].mxu0
    %4446 = vmatprep.mubr.bf16.mxu0 %v3559
    %4447 = vmatmul.mubr.bf16.gmra.mrb[0].mxu0 %v3558
    %v4448 = vpop.f32.mrb[0].mxu0
    %v4449 = vadd.f32 0.0, %v4448
    %v4450 = vpop.f32.mrb[0].mxu0
    %v4451 = vpop.f32.mrb[0].mxu0
    %v4452 = vadd.f32 0.0, %v4451
    %v4453 = vpop.f32.mrb[0].mxu0
    %4454 = vmatprep.mubr.bf16.mxu0 %v3568
    %4455 = vmatmul.mubr.bf16.gmra.mrb[0].mxu0 %v3567
    %v4456 = vpop.f32.mrb[0].mxu0
    %v4457 = vadd.f32 0.0, %v4456
    %v4458 = vpop.f32.mrb[0].mxu0
    %v4459 = vpop.f32.mrb[0].mxu0
    %v4460 = vadd.f32 0.0, %v4459
    %v4461 = vpop.f32.mrb[0].mxu0
    %4462 = vmatprep.mubr.bf16.mxu0 %v3577
    %4463 = vmatmul.mubr.bf16.gmra.mrb[0].mxu0 %v3576
    %v4464 = vpop.f32.mrb[0].mxu0
    %v4465 = vadd.f32 0.0, %v4464
    %v4466 = vpop.f32.mrb[0].mxu0
    %v4467 = vpop.f32.mrb[0].mxu0
    %v4468 = vadd.f32 0.0, %v4467
    %v4469 = vpop.f32.mrb[0].mxu0
    %4470 = vmatprep.mubr.bf16.mxu0 %v3586
    %4471 = vmatmul.mubr.bf16.gmra.mrb[0].mxu0 %v3585
    %v4472 = vpop.f32.mrb[0].mxu0
    %v4473 = vadd.f32 0.0, %v4472
    %v4474 = vpop.f32.mrb[0].mxu0
    %v4475 = vpop.f32.mrb[0].mxu0
    %v4476 = vadd.f32 0.0, %v4475
    %v4477 = vpop.f32.mrb[0].mxu0
    %4478 = vmatprep.mubr.bf16.mxu0 %v3595
    %4479 = vmatmul.mubr.bf16.gmra.mrb[0].mxu0 %v3594
    %v4480 = vpop.f32.mrb[0].mxu0
    %v4481 = vadd.f32 0.0, %v4480
    %v4482 = vpop.f32.mrb[0].mxu0
    %v4483 = vpop.f32.mrb[0].mxu0
    %v4484 = vadd.f32 0.0, %v4483
    %v4485 = vpop.f32.mrb[0].mxu0
    %4486 = vmatprep.mubr.bf16.mxu0 %v3604
    %4487 = vmatmul.mubr.bf16.gmra.mrb[0].mxu0 %v3603
    %v4488 = vpop.f32.mrb[0].mxu0
    %v4489 = vadd.f32 0.0, %v4488
    %v4490 = vpop.f32.mrb[0].mxu0
    %v4491 = vpop.f32.mrb[0].mxu0
    %v4492 = vadd.f32 0.0, %v4491
    %v4493 = vpop.f32.mrb[0].mxu0
    %4494 = vmatprep.mubr.bf16.mxu0 %v3613
    %4495 = vmatmul.mubr.bf16.gmra.mrb[0].mxu0 %v3612
    %v4496 = vpop.f32.mrb[0].mxu0
    %v4497 = vadd.f32 0.0, %v4496
    %v4498 = vpop.f32.mrb[0].mxu0
    %v4499 = vpop.f32.mrb[0].mxu0
    %v4500 = vadd.f32 0.0, %v4499
    %v4501 = vpop.f32.mrb[0].mxu0
    %4502 = vmatprep.mubr.bf16.mxu0 %v3622
    %4503 = vmatmul.mubr.bf16.gmra.mrb[0].mxu0 %v3621
    %v4504 = vpop.f32.mrb[0].mxu0
    %v4505 = vadd.f32 0.0, %v4504
    %v4506 = vpop.f32.mrb[0].mxu0
    %v4507 = vpop.f32.mrb[0].mxu0
    %v4508 = vadd.f32 0.0, %v4507
    %v4509 = vpop.f32.mrb[0].mxu0
    %4510 = vmatprep.mubr.bf16.mxu0 %v3631
    %4511 = vmatmul.mubr.bf16.gmra.mrb[0].mxu0 %v3630
    %v4512 = vpop.f32.mrb[0].mxu0
    %v4513 = vadd.f32 0.0, %v4512
    %v4514 = vpop.f32.mrb[0].mxu0
    %v4515 = vpop.f32.mrb[0].mxu0
    %v4516 = vadd.f32 0.0, %v4515
    %v4517 = vpop.f32.mrb[0].mxu0
    %4518 = vmatprep.mubr.bf16.mxu0 %v3640
    %4519 = vmatmul.mubr.bf16.gmra.mrb[0].mxu0 %v3639
    %v4520 = vpop.f32.mrb[0].mxu0
    %v4521 = vadd.f32 0.0, %v4520
    %v4522 = vpop.f32.mrb[0].mxu0
    %v4523 = vpop.f32.mrb[0].mxu0
    %v4524 = vadd.f32 0.0, %v4523
    %v4525 = vpop.f32.mrb[0].mxu0
    %4526 = vmatprep.mubr.bf16.mxu0 %v3649
    %4527 = vmatmul.mubr.bf16.gmra.mrb[0].mxu0 %v3648
    %v4528 = vpop.f32.mrb[0].mxu0
    %v4529 = vadd.f32 0.0, %v4528
    %v4530 = vpop.f32.mrb[0].mxu0
    %v4531 = vpop.f32.mrb[0].mxu0
    %v4532 = vadd.f32 0.0, %v4531
    %v4533 = vpop.f32.mrb[0].mxu0
    %4534 = vmatprep.mubr.bf16.mxu0 %v3658
    %4535 = vmatmul.mubr.bf16.gmra.mrb[0].mxu0 %v3657
    %v4536 = vpop.f32.mrb[0].mxu0
    %v4537 = vadd.f32 0.0, %v4536
    %v4538 = vpop.f32.mrb[0].mxu0
    %v4539 = vpop.f32.mrb[0].mxu0
    %v4540 = vadd.f32 0.0, %v4539
    %v4541 = vpop.f32.mrb[0].mxu0
    %4542 = vmatprep.mubr.bf16.mxu0 %v3667
    %4543 = vmatmul.mubr.bf16.gmra.mrb[0].mxu0 %v3666
    %v4544 = vpop.f32.mrb[0].mxu0
    %v4545 = vadd.f32 0.0, %v4544
    %v4546 = vpop.f32.mrb[0].mxu0
    %v4547 = vpop.f32.mrb[0].mxu0
    %v4548 = vadd.f32 0.0, %v4547
    %v4549 = vpop.f32.mrb[0].mxu0
    %4550 = vmatprep.mubr.bf16.mxu0 %v3676
    %4551 = vmatmul.mubr.bf16.gmra.mrb[0].mxu0 %v3675
    %v4552 = vpop.f32.mrb[0].mxu0
    %v4553 = vadd.f32 0.0, %v4552
    %v4554 = vpop.f32.mrb[0].mxu0
    %v4555 = vpop.f32.mrb[0].mxu0
    %v4556 = vadd.f32 0.0, %v4555
    %v4557 = vpop.f32.mrb[0].mxu0
    %4558 = vmatprep.mubr.bf16.mxu0 %v3685
    %4559 = vmatmul.mubr.bf16.gmra.mrb[0].mxu0 %v3684
    %v4560 = vpop.f32.mrb[0].mxu0
    %v4561 = vadd.f32 0.0, %v4560
    %v4562 = vpop.f32.mrb[0].mxu0
    %v4563 = vpop.f32.mrb[0].mxu0
    %v4564 = vadd.f32 0.0, %v4563
    %v4565 = vpop.f32.mrb[0].mxu0
    %4566 = vmatprep.mubr.bf16.mxu0 %v3694
    %4567 = vmatmul.mubr.bf16.gmra.mrb[0].mxu0 %v3693
    %v4568 = vpop.f32.mrb[0].mxu0
    %v4569 = vadd.f32 0.0, %v4568
    %v4570 = vpop.f32.mrb[0].mxu0
    %v4571 = vpop.f32.mrb[0].mxu0
    %v4572 = vadd.f32 0.0, %v4571
    %v4573 = vpop.f32.mrb[0].mxu0
    %4574 = vmatprep.mubr.bf16.mxu0 %v3703
    %4575 = vmatmul.mubr.bf16.gmra.mrb[0].mxu0 %v3702
    %v4576 = vpop.f32.mrb[0].mxu0
    %v4577 = vadd.f32 0.0, %v4576
    %v4578 = vpop.f32.mrb[0].mxu0
    %v4579 = vpop.f32.mrb[0].mxu0
    %v4580 = vadd.f32 0.0, %v4579
    %v4581 = vpop.f32.mrb[0].mxu0
    %4582 = vmatprep.mubr.bf16.mxu0 %v3712
    %4583 = vmatmul.mubr.bf16.gmra.mrb[0].mxu0 %v3711
    %v4584 = vpop.f32.mrb[0].mxu0
    %v4585 = vadd.f32 0.0, %v4584
    %v4586 = vpop.f32.mrb[0].mxu0
    %v4587 = vpop.f32.mrb[0].mxu0
    %v4588 = vadd.f32 0.0, %v4587
    %v4589 = vpop.f32.mrb[0].mxu0
    %4590 = vmatprep.mubr.bf16.mxu0 %v3721
    %4591 = vmatmul.mubr.bf16.gmra.mrb[0].mxu0 %v3720
    %v4592 = vpop.f32.mrb[0].mxu0
    %v4593 = vadd.f32 0.0, %v4592
    %v4594 = vpop.f32.mrb[0].mxu0
    %v4595 = vpop.f32.mrb[0].mxu0
    %v4596 = vadd.f32 0.0, %v4595
    %v4597 = vpop.f32.mrb[0].mxu0
    %4598 = vmatprep.mubr.bf16.mxu0 %v3730
    %4599 = vmatmul.mubr.bf16.gmra.mrb[0].mxu0 %v3729
    %v4600 = vpop.f32.mrb[0].mxu0
    %v4601 = vadd.f32 0.0, %v4600
    %v4602 = vpop.f32.mrb[0].mxu0
    %v4603 = vpop.f32.mrb[0].mxu0
    %v4604 = vadd.f32 0.0, %v4603
    %v4605 = vpop.f32.mrb[0].mxu0
    %4606 = vmatprep.mubr.bf16.mxu0 %v3739
    %4607 = vmatmul.mubr.bf16.gmra.mrb[0].mxu0 %v3738
    %v4608 = vpop.f32.mrb[0].mxu0
    %v4609 = vadd.f32 0.0, %v4608
    %v4610 = vpop.f32.mrb[0].mxu0
    %v4611 = vpop.f32.mrb[0].mxu0
    %v4612 = vadd.f32 0.0, %v4611
    %v4613 = vpop.f32.mrb[0].mxu0
    %4614 = vmatprep.mubr.bf16.mxu0 %v3748
    %4615 = vmatmul.mubr.bf16.gmra.mrb[0].mxu0 %v3747
    %v4616 = vpop.f32.mrb[0].mxu0
    %v4617 = vadd.f32 0.0, %v4616
    %v4618 = vpop.f32.mrb[0].mxu0
    %v4619 = vpop.f32.mrb[0].mxu0
    %v4620 = vadd.f32 0.0, %v4619
    %v4621 = vpop.f32.mrb[0].mxu0
    %4622 = vmatprep.mubr.bf16.mxu0 %v3757
    %4623 = vmatmul.mubr.bf16.gmra.mrb[0].mxu0 %v3756
    %v4624 = vpop.f32.mrb[0].mxu0
    %v4625 = vadd.f32 0.0, %v4624
    %v4626 = vpop.f32.mrb[0].mxu0
    %v4627 = vpop.f32.mrb[0].mxu0
    %v4628 = vadd.f32 0.0, %v4627
    %v4629 = vpop.f32.mrb[0].mxu0
    %4630 = vmatprep.mubr.bf16.mxu0 %v3766
    %4631 = vmatmul.mubr.bf16.gmra.mrb[0].mxu0 %v3765
    %v4632 = vpop.f32.mrb[0].mxu0
    %v4633 = vadd.f32 0.0, %v4632
    %v4634 = vpop.f32.mrb[0].mxu0
    %v4635 = vpop.f32.mrb[0].mxu0
    %v4636 = vadd.f32 0.0, %v4635
    %v4637 = vpop.f32.mrb[0].mxu0
    %4638 = vdwg.mxu0
    %4639 = vmatprep.subr.bf16.mxu0 0
    %4640 = vmatpush1.bf16.msra.mxu0 %v4222
    %4641 = vmatprep.subr.bf16.mxu0 0
    %4642 = vmatpush1.bf16.msra.mxu0 %v4223
    %4643 = vmatprep.subr.bf16.mxu0 0
    %4644 = vmatpush1.bf16.msra.mxu0 %v4224
    %4645 = vmatprep.subr.bf16.mxu0 0
    %4646 = vmatpush1.bf16.msra.mxu0 %v4225
    %4647 = vmatprep.subr.bf16.mxu0 0
    %4648 = vmatpush1.bf16.msra.mxu0 %v4226
    %4649 = vmatprep.subr.bf16.mxu0 0
    %4650 = vmatpush1.bf16.msra.mxu0 %v4227
    %4651 = vmatprep.subr.bf16.mxu0 0
    %4652 = vmatpush1.bf16.msra.mxu0 %v4228
    %4653 = vmatprep.subr.bf16.mxu0 0
    %4654 = vmatpush1.bf16.msra.mxu0 %v4229
    %4655 = vmatprep.subr.bf16.mxu0 0
    %4656 = vmatpush1.bf16.msra.mxu0 %v4230
    %4657 = vmatprep.subr.bf16.mxu0 0
    %4658 = vmatpush1.bf16.msra.mxu0 %v4231
    %4659 = vmatprep.subr.bf16.mxu0 0
    %4660 = vmatpush1.bf16.msra.mxu0 %v4232
    %4661 = vmatprep.subr.bf16.mxu0 0
    %4662 = vmatpush1.bf16.msra.mxu0 %v4233
    %4663 = vmatprep.subr.bf16.mxu0 0
    %4664 = vmatpush1.bf16.msra.mxu0 %v4234
    %4665 = vmatprep.subr.bf16.mxu0 0
    %4666 = vmatpush1.bf16.msra.mxu0 %v4235
    %4667 = vmatprep.subr.bf16.mxu0 0
    %4668 = vmatpush1.bf16.msra.mxu0 %v4236
    %4669 = vmatprep.subr.bf16.mxu0 0
    %4670 = vmatpush1.bf16.msra.mxu0 %v4237
    %4671 = vmatprep.mubr.bf16.mxu0 %v3489
    %4672 = vmatmul.mubr.bf16.gmra.mrb[0].mxu0 %v3488
    %v4673 = vpop.f32.mrb[0].mxu0
    %v4674 = vadd.f32 %v4385, %v4673
    %v4675 = vpop.f32.mrb[0].mxu0
    %v4676 = vpop.f32.mrb[0].mxu0
    %v4677 = vadd.f32 %v4388, %v4676
    %v4678 = vpop.f32.mrb[0].mxu0
    %4679 = vmatprep.mubr.bf16.mxu0 %v3498
    %4680 = vmatmul.mubr.bf16.gmra.mrb[0].mxu0 %v3497
    %v4681 = vpop.f32.mrb[0].mxu0
    %v4682 = vadd.f32 %v4393, %v4681
    %v4683 = vpop.f32.mrb[0].mxu0
    %v4684 = vpop.f32.mrb[0].mxu0
    %v4685 = vadd.f32 %v4396, %v4684
    %v4686 = vpop.f32.mrb[0].mxu0
    %4687 = vmatprep.mubr.bf16.mxu0 %v3507
    %4688 = vmatmul.mubr.bf16.gmra.mrb[0].mxu0 %v3506
    %v4689 = vpop.f32.mrb[0].mxu0
    %v4690 = vadd.f32 %v4401, %v4689
    %v4691 = vpop.f32.mrb[0].mxu0
    %v4692 = vpop.f32.mrb[0].mxu0
    %v4693 = vadd.f32 %v4404, %v4692
    %v4694 = vpop.f32.mrb[0].mxu0
    %4695 = vmatprep.mubr.bf16.mxu0 %v3516
    %4696 = vmatmul.mubr.bf16.gmra.mrb[0].mxu0 %v3515
    %v4697 = vpop.f32.mrb[0].mxu0
    %v4698 = vadd.f32 %v4409, %v4697
    %v4699 = vpop.f32.mrb[0].mxu0
    %v4700 = vpop.f32.mrb[0].mxu0
    %v4701 = vadd.f32 %v4412, %v4700
    %v4702 = vpop.f32.mrb[0].mxu0
    %4703 = vmatprep.mubr.bf16.mxu0 %v3525
    %4704 = vmatmul.mubr.bf16.gmra.mrb[0].mxu0 %v3524
    %v4705 = vpop.f32.mrb[0].mxu0
    %v4706 = vadd.f32 %v4417, %v4705
    %v4707 = vpop.f32.mrb[0].mxu0
    %v4708 = vpop.f32.mrb[0].mxu0
    %v4709 = vadd.f32 %v4420, %v4708
    %v4710 = vpop.f32.mrb[0].mxu0
    %4711 = vmatprep.mubr.bf16.mxu0 %v3534
    %4712 = vmatmul.mubr.bf16.gmra.mrb[0].mxu0 %v3533
    %v4713 = vpop.f32.mrb[0].mxu0
    %v4714 = vadd.f32 %v4425, %v4713
    %v4715 = vpop.f32.mrb[0].mxu0
    %v4716 = vpop.f32.mrb[0].mxu0
    %v4717 = vadd.f32 %v4428, %v4716
    %v4718 = vpop.f32.mrb[0].mxu0
    %4719 = vmatprep.mubr.bf16.mxu0 %v3543
    %4720 = vmatmul.mubr.bf16.gmra.mrb[0].mxu0 %v3542
    %v4721 = vpop.f32.mrb[0].mxu0
    %v4722 = vadd.f32 %v4433, %v4721
    %v4723 = vpop.f32.mrb[0].mxu0
    %v4724 = vpop.f32.mrb[0].mxu0
    %v4725 = vadd.f32 %v4436, %v4724
    %v4726 = vpop.f32.mrb[0].mxu0
    %4727 = vmatprep.mubr.bf16.mxu0 %v3552
    %4728 = vmatmul.mubr.bf16.gmra.mrb[0].mxu0 %v3551
    %v4729 = vpop.f32.mrb[0].mxu0
    %v4730 = vadd.f32 %v4441, %v4729
    %v4731 = vpop.f32.mrb[0].mxu0
    %v4732 = vpop.f32.mrb[0].mxu0
    %v4733 = vadd.f32 %v4444, %v4732
    %v4734 = vpop.f32.mrb[0].mxu0
    %4735 = vmatprep.mubr.bf16.mxu0 %v3561
    %4736 = vmatmul.mubr.bf16.gmra.mrb[0].mxu0 %v3560
    %v4737 = vpop.f32.mrb[0].mxu0
    %v4738 = vadd.f32 %v4449, %v4737
    %v4739 = vpop.f32.mrb[0].mxu0
    %v4740 = vpop.f32.mrb[0].mxu0
    %v4741 = vadd.f32 %v4452, %v4740
    %v4742 = vpop.f32.mrb[0].mxu0
    %4743 = vmatprep.mubr.bf16.mxu0 %v3570
    %4744 = vmatmul.mubr.bf16.gmra.mrb[0].mxu0 %v3569
    %v4745 = vpop.f32.mrb[0].mxu0
    %v4746 = vadd.f32 %v4457, %v4745
    %v4747 = vpop.f32.mrb[0].mxu0
    %v4748 = vpop.f32.mrb[0].mxu0
    %v4749 = vadd.f32 %v4460, %v4748
    %v4750 = vpop.f32.mrb[0].mxu0
    %4751 = vmatprep.mubr.bf16.mxu0 %v3579
    %4752 = vmatmul.mubr.bf16.gmra.mrb[0].mxu0 %v3578
    %v4753 = vpop.f32.mrb[0].mxu0
    %v4754 = vadd.f32 %v4465, %v4753
    %v4755 = vpop.f32.mrb[0].mxu0
    %v4756 = vpop.f32.mrb[0].mxu0
    %v4757 = vadd.f32 %v4468, %v4756
    %v4758 = vpop.f32.mrb[0].mxu0
    %4759 = vmatprep.mubr.bf16.mxu0 %v3588
    %4760 = vmatmul.mubr.bf16.gmra.mrb[0].mxu0 %v3587
    %v4761 = vpop.f32.mrb[0].mxu0
    %v4762 = vadd.f32 %v4473, %v4761
    %v4763 = vpop.f32.mrb[0].mxu0
    %v4764 = vpop.f32.mrb[0].mxu0
    %v4765 = vadd.f32 %v4476, %v4764
    %v4766 = vpop.f32.mrb[0].mxu0
    %4767 = vmatprep.mubr.bf16.mxu0 %v3597
    %4768 = vmatmul.mubr.bf16.gmra.mrb[0].mxu0 %v3596
    %v4769 = vpop.f32.mrb[0].mxu0
    %v4770 = vadd.f32 %v4481, %v4769
    %v4771 = vpop.f32.mrb[0].mxu0
    %v4772 = vpop.f32.mrb[0].mxu0
    %v4773 = vadd.f32 %v4484, %v4772
    %v4774 = vpop.f32.mrb[0].mxu0
    %4775 = vmatprep.mubr.bf16.mxu0 %v3606
    %4776 = vmatmul.mubr.bf16.gmra.mrb[0].mxu0 %v3605
    %v4777 = vpop.f32.mrb[0].mxu0
    %v4778 = vadd.f32 %v4489, %v4777
    %v4779 = vpop.f32.mrb[0].mxu0
    %v4780 = vpop.f32.mrb[0].mxu0
    %v4781 = vadd.f32 %v4492, %v4780
    %v4782 = vpop.f32.mrb[0].mxu0
    %4783 = vmatprep.mubr.bf16.mxu0 %v3615
    %4784 = vmatmul.mubr.bf16.gmra.mrb[0].mxu0 %v3614
    %v4785 = vpop.f32.mrb[0].mxu0
    %v4786 = vadd.f32 %v4497, %v4785
    %v4787 = vpop.f32.mrb[0].mxu0
    %v4788 = vpop.f32.mrb[0].mxu0
    %v4789 = vadd.f32 %v4500, %v4788
    %v4790 = vpop.f32.mrb[0].mxu0
    %4791 = vmatprep.mubr.bf16.mxu0 %v3624
    %4792 = vmatmul.mubr.bf16.gmra.mrb[0].mxu0 %v3623
    %v4793 = vpop.f32.mrb[0].mxu0
    %v4794 = vadd.f32 %v4505, %v4793
    %v4795 = vpop.f32.mrb[0].mxu0
    %v4796 = vpop.f32.mrb[0].mxu0
    %v4797 = vadd.f32 %v4508, %v4796
    %v4798 = vpop.f32.mrb[0].mxu0
    %4799 = vmatprep.mubr.bf16.mxu0 %v3633
    %4800 = vmatmul.mubr.bf16.gmra.mrb[0].mxu0 %v3632
    %v4801 = vpop.f32.mrb[0].mxu0
    %v4802 = vadd.f32 %v4513, %v4801
    %v4803 = vpop.f32.mrb[0].mxu0
    %v4804 = vpop.f32.mrb[0].mxu0
    %v4805 = vadd.f32 %v4516, %v4804
    %v4806 = vpop.f32.mrb[0].mxu0
    %4807 = vmatprep.mubr.bf16.mxu0 %v3642
    %4808 = vmatmul.mubr.bf16.gmra.mrb[0].mxu0 %v3641
    %v4809 = vpop.f32.mrb[0].mxu0
    %v4810 = vadd.f32 %v4521, %v4809
    %v4811 = vpop.f32.mrb[0].mxu0
    %v4812 = vpop.f32.mrb[0].mxu0
    %v4813 = vadd.f32 %v4524, %v4812
    %v4814 = vpop.f32.mrb[0].mxu0
    %4815 = vmatprep.mubr.bf16.mxu0 %v3651
    %4816 = vmatmul.mubr.bf16.gmra.mrb[0].mxu0 %v3650
    %v4817 = vpop.f32.mrb[0].mxu0
    %v4818 = vadd.f32 %v4529, %v4817
    %v4819 = vpop.f32.mrb[0].mxu0
    %v4820 = vpop.f32.mrb[0].mxu0
    %v4821 = vadd.f32 %v4532, %v4820
    %v4822 = vpop.f32.mrb[0].mxu0
    %4823 = vmatprep.mubr.bf16.mxu0 %v3660
    %4824 = vmatmul.mubr.bf16.gmra.mrb[0].mxu0 %v3659
    %v4825 = vpop.f32.mrb[0].mxu0
    %v4826 = vadd.f32 %v4537, %v4825
    %v4827 = vpop.f32.mrb[0].mxu0
    %v4828 = vpop.f32.mrb[0].mxu0
    %v4829 = vadd.f32 %v4540, %v4828
    %v4830 = vpop.f32.mrb[0].mxu0
    %4831 = vmatprep.mubr.bf16.mxu0 %v3669
    %4832 = vmatmul.mubr.bf16.gmra.mrb[0].mxu0 %v3668
    %v4833 = vpop.f32.mrb[0].mxu0
    %v4834 = vadd.f32 %v4545, %v4833
    %v4835 = vpop.f32.mrb[0].mxu0
    %v4836 = vpop.f32.mrb[0].mxu0
    %v4837 = vadd.f32 %v4548, %v4836
    %v4838 = vpop.f32.mrb[0].mxu0
    %4839 = vmatprep.mubr.bf16.mxu0 %v3678
    %4840 = vmatmul.mubr.bf16.gmra.mrb[0].mxu0 %v3677
    %v4841 = vpop.f32.mrb[0].mxu0
    %v4842 = vadd.f32 %v4553, %v4841
    %v4843 = vpop.f32.mrb[0].mxu0
    %v4844 = vpop.f32.mrb[0].mxu0
    %v4845 = vadd.f32 %v4556, %v4844
    %v4846 = vpop.f32.mrb[0].mxu0
    %4847 = vmatprep.mubr.bf16.mxu0 %v3687
    %4848 = vmatmul.mubr.bf16.gmra.mrb[0].mxu0 %v3686
    %v4849 = vpop.f32.mrb[0].mxu0
    %v4850 = vadd.f32 %v4561, %v4849
    %v4851 = vpop.f32.mrb[0].mxu0
    %v4852 = vpop.f32.mrb[0].mxu0
    %v4853 = vadd.f32 %v4564, %v4852
    %v4854 = vpop.f32.mrb[0].mxu0
    %4855 = vmatprep.mubr.bf16.mxu0 %v3696
    %4856 = vmatmul.mubr.bf16.gmra.mrb[0].mxu0 %v3695
    %v4857 = vpop.f32.mrb[0].mxu0
    %v4858 = vadd.f32 %v4569, %v4857
    %v4859 = vpop.f32.mrb[0].mxu0
    %v4860 = vpop.f32.mrb[0].mxu0
    %v4861 = vadd.f32 %v4572, %v4860
    %v4862 = vpop.f32.mrb[0].mxu0
    %4863 = vmatprep.mubr.bf16.mxu0 %v3705
    %4864 = vmatmul.mubr.bf16.gmra.mrb[0].mxu0 %v3704
    %v4865 = vpop.f32.mrb[0].mxu0
    %v4866 = vadd.f32 %v4577, %v4865
    %v4867 = vpop.f32.mrb[0].mxu0
    %v4868 = vpop.f32.mrb[0].mxu0
    %v4869 = vadd.f32 %v4580, %v4868
    %v4870 = vpop.f32.mrb[0].mxu0
    %4871 = vmatprep.mubr.bf16.mxu0 %v3714
    %4872 = vmatmul.mubr.bf16.gmra.mrb[0].mxu0 %v3713
    %v4873 = vpop.f32.mrb[0].mxu0
    %v4874 = vadd.f32 %v4585, %v4873
    %v4875 = vpop.f32.mrb[0].mxu0
    %v4876 = vpop.f32.mrb[0].mxu0
    %v4877 = vadd.f32 %v4588, %v4876
    %v4878 = vpop.f32.mrb[0].mxu0
    %4879 = vmatprep.mubr.bf16.mxu0 %v3723
    %4880 = vmatmul.mubr.bf16.gmra.mrb[0].mxu0 %v3722
    %v4881 = vpop.f32.mrb[0].mxu0
    %v4882 = vadd.f32 %v4593, %v4881
    %v4883 = vpop.f32.mrb[0].mxu0
    %v4884 = vpop.f32.mrb[0].mxu0
    %v4885 = vadd.f32 %v4596, %v4884
    %v4886 = vpop.f32.mrb[0].mxu0
    %4887 = vmatprep.mubr.bf16.mxu0 %v3732
    %4888 = vmatmul.mubr.bf16.gmra.mrb[0].mxu0 %v3731
    %v4889 = vpop.f32.mrb[0].mxu0
    %v4890 = vadd.f32 %v4601, %v4889
    %v4891 = vpop.f32.mrb[0].mxu0
    %v4892 = vpop.f32.mrb[0].mxu0
    %v4893 = vadd.f32 %v4604, %v4892
    %v4894 = vpop.f32.mrb[0].mxu0
    %4895 = vmatprep.mubr.bf16.mxu0 %v3741
    %4896 = vmatmul.mubr.bf16.gmra.mrb[0].mxu0 %v3740
    %v4897 = vpop.f32.mrb[0].mxu0
    %v4898 = vadd.f32 %v4609, %v4897
    %v4899 = vpop.f32.mrb[0].mxu0
    %v4900 = vpop.f32.mrb[0].mxu0
    %v4901 = vadd.f32 %v4612, %v4900
    %v4902 = vpop.f32.mrb[0].mxu0
    %4903 = vmatprep.mubr.bf16.mxu0 %v3750
    %4904 = vmatmul.mubr.bf16.gmra.mrb[0].mxu0 %v3749
    %v4905 = vpop.f32.mrb[0].mxu0
    %v4906 = vadd.f32 %v4617, %v4905
    %v4907 = vpop.f32.mrb[0].mxu0
    %v4908 = vpop.f32.mrb[0].mxu0
    %v4909 = vadd.f32 %v4620, %v4908
    %v4910 = vpop.f32.mrb[0].mxu0
    %4911 = vmatprep.mubr.bf16.mxu0 %v3759
    %4912 = vmatmul.mubr.bf16.gmra.mrb[0].mxu0 %v3758
    %v4913 = vpop.f32.mrb[0].mxu0
    %v4914 = vadd.f32 %v4625, %v4913
    %v4915 = vpop.f32.mrb[0].mxu0
    %v4916 = vpop.f32.mrb[0].mxu0
    %v4917 = vadd.f32 %v4628, %v4916
    %v4918 = vpop.f32.mrb[0].mxu0
    %4919 = vmatprep.mubr.bf16.mxu0 %v3768
    %4920 = vmatmul.mubr.bf16.gmra.mrb[0].mxu0 %v3767
    %v4921 = vpop.f32.mrb[0].mxu0
    %v4922 = vadd.f32 %v4633, %v4921
    %v4923 = vpop.f32.mrb[0].mxu0
    %v4924 = vpop.f32.mrb[0].mxu0
    %v4925 = vadd.f32 %v4636, %v4924
    %v4926 = vpop.f32.mrb[0].mxu0
    %4927 = vdwg.mxu0
    %4928 = vmatprep.subr.bf16.mxu0 0
    %4929 = vmatpush1.bf16.msra.mxu0 %v4238
    %4930 = vmatprep.subr.bf16.mxu0 0
    %4931 = vmatpush1.bf16.msra.mxu0 %v4239
    %4932 = vmatprep.subr.bf16.mxu0 0
    %4933 = vmatpush1.bf16.msra.mxu0 %v4240
    %4934 = vmatprep.subr.bf16.mxu0 0
    %4935 = vmatpush1.bf16.msra.mxu0 %v4241
    %4936 = vmatprep.subr.bf16.mxu0 0
    %4937 = vmatpush1.bf16.msra.mxu0 %v4242
    %4938 = vmatprep.subr.bf16.mxu0 0
    %4939 = vmatpush1.bf16.msra.mxu0 %v4243
    %4940 = vmatprep.subr.bf16.mxu0 0
    %4941 = vmatpush1.bf16.msra.mxu0 %v4244
    %4942 = vmatprep.subr.bf16.mxu0 0
    %4943 = vmatpush1.bf16.msra.mxu0 %v4245
    %4944 = vmatprep.subr.bf16.mxu0 0
    %4945 = vmatpush1.bf16.msra.mxu0 %v4246
    %4946 = vmatprep.subr.bf16.mxu0 0
    %4947 = vmatpush1.bf16.msra.mxu0 %v4247
    %4948 = vmatprep.subr.bf16.mxu0 0
    %4949 = vmatpush1.bf16.msra.mxu0 %v4248
    %4950 = vmatprep.subr.bf16.mxu0 0
    %4951 = vmatpush1.bf16.msra.mxu0 %v4249
    %4952 = vmatprep.subr.bf16.mxu0 0
    %4953 = vmatpush1.bf16.msra.mxu0 %v4250
    %4954 = vmatprep.subr.bf16.mxu0 0
    %4955 = vmatpush1.bf16.msra.mxu0 %v4251
    %4956 = vmatprep.subr.bf16.mxu0 0
    %4957 = vmatpush1.bf16.msra.mxu0 %v4252
    %4958 = vmatprep.subr.bf16.mxu0 0
    %4959 = vmatpush1.bf16.msra.mxu0 %v4253
    %4960 = vmatprep.mubr.bf16.mxu0 %v3491
    %4961 = vmatmul.mubr.bf16.gmra.mrb[0].mxu0 %v3490
    %v4962 = vpop.f32.mrb[0].mxu0
    %v4963 = vadd.f32 %v4674, %v4962
    %v4964 = vpop.f32.mrb[0].mxu0
    %v4965 = vpop.f32.mrb[0].mxu0
    %v4966 = vadd.f32 %v4677, %v4965
    %v4967 = vpop.f32.mrb[0].mxu0
    %4968 = vmatprep.mubr.bf16.mxu0 %v3500
    %4969 = vmatmul.mubr.bf16.gmra.mrb[0].mxu0 %v3499
    %v4970 = vpop.f32.mrb[0].mxu0
    %v4971 = vadd.f32 %v4682, %v4970
    %v4972 = vpop.f32.mrb[0].mxu0
    %v4973 = vpop.f32.mrb[0].mxu0
    %v4974 = vadd.f32 %v4685, %v4973
    %v4975 = vpop.f32.mrb[0].mxu0
    %4976 = vmatprep.mubr.bf16.mxu0 %v3509
    %4977 = vmatmul.mubr.bf16.gmra.mrb[0].mxu0 %v3508
    %v4978 = vpop.f32.mrb[0].mxu0
    %v4979 = vadd.f32 %v4690, %v4978
    %v4980 = vpop.f32.mrb[0].mxu0
    %v4981 = vpop.f32.mrb[0].mxu0
    %v4982 = vadd.f32 %v4693, %v4981
    %v4983 = vpop.f32.mrb[0].mxu0
    %4984 = vmatprep.mubr.bf16.mxu0 %v3518
    %4985 = vmatmul.mubr.bf16.gmra.mrb[0].mxu0 %v3517
    %v4986 = vpop.f32.mrb[0].mxu0
    %v4987 = vadd.f32 %v4698, %v4986
    %v4988 = vpop.f32.mrb[0].mxu0
    %v4989 = vpop.f32.mrb[0].mxu0
    %v4990 = vadd.f32 %v4701, %v4989
    %v4991 = vpop.f32.mrb[0].mxu0
    %4992 = vmatprep.mubr.bf16.mxu0 %v3527
    %4993 = vmatmul.mubr.bf16.gmra.mrb[0].mxu0 %v3526
    %v4994 = vpop.f32.mrb[0].mxu0
    %v4995 = vadd.f32 %v4706, %v4994
    %v4996 = vpop.f32.mrb[0].mxu0
    %v4997 = vpop.f32.mrb[0].mxu0
    %v4998 = vadd.f32 %v4709, %v4997
    %v4999 = vpop.f32.mrb[0].mxu0
    %5000 = vmatprep.mubr.bf16.mxu0 %v3536
    %5001 = vmatmul.mubr.bf16.gmra.mrb[0].mxu0 %v3535
    %v5002 = vpop.f32.mrb[0].mxu0
    %v5003 = vadd.f32 %v4714, %v5002
    %v5004 = vpop.f32.mrb[0].mxu0
    %v5005 = vpop.f32.mrb[0].mxu0
    %v5006 = vadd.f32 %v4717, %v5005
    %v5007 = vpop.f32.mrb[0].mxu0
    %5008 = vmatprep.mubr.bf16.mxu0 %v3545
    %5009 = vmatmul.mubr.bf16.gmra.mrb[0].mxu0 %v3544
    %v5010 = vpop.f32.mrb[0].mxu0
    %v5011 = vadd.f32 %v4722, %v5010
    %v5012 = vpop.f32.mrb[0].mxu0
    %v5013 = vpop.f32.mrb[0].mxu0
    %v5014 = vadd.f32 %v4725, %v5013
    %v5015 = vpop.f32.mrb[0].mxu0
    %5016 = vmatprep.mubr.bf16.mxu0 %v3554
    %5017 = vmatmul.mubr.bf16.gmra.mrb[0].mxu0 %v3553
    %v5018 = vpop.f32.mrb[0].mxu0
    %v5019 = vadd.f32 %v4730, %v5018
    %v5020 = vpop.f32.mrb[0].mxu0
    %v5021 = vpop.f32.mrb[0].mxu0
    %v5022 = vadd.f32 %v4733, %v5021
    %v5023 = vpop.f32.mrb[0].mxu0
    %5024 = vmatprep.mubr.bf16.mxu0 %v3563
    %5025 = vmatmul.mubr.bf16.gmra.mrb[0].mxu0 %v3562
    %v5026 = vpop.f32.mrb[0].mxu0
    %v5027 = vadd.f32 %v4738, %v5026
    %v5028 = vpop.f32.mrb[0].mxu0
    %v5029 = vpop.f32.mrb[0].mxu0
    %v5030 = vadd.f32 %v4741, %v5029
    %v5031 = vpop.f32.mrb[0].mxu0
    %5032 = vmatprep.mubr.bf16.mxu0 %v3572
    %5033 = vmatmul.mubr.bf16.gmra.mrb[0].mxu0 %v3571
    %v5034 = vpop.f32.mrb[0].mxu0
    %v5035 = vadd.f32 %v4746, %v5034
    %v5036 = vpop.f32.mrb[0].mxu0
    %v5037 = vpop.f32.mrb[0].mxu0
    %v5038 = vadd.f32 %v4749, %v5037
    %v5039 = vpop.f32.mrb[0].mxu0
    %5040 = vmatprep.mubr.bf16.mxu0 %v3581
    %5041 = vmatmul.mubr.bf16.gmra.mrb[0].mxu0 %v3580
    %v5042 = vpop.f32.mrb[0].mxu0
    %v5043 = vadd.f32 %v4754, %v5042
    %v5044 = vpop.f32.mrb[0].mxu0
    %v5045 = vpop.f32.mrb[0].mxu0
    %v5046 = vadd.f32 %v4757, %v5045
    %v5047 = vpop.f32.mrb[0].mxu0
    %5048 = vmatprep.mubr.bf16.mxu0 %v3590
    %5049 = vmatmul.mubr.bf16.gmra.mrb[0].mxu0 %v3589
    %v5050 = vpop.f32.mrb[0].mxu0
    %v5051 = vadd.f32 %v4762, %v5050
    %v5052 = vpop.f32.mrb[0].mxu0
    %v5053 = vpop.f32.mrb[0].mxu0
    %v5054 = vadd.f32 %v4765, %v5053
    %v5055 = vpop.f32.mrb[0].mxu0
    %5056 = vmatprep.mubr.bf16.mxu0 %v3599
    %5057 = vmatmul.mubr.bf16.gmra.mrb[0].mxu0 %v3598
    %v5058 = vpop.f32.mrb[0].mxu0
    %v5059 = vadd.f32 %v4770, %v5058
    %v5060 = vpop.f32.mrb[0].mxu0
    %v5061 = vpop.f32.mrb[0].mxu0
    %v5062 = vadd.f32 %v4773, %v5061
    %v5063 = vpop.f32.mrb[0].mxu0
    %5064 = vmatprep.mubr.bf16.mxu0 %v3608
    %5065 = vmatmul.mubr.bf16.gmra.mrb[0].mxu0 %v3607
    %v5066 = vpop.f32.mrb[0].mxu0
    %v5067 = vadd.f32 %v4778, %v5066
    %v5068 = vpop.f32.mrb[0].mxu0
    %v5069 = vpop.f32.mrb[0].mxu0
    %v5070 = vadd.f32 %v4781, %v5069
    %v5071 = vpop.f32.mrb[0].mxu0
    %5072 = vmatprep.mubr.bf16.mxu0 %v3617
    %5073 = vmatmul.mubr.bf16.gmra.mrb[0].mxu0 %v3616
    %v5074 = vpop.f32.mrb[0].mxu0
    %v5075 = vadd.f32 %v4786, %v5074
    %v5076 = vpop.f32.mrb[0].mxu0
    %v5077 = vpop.f32.mrb[0].mxu0
    %v5078 = vadd.f32 %v4789, %v5077
    %v5079 = vpop.f32.mrb[0].mxu0
    %5080 = vmatprep.mubr.bf16.mxu0 %v3626
    %5081 = vmatmul.mubr.bf16.gmra.mrb[0].mxu0 %v3625
    %v5082 = vpop.f32.mrb[0].mxu0
    %v5083 = vadd.f32 %v4794, %v5082
    %v5084 = vpop.f32.mrb[0].mxu0
    %v5085 = vpop.f32.mrb[0].mxu0
    %v5086 = vadd.f32 %v4797, %v5085
    %v5087 = vpop.f32.mrb[0].mxu0
    %5088 = vmatprep.mubr.bf16.mxu0 %v3635
    %5089 = vmatmul.mubr.bf16.gmra.mrb[0].mxu0 %v3634
    %v5090 = vpop.f32.mrb[0].mxu0
    %v5091 = vadd.f32 %v4802, %v5090
    %v5092 = vpop.f32.mrb[0].mxu0
    %v5093 = vpop.f32.mrb[0].mxu0
    %v5094 = vadd.f32 %v4805, %v5093
    %v5095 = vpop.f32.mrb[0].mxu0
    %5096 = vmatprep.mubr.bf16.mxu0 %v3644
    %5097 = vmatmul.mubr.bf16.gmra.mrb[0].mxu0 %v3643
    %v5098 = vpop.f32.mrb[0].mxu0
    %v5099 = vadd.f32 %v4810, %v5098
    %v5100 = vpop.f32.mrb[0].mxu0
    %v5101 = vpop.f32.mrb[0].mxu0
    %v5102 = vadd.f32 %v4813, %v5101
    %v5103 = vpop.f32.mrb[0].mxu0
    %5104 = vmatprep.mubr.bf16.mxu0 %v3653
    %5105 = vmatmul.mubr.bf16.gmra.mrb[0].mxu0 %v3652
    %v5106 = vpop.f32.mrb[0].mxu0
    %v5107 = vadd.f32 %v4818, %v5106
    %v5108 = vpop.f32.mrb[0].mxu0
    %v5109 = vpop.f32.mrb[0].mxu0
    %v5110 = vadd.f32 %v4821, %v5109
    %v5111 = vpop.f32.mrb[0].mxu0
    %5112 = vmatprep.mubr.bf16.mxu0 %v3662
    %5113 = vmatmul.mubr.bf16.gmra.mrb[0].mxu0 %v3661
    %v5114 = vpop.f32.mrb[0].mxu0
    %v5115 = vadd.f32 %v4826, %v5114
    %v5116 = vpop.f32.mrb[0].mxu0
    %v5117 = vpop.f32.mrb[0].mxu0
    %v5118 = vadd.f32 %v4829, %v5117
    %v5119 = vpop.f32.mrb[0].mxu0
    %5120 = vmatprep.mubr.bf16.mxu0 %v3671
    %5121 = vmatmul.mubr.bf16.gmra.mrb[0].mxu0 %v3670
    %v5122 = vpop.f32.mrb[0].mxu0
    %v5123 = vadd.f32 %v4834, %v5122
    %v5124 = vpop.f32.mrb[0].mxu0
    %v5125 = vpop.f32.mrb[0].mxu0
    %v5126 = vadd.f32 %v4837, %v5125
    %v5127 = vpop.f32.mrb[0].mxu0
    %5128 = vmatprep.mubr.bf16.mxu0 %v3680
    %5129 = vmatmul.mubr.bf16.gmra.mrb[0].mxu0 %v3679
    %v5130 = vpop.f32.mrb[0].mxu0
    %v5131 = vadd.f32 %v4842, %v5130
    %v5132 = vpop.f32.mrb[0].mxu0
    %v5133 = vpop.f32.mrb[0].mxu0
    %v5134 = vadd.f32 %v4845, %v5133
    %v5135 = vpop.f32.mrb[0].mxu0
    %5136 = vmatprep.mubr.bf16.mxu0 %v3689
    %5137 = vmatmul.mubr.bf16.gmra.mrb[0].mxu0 %v3688
    %v5138 = vpop.f32.mrb[0].mxu0
    %v5139 = vadd.f32 %v4850, %v5138
    %v5140 = vpop.f32.mrb[0].mxu0
    %v5141 = vpop.f32.mrb[0].mxu0
    %v5142 = vadd.f32 %v4853, %v5141
    %v5143 = vpop.f32.mrb[0].mxu0
    %5144 = vmatprep.mubr.bf16.mxu0 %v3698
    %5145 = vmatmul.mubr.bf16.gmra.mrb[0].mxu0 %v3697
    %v5146 = vpop.f32.mrb[0].mxu0
    %v5147 = vadd.f32 %v4858, %v5146
    %v5148 = vpop.f32.mrb[0].mxu0
    %v5149 = vpop.f32.mrb[0].mxu0
    %v5150 = vadd.f32 %v4861, %v5149
    %v5151 = vpop.f32.mrb[0].mxu0
    %5152 = vmatprep.mubr.bf16.mxu0 %v3707
    %5153 = vmatmul.mubr.bf16.gmra.mrb[0].mxu0 %v3706
    %v5154 = vpop.f32.mrb[0].mxu0
    %v5155 = vadd.f32 %v4866, %v5154
    %v5156 = vpop.f32.mrb[0].mxu0
    %v5157 = vpop.f32.mrb[0].mxu0
    %v5158 = vadd.f32 %v4869, %v5157
    %v5159 = vpop.f32.mrb[0].mxu0
    %5160 = vmatprep.mubr.bf16.mxu0 %v3716
    %5161 = vmatmul.mubr.bf16.gmra.mrb[0].mxu0 %v3715
    %v5162 = vpop.f32.mrb[0].mxu0
    %v5163 = vadd.f32 %v4874, %v5162
    %v5164 = vpop.f32.mrb[0].mxu0
    %v5165 = vpop.f32.mrb[0].mxu0
    %v5166 = vadd.f32 %v4877, %v5165
    %v5167 = vpop.f32.mrb[0].mxu0
    %5168 = vmatprep.mubr.bf16.mxu0 %v3725
    %5169 = vmatmul.mubr.bf16.gmra.mrb[0].mxu0 %v3724
    %v5170 = vpop.f32.mrb[0].mxu0
    %v5171 = vadd.f32 %v4882, %v5170
    %v5172 = vpop.f32.mrb[0].mxu0
    %v5173 = vpop.f32.mrb[0].mxu0
    %v5174 = vadd.f32 %v4885, %v5173
    %v5175 = vpop.f32.mrb[0].mxu0
    %5176 = vmatprep.mubr.bf16.mxu0 %v3734
    %5177 = vmatmul.mubr.bf16.gmra.mrb[0].mxu0 %v3733
    %v5178 = vpop.f32.mrb[0].mxu0
    %v5179 = vadd.f32 %v4890, %v5178
    %v5180 = vpop.f32.mrb[0].mxu0
    %v5181 = vpop.f32.mrb[0].mxu0
    %v5182 = vadd.f32 %v4893, %v5181
    %v5183 = vpop.f32.mrb[0].mxu0
    %5184 = vmatprep.mubr.bf16.mxu0 %v3743
    %5185 = vmatmul.mubr.bf16.gmra.mrb[0].mxu0 %v3742
    %v5186 = vpop.f32.mrb[0].mxu0
    %v5187 = vadd.f32 %v4898, %v5186
    %v5188 = vpop.f32.mrb[0].mxu0
    %v5189 = vpop.f32.mrb[0].mxu0
    %v5190 = vadd.f32 %v4901, %v5189
    %v5191 = vpop.f32.mrb[0].mxu0
    %5192 = vmatprep.mubr.bf16.mxu0 %v3752
    %5193 = vmatmul.mubr.bf16.gmra.mrb[0].mxu0 %v3751
    %v5194 = vpop.f32.mrb[0].mxu0
    %v5195 = vadd.f32 %v4906, %v5194
    %v5196 = vpop.f32.mrb[0].mxu0
    %v5197 = vpop.f32.mrb[0].mxu0
    %v5198 = vadd.f32 %v4909, %v5197
    %v5199 = vpop.f32.mrb[0].mxu0
    %5200 = vmatprep.mubr.bf16.mxu0 %v3761
    %5201 = vmatmul.mubr.bf16.gmra.mrb[0].mxu0 %v3760
    %v5202 = vpop.f32.mrb[0].mxu0
    %v5203 = vadd.f32 %v4914, %v5202
    %v5204 = vpop.f32.mrb[0].mxu0
    %v5205 = vpop.f32.mrb[0].mxu0
    %v5206 = vadd.f32 %v4917, %v5205
    %v5207 = vpop.f32.mrb[0].mxu0
    %5208 = vmatprep.mubr.bf16.mxu0 %v3770
    %5209 = vmatmul.mubr.bf16.gmra.mrb[0].mxu0 %v3769
    %v5210 = vpop.f32.mrb[0].mxu0
    %v5211 = vadd.f32 %v4922, %v5210
    %v5212 = vpop.f32.mrb[0].mxu0
    %v5213 = vpop.f32.mrb[0].mxu0
    %v5214 = vadd.f32 %v4925, %v5213
    %v5215 = vpop.f32.mrb[0].mxu0
    %5216 = vdwg.mxu0
    %5217 = vmatprep.subr.bf16.mxu0 0
    %5218 = vmatpush1.bf16.msra.mxu0 %v4254
    %5219 = vmatprep.subr.bf16.mxu0 0
    %5220 = vmatpush1.bf16.msra.mxu0 %v4255
    %5221 = vmatprep.subr.bf16.mxu0 0
    %5222 = vmatpush1.bf16.msra.mxu0 %v4256
    %5223 = vmatprep.subr.bf16.mxu0 0
    %5224 = vmatpush1.bf16.msra.mxu0 %v4257
    %5225 = vmatprep.subr.bf16.mxu0 0
    %5226 = vmatpush1.bf16.msra.mxu0 %v4258
    %5227 = vmatprep.subr.bf16.mxu0 0
    %5228 = vmatpush1.bf16.msra.mxu0 %v4259
    %5229 = vmatprep.subr.bf16.mxu0 0
    %5230 = vmatpush1.bf16.msra.mxu0 %v4260
    %5231 = vmatprep.subr.bf16.mxu0 0
    %5232 = vmatpush1.bf16.msra.mxu0 %v4261
    %5233 = vmatprep.subr.bf16.mxu0 0
    %5234 = vmatpush1.bf16.msra.mxu0 %v4262
    %5235 = vmatprep.subr.bf16.mxu0 0
    %5236 = vmatpush1.bf16.msra.mxu0 %v4263
    %5237 = vmatprep.subr.bf16.mxu0 0
    %5238 = vmatpush1.bf16.msra.mxu0 %v4264
    %5239 = vmatprep.subr.bf16.mxu0 0
    %5240 = vmatpush1.bf16.msra.mxu0 %v4265
    %5241 = vmatprep.subr.bf16.mxu0 0
    %5242 = vmatpush1.bf16.msra.mxu0 %v4266
    %5243 = vmatprep.subr.bf16.mxu0 0
    %5244 = vmatpush1.bf16.msra.mxu0 %v4267
    %5245 = vmatprep.subr.bf16.mxu0 0
    %5246 = vmatpush1.bf16.msra.mxu0 %v4268
    %5247 = vmatprep.subr.bf16.mxu0 0
    %5248 = vmatpush1.bf16.msra.mxu0 %v4269
    %5249 = vmatprep.mubr.bf16.mxu0 %v3493
    %5250 = vmatmul.mubr.bf16.gmra.mrb[0].mxu0 %v3492
    %v5251 = vpop.f32.mrb[0].mxu0
    %v5252 = vadd.f32 %v4963, %v5251
    %v5253 = vpop.f32.mrb[0].mxu0
    %v5254 = vpop.f32.mrb[0].mxu0
    %v5255 = vadd.f32 %v4966, %v5254
    %v5256 = vpop.f32.mrb[0].mxu0
    %5257 = vmatprep.mubr.bf16.mxu0 %v3502
    %5258 = vmatmul.mubr.bf16.gmra.mrb[0].mxu0 %v3501
    %v5259 = vpop.f32.mrb[0].mxu0
    %v5260 = vadd.f32 %v4971, %v5259
    %v5261 = vpop.f32.mrb[0].mxu0
    %v5262 = vpop.f32.mrb[0].mxu0
    %v5263 = vadd.f32 %v4974, %v5262
    %v5264 = vpop.f32.mrb[0].mxu0
    %5265 = vmatprep.mubr.bf16.mxu0 %v3511
    %5266 = vmatmul.mubr.bf16.gmra.mrb[0].mxu0 %v3510
    %v5267 = vpop.f32.mrb[0].mxu0
    %v5268 = vadd.f32 %v4979, %v5267
    %v5269 = vpop.f32.mrb[0].mxu0
    %v5270 = vpop.f32.mrb[0].mxu0
    %v5271 = vadd.f32 %v4982, %v5270
    %v5272 = vpop.f32.mrb[0].mxu0
    %5273 = vmatprep.mubr.bf16.mxu0 %v3520
    %5274 = vmatmul.mubr.bf16.gmra.mrb[0].mxu0 %v3519
    %v5275 = vpop.f32.mrb[0].mxu0
    %v5276 = vadd.f32 %v4987, %v5275
    %v5277 = vpop.f32.mrb[0].mxu0
    %v5278 = vpop.f32.mrb[0].mxu0
    %v5279 = vadd.f32 %v4990, %v5278
    %v5280 = vpop.f32.mrb[0].mxu0
    %5281 = vmatprep.mubr.bf16.mxu0 %v3529
    %5282 = vmatmul.mubr.bf16.gmra.mrb[0].mxu0 %v3528
    %v5283 = vpop.f32.mrb[0].mxu0
    %v5284 = vadd.f32 %v4995, %v5283
    %v5285 = vpop.f32.mrb[0].mxu0
    %v5286 = vpop.f32.mrb[0].mxu0
    %v5287 = vadd.f32 %v4998, %v5286
    %v5288 = vpop.f32.mrb[0].mxu0
    %5289 = vmatprep.mubr.bf16.mxu0 %v3538
    %5290 = vmatmul.mubr.bf16.gmra.mrb[0].mxu0 %v3537
    %v5291 = vpop.f32.mrb[0].mxu0
    %v5292 = vadd.f32 %v5003, %v5291
    %v5293 = vpop.f32.mrb[0].mxu0
    %v5294 = vpop.f32.mrb[0].mxu0
    %v5295 = vadd.f32 %v5006, %v5294
    %v5296 = vpop.f32.mrb[0].mxu0
    %5297 = vmatprep.mubr.bf16.mxu0 %v3547
    %5298 = vmatmul.mubr.bf16.gmra.mrb[0].mxu0 %v3546
    %v5299 = vpop.f32.mrb[0].mxu0
    %v5300 = vadd.f32 %v5011, %v5299
    %v5301 = vpop.f32.mrb[0].mxu0
    %v5302 = vpop.f32.mrb[0].mxu0
    %v5303 = vadd.f32 %v5014, %v5302
    %v5304 = vpop.f32.mrb[0].mxu0
    %5305 = vmatprep.mubr.bf16.mxu0 %v3556
    %5306 = vmatmul.mubr.bf16.gmra.mrb[0].mxu0 %v3555
    %v5307 = vpop.f32.mrb[0].mxu0
    %v5308 = vadd.f32 %v5019, %v5307
    %v5309 = vpop.f32.mrb[0].mxu0
    %v5310 = vpop.f32.mrb[0].mxu0
    %v5311 = vadd.f32 %v5022, %v5310
    %v5312 = vpop.f32.mrb[0].mxu0
    %5313 = vmatprep.mubr.bf16.mxu0 %v3565
    %5314 = vmatmul.mubr.bf16.gmra.mrb[0].mxu0 %v3564
    %v5315 = vpop.f32.mrb[0].mxu0
    %v5316 = vadd.f32 %v5027, %v5315
    %v5317 = vpop.f32.mrb[0].mxu0
    %v5318 = vpop.f32.mrb[0].mxu0
    %v5319 = vadd.f32 %v5030, %v5318
    %v5320 = vpop.f32.mrb[0].mxu0
    %5321 = vmatprep.mubr.bf16.mxu0 %v3574
    %5322 = vmatmul.mubr.bf16.gmra.mrb[0].mxu0 %v3573
    %v5323 = vpop.f32.mrb[0].mxu0
    %v5324 = vadd.f32 %v5035, %v5323
    %v5325 = vpop.f32.mrb[0].mxu0
    %v5326 = vpop.f32.mrb[0].mxu0
    %v5327 = vadd.f32 %v5038, %v5326
    %v5328 = vpop.f32.mrb[0].mxu0
    %5329 = vmatprep.mubr.bf16.mxu0 %v3583
    %5330 = vmatmul.mubr.bf16.gmra.mrb[0].mxu0 %v3582
    %v5331 = vpop.f32.mrb[0].mxu0
    %v5332 = vadd.f32 %v5043, %v5331
    %v5333 = vpop.f32.mrb[0].mxu0
    %v5334 = vpop.f32.mrb[0].mxu0
    %v5335 = vadd.f32 %v5046, %v5334
    %v5336 = vpop.f32.mrb[0].mxu0
    %5337 = vmatprep.mubr.bf16.mxu0 %v3592
    %5338 = vmatmul.mubr.bf16.gmra.mrb[0].mxu0 %v3591
    %v5339 = vpop.f32.mrb[0].mxu0
    %v5340 = vadd.f32 %v5051, %v5339
    %v5341 = vpop.f32.mrb[0].mxu0
    %v5342 = vpop.f32.mrb[0].mxu0
    %v5343 = vadd.f32 %v5054, %v5342
    %v5344 = vpop.f32.mrb[0].mxu0
    %5345 = vmatprep.mubr.bf16.mxu0 %v3601
    %5346 = vmatmul.mubr.bf16.gmra.mrb[0].mxu0 %v3600
    %v5347 = vpop.f32.mrb[0].mxu0
    %v5348 = vadd.f32 %v5059, %v5347
    %v5349 = vpop.f32.mrb[0].mxu0
    %v5350 = vpop.f32.mrb[0].mxu0
    %v5351 = vadd.f32 %v5062, %v5350
    %v5352 = vpop.f32.mrb[0].mxu0
    %5353 = vmatprep.mubr.bf16.mxu0 %v3610
    %5354 = vmatmul.mubr.bf16.gmra.mrb[0].mxu0 %v3609
    %v5355 = vpop.f32.mrb[0].mxu0
    %v5356 = vadd.f32 %v5067, %v5355
    %v5357 = vpop.f32.mrb[0].mxu0
    %v5358 = vpop.f32.mrb[0].mxu0
    %v5359 = vadd.f32 %v5070, %v5358
    %v5360 = vpop.f32.mrb[0].mxu0
    %5361 = vmatprep.mubr.bf16.mxu0 %v3619
    %5362 = vmatmul.mubr.bf16.gmra.mrb[0].mxu0 %v3618
    %v5363 = vpop.f32.mrb[0].mxu0
    %v5364 = vadd.f32 %v5075, %v5363
    %v5365 = vpop.f32.mrb[0].mxu0
    %v5366 = vpop.f32.mrb[0].mxu0
    %v5367 = vadd.f32 %v5078, %v5366
    %v5368 = vpop.f32.mrb[0].mxu0
    %5369 = vmatprep.mubr.bf16.mxu0 %v3628
    %5370 = vmatmul.mubr.bf16.gmra.mrb[0].mxu0 %v3627
    %v5371 = vpop.f32.mrb[0].mxu0
    %v5372 = vadd.f32 %v5083, %v5371
    %v5373 = vpop.f32.mrb[0].mxu0
    %v5374 = vpop.f32.mrb[0].mxu0
    %v5375 = vadd.f32 %v5086, %v5374
    %v5376 = vpop.f32.mrb[0].mxu0
    %5377 = vmatprep.mubr.bf16.mxu0 %v3637
    %5378 = vmatmul.mubr.bf16.gmra.mrb[0].mxu0 %v3636
    %v5379 = vpop.f32.mrb[0].mxu0
    %v5380 = vadd.f32 %v5091, %v5379
    %v5381 = vpop.f32.mrb[0].mxu0
    %v5382 = vpop.f32.mrb[0].mxu0
    %v5383 = vadd.f32 %v5094, %v5382
    %v5384 = vpop.f32.mrb[0].mxu0
    %5385 = vmatprep.mubr.bf16.mxu0 %v3646
    %5386 = vmatmul.mubr.bf16.gmra.mrb[0].mxu0 %v3645
    %v5387 = vpop.f32.mrb[0].mxu0
    %v5388 = vadd.f32 %v5099, %v5387
    %v5389 = vpop.f32.mrb[0].mxu0
    %v5390 = vpop.f32.mrb[0].mxu0
    %v5391 = vadd.f32 %v5102, %v5390
    %v5392 = vpop.f32.mrb[0].mxu0
    %5393 = vmatprep.mubr.bf16.mxu0 %v3655
    %5394 = vmatmul.mubr.bf16.gmra.mrb[0].mxu0 %v3654
    %v5395 = vpop.f32.mrb[0].mxu0
    %v5396 = vadd.f32 %v5107, %v5395
    %v5397 = vpop.f32.mrb[0].mxu0
    %v5398 = vpop.f32.mrb[0].mxu0
    %v5399 = vadd.f32 %v5110, %v5398
    %v5400 = vpop.f32.mrb[0].mxu0
    %5401 = vmatprep.mubr.bf16.mxu0 %v3664
    %5402 = vmatmul.mubr.bf16.gmra.mrb[0].mxu0 %v3663
    %v5403 = vpop.f32.mrb[0].mxu0
    %v5404 = vadd.f32 %v5115, %v5403
    %v5405 = vpop.f32.mrb[0].mxu0
    %v5406 = vpop.f32.mrb[0].mxu0
    %v5407 = vadd.f32 %v5118, %v5406
    %v5408 = vpop.f32.mrb[0].mxu0
    %5409 = vmatprep.mubr.bf16.mxu0 %v3673
    %5410 = vmatmul.mubr.bf16.gmra.mrb[0].mxu0 %v3672
    %v5411 = vpop.f32.mrb[0].mxu0
    %v5412 = vadd.f32 %v5123, %v5411
    %v5413 = vpop.f32.mrb[0].mxu0
    %v5414 = vpop.f32.mrb[0].mxu0
    %v5415 = vadd.f32 %v5126, %v5414
    %v5416 = vpop.f32.mrb[0].mxu0
    %5417 = vmatprep.mubr.bf16.mxu0 %v3682
    %5418 = vmatmul.mubr.bf16.gmra.mrb[0].mxu0 %v3681
    %v5419 = vpop.f32.mrb[0].mxu0
    %v5420 = vadd.f32 %v5131, %v5419
    %v5421 = vpop.f32.mrb[0].mxu0
    %v5422 = vpop.f32.mrb[0].mxu0
    %v5423 = vadd.f32 %v5134, %v5422
    %v5424 = vpop.f32.mrb[0].mxu0
    %5425 = vmatprep.mubr.bf16.mxu0 %v3691
    %5426 = vmatmul.mubr.bf16.gmra.mrb[0].mxu0 %v3690
    %v5427 = vpop.f32.mrb[0].mxu0
    %v5428 = vadd.f32 %v5139, %v5427
    %v5429 = vpop.f32.mrb[0].mxu0
    %v5430 = vpop.f32.mrb[0].mxu0
    %v5431 = vadd.f32 %v5142, %v5430
    %v5432 = vpop.f32.mrb[0].mxu0
    %5433 = vmatprep.mubr.bf16.mxu0 %v3700
    %5434 = vmatmul.mubr.bf16.gmra.mrb[0].mxu0 %v3699
    %v5435 = vpop.f32.mrb[0].mxu0
    %v5436 = vadd.f32 %v5147, %v5435
    %v5437 = vpop.f32.mrb[0].mxu0
    %v5438 = vpop.f32.mrb[0].mxu0
    %v5439 = vadd.f32 %v5150, %v5438
    %v5440 = vpop.f32.mrb[0].mxu0
    %5441 = vmatprep.mubr.bf16.mxu0 %v3709
    %5442 = vmatmul.mubr.bf16.gmra.mrb[0].mxu0 %v3708
    %v5443 = vpop.f32.mrb[0].mxu0
    %v5444 = vadd.f32 %v5155, %v5443
    %v5445 = vpop.f32.mrb[0].mxu0
    %v5446 = vpop.f32.mrb[0].mxu0
    %v5447 = vadd.f32 %v5158, %v5446
    %v5448 = vpop.f32.mrb[0].mxu0
    %5449 = vmatprep.mubr.bf16.mxu0 %v3718
    %5450 = vmatmul.mubr.bf16.gmra.mrb[0].mxu0 %v3717
    %v5451 = vpop.f32.mrb[0].mxu0
    %v5452 = vadd.f32 %v5163, %v5451
    %v5453 = vpop.f32.mrb[0].mxu0
    %v5454 = vpop.f32.mrb[0].mxu0
    %v5455 = vadd.f32 %v5166, %v5454
    %v5456 = vpop.f32.mrb[0].mxu0
    %5457 = vmatprep.mubr.bf16.mxu0 %v3727
    %5458 = vmatmul.mubr.bf16.gmra.mrb[0].mxu0 %v3726
    %v5459 = vpop.f32.mrb[0].mxu0
    %v5460 = vadd.f32 %v5171, %v5459
    %v5461 = vpop.f32.mrb[0].mxu0
    %v5462 = vpop.f32.mrb[0].mxu0
    %v5463 = vadd.f32 %v5174, %v5462
    %v5464 = vpop.f32.mrb[0].mxu0
    %5465 = vmatprep.mubr.bf16.mxu0 %v3736
    %5466 = vmatmul.mubr.bf16.gmra.mrb[0].mxu0 %v3735
    %v5467 = vpop.f32.mrb[0].mxu0
    %v5468 = vadd.f32 %v5179, %v5467
    %v5469 = vpop.f32.mrb[0].mxu0
    %v5470 = vpop.f32.mrb[0].mxu0
    %v5471 = vadd.f32 %v5182, %v5470
    %v5472 = vpop.f32.mrb[0].mxu0
    %5473 = vmatprep.mubr.bf16.mxu0 %v3745
    %5474 = vmatmul.mubr.bf16.gmra.mrb[0].mxu0 %v3744
    %v5475 = vpop.f32.mrb[0].mxu0
    %v5476 = vadd.f32 %v5187, %v5475
    %v5477 = vpop.f32.mrb[0].mxu0
    %v5478 = vpop.f32.mrb[0].mxu0
    %v5479 = vadd.f32 %v5190, %v5478
    %v5480 = vpop.f32.mrb[0].mxu0
    %5481 = vmatprep.mubr.bf16.mxu0 %v3754
    %5482 = vmatmul.mubr.bf16.gmra.mrb[0].mxu0 %v3753
    %v5483 = vpop.f32.mrb[0].mxu0
    %v5484 = vadd.f32 %v5195, %v5483
    %v5485 = vpop.f32.mrb[0].mxu0
    %v5486 = vpop.f32.mrb[0].mxu0
    %v5487 = vadd.f32 %v5198, %v5486
    %v5488 = vpop.f32.mrb[0].mxu0
    %5489 = vmatprep.mubr.bf16.mxu0 %v3763
    %5490 = vmatmul.mubr.bf16.gmra.mrb[0].mxu0 %v3762
    %v5491 = vpop.f32.mrb[0].mxu0
    %v5492 = vadd.f32 %v5203, %v5491
    %v5493 = vpop.f32.mrb[0].mxu0
    %v5494 = vpop.f32.mrb[0].mxu0
    %v5495 = vadd.f32 %v5206, %v5494
    %v5496 = vpop.f32.mrb[0].mxu0
    %5497 = vmatprep.mubr.bf16.mxu0 %v3772
    %5498 = vmatmul.mubr.bf16.gmra.mrb[0].mxu0 %v3771
    %v5499 = vpop.f32.mrb[0].mxu0
    %v5500 = vadd.f32 %v5211, %v5499
    %v5501 = vpop.f32.mrb[0].mxu0
    %v5502 = vpop.f32.mrb[0].mxu0
    %v5503 = vadd.f32 %v5214, %v5502
    %v5504 = vpop.f32.mrb[0].mxu0
    %5505 = vdwg.mxu0
    %5506 = vmatprep.subr.bf16.mxu0 0
    %5507 = vmatpush1.bf16.msra.mxu0 %v4270
    %5508 = vmatprep.subr.bf16.mxu0 0
    %5509 = vmatpush1.bf16.msra.mxu0 %v4271
    %5510 = vmatprep.subr.bf16.mxu0 0
    %5511 = vmatpush1.bf16.msra.mxu0 %v4272
    %5512 = vmatprep.subr.bf16.mxu0 0
    %5513 = vmatpush1.bf16.msra.mxu0 %v4273
    %5514 = vmatprep.subr.bf16.mxu0 0
    %5515 = vmatpush1.bf16.msra.mxu0 %v4274
    %5516 = vmatprep.subr.bf16.mxu0 0
    %5517 = vmatpush1.bf16.msra.mxu0 %v4275
    %5518 = vmatprep.subr.bf16.mxu0 0
    %5519 = vmatpush1.bf16.msra.mxu0 %v4276
    %5520 = vmatprep.subr.bf16.mxu0 0
    %5521 = vmatpush1.bf16.msra.mxu0 %v4277
    %5522 = vmatprep.subr.bf16.mxu0 0
    %5523 = vmatpush1.bf16.msra.mxu0 0
    %5524 = vmatprep.subr.bf16.mxu0 0
    %5525 = vmatpush1.bf16.msra.mxu0 0
    %5526 = vmatprep.subr.bf16.mxu0 0
    %5527 = vmatpush1.bf16.msra.mxu0 0
    %5528 = vmatprep.subr.bf16.mxu0 0
    %5529 = vmatpush1.bf16.msra.mxu0 0
    %5530 = vmatprep.subr.bf16.mxu0 0
    %5531 = vmatpush1.bf16.msra.mxu0 0
    %5532 = vmatprep.subr.bf16.mxu0 0
    %5533 = vmatpush1.bf16.msra.mxu0 0
    %5534 = vmatprep.subr.bf16.mxu0 0
    %5535 = vmatpush1.bf16.msra.mxu0 0
    %5536 = vmatprep.subr.bf16.mxu0 0
    %5537 = vmatpush1.bf16.msra.mxu0 0
    %5538 = vmatprep.mubr.bf16.mxu0 0
    %5539 = vmatmul.mubr.bf16.gmra.mrb[0].mxu0 %v3494
    %v5540 = vpop.f32.mrb[0].mxu0
    %v5541 = vadd.f32 %v5252, %v5540
    %v5542 = vpop.f32.mrb[0].mxu0
    %v5543 = vpop.f32.mrb[0].mxu0
    %v5544 = vadd.f32 %v5255, %v5543
    %v5545 = vpop.f32.mrb[0].mxu0
    %5546 = vmatprep.mubr.bf16.mxu0 0
    %5547 = vmatmul.mubr.bf16.gmra.mrb[0].mxu0 %v3503
    %v5548 = vpop.f32.mrb[0].mxu0
    %v5549 = vadd.f32 %v5260, %v5548
    %v5550 = vpop.f32.mrb[0].mxu0
    %v5551 = vpop.f32.mrb[0].mxu0
    %v5552 = vadd.f32 %v5263, %v5551
    %v5553 = vpop.f32.mrb[0].mxu0
    %5554 = vmatprep.mubr.bf16.mxu0 0
    %5555 = vmatmul.mubr.bf16.gmra.mrb[0].mxu0 %v3512
    %v5556 = vpop.f32.mrb[0].mxu0
    %v5557 = vadd.f32 %v5268, %v5556
    %v5558 = vpop.f32.mrb[0].mxu0
    %v5559 = vpop.f32.mrb[0].mxu0
    %v5560 = vadd.f32 %v5271, %v5559
    %v5561 = vpop.f32.mrb[0].mxu0
    %5562 = vmatprep.mubr.bf16.mxu0 0
    %5563 = vmatmul.mubr.bf16.gmra.mrb[0].mxu0 %v3521
    %v5564 = vpop.f32.mrb[0].mxu0
    %v5565 = vadd.f32 %v5276, %v5564
    %v5566 = vpop.f32.mrb[0].mxu0
    %v5567 = vpop.f32.mrb[0].mxu0
    %v5568 = vadd.f32 %v5279, %v5567
    %v5569 = vpop.f32.mrb[0].mxu0
    %5570 = vmatprep.mubr.bf16.mxu0 0
    %5571 = vmatmul.mubr.bf16.gmra.mrb[0].mxu0 %v3530
    %v5572 = vpop.f32.mrb[0].mxu0
    %v5573 = vadd.f32 %v5284, %v5572
    %v5574 = vpop.f32.mrb[0].mxu0
    %v5575 = vpop.f32.mrb[0].mxu0
    %v5576 = vadd.f32 %v5287, %v5575
    %v5577 = vpop.f32.mrb[0].mxu0
    %5578 = vmatprep.mubr.bf16.mxu0 0
    %5579 = vmatmul.mubr.bf16.gmra.mrb[0].mxu0 %v3539
    %v5580 = vpop.f32.mrb[0].mxu0
    %v5581 = vadd.f32 %v5292, %v5580
    %v5582 = vpop.f32.mrb[0].mxu0
    %v5583 = vpop.f32.mrb[0].mxu0
    %v5584 = vadd.f32 %v5295, %v5583
    %v5585 = vpop.f32.mrb[0].mxu0
    %5586 = vmatprep.mubr.bf16.mxu0 0
    %5587 = vmatmul.mubr.bf16.gmra.mrb[0].mxu0 %v3548
    %v5588 = vpop.f32.mrb[0].mxu0
    %v5589 = vadd.f32 %v5300, %v5588
    %v5590 = vpop.f32.mrb[0].mxu0
    %v5591 = vpop.f32.mrb[0].mxu0
    %v5592 = vadd.f32 %v5303, %v5591
    %v5593 = vpop.f32.mrb[0].mxu0
    %5594 = vmatprep.mubr.bf16.mxu0 0
    %5595 = vmatmul.mubr.bf16.gmra.mrb[0].mxu0 %v3557
    %v5596 = vpop.f32.mrb[0].mxu0
    %v5597 = vadd.f32 %v5308, %v5596
    %v5598 = vpop.f32.mrb[0].mxu0
    %v5599 = vpop.f32.mrb[0].mxu0
    %v5600 = vadd.f32 %v5311, %v5599
    %v5601 = vpop.f32.mrb[0].mxu0
    %5602 = vmatprep.mubr.bf16.mxu0 0
    %5603 = vmatmul.mubr.bf16.gmra.mrb[0].mxu0 %v3566
    %v5604 = vpop.f32.mrb[0].mxu0
    %v5605 = vadd.f32 %v5316, %v5604
    %v5606 = vpop.f32.mrb[0].mxu0
    %v5607 = vpop.f32.mrb[0].mxu0
    %v5608 = vadd.f32 %v5319, %v5607
    %v5609 = vpop.f32.mrb[0].mxu0
    %5610 = vmatprep.mubr.bf16.mxu0 0
    %5611 = vmatmul.mubr.bf16.gmra.mrb[0].mxu0 %v3575
    %v5612 = vpop.f32.mrb[0].mxu0
    %v5613 = vadd.f32 %v5324, %v5612
    %v5614 = vpop.f32.mrb[0].mxu0
    %v5615 = vpop.f32.mrb[0].mxu0
    %v5616 = vadd.f32 %v5327, %v5615
    %v5617 = vpop.f32.mrb[0].mxu0
    %5618 = vmatprep.mubr.bf16.mxu0 0
    %5619 = vmatmul.mubr.bf16.gmra.mrb[0].mxu0 %v3584
    %v5620 = vpop.f32.mrb[0].mxu0
    %v5621 = vadd.f32 %v5332, %v5620
    %v5622 = vpop.f32.mrb[0].mxu0
    %v5623 = vpop.f32.mrb[0].mxu0
    %v5624 = vadd.f32 %v5335, %v5623
    %v5625 = vpop.f32.mrb[0].mxu0
    %5626 = vmatprep.mubr.bf16.mxu0 0
    %5627 = vmatmul.mubr.bf16.gmra.mrb[0].mxu0 %v3593
    %v5628 = vpop.f32.mrb[0].mxu0
    %v5629 = vadd.f32 %v5340, %v5628
    %v5630 = vpop.f32.mrb[0].mxu0
    %v5631 = vpop.f32.mrb[0].mxu0
    %v5632 = vadd.f32 %v5343, %v5631
    %v5633 = vpop.f32.mrb[0].mxu0
    %5634 = vmatprep.mubr.bf16.mxu0 0
    %5635 = vmatmul.mubr.bf16.gmra.mrb[0].mxu0 %v3602
    %v5636 = vpop.f32.mrb[0].mxu0
    %v5637 = vadd.f32 %v5348, %v5636
    %v5638 = vpop.f32.mrb[0].mxu0
    %v5639 = vpop.f32.mrb[0].mxu0
    %v5640 = vadd.f32 %v5351, %v5639
    %v5641 = vpop.f32.mrb[0].mxu0
    %5642 = vmatprep.mubr.bf16.mxu0 0
    %5643 = vmatmul.mubr.bf16.gmra.mrb[0].mxu0 %v3611
    %v5644 = vpop.f32.mrb[0].mxu0
    %v5645 = vadd.f32 %v5356, %v5644
    %v5646 = vpop.f32.mrb[0].mxu0
    %v5647 = vpop.f32.mrb[0].mxu0
    %v5648 = vadd.f32 %v5359, %v5647
    %v5649 = vpop.f32.mrb[0].mxu0
    %5650 = vmatprep.mubr.bf16.mxu0 0
    %5651 = vmatmul.mubr.bf16.gmra.mrb[0].mxu0 %v3620
    %v5652 = vpop.f32.mrb[0].mxu0
    %v5653 = vadd.f32 %v5364, %v5652
    %v5654 = vpop.f32.mrb[0].mxu0
    %v5655 = vpop.f32.mrb[0].mxu0
    %v5656 = vadd.f32 %v5367, %v5655
    %v5657 = vpop.f32.mrb[0].mxu0
    %5658 = vmatprep.mubr.bf16.mxu0 0
    %5659 = vmatmul.mubr.bf16.gmra.mrb[0].mxu0 %v3629
    %v5660 = vpop.f32.mrb[0].mxu0
    %v5661 = vadd.f32 %v5372, %v5660
    %v5662 = vpop.f32.mrb[0].mxu0
    %v5663 = vpop.f32.mrb[0].mxu0
    %v5664 = vadd.f32 %v5375, %v5663
    %v5665 = vpop.f32.mrb[0].mxu0
    %5666 = vmatprep.mubr.bf16.mxu0 0
    %5667 = vmatmul.mubr.bf16.gmra.mrb[0].mxu0 %v3638
    %v5668 = vpop.f32.mrb[0].mxu0
    %v5669 = vadd.f32 %v5380, %v5668
    %v5670 = vpop.f32.mrb[0].mxu0
    %v5671 = vpop.f32.mrb[0].mxu0
    %v5672 = vadd.f32 %v5383, %v5671
    %v5673 = vpop.f32.mrb[0].mxu0
    %5674 = vmatprep.mubr.bf16.mxu0 0
    %5675 = vmatmul.mubr.bf16.gmra.mrb[0].mxu0 %v3647
    %v5676 = vpop.f32.mrb[0].mxu0
    %v5677 = vadd.f32 %v5388, %v5676
    %v5678 = vpop.f32.mrb[0].mxu0
    %v5679 = vpop.f32.mrb[0].mxu0
    %v5680 = vadd.f32 %v5391, %v5679
    %v5681 = vpop.f32.mrb[0].mxu0
    %5682 = vmatprep.mubr.bf16.mxu0 0
    %5683 = vmatmul.mubr.bf16.gmra.mrb[0].mxu0 %v3656
    %v5684 = vpop.f32.mrb[0].mxu0
    %v5685 = vadd.f32 %v5396, %v5684
    %v5686 = vpop.f32.mrb[0].mxu0
    %v5687 = vpop.f32.mrb[0].mxu0
    %v5688 = vadd.f32 %v5399, %v5687
    %v5689 = vpop.f32.mrb[0].mxu0
    %5690 = vmatprep.mubr.bf16.mxu0 0
    %5691 = vmatmul.mubr.bf16.gmra.mrb[0].mxu0 %v3665
    %v5692 = vpop.f32.mrb[0].mxu0
    %v5693 = vadd.f32 %v5404, %v5692
    %v5694 = vpop.f32.mrb[0].mxu0
    %v5695 = vpop.f32.mrb[0].mxu0
    %v5696 = vadd.f32 %v5407, %v5695
    %v5697 = vpop.f32.mrb[0].mxu0
    %5698 = vmatprep.mubr.bf16.mxu0 0
    %5699 = vmatmul.mubr.bf16.gmra.mrb[0].mxu0 %v3674
    %v5700 = vpop.f32.mrb[0].mxu0
    %v5701 = vadd.f32 %v5412, %v5700
    %v5702 = vpop.f32.mrb[0].mxu0
    %v5703 = vpop.f32.mrb[0].mxu0
    %v5704 = vadd.f32 %v5415, %v5703
    %v5705 = vpop.f32.mrb[0].mxu0
    %5706 = vmatprep.mubr.bf16.mxu0 0
    %5707 = vmatmul.mubr.bf16.gmra.mrb[0].mxu0 %v3683
    %v5708 = vpop.f32.mrb[0].mxu0
    %v5709 = vadd.f32 %v5420, %v5708
    %v5710 = vpop.f32.mrb[0].mxu0
    %v5711 = vpop.f32.mrb[0].mxu0
    %v5712 = vadd.f32 %v5423, %v5711
    %v5713 = vpop.f32.mrb[0].mxu0
    %5714 = vmatprep.mubr.bf16.mxu0 0
    %5715 = vmatmul.mubr.bf16.gmra.mrb[0].mxu0 %v3692
    %v5716 = vpop.f32.mrb[0].mxu0
    %v5717 = vadd.f32 %v5428, %v5716
    %v5718 = vpop.f32.mrb[0].mxu0
    %v5719 = vpop.f32.mrb[0].mxu0
    %v5720 = vadd.f32 %v5431, %v5719
    %v5721 = vpop.f32.mrb[0].mxu0
    %5722 = vmatprep.mubr.bf16.mxu0 0
    %5723 = vmatmul.mubr.bf16.gmra.mrb[0].mxu0 %v3701
    %v5724 = vpop.f32.mrb[0].mxu0
    %v5725 = vadd.f32 %v5436, %v5724
    %v5726 = vpop.f32.mrb[0].mxu0
    %v5727 = vpop.f32.mrb[0].mxu0
    %v5728 = vadd.f32 %v5439, %v5727
    %v5729 = vpop.f32.mrb[0].mxu0
    %5730 = vmatprep.mubr.bf16.mxu0 0
    %5731 = vmatmul.mubr.bf16.gmra.mrb[0].mxu0 %v3710
    %v5732 = vpop.f32.mrb[0].mxu0
    %v5733 = vadd.f32 %v5444, %v5732
    %v5734 = vpop.f32.mrb[0].mxu0
    %v5735 = vpop.f32.mrb[0].mxu0
    %v5736 = vadd.f32 %v5447, %v5735
    %v5737 = vpop.f32.mrb[0].mxu0
    %5738 = vmatprep.mubr.bf16.mxu0 0
    %5739 = vmatmul.mubr.bf16.gmra.mrb[0].mxu0 %v3719
    %v5740 = vpop.f32.mrb[0].mxu0
    %v5741 = vadd.f32 %v5452, %v5740
    %v5742 = vpop.f32.mrb[0].mxu0
    %v5743 = vpop.f32.mrb[0].mxu0
    %v5744 = vadd.f32 %v5455, %v5743
    %v5745 = vpop.f32.mrb[0].mxu0
    %5746 = vmatprep.mubr.bf16.mxu0 0
    %5747 = vmatmul.mubr.bf16.gmra.mrb[0].mxu0 %v3728
    %v5748 = vpop.f32.mrb[0].mxu0
    %v5749 = vadd.f32 %v5460, %v5748
    %v5750 = vpop.f32.mrb[0].mxu0
    %v5751 = vpop.f32.mrb[0].mxu0
    %v5752 = vadd.f32 %v5463, %v5751
    %v5753 = vpop.f32.mrb[0].mxu0
    %5754 = vmatprep.mubr.bf16.mxu0 0
    %5755 = vmatmul.mubr.bf16.gmra.mrb[0].mxu0 %v3737
    %v5756 = vpop.f32.mrb[0].mxu0
    %v5757 = vadd.f32 %v5468, %v5756
    %v5758 = vpop.f32.mrb[0].mxu0
    %v5759 = vpop.f32.mrb[0].mxu0
    %v5760 = vadd.f32 %v5471, %v5759
    %v5761 = vpop.f32.mrb[0].mxu0
    %5762 = vmatprep.mubr.bf16.mxu0 0
    %5763 = vmatmul.mubr.bf16.gmra.mrb[0].mxu0 %v3746
    %v5764 = vpop.f32.mrb[0].mxu0
    %v5765 = vadd.f32 %v5476, %v5764
    %v5766 = vpop.f32.mrb[0].mxu0
    %v5767 = vpop.f32.mrb[0].mxu0
    %v5768 = vadd.f32 %v5479, %v5767
    %v5769 = vpop.f32.mrb[0].mxu0
    %5770 = vmatprep.mubr.bf16.mxu0 0
    %5771 = vmatmul.mubr.bf16.gmra.mrb[0].mxu0 %v3755
    %v5772 = vpop.f32.mrb[0].mxu0
    %v5773 = vadd.f32 %v5484, %v5772
    %v5774 = vpop.f32.mrb[0].mxu0
    %v5775 = vpop.f32.mrb[0].mxu0
    %v5776 = vadd.f32 %v5487, %v5775
    %v5777 = vpop.f32.mrb[0].mxu0
    %5778 = vmatprep.mubr.bf16.mxu0 0
    %5779 = vmatmul.mubr.bf16.gmra.mrb[0].mxu0 %v3764
    %v5780 = vpop.f32.mrb[0].mxu0
    %v5781 = vadd.f32 %v5492, %v5780
    %v5782 = vpop.f32.mrb[0].mxu0
    %v5783 = vpop.f32.mrb[0].mxu0
    %v5784 = vadd.f32 %v5495, %v5783
    %v5785 = vpop.f32.mrb[0].mxu0
    %5786 = vmatprep.mubr.bf16.mxu0 0
    %5787 = vmatmul.mubr.bf16.gmra.mrb[0].mxu0 %v3773
    %v5788 = vpop.f32.mrb[0].mxu0
    %v5789 = vadd.f32 %v5500, %v5788
    %v5790 = vpop.f32.mrb[0].mxu0
    %v5791 = vpop.f32.mrb[0].mxu0
    %v5792 = vadd.f32 %v5503, %v5791
    %v5793 = vpop.f32.mrb[0].mxu0
    %5794 = vdwg.mxu0
    %v5795 = vadd.f32 %v5541, %v5544
    %v5796 = vadd.f32 %v5795, %v5549
    %v5797 = vadd.f32 %v5796, %v5552
    %v5798 = vadd.f32 %v5797, %v5557
    %v5799 = vadd.f32 %v5798, %v5560
    %v5800 = vadd.f32 %v5799, %v5565
    %v5801 = vadd.f32 %v5800, %v5568
    %v5802 = vadd.f32 %v5801, %v5573
    %v5803 = vadd.f32 %v5802, %v5576
    %v5804 = vadd.f32 %v5803, %v5581
    %v5805 = vadd.f32 %v5804, %v5584
    %v5806 = vadd.f32 %v5805, %v5589
    %v5807 = vadd.f32 %v5806, %v5592
    %v5808 = vadd.f32 %v5807, %v5597
    %v5809 = vadd.f32 %v5808, %v5600
    %v5810 = vadd.f32 %v5809, %v5605
    %v5811 = vadd.f32 %v5810, %v5608
    %v5812 = vadd.f32 %v5811, %v5613
    %v5813 = vadd.f32 %v5812, %v5616
    %v5814 = vadd.f32 %v5813, %v5621
    %v5815 = vadd.f32 %v5814, %v5624
    %v5816 = vadd.f32 %v5815, %v5629
    %v5817 = vadd.f32 %v5816, %v5632
    %v5818 = vadd.f32 %v5817, %v5637
    %v5819 = vadd.f32 %v5818, %v5640
    %v5820 = vadd.f32 %v5819, %v5645
    %v5821 = vadd.f32 %v5820, %v5648
    %v5822 = vadd.f32 %v5821, %v5653
    %v5823 = vadd.f32 %v5822, %v5656
    %v5824 = vadd.f32 %v5823, %v5661
    %v5825 = vadd.f32 %v5824, %v5664
    %v5826 = vadd.f32 %v5825, %v5669
    %v5827 = vadd.f32 %v5826, %v5672
    %v5828 = vadd.f32 %v5827, %v5677
    %v5829 = vadd.f32 %v5828, %v5680
    %v5830 = vadd.f32 %v5829, %v5685
    %v5831 = vadd.f32 %v5830, %v5688
    %v5832 = vadd.f32 %v5831, %v5693
    %v5833 = vadd.f32 %v5832, %v5696
    %v5834 = vadd.f32 %v5833, %v5701
    %v5835 = vadd.f32 %v5834, %v5704
    %v5836 = vadd.f32 %v5835, %v5709
    %v5837 = vadd.f32 %v5836, %v5712
    %v5838 = vadd.f32 %v5837, %v5717
    %v5839 = vadd.f32 %v5838, %v5720
    %v5840 = vadd.f32 %v5839, %v5725
    %v5841 = vadd.f32 %v5840, %v5728
    %v5842 = vadd.f32 %v5841, %v5733
    %v5843 = vadd.f32 %v5842, %v5736
    %v5844 = vadd.f32 %v5843, %v5741
    %v5845 = vadd.f32 %v5844, %v5744
    %v5846 = vadd.f32 %v5845, %v5749
    %v5847 = vadd.f32 %v5846, %v5752
    %v5848 = vadd.f32 %v5847, %v5757
    %v5849 = vadd.f32 %v5848, %v5760
    %v5850 = vadd.f32 %v5849, %v5765
    %v5851 = vadd.f32 %v5850, %v5768
    %v5852 = vadd.f32 %v5851, %v5773
    %v5853 = vadd.f32 %v5852, %v5776
    %v5854 = vadd.f32 %v5853, %v5781
    %v5855 = vadd.f32 %v5854, %v5784
    %v5856 = vadd.f32 %v5855, %v5789
    %v5857 = vadd.f32 %v5856, %v5792
    %v5858 = vrot.slane %v5857, 4
    %v5859 = vadd.f32 %v5857, %v5858
    %v5860 = vrot.slane %v5859, 2
    %v5861 = vadd.f32 %v5859, %v5860
    %v5862 = vrot.slane %v5861, 1
    %v5863 = vadd.f32 %v5861, %v5862
    %v5864 = vrcp.pop 512.0
    %v5865 = vmul.f32 %v5863, %v5864
    %v5866 = vmul.f32 %v5541, %v5541
    %v5867 = vmul.f32 %v5544, %v5544
    %v5868 = vmul.f32 %v5549, %v5549
    %v5869 = vmul.f32 %v5552, %v5552
    %v5870 = vmul.f32 %v5557, %v5557
    %v5871 = vmul.f32 %v5560, %v5560
    %v5872 = vmul.f32 %v5565, %v5565
    %v5873 = vmul.f32 %v5568, %v5568
    %v5874 = vmul.f32 %v5573, %v5573
    %v5875 = vmul.f32 %v5576, %v5576
    %v5876 = vmul.f32 %v5581, %v5581
    %v5877 = vmul.f32 %v5584, %v5584
    %v5878 = vmul.f32 %v5589, %v5589
    %v5879 = vmul.f32 %v5592, %v5592
    %v5880 = vmul.f32 %v5597, %v5597
    %v5881 = vmul.f32 %v5600, %v5600
    %v5882 = vmul.f32 %v5605, %v5605
    %v5883 = vmul.f32 %v5608, %v5608
    %v5884 = vmul.f32 %v5613, %v5613
    %v5885 = vmul.f32 %v5616, %v5616
    %v5886 = vmul.f32 %v5621, %v5621
    %v5887 = vmul.f32 %v5624, %v5624
    %v5888 = vmul.f32 %v5629, %v5629
    %v5889 = vmul.f32 %v5632, %v5632
    %v5890 = vmul.f32 %v5637, %v5637
    %v5891 = vmul.f32 %v5640, %v5640
    %v5892 = vmul.f32 %v5645, %v5645
    %v5893 = vmul.f32 %v5648, %v5648
    %v5894 = vmul.f32 %v5653, %v5653
    %v5895 = vmul.f32 %v5656, %v5656
    %v5896 = vmul.f32 %v5661, %v5661
    %v5897 = vmul.f32 %v5664, %v5664
    %v5898 = vmul.f32 %v5669, %v5669
    %v5899 = vmul.f32 %v5672, %v5672
    %v5900 = vmul.f32 %v5677, %v5677
    %v5901 = vmul.f32 %v5680, %v5680
    %v5902 = vmul.f32 %v5685, %v5685
    %v5903 = vmul.f32 %v5688, %v5688
    %v5904 = vmul.f32 %v5693, %v5693
    %v5905 = vmul.f32 %v5696, %v5696
    %v5906 = vmul.f32 %v5701, %v5701
    %v5907 = vmul.f32 %v5704, %v5704
    %v5908 = vmul.f32 %v5709, %v5709
    %v5909 = vmul.f32 %v5712, %v5712
    %v5910 = vmul.f32 %v5717, %v5717
    %v5911 = vmul.f32 %v5720, %v5720
    %v5912 = vmul.f32 %v5725, %v5725
    %v5913 = vmul.f32 %v5728, %v5728
    %v5914 = vmul.f32 %v5733, %v5733
    %v5915 = vmul.f32 %v5736, %v5736
    %v5916 = vmul.f32 %v5741, %v5741
    %v5917 = vmul.f32 %v5744, %v5744
    %v5918 = vmul.f32 %v5749, %v5749
    %v5919 = vmul.f32 %v5752, %v5752
    %v5920 = vmul.f32 %v5757, %v5757
    %v5921 = vmul.f32 %v5760, %v5760
    %v5922 = vmul.f32 %v5765, %v5765
    %v5923 = vmul.f32 %v5768, %v5768
    %v5924 = vmul.f32 %v5773, %v5773
    %v5925 = vmul.f32 %v5776, %v5776
    %v5926 = vmul.f32 %v5781, %v5781
    %v5927 = vmul.f32 %v5784, %v5784
    %v5928 = vmul.f32 %v5789, %v5789
    %v5929 = vmul.f32 %v5792, %v5792
    %v5930 = vadd.f32 %v5866, %v5867
    %v5931 = vadd.f32 %v5930, %v5868
    %v5932 = vadd.f32 %v5931, %v5869
    %v5933 = vadd.f32 %v5932, %v5870
    %v5934 = vadd.f32 %v5933, %v5871
    %v5935 = vadd.f32 %v5934, %v5872
    %v5936 = vadd.f32 %v5935, %v5873
    %v5937 = vadd.f32 %v5936, %v5874
    %v5938 = vadd.f32 %v5937, %v5875
    %v5939 = vadd.f32 %v5938, %v5876
    %v5940 = vadd.f32 %v5939, %v5877
    %v5941 = vadd.f32 %v5940, %v5878
    %v5942 = vadd.f32 %v5941, %v5879
    %v5943 = vadd.f32 %v5942, %v5880
    %v5944 = vadd.f32 %v5943, %v5881
    %v5945 = vadd.f32 %v5944, %v5882
    %v5946 = vadd.f32 %v5945, %v5883
    %v5947 = vadd.f32 %v5946, %v5884
    %v5948 = vadd.f32 %v5947, %v5885
    %v5949 = vadd.f32 %v5948, %v5886
    %v5950 = vadd.f32 %v5949, %v5887
    %v5951 = vadd.f32 %v5950, %v5888
    %v5952 = vadd.f32 %v5951, %v5889
    %v5953 = vadd.f32 %v5952, %v5890
    %v5954 = vadd.f32 %v5953, %v5891
    %v5955 = vadd.f32 %v5954, %v5892
    %v5956 = vadd.f32 %v5955, %v5893
    %v5957 = vadd.f32 %v5956, %v5894
    %v5958 = vadd.f32 %v5957, %v5895
    %v5959 = vadd.f32 %v5958, %v5896
    %v5960 = vadd.f32 %v5959, %v5897
    %v5961 = vadd.f32 %v5960, %v5898
    %v5962 = vadd.f32 %v5961, %v5899
    %v5963 = vadd.f32 %v5962, %v5900
    %v5964 = vadd.f32 %v5963, %v5901
    %v5965 = vadd.f32 %v5964, %v5902
    %v5966 = vadd.f32 %v5965, %v5903
    %v5967 = vadd.f32 %v5966, %v5904
    %v5968 = vadd.f32 %v5967, %v5905
    %v5969 = vadd.f32 %v5968, %v5906
    %v5970 = vadd.f32 %v5969, %v5907
    %v5971 = vadd.f32 %v5970, %v5908
    %v5972 = vadd.f32 %v5971, %v5909
    %v5973 = vadd.f32 %v5972, %v5910
    %v5974 = vadd.f32 %v5973, %v5911
    %v5975 = vadd.f32 %v5974, %v5912
    %v5976 = vadd.f32 %v5975, %v5913
    %v5977 = vadd.f32 %v5976, %v5914
    %v5978 = vadd.f32 %v5977, %v5915
    %v5979 = vadd.f32 %v5978, %v5916
    %v5980 = vadd.f32 %v5979, %v5917
    %v5981 = vadd.f32 %v5980, %v5918
    %v5982 = vadd.f32 %v5981, %v5919
    %v5983 = vadd.f32 %v5982, %v5920
    %v5984 = vadd.f32 %v5983, %v5921
    %v5985 = vadd.f32 %v5984, %v5922
    %v5986 = vadd.f32 %v5985, %v5923
    %v5987 = vadd.f32 %v5986, %v5924
    %v5988 = vadd.f32 %v5987, %v5925
    %v5989 = vadd.f32 %v5988, %v5926
    %v5990 = vadd.f32 %v5989, %v5927
    %v5991 = vadd.f32 %v5990, %v5928
    %v5992 = vadd.f32 %v5991, %v5929
    %v5993 = vrot.slane %v5992, 4
    %v5994 = vadd.f32 %v5992, %v5993
    %v5995 = vrot.slane %v5994, 2
    %v5996 = vadd.f32 %v5994, %v5995
    %v5997 = vrot.slane %v5996, 1
    %v5998 = vadd.f32 %v5996, %v5997
    %v5999 = vmul.f32 %v5998, %v5864
    %v6000 = vmul.f32 %v5865, %v5865
    %v6001 = vsub.f32 %v5999, %v6000
    %v6002 = vadd.f32 %v6001, 1e-05
    %v6003 = vrsqrt.pop %v6002
    %v6004 = vld [vmem:[%s2] sm:$0x1]
    %v6005 = vmul.f32 %v6003, %v6004
    %v6006 = vlaneseq
    %v6007 = vshrl.u32 %v6006, 7
    %v6008 = vsub.s32 0, %v6007
    %v6009 = vrot.slane %v6005, %v6008
    %v6010 = vmul.f32 %v5541, %v6009
    %v6011 = vmul.f32 %v5544, %v6009
    %v6012 = vmul.f32 %v5549, %v6009
    %v6013 = vmul.f32 %v5552, %v6009
    %v6014 = vmul.f32 %v5557, %v6009
    %v6015 = vmul.f32 %v5560, %v6009
    %v6016 = vmul.f32 %v5565, %v6009
    %v6017 = vmul.f32 %v5568, %v6009
    %v6018 = vmul.f32 %v5573, %v6009
    %v6019 = vmul.f32 %v5576, %v6009
    %v6020 = vmul.f32 %v5581, %v6009
    %v6021 = vmul.f32 %v5584, %v6009
    %v6022 = vmul.f32 %v5589, %v6009
    %v6023 = vmul.f32 %v5592, %v6009
    %v6024 = vmul.f32 %v5597, %v6009
    %v6025 = vmul.f32 %v5600, %v6009
    %v6026 = vmul.f32 %v5605, %v6009
    %v6027 = vmul.f32 %v5608, %v6009
    %v6028 = vmul.f32 %v5613, %v6009
    %v6029 = vmul.f32 %v5616, %v6009
    %v6030 = vmul.f32 %v5621, %v6009
    %v6031 = vmul.f32 %v5624, %v6009
    %v6032 = vmul.f32 %v5629, %v6009
    %v6033 = vmul.f32 %v5632, %v6009
    %v6034 = vmul.f32 %v5637, %v6009
    %v6035 = vmul.f32 %v5640, %v6009
    %v6036 = vmul.f32 %v5645, %v6009
    %v6037 = vmul.f32 %v5648, %v6009
    %v6038 = vmul.f32 %v5653, %v6009
    %v6039 = vmul.f32 %v5656, %v6009
    %v6040 = vmul.f32 %v5661, %v6009
    %v6041 = vmul.f32 %v5664, %v6009
    %v6042 = vmul.f32 %v5669, %v6009
    %v6043 = vmul.f32 %v5672, %v6009
    %v6044 = vmul.f32 %v5677, %v6009
    %v6045 = vmul.f32 %v5680, %v6009
    %v6046 = vmul.f32 %v5685, %v6009
    %v6047 = vmul.f32 %v5688, %v6009
    %v6048 = vmul.f32 %v5693, %v6009
    %v6049 = vmul.f32 %v5696, %v6009
    %v6050 = vmul.f32 %v5701, %v6009
    %v6051 = vmul.f32 %v5704, %v6009
    %v6052 = vmul.f32 %v5709, %v6009
    %v6053 = vmul.f32 %v5712, %v6009
    %v6054 = vmul.f32 %v5717, %v6009
    %v6055 = vmul.f32 %v5720, %v6009
    %v6056 = vmul.f32 %v5725, %v6009
    %v6057 = vmul.f32 %v5728, %v6009
    %v6058 = vmul.f32 %v5733, %v6009
    %v6059 = vmul.f32 %v5736, %v6009
    %v6060 = vmul.f32 %v5741, %v6009
    %v6061 = vmul.f32 %v5744, %v6009
    %v6062 = vmul.f32 %v5749, %v6009
    %v6063 = vmul.f32 %v5752, %v6009
    %v6064 = vmul.f32 %v5757, %v6009
    %v6065 = vmul.f32 %v5760, %v6009
    %v6066 = vmul.f32 %v5765, %v6009
    %v6067 = vmul.f32 %v5768, %v6009
    %v6068 = vmul.f32 %v5773, %v6009
    %v6069 = vmul.f32 %v5776, %v6009
    %v6070 = vmul.f32 %v5781, %v6009
    %v6071 = vmul.f32 %v5784, %v6009
    %v6072 = vmul.f32 %v5789, %v6009
    %v6073 = vmul.f32 %v5792, %v6009
    %v6074 = vld [vmem:[%s3] sm:$0x1]
    %v6075 = vmul.f32 %v5865, %v6005
    %v6076 = vsub.f32 %v6074, %v6075
    %v6078 = vlaneseq
    %v6079 = vshrl.u32 %v6078, 7
    %v6080 = vsub.s32 0, %v6079
    %v6081 = vrot.slane %v6076, %v6080
    %v6083 = vadd.f32 %v6010, %v6081
    %v6084 = vadd.f32 %v6011, %v6081
    %v6085 = vadd.f32 %v6012, %v6081
    %v6086 = vadd.f32 %v6013, %v6081
    %v6087 = vadd.f32 %v6014, %v6081
    %v6088 = vadd.f32 %v6015, %v6081
    %v6089 = vadd.f32 %v6016, %v6081
    %v6090 = vadd.f32 %v6017, %v6081
    %v6091 = vadd.f32 %v6018, %v6081
    %v6092 = vadd.f32 %v6019, %v6081
    %v6093 = vadd.f32 %v6020, %v6081
    %v6094 = vadd.f32 %v6021, %v6081
    %v6095 = vadd.f32 %v6022, %v6081
    %v6096 = vadd.f32 %v6023, %v6081
    %v6097 = vadd.f32 %v6024, %v6081
    %v6098 = vadd.f32 %v6025, %v6081
    %v6099 = vadd.f32 %v6026, %v6081
    %v6100 = vadd.f32 %v6027, %v6081
    %v6101 = vadd.f32 %v6028, %v6081
    %v6102 = vadd.f32 %v6029, %v6081
    %v6103 = vadd.f32 %v6030, %v6081
    %v6104 = vadd.f32 %v6031, %v6081
    %v6105 = vadd.f32 %v6032, %v6081
    %v6106 = vadd.f32 %v6033, %v6081
    %v6107 = vadd.f32 %v6034, %v6081
    %v6108 = vadd.f32 %v6035, %v6081
    %v6109 = vadd.f32 %v6036, %v6081
    %v6110 = vadd.f32 %v6037, %v6081
    %v6111 = vadd.f32 %v6038, %v6081
    %v6112 = vadd.f32 %v6039, %v6081
    %v6113 = vadd.f32 %v6040, %v6081
    %v6114 = vadd.f32 %v6041, %v6081
    %v6115 = vadd.f32 %v6042, %v6081
    %v6116 = vadd.f32 %v6043, %v6081
    %v6117 = vadd.f32 %v6044, %v6081
    %v6118 = vadd.f32 %v6045, %v6081
    %v6119 = vadd.f32 %v6046, %v6081
    %v6120 = vadd.f32 %v6047, %v6081
    %v6121 = vadd.f32 %v6048, %v6081
    %v6122 = vadd.f32 %v6049, %v6081
    %v6123 = vadd.f32 %v6050, %v6081
    %v6124 = vadd.f32 %v6051, %v6081
    %v6125 = vadd.f32 %v6052, %v6081
    %v6126 = vadd.f32 %v6053, %v6081
    %v6127 = vadd.f32 %v6054, %v6081
    %v6128 = vadd.f32 %v6055, %v6081
    %v6129 = vadd.f32 %v6056, %v6081
    %v6130 = vadd.f32 %v6057, %v6081
    %v6131 = vadd.f32 %v6058, %v6081
    %v6132 = vadd.f32 %v6059, %v6081
    %v6133 = vadd.f32 %v6060, %v6081
    %v6134 = vadd.f32 %v6061, %v6081
    %v6135 = vadd.f32 %v6062, %v6081
    %v6136 = vadd.f32 %v6063, %v6081
    %v6137 = vadd.f32 %v6064, %v6081
    %v6138 = vadd.f32 %v6065, %v6081
    %v6139 = vadd.f32 %v6066, %v6081
    %v6140 = vadd.f32 %v6067, %v6081
    %v6141 = vadd.f32 %v6068, %v6081
    %v6142 = vadd.f32 %v6069, %v6081
    %v6143 = vadd.f32 %v6070, %v6081
    %v6144 = vadd.f32 %v6071, %v6081
    %v6145 = vadd.f32 %v6072, %v6081
    %v6146 = vadd.f32 %v6073, %v6081
    %v6147 = vmax.f32 %v6083, 0.0
    %v6148 = vmax.f32 %v6084, 0.0
    %v6149 = vmax.f32 %v6085, 0.0
    %v6150 = vmax.f32 %v6086, 0.0
    %v6151 = vmax.f32 %v6087, 0.0
    %v6152 = vmax.f32 %v6088, 0.0
    %v6153 = vmax.f32 %v6089, 0.0
    %v6154 = vmax.f32 %v6090, 0.0
    %v6155 = vmax.f32 %v6091, 0.0
    %v6156 = vmax.f32 %v6092, 0.0
    %v6157 = vmax.f32 %v6093, 0.0
    %v6158 = vmax.f32 %v6094, 0.0
    %v6159 = vmax.f32 %v6095, 0.0
    %v6160 = vmax.f32 %v6096, 0.0
    %v6161 = vmax.f32 %v6097, 0.0
    %v6162 = vmax.f32 %v6098, 0.0
    %v6163 = vmax.f32 %v6099, 0.0
    %v6164 = vmax.f32 %v6100, 0.0
    %v6165 = vmax.f32 %v6101, 0.0
    %v6166 = vmax.f32 %v6102, 0.0
    %v6167 = vmax.f32 %v6103, 0.0
    %v6168 = vmax.f32 %v6104, 0.0
    %v6169 = vmax.f32 %v6105, 0.0
    %v6170 = vmax.f32 %v6106, 0.0
    %v6171 = vmax.f32 %v6107, 0.0
    %v6172 = vmax.f32 %v6108, 0.0
    %v6173 = vmax.f32 %v6109, 0.0
    %v6174 = vmax.f32 %v6110, 0.0
    %v6175 = vmax.f32 %v6111, 0.0
    %v6176 = vmax.f32 %v6112, 0.0
    %v6177 = vmax.f32 %v6113, 0.0
    %v6178 = vmax.f32 %v6114, 0.0
    %v6179 = vmax.f32 %v6115, 0.0
    %v6180 = vmax.f32 %v6116, 0.0
    %v6181 = vmax.f32 %v6117, 0.0
    %v6182 = vmax.f32 %v6118, 0.0
    %v6183 = vmax.f32 %v6119, 0.0
    %v6184 = vmax.f32 %v6120, 0.0
    %v6185 = vmax.f32 %v6121, 0.0
    %v6186 = vmax.f32 %v6122, 0.0
    %v6187 = vmax.f32 %v6123, 0.0
    %v6188 = vmax.f32 %v6124, 0.0
    %v6189 = vmax.f32 %v6125, 0.0
    %v6190 = vmax.f32 %v6126, 0.0
    %v6191 = vmax.f32 %v6127, 0.0
    %v6192 = vmax.f32 %v6128, 0.0
    %v6193 = vmax.f32 %v6129, 0.0
    %v6194 = vmax.f32 %v6130, 0.0
    %v6195 = vmax.f32 %v6131, 0.0
    %v6196 = vmax.f32 %v6132, 0.0
    %v6197 = vmax.f32 %v6133, 0.0
    %v6198 = vmax.f32 %v6134, 0.0
    %v6199 = vmax.f32 %v6135, 0.0
    %v6200 = vmax.f32 %v6136, 0.0
    %v6201 = vmax.f32 %v6137, 0.0
    %v6202 = vmax.f32 %v6138, 0.0
    %v6203 = vmax.f32 %v6139, 0.0
    %v6204 = vmax.f32 %v6140, 0.0
    %v6205 = vmax.f32 %v6141, 0.0
    %v6206 = vmax.f32 %v6142, 0.0
    %v6207 = vmax.f32 %v6143, 0.0
    %v6208 = vmax.f32 %v6144, 0.0
    %v6209 = vmax.f32 %v6145, 0.0
    %v6210 = vmax.f32 %v6146, 0.0
    %v6211 = vpack.c.bf16 %v6148, %v6147
    %v6212 = vpack.c.bf16 %v6150, %v6149
    %v6213 = vpack.c.bf16 %v6152, %v6151
    %v6214 = vpack.c.bf16 %v6154, %v6153
    %v6215 = vpack.c.bf16 %v6156, %v6155
    %v6216 = vpack.c.bf16 %v6158, %v6157
    %v6217 = vpack.c.bf16 %v6160, %v6159
    %v6218 = vpack.c.bf16 %v6162, %v6161
    %v6219 = vpack.c.bf16 %v6164, %v6163
    %v6220 = vpack.c.bf16 %v6166, %v6165
    %v6221 = vpack.c.bf16 %v6168, %v6167
    %v6222 = vpack.c.bf16 %v6170, %v6169
    %v6223 = vpack.c.bf16 %v6172, %v6171
    %v6224 = vpack.c.bf16 %v6174, %v6173
    %v6225 = vpack.c.bf16 %v6176, %v6175
    %v6226 = vpack.c.bf16 %v6178, %v6177
    %v6227 = vpack.c.bf16 %v6180, %v6179
    %v6228 = vpack.c.bf16 %v6182, %v6181
    %v6229 = vpack.c.bf16 %v6184, %v6183
    %v6230 = vpack.c.bf16 %v6186, %v6185
    %v6231 = vpack.c.bf16 %v6188, %v6187
    %v6232 = vpack.c.bf16 %v6190, %v6189
    %v6233 = vpack.c.bf16 %v6192, %v6191
    %v6234 = vpack.c.bf16 %v6194, %v6193
    %v6235 = vpack.c.bf16 %v6196, %v6195
    %v6236 = vpack.c.bf16 %v6198, %v6197
    %v6237 = vpack.c.bf16 %v6200, %v6199
    %v6238 = vpack.c.bf16 %v6202, %v6201
    %v6239 = vpack.c.bf16 %v6204, %v6203
    %v6240 = vpack.c.bf16 %v6206, %v6205
    %v6241 = vpack.c.bf16 %v6208, %v6207
    %v6242 = vpack.c.bf16 %v6210, %v6209
    %v6275 = vunpack.c.l.b16 %v6211
    %v6276 = vunpack.c.h.b16 %v6211
    %v6277 = vunpack.c.l.b16 %v6212
    %v6278 = vunpack.c.h.b16 %v6212
    %v6279 = vunpack.c.l.b16 %v6213
    %v6280 = vunpack.c.h.b16 %v6213
    %v6281 = vunpack.c.l.b16 %v6214
    %v6282 = vunpack.c.h.b16 %v6214
    %v6283 = vunpack.c.l.b16 %v6215
    %v6284 = vunpack.c.h.b16 %v6215
    %v6285 = vunpack.c.l.b16 %v6216
    %v6286 = vunpack.c.h.b16 %v6216
    %v6287 = vunpack.c.l.b16 %v6217
    %v6288 = vunpack.c.h.b16 %v6217
    %v6289 = vunpack.c.l.b16 %v6218
    %v6290 = vunpack.c.h.b16 %v6218
    %v6291 = vunpack.c.l.b16 %v6219
    %v6292 = vunpack.c.h.b16 %v6219
    %v6293 = vunpack.c.l.b16 %v6220
    %v6294 = vunpack.c.h.b16 %v6220
    %v6295 = vunpack.c.l.b16 %v6221
    %v6296 = vunpack.c.h.b16 %v6221
    %v6297 = vunpack.c.l.b16 %v6222
    %v6298 = vunpack.c.h.b16 %v6222
    %v6299 = vunpack.c.l.b16 %v6223
    %v6300 = vunpack.c.h.b16 %v6223
    %v6301 = vunpack.c.l.b16 %v6224
    %v6302 = vunpack.c.h.b16 %v6224
    %v6303 = vunpack.c.l.b16 %v6225
    %v6304 = vunpack.c.h.b16 %v6225
    %v6305 = vunpack.c.l.b16 %v6226
    %v6306 = vunpack.c.h.b16 %v6226
    %v6307 = vunpack.c.l.b16 %v6227
    %v6308 = vunpack.c.h.b16 %v6227
    %v6309 = vunpack.c.l.b16 %v6228
    %v6310 = vunpack.c.h.b16 %v6228
    %v6311 = vunpack.c.l.b16 %v6229
    %v6312 = vunpack.c.h.b16 %v6229
    %v6313 = vunpack.c.l.b16 %v6230
    %v6314 = vunpack.c.h.b16 %v6230
    %v6315 = vunpack.c.l.b16 %v6231
    %v6316 = vunpack.c.h.b16 %v6231
    %v6317 = vunpack.c.l.b16 %v6232
    %v6318 = vunpack.c.h.b16 %v6232
    %v6319 = vunpack.c.l.b16 %v6233
    %v6320 = vunpack.c.h.b16 %v6233
    %v6321 = vunpack.c.l.b16 %v6234
    %v6322 = vunpack.c.h.b16 %v6234
    %v6323 = vunpack.c.l.b16 %v6235
    %v6324 = vunpack.c.h.b16 %v6235
    %v6325 = vunpack.c.l.b16 %v6236
    %v6326 = vunpack.c.h.b16 %v6236
    %v6327 = vunpack.c.l.b16 %v6237
    %v6328 = vunpack.c.h.b16 %v6237
    %v6329 = vunpack.c.l.b16 %v6238
    %v6330 = vunpack.c.h.b16 %v6238
    %v6331 = vunpack.c.l.b16 %v6239
    %v6332 = vunpack.c.h.b16 %v6239
    %v6333 = vunpack.c.l.b16 %v6240
    %v6334 = vunpack.c.h.b16 %v6240
    %v6335 = vunpack.c.l.b16 %v6241
    %v6336 = vunpack.c.h.b16 %v6241
    %v6337 = vunpack.c.l.b16 %v6242
    %v6338 = vunpack.c.h.b16 %v6242
    %v6339 = vpack.c.b16 %v6275, %v6275
    %v6340 = vpack.c.b16 %v6276, %v6276
    %v6341 = vpack.c.b16 %v6277, %v6277
    %v6342 = vpack.c.b16 %v6278, %v6278
    %v6343 = vpack.c.b16 %v6279, %v6279
    %v6344 = vpack.c.b16 %v6280, %v6280
    %v6345 = vpack.c.b16 %v6281, %v6281
    %v6346 = vpack.c.b16 %v6282, %v6282
    %v6347 = vpack.c.b16 %v6283, %v6283
    %v6348 = vpack.c.b16 %v6284, %v6284
    %v6349 = vpack.c.b16 %v6285, %v6285
    %v6350 = vpack.c.b16 %v6286, %v6286
    %v6351 = vpack.c.b16 %v6287, %v6287
    %v6352 = vpack.c.b16 %v6288, %v6288
    %v6353 = vpack.c.b16 %v6289, %v6289
    %v6354 = vpack.c.b16 %v6290, %v6290
    %v6355 = vpack.c.b16 %v6291, %v6291
    %v6356 = vpack.c.b16 %v6292, %v6292
    %v6357 = vpack.c.b16 %v6293, %v6293
    %v6358 = vpack.c.b16 %v6294, %v6294
    %v6359 = vpack.c.b16 %v6295, %v6295
    %v6360 = vpack.c.b16 %v6296, %v6296
    %v6361 = vpack.c.b16 %v6297, %v6297
    %v6362 = vpack.c.b16 %v6298, %v6298
    %v6363 = vpack.c.b16 %v6299, %v6299
    %v6364 = vpack.c.b16 %v6300, %v6300
    %v6365 = vpack.c.b16 %v6301, %v6301
    %v6366 = vpack.c.b16 %v6302, %v6302
    %v6367 = vpack.c.b16 %v6303, %v6303
    %v6368 = vpack.c.b16 %v6304, %v6304
    %v6369 = vpack.c.b16 %v6305, %v6305
    %v6370 = vpack.c.b16 %v6306, %v6306
    %v6371 = vpack.c.b16 %v6307, %v6307
    %v6372 = vpack.c.b16 %v6308, %v6308
    %v6373 = vpack.c.b16 %v6309, %v6309
    %v6374 = vpack.c.b16 %v6310, %v6310
    %v6375 = vpack.c.b16 %v6311, %v6311
    %v6376 = vpack.c.b16 %v6312, %v6312
    %v6377 = vpack.c.b16 %v6313, %v6313
    %v6378 = vpack.c.b16 %v6314, %v6314
    %v6379 = vpack.c.b16 %v6315, %v6315
    %v6380 = vpack.c.b16 %v6316, %v6316
    %v6381 = vpack.c.b16 %v6317, %v6317
    %v6382 = vpack.c.b16 %v6318, %v6318
    %v6383 = vpack.c.b16 %v6319, %v6319
    %v6384 = vpack.c.b16 %v6320, %v6320
    %v6385 = vpack.c.b16 %v6321, %v6321
    %v6386 = vpack.c.b16 %v6322, %v6322
    %v6387 = vpack.c.b16 %v6323, %v6323
    %v6388 = vpack.c.b16 %v6324, %v6324
    %v6389 = vpack.c.b16 %v6325, %v6325
    %v6390 = vpack.c.b16 %v6326, %v6326
    %v6391 = vpack.c.b16 %v6327, %v6327
    %v6392 = vpack.c.b16 %v6328, %v6328
    %v6393 = vpack.c.b16 %v6329, %v6329
    %v6394 = vpack.c.b16 %v6330, %v6330
    %v6395 = vpack.c.b16 %v6331, %v6331
    %v6396 = vpack.c.b16 %v6332, %v6332
    %v6397 = vpack.c.b16 %v6333, %v6333
    %v6398 = vpack.c.b16 %v6334, %v6334
    %v6399 = vpack.c.b16 %v6335, %v6335
    %v6400 = vpack.c.b16 %v6336, %v6336
    %v6401 = vpack.c.b16 %v6337, %v6337
    %v6402 = vpack.c.b16 %v6338, %v6338
    %v6404 = vshrl.u32 %v6339, 16
    %v6406 = vrot.slane %v6404, 7
    %v6407 = vshll.u32 %v6339, 16
    %v6409 = vor.u32 %v6406, %v6407
    %v6410 = vrot.slane %v6406, 4
    %v6412 = vshrl.u32 %v6340, 16
    %v6414 = vrot.slane %v6412, 7
    %v6415 = vshll.u32 %v6340, 16
    %v6417 = vor.u32 %v6414, %v6415
    %v6418 = vsel %vm560, %v6410, %v6417
    %v6419 = vrot.slane %v6414, 4
    %v6421 = vshrl.u32 %v6341, 16
    %v6423 = vrot.slane %v6421, 7
    %v6424 = vshll.u32 %v6341, 16
    %v6426 = vor.u32 %v6423, %v6424
    %v6427 = vrot.slane %v6423, 4
    %v6429 = vshrl.u32 %v6342, 16
    %v6431 = vrot.slane %v6429, 7
    %v6432 = vshll.u32 %v6342, 16
    %v6434 = vor.u32 %v6431, %v6432
    %v6435 = vsel %vm560, %v6427, %v6434
    %v6436 = vrot.slane %v6431, 4
    %v6438 = vshrl.u32 %v6343, 16
    %v6440 = vrot.slane %v6438, 7
    %v6441 = vshll.u32 %v6343, 16
    %v6443 = vor.u32 %v6440, %v6441
    %v6444 = vrot.slane %v6440, 4
    %v6446 = vshrl.u32 %v6344, 16
    %v6448 = vrot.slane %v6446, 7
    %v6449 = vshll.u32 %v6344, 16
    %v6451 = vor.u32 %v6448, %v6449
    %v6452 = vsel %vm560, %v6444, %v6451
    %v6453 = vrot.slane %v6448, 4
    %v6455 = vshrl.u32 %v6345, 16
    %v6457 = vrot.slane %v6455, 7
    %v6458 = vshll.u32 %v6345, 16
    %v6460 = vor.u32 %v6457, %v6458
    %v6461 = vrot.slane %v6457, 4
    %v6463 = vshrl.u32 %v6346, 16
    %v6465 = vrot.slane %v6463, 7
    %v6466 = vshll.u32 %v6346, 16
    %v6468 = vor.u32 %v6465, %v6466
    %v6469 = vsel %vm560, %v6461, %v6468
    %v6470 = vrot.slane %v6465, 4
    %v6472 = vshrl.u32 %v6347, 16
    %v6474 = vrot.slane %v6472, 7
    %v6475 = vshll.u32 %v6347, 16
    %v6477 = vor.u32 %v6474, %v6475
    %v6478 = vrot.slane %v6474, 4
    %v6480 = vshrl.u32 %v6348, 16
    %v6482 = vrot.slane %v6480, 7
    %v6483 = vshll.u32 %v6348, 16
    %v6485 = vor.u32 %v6482, %v6483
    %v6486 = vsel %vm560, %v6478, %v6485
    %v6487 = vrot.slane %v6482, 4
    %v6489 = vshrl.u32 %v6349, 16
    %v6491 = vrot.slane %v6489, 7
    %v6492 = vshll.u32 %v6349, 16
    %v6494 = vor.u32 %v6491, %v6492
    %v6495 = vrot.slane %v6491, 4
    %v6497 = vshrl.u32 %v6350, 16
    %v6499 = vrot.slane %v6497, 7
    %v6500 = vshll.u32 %v6350, 16
    %v6502 = vor.u32 %v6499, %v6500
    %v6503 = vsel %vm560, %v6495, %v6502
    %v6504 = vrot.slane %v6499, 4
    %v6506 = vshrl.u32 %v6351, 16
    %v6508 = vrot.slane %v6506, 7
    %v6509 = vshll.u32 %v6351, 16
    %v6511 = vor.u32 %v6508, %v6509
    %v6512 = vrot.slane %v6508, 4
    %v6514 = vshrl.u32 %v6352, 16
    %v6516 = vrot.slane %v6514, 7
    %v6517 = vshll.u32 %v6352, 16
    %v6519 = vor.u32 %v6516, %v6517
    %v6520 = vsel %vm560, %v6512, %v6519
    %v6521 = vrot.slane %v6516, 4
    %v6523 = vshrl.u32 %v6353, 16
    %v6525 = vrot.slane %v6523, 7
    %v6526 = vshll.u32 %v6353, 16
    %v6528 = vor.u32 %v6525, %v6526
    %v6529 = vrot.slane %v6525, 4
    %v6531 = vshrl.u32 %v6354, 16
    %v6533 = vrot.slane %v6531, 7
    %v6534 = vshll.u32 %v6354, 16
    %v6536 = vor.u32 %v6533, %v6534
    %v6537 = vsel %vm560, %v6529, %v6536
    %v6538 = vrot.slane %v6533, 4
    %v6540 = vshrl.u32 %v6355, 16
    %v6542 = vrot.slane %v6540, 7
    %v6543 = vshll.u32 %v6355, 16
    %v6545 = vor.u32 %v6542, %v6543
    %v6546 = vrot.slane %v6542, 4
    %v6548 = vshrl.u32 %v6356, 16
    %v6550 = vrot.slane %v6548, 7
    %v6551 = vshll.u32 %v6356, 16
    %v6553 = vor.u32 %v6550, %v6551
    %v6554 = vsel %vm560, %v6546, %v6553
    %v6555 = vrot.slane %v6550, 4
    %v6557 = vshrl.u32 %v6357, 16
    %v6559 = vrot.slane %v6557, 7
    %v6560 = vshll.u32 %v6357, 16
    %v6562 = vor.u32 %v6559, %v6560
    %v6563 = vrot.slane %v6559, 4
    %v6565 = vshrl.u32 %v6358, 16
    %v6567 = vrot.slane %v6565, 7
    %v6568 = vshll.u32 %v6358, 16
    %v6570 = vor.u32 %v6567, %v6568
    %v6571 = vsel %vm560, %v6563, %v6570
    %v6572 = vrot.slane %v6567, 4
    %v6574 = vshrl.u32 %v6359, 16
    %v6576 = vrot.slane %v6574, 7
    %v6577 = vshll.u32 %v6359, 16
    %v6579 = vor.u32 %v6576, %v6577
    %v6580 = vrot.slane %v6576, 4
    %v6582 = vshrl.u32 %v6360, 16
    %v6584 = vrot.slane %v6582, 7
    %v6585 = vshll.u32 %v6360, 16
    %v6587 = vor.u32 %v6584, %v6585
    %v6588 = vsel %vm560, %v6580, %v6587
    %v6589 = vrot.slane %v6584, 4
    %v6591 = vshrl.u32 %v6361, 16
    %v6593 = vrot.slane %v6591, 7
    %v6594 = vshll.u32 %v6361, 16
    %v6596 = vor.u32 %v6593, %v6594
    %v6597 = vrot.slane %v6593, 4
    %v6599 = vshrl.u32 %v6362, 16
    %v6601 = vrot.slane %v6599, 7
    %v6602 = vshll.u32 %v6362, 16
    %v6604 = vor.u32 %v6601, %v6602
    %v6605 = vsel %vm560, %v6597, %v6604
    %v6606 = vrot.slane %v6601, 4
    %v6608 = vshrl.u32 %v6363, 16
    %v6610 = vrot.slane %v6608, 7
    %v6611 = vshll.u32 %v6363, 16
    %v6613 = vor.u32 %v6610, %v6611
    %v6614 = vrot.slane %v6610, 4
    %v6616 = vshrl.u32 %v6364, 16
    %v6618 = vrot.slane %v6616, 7
    %v6619 = vshll.u32 %v6364, 16
    %v6621 = vor.u32 %v6618, %v6619
    %v6622 = vsel %vm560, %v6614, %v6621
    %v6623 = vrot.slane %v6618, 4
    %v6625 = vshrl.u32 %v6365, 16
    %v6627 = vrot.slane %v6625, 7
    %v6628 = vshll.u32 %v6365, 16
    %v6630 = vor.u32 %v6627, %v6628
    %v6631 = vrot.slane %v6627, 4
    %v6633 = vshrl.u32 %v6366, 16
    %v6635 = vrot.slane %v6633, 7
    %v6636 = vshll.u32 %v6366, 16
    %v6638 = vor.u32 %v6635, %v6636
    %v6639 = vsel %vm560, %v6631, %v6638
    %v6640 = vrot.slane %v6635, 4
    %v6642 = vshrl.u32 %v6367, 16
    %v6644 = vrot.slane %v6642, 7
    %v6645 = vshll.u32 %v6367, 16
    %v6647 = vor.u32 %v6644, %v6645
    %v6648 = vrot.slane %v6644, 4
    %v6650 = vshrl.u32 %v6368, 16
    %v6652 = vrot.slane %v6650, 7
    %v6653 = vshll.u32 %v6368, 16
    %v6655 = vor.u32 %v6652, %v6653
    %v6656 = vsel %vm560, %v6648, %v6655
    %v6657 = vrot.slane %v6652, 4
    %v6659 = vshrl.u32 %v6369, 16
    %v6661 = vrot.slane %v6659, 7
    %v6662 = vshll.u32 %v6369, 16
    %v6664 = vor.u32 %v6661, %v6662
    %v6665 = vrot.slane %v6661, 4
    %v6667 = vshrl.u32 %v6370, 16
    %v6669 = vrot.slane %v6667, 7
    %v6670 = vshll.u32 %v6370, 16
    %v6672 = vor.u32 %v6669, %v6670
    %v6673 = vsel %vm560, %v6665, %v6672
    %v6674 = vrot.slane %v6669, 4
    %v6676 = vshrl.u32 %v6371, 16
    %v6678 = vrot.slane %v6676, 7
    %v6679 = vshll.u32 %v6371, 16
    %v6681 = vor.u32 %v6678, %v6679
    %v6682 = vrot.slane %v6678, 4
    %v6684 = vshrl.u32 %v6372, 16
    %v6686 = vrot.slane %v6684, 7
    %v6687 = vshll.u32 %v6372, 16
    %v6689 = vor.u32 %v6686, %v6687
    %v6690 = vsel %vm560, %v6682, %v6689
    %v6691 = vrot.slane %v6686, 4
    %v6693 = vshrl.u32 %v6373, 16
    %v6695 = vrot.slane %v6693, 7
    %v6696 = vshll.u32 %v6373, 16
    %v6698 = vor.u32 %v6695, %v6696
    %v6699 = vrot.slane %v6695, 4
    %v6701 = vshrl.u32 %v6374, 16
    %v6703 = vrot.slane %v6701, 7
    %v6704 = vshll.u32 %v6374, 16
    %v6706 = vor.u32 %v6703, %v6704
    %v6707 = vsel %vm560, %v6699, %v6706
    %v6708 = vrot.slane %v6703, 4
    %v6710 = vshrl.u32 %v6375, 16
    %v6712 = vrot.slane %v6710, 7
    %v6713 = vshll.u32 %v6375, 16
    %v6715 = vor.u32 %v6712, %v6713
    %v6716 = vrot.slane %v6712, 4
    %v6718 = vshrl.u32 %v6376, 16
    %v6720 = vrot.slane %v6718, 7
    %v6721 = vshll.u32 %v6376, 16
    %v6723 = vor.u32 %v6720, %v6721
    %v6724 = vsel %vm560, %v6716, %v6723
    %v6725 = vrot.slane %v6720, 4
    %v6727 = vshrl.u32 %v6377, 16
    %v6729 = vrot.slane %v6727, 7
    %v6730 = vshll.u32 %v6377, 16
    %v6732 = vor.u32 %v6729, %v6730
    %v6733 = vrot.slane %v6729, 4
    %v6735 = vshrl.u32 %v6378, 16
    %v6737 = vrot.slane %v6735, 7
    %v6738 = vshll.u32 %v6378, 16
    %v6740 = vor.u32 %v6737, %v6738
    %v6741 = vsel %vm560, %v6733, %v6740
    %v6742 = vrot.slane %v6737, 4
    %v6744 = vshrl.u32 %v6379, 16
    %v6746 = vrot.slane %v6744, 7
    %v6747 = vshll.u32 %v6379, 16
    %v6749 = vor.u32 %v6746, %v6747
    %v6750 = vrot.slane %v6746, 4
    %v6752 = vshrl.u32 %v6380, 16
    %v6754 = vrot.slane %v6752, 7
    %v6755 = vshll.u32 %v6380, 16
    %v6757 = vor.u32 %v6754, %v6755
    %v6758 = vsel %vm560, %v6750, %v6757
    %v6759 = vrot.slane %v6754, 4
    %v6761 = vshrl.u32 %v6381, 16
    %v6763 = vrot.slane %v6761, 7
    %v6764 = vshll.u32 %v6381, 16
    %v6766 = vor.u32 %v6763, %v6764
    %v6767 = vrot.slane %v6763, 4
    %v6769 = vshrl.u32 %v6382, 16
    %v6771 = vrot.slane %v6769, 7
    %v6772 = vshll.u32 %v6382, 16
    %v6774 = vor.u32 %v6771, %v6772
    %v6775 = vsel %vm560, %v6767, %v6774
    %v6776 = vrot.slane %v6771, 4
    %v6778 = vshrl.u32 %v6383, 16
    %v6780 = vrot.slane %v6778, 7
    %v6781 = vshll.u32 %v6383, 16
    %v6783 = vor.u32 %v6780, %v6781
    %v6784 = vrot.slane %v6780, 4
    %v6786 = vshrl.u32 %v6384, 16
    %v6788 = vrot.slane %v6786, 7
    %v6789 = vshll.u32 %v6384, 16
    %v6791 = vor.u32 %v6788, %v6789
    %v6792 = vsel %vm560, %v6784, %v6791
    %v6793 = vrot.slane %v6788, 4
    %v6795 = vshrl.u32 %v6385, 16
    %v6797 = vrot.slane %v6795, 7
    %v6798 = vshll.u32 %v6385, 16
    %v6800 = vor.u32 %v6797, %v6798
    %v6801 = vrot.slane %v6797, 4
    %v6803 = vshrl.u32 %v6386, 16
    %v6805 = vrot.slane %v6803, 7
    %v6806 = vshll.u32 %v6386, 16
    %v6808 = vor.u32 %v6805, %v6806
    %v6809 = vsel %vm560, %v6801, %v6808
    %v6810 = vrot.slane %v6805, 4
    %v6812 = vshrl.u32 %v6387, 16
    %v6814 = vrot.slane %v6812, 7
    %v6815 = vshll.u32 %v6387, 16
    %v6817 = vor.u32 %v6814, %v6815
    %v6818 = vrot.slane %v6814, 4
    %v6820 = vshrl.u32 %v6388, 16
    %v6822 = vrot.slane %v6820, 7
    %v6823 = vshll.u32 %v6388, 16
    %v6825 = vor.u32 %v6822, %v6823
    %v6826 = vsel %vm560, %v6818, %v6825
    %v6827 = vrot.slane %v6822, 4
    %v6829 = vshrl.u32 %v6389, 16
    %v6831 = vrot.slane %v6829, 7
    %v6832 = vshll.u32 %v6389, 16
    %v6834 = vor.u32 %v6831, %v6832
    %v6835 = vrot.slane %v6831, 4
    %v6837 = vshrl.u32 %v6390, 16
    %v6839 = vrot.slane %v6837, 7
    %v6840 = vshll.u32 %v6390, 16
    %v6842 = vor.u32 %v6839, %v6840
    %v6843 = vsel %vm560, %v6835, %v6842
    %v6844 = vrot.slane %v6839, 4
    %v6846 = vshrl.u32 %v6391, 16
    %v6848 = vrot.slane %v6846, 7
    %v6849 = vshll.u32 %v6391, 16
    %v6851 = vor.u32 %v6848, %v6849
    %v6852 = vrot.slane %v6848, 4
    %v6854 = vshrl.u32 %v6392, 16
    %v6856 = vrot.slane %v6854, 7
    %v6857 = vshll.u32 %v6392, 16
    %v6859 = vor.u32 %v6856, %v6857
    %v6860 = vsel %vm560, %v6852, %v6859
    %v6861 = vrot.slane %v6856, 4
    %v6863 = vshrl.u32 %v6393, 16
    %v6865 = vrot.slane %v6863, 7
    %v6866 = vshll.u32 %v6393, 16
    %v6868 = vor.u32 %v6865, %v6866
    %v6869 = vrot.slane %v6865, 4
    %v6871 = vshrl.u32 %v6394, 16
    %v6873 = vrot.slane %v6871, 7
    %v6874 = vshll.u32 %v6394, 16
    %v6876 = vor.u32 %v6873, %v6874
    %v6877 = vsel %vm560, %v6869, %v6876
    %v6878 = vrot.slane %v6873, 4
    %v6880 = vshrl.u32 %v6395, 16
    %v6882 = vrot.slane %v6880, 7
    %v6883 = vshll.u32 %v6395, 16
    %v6885 = vor.u32 %v6882, %v6883
    %v6886 = vrot.slane %v6882, 4
    %v6888 = vshrl.u32 %v6396, 16
    %v6890 = vrot.slane %v6888, 7
    %v6891 = vshll.u32 %v6396, 16
    %v6893 = vor.u32 %v6890, %v6891
    %v6894 = vsel %vm560, %v6886, %v6893
    %v6895 = vrot.slane %v6890, 4
    %v6897 = vshrl.u32 %v6397, 16
    %v6899 = vrot.slane %v6897, 7
    %v6900 = vshll.u32 %v6397, 16
    %v6902 = vor.u32 %v6899, %v6900
    %v6903 = vrot.slane %v6899, 4
    %v6905 = vshrl.u32 %v6398, 16
    %v6907 = vrot.slane %v6905, 7
    %v6908 = vshll.u32 %v6398, 16
    %v6910 = vor.u32 %v6907, %v6908
    %v6911 = vsel %vm560, %v6903, %v6910
    %v6912 = vrot.slane %v6907, 4
    %v6914 = vshrl.u32 %v6399, 16
    %v6916 = vrot.slane %v6914, 7
    %v6917 = vshll.u32 %v6399, 16
    %v6919 = vor.u32 %v6916, %v6917
    %v6920 = vrot.slane %v6916, 4
    %v6922 = vshrl.u32 %v6400, 16
    %v6924 = vrot.slane %v6922, 7
    %v6925 = vshll.u32 %v6400, 16
    %v6927 = vor.u32 %v6924, %v6925
    %v6928 = vsel %vm560, %v6920, %v6927
    %v6929 = vrot.slane %v6924, 4
    %v6931 = vshrl.u32 %v6401, 16
    %v6933 = vrot.slane %v6931, 7
    %v6934 = vshll.u32 %v6401, 16
    %v6936 = vor.u32 %v6933, %v6934
    %v6937 = vrot.slane %v6933, 4
    %v6939 = vshrl.u32 %v6402, 16
    %v6941 = vrot.slane %v6939, 7
    %v6942 = vshll.u32 %v6402, 16
    %v6944 = vor.u32 %v6941, %v6942
    %v6945 = vsel %vm560, %v6937, %v6944
    %v6946 = vrot.slane %v6941, 4
    %v7043 = vld [vmem:[%s1201] sm:$0xf]
    %v7044 = vsel %vm1203, %v6409, %v7043
    %7045 = vst [vmem:[%s1201] sm:$0xf] %v7044
    %7046 = vst [vmem:[%s1201 + $0x4] sm:$0xf] %v6418
    %v7047 = vld [vmem:[%s1201 + $0x8] sm:$0x1]
    %v7048 = vsel %vm84, %v6419, %v7047
    %7049 = vst [vmem:[%s1201 + $0x8] sm:$0x1] %v7048
    %v7050 = vld [vmem:[%s1201 + $0xc] sm:$0xf]
    %v7051 = vsel %vm1203, %v6426, %v7050
    %7052 = vst [vmem:[%s1201 + $0xc] sm:$0xf] %v7051
    %7053 = vst [vmem:[%s1201 + $0x10] sm:$0xf] %v6435
    %v7054 = vld [vmem:[%s1201 + $0x14] sm:$0x1]
    %v7055 = vsel %vm84, %v6436, %v7054
    %7056 = vst [vmem:[%s1201 + $0x14] sm:$0x1] %v7055
    %v7057 = vld [vmem:[%s1201 + $0x18] sm:$0xf]
    %v7058 = vsel %vm1203, %v6443, %v7057
    %7059 = vst [vmem:[%s1201 + $0x18] sm:$0xf] %v7058
    %7060 = vst [vmem:[%s1201 + $0x1c] sm:$0xf] %v6452
    %v7061 = vld [vmem:[%s1201 + $0x20] sm:$0x1]
    %v7062 = vsel %vm84, %v6453, %v7061
    %7063 = vst [vmem:[%s1201 + $0x20] sm:$0x1] %v7062
    %v7064 = vld [vmem:[%s1201 + $0x24] sm:$0xf]
    %v7065 = vsel %vm1203, %v6460, %v7064
    %7066 = vst [vmem:[%s1201 + $0x24] sm:$0xf] %v7065
    %7067 = vst [vmem:[%s1201 + $0x28] sm:$0xf] %v6469
    %v7068 = vld [vmem:[%s1201 + $0x2c] sm:$0x1]
    %v7069 = vsel %vm84, %v6470, %v7068
    %7070 = vst [vmem:[%s1201 + $0x2c] sm:$0x1] %v7069
    %v7071 = vld [vmem:[%s1201 + $0x30] sm:$0xf]
    %v7072 = vsel %vm1203, %v6477, %v7071
    %7073 = vst [vmem:[%s1201 + $0x30] sm:$0xf] %v7072
    %7074 = vst [vmem:[%s1201 + $0x34] sm:$0xf] %v6486
    %v7075 = vld [vmem:[%s1201 + $0x38] sm:$0x1]
    %v7076 = vsel %vm84, %v6487, %v7075
    %7077 = vst [vmem:[%s1201 + $0x38] sm:$0x1] %v7076
    %v7078 = vld [vmem:[%s1201 + $0x3c] sm:$0xf]
    %v7079 = vsel %vm1203, %v6494, %v7078
    %7080 = vst [vmem:[%s1201 + $0x3c] sm:$0xf] %v7079
    %7081 = vst [vmem:[%s1201 + $0x40] sm:$0xf] %v6503
    %v7082 = vld [vmem:[%s1201 + $0x44] sm:$0x1]
    %v7083 = vsel %vm84, %v6504, %v7082
    %7084 = vst [vmem:[%s1201 + $0x44] sm:$0x1] %v7083
    %v7085 = vld [vmem:[%s1201 + $0x48] sm:$0xf]
    %v7086 = vsel %vm1203, %v6511, %v7085
    %7087 = vst [vmem:[%s1201 + $0x48] sm:$0xf] %v7086
    %7088 = vst [vmem:[%s1201 + $0x4c] sm:$0xf] %v6520
    %v7089 = vld [vmem:[%s1201 + $0x50] sm:$0x1]
    %v7090 = vsel %vm84, %v6521, %v7089
    %7091 = vst [vmem:[%s1201 + $0x50] sm:$0x1] %v7090
    %v7092 = vld [vmem:[%s1201 + $0x54] sm:$0xf]
    %v7093 = vsel %vm1203, %v6528, %v7092
    %7094 = vst [vmem:[%s1201 + $0x54] sm:$0xf] %v7093
    %7095 = vst [vmem:[%s1201 + $0x58] sm:$0xf] %v6537
    %v7096 = vld [vmem:[%s1201 + $0x5c] sm:$0x1]
    %v7097 = vsel %vm84, %v6538, %v7096
    %7098 = vst [vmem:[%s1201 + $0x5c] sm:$0x1] %v7097
    %v7099 = vld [vmem:[%s1201 + $0x60] sm:$0xf]
    %v7100 = vsel %vm1203, %v6545, %v7099
    %7101 = vst [vmem:[%s1201 + $0x60] sm:$0xf] %v7100
    %7102 = vst [vmem:[%s1201 + $0x64] sm:$0xf] %v6554
    %v7103 = vld [vmem:[%s1201 + $0x68] sm:$0x1]
    %v7104 = vsel %vm84, %v6555, %v7103
    %7105 = vst [vmem:[%s1201 + $0x68] sm:$0x1] %v7104
    %v7106 = vld [vmem:[%s1201 + $0x6c] sm:$0xf]
    %v7107 = vsel %vm1203, %v6562, %v7106
    %7108 = vst [vmem:[%s1201 + $0x6c] sm:$0xf] %v7107
    %7109 = vst [vmem:[%s1201 + $0x70] sm:$0xf] %v6571
    %v7110 = vld [vmem:[%s1201 + $0x74] sm:$0x1]
    %v7111 = vsel %vm84, %v6572, %v7110
    %7112 = vst [vmem:[%s1201 + $0x74] sm:$0x1] %v7111
    %v7113 = vld [vmem:[%s1201 + $0x78] sm:$0xf]
    %v7114 = vsel %vm1203, %v6579, %v7113
    %7115 = vst [vmem:[%s1201 + $0x78] sm:$0xf] %v7114
    %7116 = vst [vmem:[%s1201 + $0x7c] sm:$0xf] %v6588
    %v7117 = vld [vmem:[%s1201 + $0x80] sm:$0x1]
    %v7118 = vsel %vm84, %v6589, %v7117
    %7119 = vst [vmem:[%s1201 + $0x80] sm:$0x1] %v7118
    %v7120 = vld [vmem:[%s1201 + $0x84] sm:$0xf]
    %v7121 = vsel %vm1203, %v6596, %v7120
    %7122 = vst [vmem:[%s1201 + $0x84] sm:$0xf] %v7121
    %7123 = vst [vmem:[%s1201 + $0x88] sm:$0xf] %v6605
    %v7124 = vld [vmem:[%s1201 + $0x8c] sm:$0x1]
    %v7125 = vsel %vm84, %v6606, %v7124
    %7126 = vst [vmem:[%s1201 + $0x8c] sm:$0x1] %v7125
    %v7127 = vld [vmem:[%s1201 + $0x90] sm:$0xf]
    %v7128 = vsel %vm1203, %v6613, %v7127
    %7129 = vst [vmem:[%s1201 + $0x90] sm:$0xf] %v7128
    %7130 = vst [vmem:[%s1201 + $0x94] sm:$0xf] %v6622
    %v7131 = vld [vmem:[%s1201 + $0x98] sm:$0x1]
    %v7132 = vsel %vm84, %v6623, %v7131
    %7133 = vst [vmem:[%s1201 + $0x98] sm:$0x1] %v7132
    %v7134 = vld [vmem:[%s1201 + $0x9c] sm:$0xf]
    %v7135 = vsel %vm1203, %v6630, %v7134
    %7136 = vst [vmem:[%s1201 + $0x9c] sm:$0xf] %v7135
    %7137 = vst [vmem:[%s1201 + $0xa0] sm:$0xf] %v6639
    %v7138 = vld [vmem:[%s1201 + $0xa4] sm:$0x1]
    %v7139 = vsel %vm84, %v6640, %v7138
    %7140 = vst [vmem:[%s1201 + $0xa4] sm:$0x1] %v7139
    %v7141 = vld [vmem:[%s1201 + $0xa8] sm:$0xf]
    %v7142 = vsel %vm1203, %v6647, %v7141
    %7143 = vst [vmem:[%s1201 + $0xa8] sm:$0xf] %v7142
    %7144 = vst [vmem:[%s1201 + $0xac] sm:$0xf] %v6656
    %v7145 = vld [vmem:[%s1201 + $0xb0] sm:$0x1]
    %v7146 = vsel %vm84, %v6657, %v7145
    %7147 = vst [vmem:[%s1201 + $0xb0] sm:$0x1] %v7146
    %v7148 = vld [vmem:[%s1201 + $0xb4] sm:$0xf]
    %v7149 = vsel %vm1203, %v6664, %v7148
    %7150 = vst [vmem:[%s1201 + $0xb4] sm:$0xf] %v7149
    %7151 = vst [vmem:[%s1201 + $0xb8] sm:$0xf] %v6673
    %v7152 = vld [vmem:[%s1201 + $0xbc] sm:$0x1]
    %v7153 = vsel %vm84, %v6674, %v7152
    %7154 = vst [vmem:[%s1201 + $0xbc] sm:$0x1] %v7153
    %v7155 = vld [vmem:[%s1201 + $0xd8] sm:$0xf]
    %v7156 = vsel %vm1203, %v6681, %v7155
    %7157 = vst [vmem:[%s1201 + $0xd8] sm:$0xf] %v7156
    %7158 = vst [vmem:[%s1201 + $0xdc] sm:$0xf] %v6690
    %v7159 = vld [vmem:[%s1201 + $0xe0] sm:$0x1]
    %v7160 = vsel %vm84, %v6691, %v7159
    %7161 = vst [vmem:[%s1201 + $0xe0] sm:$0x1] %v7160
    %v7162 = vld [vmem:[%s1201 + $0xe4] sm:$0xf]
    %v7163 = vsel %vm1203, %v6698, %v7162
    %7164 = vst [vmem:[%s1201 + $0xe4] sm:$0xf] %v7163
    %7165 = vst [vmem:[%s1201 + $0xe8] sm:$0xf] %v6707
    %v7166 = vld [vmem:[%s1201 + $0xec] sm:$0x1]
    %v7167 = vsel %vm84, %v6708, %v7166
    %7168 = vst [vmem:[%s1201 + $0xec] sm:$0x1] %v7167
    %v7169 = vld [vmem:[%s1201 + $0xf0] sm:$0xf]
    %v7170 = vsel %vm1203, %v6715, %v7169
    %7171 = vst [vmem:[%s1201 + $0xf0] sm:$0xf] %v7170
    %7172 = vst [vmem:[%s1201 + $0xf4] sm:$0xf] %v6724
    %v7173 = vld [vmem:[%s1201 + $0xf8] sm:$0x1]
    %v7174 = vsel %vm84, %v6725, %v7173
    %7175 = vst [vmem:[%s1201 + $0xf8] sm:$0x1] %v7174
    %v7176 = vld [vmem:[%s1201 + $0xfc] sm:$0xf]
    %v7177 = vsel %vm1203, %v6732, %v7176
    %7178 = vst [vmem:[%s1201 + $0xfc] sm:$0xf] %v7177
    %7179 = vst [vmem:[%s1201 + $0x100] sm:$0xf] %v6741
    %v7180 = vld [vmem:[%s1201 + $0x104] sm:$0x1]
    %v7181 = vsel %vm84, %v6742, %v7180
    %7182 = vst [vmem:[%s1201 + $0x104] sm:$0x1] %v7181
    %v7183 = vld [vmem:[%s1201 + $0x108] sm:$0xf]
    %v7184 = vsel %vm1203, %v6749, %v7183
    %7185 = vst [vmem:[%s1201 + $0x108] sm:$0xf] %v7184
    %7186 = vst [vmem:[%s1201 + $0x10c] sm:$0xf] %v6758
    %v7187 = vld [vmem:[%s1201 + $0x110] sm:$0x1]
    %v7188 = vsel %vm84, %v6759, %v7187
    %7189 = vst [vmem:[%s1201 + $0x110] sm:$0x1] %v7188
    %v7190 = vld [vmem:[%s1201 + $0x114] sm:$0xf]
    %v7191 = vsel %vm1203, %v6766, %v7190
    %7192 = vst [vmem:[%s1201 + $0x114] sm:$0xf] %v7191
    %7193 = vst [vmem:[%s1201 + $0x118] sm:$0xf] %v6775
    %v7194 = vld [vmem:[%s1201 + $0x11c] sm:$0x1]
    %v7195 = vsel %vm84, %v6776, %v7194
    %7196 = vst [vmem:[%s1201 + $0x11c] sm:$0x1] %v7195
    %v7197 = vld [vmem:[%s1201 + $0x120] sm:$0xf]
    %v7198 = vsel %vm1203, %v6783, %v7197
    %7199 = vst [vmem:[%s1201 + $0x120] sm:$0xf] %v7198
    %7200 = vst [vmem:[%s1201 + $0x124] sm:$0xf] %v6792
    %v7201 = vld [vmem:[%s1201 + $0x128] sm:$0x1]
    %v7202 = vsel %vm84, %v6793, %v7201
    %7203 = vst [vmem:[%s1201 + $0x128] sm:$0x1] %v7202
    %v7204 = vld [vmem:[%s1201 + $0x12c] sm:$0xf]
    %v7205 = vsel %vm1203, %v6800, %v7204
    %7206 = vst [vmem:[%s1201 + $0x12c] sm:$0xf] %v7205
    %7207 = vst [vmem:[%s1201 + $0x130] sm:$0xf] %v6809
    %v7208 = vld [vmem:[%s1201 + $0x134] sm:$0x1]
    %v7209 = vsel %vm84, %v6810, %v7208
    %7210 = vst [vmem:[%s1201 + $0x134] sm:$0x1] %v7209
    %v7211 = vld [vmem:[%s1201 + $0x138] sm:$0xf]
    %v7212 = vsel %vm1203, %v6817, %v7211
    %7213 = vst [vmem:[%s1201 + $0x138] sm:$0xf] %v7212
    %7214 = vst [vmem:[%s1201 + $0x13c] sm:$0xf] %v6826
    %v7215 = vld [vmem:[%s1201 + $0x140] sm:$0x1]
    %v7216 = vsel %vm84, %v6827, %v7215
    %7217 = vst [vmem:[%s1201 + $0x140] sm:$0x1] %v7216
    %v7218 = vld [vmem:[%s1201 + $0x144] sm:$0xf]
    %v7219 = vsel %vm1203, %v6834, %v7218
    %7220 = vst [vmem:[%s1201 + $0x144] sm:$0xf] %v7219
    %7221 = vst [vmem:[%s1201 + $0x148] sm:$0xf] %v6843
    %v7222 = vld [vmem:[%s1201 + $0x14c] sm:$0x1]
    %v7223 = vsel %vm84, %v6844, %v7222
    %7224 = vst [vmem:[%s1201 + $0x14c] sm:$0x1] %v7223
    %v7225 = vld [vmem:[%s1201 + $0x150] sm:$0xf]
    %v7226 = vsel %vm1203, %v6851, %v7225
    %7227 = vst [vmem:[%s1201 + $0x150] sm:$0xf] %v7226
    %7228 = vst [vmem:[%s1201 + $0x154] sm:$0xf] %v6860
    %v7229 = vld [vmem:[%s1201 + $0x158] sm:$0x1]
    %v7230 = vsel %vm84, %v6861, %v7229
    %7231 = vst [vmem:[%s1201 + $0x158] sm:$0x1] %v7230
    %v7232 = vld [vmem:[%s1201 + $0x15c] sm:$0xf]
    %v7233 = vsel %vm1203, %v6868, %v7232
    %7234 = vst [vmem:[%s1201 + $0x15c] sm:$0xf] %v7233
    %7235 = vst [vmem:[%s1201 + $0x160] sm:$0xf] %v6877
    %v7236 = vld [vmem:[%s1201 + $0x164] sm:$0x1]
    %v7237 = vsel %vm84, %v6878, %v7236
    %7238 = vst [vmem:[%s1201 + $0x164] sm:$0x1] %v7237
    %v7239 = vld [vmem:[%s1201 + $0x168] sm:$0xf]
    %v7240 = vsel %vm1203, %v6885, %v7239
    %7241 = vst [vmem:[%s1201 + $0x168] sm:$0xf] %v7240
    %7242 = vst [vmem:[%s1201 + $0x16c] sm:$0xf] %v6894
    %v7243 = vld [vmem:[%s1201 + $0x170] sm:$0x1]
    %v7244 = vsel %vm84, %v6895, %v7243
    %7245 = vst [vmem:[%s1201 + $0x170] sm:$0x1] %v7244
    %v7246 = vld [vmem:[%s1201 + $0x174] sm:$0xf]
    %v7247 = vsel %vm1203, %v6902, %v7246
    %7248 = vst [vmem:[%s1201 + $0x174] sm:$0xf] %v7247
    %7249 = vst [vmem:[%s1201 + $0x178] sm:$0xf] %v6911
    %v7250 = vld [vmem:[%s1201 + $0x17c] sm:$0x1]
    %v7251 = vsel %vm84, %v6912, %v7250
    %7252 = vst [vmem:[%s1201 + $0x17c] sm:$0x1] %v7251
    %v7253 = vld [vmem:[%s1201 + $0x180] sm:$0xf]
    %v7254 = vsel %vm1203, %v6919, %v7253
    %7255 = vst [vmem:[%s1201 + $0x180] sm:$0xf] %v7254
    %7256 = vst [vmem:[%s1201 + $0x184] sm:$0xf] %v6928
    %v7257 = vld [vmem:[%s1201 + $0x188] sm:$0x1]
    %v7258 = vsel %vm84, %v6929, %v7257
    %7259 = vst [vmem:[%s1201 + $0x188] sm:$0x1] %v7258
    %v7260 = vld [vmem:[%s1201 + $0x18c] sm:$0xf]
    %v7261 = vsel %vm1203, %v6936, %v7260
    %7262 = vst [vmem:[%s1201 + $0x18c] sm:$0xf] %v7261
    %7263 = vst [vmem:[%s1201 + $0x190] sm:$0xf] %v6945
    %v7264 = vld [vmem:[%s1201 + $0x194] sm:$0x1]
    %v7265 = vsel %vm84, %v6946, %v7264
    %7266 = vst [vmem:[%s1201 + $0x194] sm:$0x1] %v7265
    %v7267 = vld [vmem:[#allocation2] sm:$0xf]
    %v7268 = vld [vmem:[#allocation2 + $0x4] sm:$0xf]
    %v7269 = vld [vmem:[#allocation2 + $0x8] sm:$0x1]
    %v7270 = vld [vmem:[#allocation2 + $0xc] sm:$0xf]
    %v7271 = vld [vmem:[#allocation2 + $0x10] sm:$0xf]
    %v7272 = vld [vmem:[#allocation2 + $0x14] sm:$0x1]
    %v7273 = vld [vmem:[#allocation2 + $0x18] sm:$0xf]
    %v7274 = vld [vmem:[#allocation2 + $0x1c] sm:$0xf]
    %v7275 = vld [vmem:[#allocation2 + $0x20] sm:$0x1]
    %v7276 = vld [vmem:[#allocation2 + $0x24] sm:$0xf]
    %v7277 = vld [vmem:[#allocation2 + $0x28] sm:$0xf]
    %v7278 = vld [vmem:[#allocation2 + $0x2c] sm:$0x1]
    %v7279 = vld [vmem:[#allocation2 + $0x30] sm:$0xf]
    %v7280 = vld [vmem:[#allocation2 + $0x34] sm:$0xf]
    %v7281 = vld [vmem:[#allocation2 + $0x38] sm:$0x1]
    %v7282 = vld [vmem:[#allocation2 + $0x3c] sm:$0xf]
    %v7283 = vld [vmem:[#allocation2 + $0x40] sm:$0xf]
    %v7284 = vld [vmem:[#allocation2 + $0x44] sm:$0x1]
    %v7285 = vld [vmem:[#allocation2 + $0x48] sm:$0xf]
    %v7286 = vld [vmem:[#allocation2 + $0x4c] sm:$0xf]
    %v7287 = vld [vmem:[#allocation2 + $0x50] sm:$0x1]
    %v7288 = vld [vmem:[#allocation2 + $0x54] sm:$0xf]
    %v7289 = vld [vmem:[#allocation2 + $0x58] sm:$0xf]
    %v7290 = vld [vmem:[#allocation2 + $0x5c] sm:$0x1]
    %v7291 = vld [vmem:[#allocation2 + $0x60] sm:$0xf]
    %v7292 = vld [vmem:[#allocation2 + $0x64] sm:$0xf]
    %v7293 = vld [vmem:[#allocation2 + $0x68] sm:$0x1]
    %v7294 = vld [vmem:[#allocation2 + $0x6c] sm:$0xf]
    %v7295 = vld [vmem:[#allocation2 + $0x70] sm:$0xf]
    %v7296 = vld [vmem:[#allocation2 + $0x74] sm:$0x1]
    %v7297 = vld [vmem:[#allocation2 + $0x78] sm:$0xf]
    %v7298 = vld [vmem:[#allocation2 + $0x7c] sm:$0xf]
    %v7299 = vld [vmem:[#allocation2 + $0x80] sm:$0x1]
    %v7300 = vld [vmem:[#allocation2 + $0x84] sm:$0xf]
    %v7301 = vld [vmem:[#allocation2 + $0x88] sm:$0xf]
    %v7302 = vld [vmem:[#allocation2 + $0x8c] sm:$0x1]
    %v7303 = vld [vmem:[#allocation2 + $0x90] sm:$0xf]
    %v7304 = vld [vmem:[#allocation2 + $0x94] sm:$0xf]
    %v7305 = vld [vmem:[#allocation2 + $0x98] sm:$0x1]
    %v7306 = vld [vmem:[#allocation2 + $0x9c] sm:$0xf]
    %v7307 = vld [vmem:[#allocation2 + $0xa0] sm:$0xf]
    %v7308 = vld [vmem:[#allocation2 + $0xa4] sm:$0x1]
    %v7309 = vld [vmem:[#allocation2 + $0xa8] sm:$0xf]
    %v7310 = vld [vmem:[#allocation2 + $0xac] sm:$0xf]
    %v7311 = vld [vmem:[#allocation2 + $0xb0] sm:$0x1]
    %v7312 = vld [vmem:[#allocation2 + $0xb4] sm:$0xf]
    %v7313 = vld [vmem:[#allocation2 + $0xb8] sm:$0xf]
    %v7314 = vld [vmem:[#allocation2 + $0xbc] sm:$0x1]
    %v7315 = vld [vmem:[#allocation2 + $0xc0] sm:$0xf]
    %v7316 = vld [vmem:[#allocation2 + $0xc4] sm:$0xf]
    %v7317 = vld [vmem:[#allocation2 + $0xc8] sm:$0x1]
    %v7318 = vld [vmem:[#allocation2 + $0xcc] sm:$0xf]
    %v7319 = vld [vmem:[#allocation2 + $0xd0] sm:$0xf]
    %v7320 = vld [vmem:[#allocation2 + $0xd4] sm:$0x1]
    %v7321 = vld [vmem:[#allocation2 + $0xd8] sm:$0xf]
    %v7322 = vld [vmem:[#allocation2 + $0xdc] sm:$0xf]
    %v7323 = vld [vmem:[#allocation2 + $0xe0] sm:$0x1]
    %v7324 = vld [vmem:[#allocation2 + $0xe4] sm:$0xf]
    %v7325 = vld [vmem:[#allocation2 + $0xe8] sm:$0xf]
    %v7326 = vld [vmem:[#allocation2 + $0xec] sm:$0x1]
    %v7327 = vld [vmem:[#allocation2 + $0xf0] sm:$0xf]
    %v7328 = vld [vmem:[#allocation2 + $0xf4] sm:$0xf]
    %v7329 = vld [vmem:[#allocation2 + $0xf8] sm:$0x1]
    %v7330 = vld [vmem:[#allocation2 + $0xfc] sm:$0xf]
    %v7331 = vld [vmem:[#allocation2 + $0x100] sm:$0xf]
    %v7332 = vld [vmem:[#allocation2 + $0x104] sm:$0x1]
    %v7333 = vld [vmem:[#allocation2 + $0x108] sm:$0xf]
    %v7334 = vld [vmem:[#allocation2 + $0x10c] sm:$0xf]
    %v7335 = vld [vmem:[#allocation2 + $0x110] sm:$0x1]
    %v7336 = vld [vmem:[#allocation2 + $0x114] sm:$0xf]
    %v7337 = vld [vmem:[#allocation2 + $0x118] sm:$0xf]
    %v7338 = vld [vmem:[#allocation2 + $0x11c] sm:$0x1]
    %v7339 = vld [vmem:[#allocation2 + $0x120] sm:$0xf]
    %v7340 = vld [vmem:[#allocation2 + $0x124] sm:$0xf]
    %v7341 = vld [vmem:[#allocation2 + $0x128] sm:$0x1]
    %v7342 = vld [vmem:[#allocation2 + $0x12c] sm:$0xf]
    %v7343 = vld [vmem:[#allocation2 + $0x130] sm:$0xf]
    %v7344 = vld [vmem:[#allocation2 + $0x134] sm:$0x1]
    %v7345 = vld [vmem:[#allocation2 + $0x138] sm:$0xf]
    %v7346 = vld [vmem:[#allocation2 + $0x13c] sm:$0xf]
    %v7347 = vld [vmem:[#allocation2 + $0x140] sm:$0x1]
    %v7348 = vld [vmem:[#allocation2 + $0x144] sm:$0xf]
    %v7349 = vld [vmem:[#allocation2 + $0x148] sm:$0xf]
    %v7350 = vld [vmem:[#allocation2 + $0x14c] sm:$0x1]
    %v7351 = vld [vmem:[#allocation2 + $0x150] sm:$0xf]
    %v7352 = vld [vmem:[#allocation2 + $0x154] sm:$0xf]
    %v7353 = vld [vmem:[#allocation2 + $0x158] sm:$0x1]
    %v7354 = vld [vmem:[#allocation2 + $0x15c] sm:$0xf]
    %v7355 = vld [vmem:[#allocation2 + $0x160] sm:$0xf]
    %v7356 = vld [vmem:[#allocation2 + $0x164] sm:$0x1]
    %v7357 = vld [vmem:[#allocation2 + $0x168] sm:$0xf]
    %v7358 = vld [vmem:[#allocation2 + $0x16c] sm:$0xf]
    %v7359 = vld [vmem:[#allocation2 + $0x170] sm:$0x1]
    %v7360 = vld [vmem:[#allocation2 + $0x174] sm:$0xf]
    %v7361 = vld [vmem:[#allocation2 + $0x178] sm:$0xf]
    %v7362 = vld [vmem:[#allocation2 + $0x17c] sm:$0x1]
    %v7363 = vld [vmem:[#allocation2 + $0x180] sm:$0xf]
    %v7364 = vld [vmem:[#allocation2 + $0x184] sm:$0xf]
    %v7365 = vld [vmem:[#allocation2 + $0x188] sm:$0x1]
    %v7366 = vld [vmem:[#allocation2 + $0x18c] sm:$0xf]
    %v7367 = vld [vmem:[#allocation2 + $0x190] sm:$0xf]
    %v7368 = vld [vmem:[#allocation2 + $0x194] sm:$0x1]
    %v7369 = vld [vmem:[#allocation2 + $0x198] sm:$0xf]
    %v7370 = vld [vmem:[#allocation2 + $0x19c] sm:$0xf]
    %v7371 = vld [vmem:[#allocation2 + $0x1a0] sm:$0x1]
    %v7372 = vld [vmem:[#allocation2 + $0x1a4] sm:$0xf]
    %v7373 = vld [vmem:[#allocation2 + $0x1a8] sm:$0xf]
    %v7374 = vld [vmem:[#allocation2 + $0x1ac] sm:$0x1]
    %v7439 = vunpack.c.l.b16 %v7267
    %v7440 = vunpack.c.l.b16 %v7268
    %v7441 = vunpack.c.l.b16 %v7270
    %v7442 = vunpack.c.l.b16 %v7271
    %v7443 = vunpack.c.l.b16 %v7273
    %v7444 = vunpack.c.l.b16 %v7274
    %v7445 = vunpack.c.l.b16 %v7276
    %v7446 = vunpack.c.l.b16 %v7277
    %v7447 = vunpack.c.l.b16 %v7279
    %v7448 = vunpack.c.l.b16 %v7280
    %v7449 = vunpack.c.l.b16 %v7282
    %v7450 = vunpack.c.l.b16 %v7283
    %v7451 = vunpack.c.l.b16 %v7285
    %v7452 = vunpack.c.l.b16 %v7286
    %v7453 = vunpack.c.l.b16 %v7288
    %v7454 = vunpack.c.l.b16 %v7289
    %v7455 = vunpack.c.l.b16 %v7291
    %v7456 = vunpack.c.l.b16 %v7292
    %v7457 = vunpack.c.l.b16 %v7294
    %v7458 = vunpack.c.l.b16 %v7295
    %v7459 = vunpack.c.l.b16 %v7297
    %v7460 = vunpack.c.l.b16 %v7298
    %v7461 = vunpack.c.l.b16 %v7300
    %v7462 = vunpack.c.l.b16 %v7301
    %v7463 = vunpack.c.l.b16 %v7303
    %v7464 = vunpack.c.l.b16 %v7304
    %v7465 = vunpack.c.l.b16 %v7306
    %v7466 = vunpack.c.l.b16 %v7307
    %v7467 = vunpack.c.l.b16 %v7309
    %v7468 = vunpack.c.l.b16 %v7310
    %v7469 = vunpack.c.l.b16 %v7312
    %v7470 = vunpack.c.l.b16 %v7313
    %v7471 = vunpack.c.l.b16 %v7321
    %v7472 = vunpack.c.l.b16 %v7322
    %v7473 = vunpack.c.l.b16 %v7324
    %v7474 = vunpack.c.l.b16 %v7325
    %v7475 = vunpack.c.l.b16 %v7327
    %v7476 = vunpack.c.l.b16 %v7328
    %v7477 = vunpack.c.l.b16 %v7330
    %v7478 = vunpack.c.l.b16 %v7331
    %v7479 = vunpack.c.l.b16 %v7333
    %v7480 = vunpack.c.l.b16 %v7334
    %v7481 = vunpack.c.l.b16 %v7336
    %v7482 = vunpack.c.l.b16 %v7337
    %v7483 = vunpack.c.l.b16 %v7339
    %v7484 = vunpack.c.l.b16 %v7340
    %v7485 = vunpack.c.l.b16 %v7342
    %v7486 = vunpack.c.l.b16 %v7343
    %v7487 = vunpack.c.l.b16 %v7345
    %v7488 = vunpack.c.l.b16 %v7346
    %v7489 = vunpack.c.l.b16 %v7348
    %v7490 = vunpack.c.l.b16 %v7349
    %v7491 = vunpack.c.l.b16 %v7351
    %v7492 = vunpack.c.l.b16 %v7352
    %v7493 = vunpack.c.l.b16 %v7354
    %v7494 = vunpack.c.l.b16 %v7355
    %v7495 = vunpack.c.l.b16 %v7357
    %v7496 = vunpack.c.l.b16 %v7358
    %v7497 = vunpack.c.l.b16 %v7360
    %v7498 = vunpack.c.l.b16 %v7361
    %v7499 = vunpack.c.l.b16 %v7363
    %v7500 = vunpack.c.l.b16 %v7364
    %v7501 = vunpack.c.l.b16 %v7366
    %v7502 = vunpack.c.l.b16 %v7367
    %v7503 = vpack.c.b16 %v7440, %v7439
    %v7504 = vpack.c.b16 %v7442, %v7441
    %v7505 = vpack.c.b16 %v7444, %v7443
    %v7506 = vpack.c.b16 %v7446, %v7445
    %v7507 = vpack.c.b16 %v7448, %v7447
    %v7508 = vpack.c.b16 %v7450, %v7449
    %v7509 = vpack.c.b16 %v7452, %v7451
    %v7510 = vpack.c.b16 %v7454, %v7453
    %v7511 = vpack.c.b16 %v7456, %v7455
    %v7512 = vpack.c.b16 %v7458, %v7457
    %v7513 = vpack.c.b16 %v7460, %v7459
    %v7514 = vpack.c.b16 %v7462, %v7461
    %v7515 = vpack.c.b16 %v7464, %v7463
    %v7516 = vpack.c.b16 %v7466, %v7465
    %v7517 = vpack.c.b16 %v7468, %v7467
    %v7518 = vpack.c.b16 %v7470, %v7469
    %v7519 = vpack.c.b16 %v7472, %v7471
    %v7520 = vpack.c.b16 %v7474, %v7473
    %v7521 = vpack.c.b16 %v7476, %v7475
    %v7522 = vpack.c.b16 %v7478, %v7477
    %v7523 = vpack.c.b16 %v7480, %v7479
    %v7524 = vpack.c.b16 %v7482, %v7481
    %v7525 = vpack.c.b16 %v7484, %v7483
    %v7526 = vpack.c.b16 %v7486, %v7485
    %v7527 = vpack.c.b16 %v7488, %v7487
    %v7528 = vpack.c.b16 %v7490, %v7489
    %v7529 = vpack.c.b16 %v7492, %v7491
    %v7530 = vpack.c.b16 %v7494, %v7493
    %v7531 = vpack.c.b16 %v7496, %v7495
    %v7532 = vpack.c.b16 %v7498, %v7497
    %v7533 = vpack.c.b16 %v7500, %v7499
    %v7534 = vpack.c.b16 %v7502, %v7501
    %7567 = vst [vmem:[#allocation3] sm:$0xff] %v7503
    %7568 = vst [vmem:[#allocation3 + $0x48] sm:$0xff] %v7504
    %7569 = vst [vmem:[#allocation3 + $0x90] sm:$0xff] %v7505
    %7570 = vst [vmem:[#allocation3 + $0xd8] sm:$0xff] %v7506
    %7571 = vst [vmem:[#allocation3 + $0x120] sm:$0xff] %v7507
    %7572 = vst [vmem:[#allocation3 + $0x168] sm:$0xff] %v7508
    %7573 = vst [vmem:[#allocation3 + $0x1b0] sm:$0xff] %v7509
    %7574 = vst [vmem:[#allocation3 + $0x1f8] sm:$0xff] %v7510
    %7575 = vst [vmem:[#allocation3 + $0x240] sm:$0xff] %v7511
    %7576 = vst [vmem:[#allocation3 + $0x288] sm:$0xff] %v7512
    %7577 = vst [vmem:[#allocation3 + $0x2d0] sm:$0xff] %v7513
    %7578 = vst [vmem:[#allocation3 + $0x318] sm:$0xff] %v7514
    %7579 = vst [vmem:[#allocation3 + $0x360] sm:$0xff] %v7515
    %7580 = vst [vmem:[#allocation3 + $0x3a8] sm:$0xff] %v7516
    %7581 = vst [vmem:[#allocation3 + $0x3f0] sm:$0xff] %v7517
    %7582 = vst [vmem:[#allocation3 + $0x438] sm:$0xff] %v7518
    %7583 = vst [vmem:[#allocation3 + $0x480] sm:$0xff] %v7519
    %7584 = vst [vmem:[#allocation3 + $0x4c8] sm:$0xff] %v7520
    %7585 = vst [vmem:[#allocation3 + $0x510] sm:$0xff] %v7521
    %7586 = vst [vmem:[#allocation3 + $0x558] sm:$0xff] %v7522
    %7587 = vst [vmem:[#allocation3 + $0x5a0] sm:$0xff] %v7523
    %7588 = vst [vmem:[#allocation3 + $0x5e8] sm:$0xff] %v7524
    %7589 = vst [vmem:[#allocation3 + $0x630] sm:$0xff] %v7525
    %7590 = vst [vmem:[#allocation3 + $0x678] sm:$0xff] %v7526
    %7591 = vst [vmem:[#allocation3 + $0x6c0] sm:$0xff] %v7527
    %7592 = vst [vmem:[#allocation3 + $0x708] sm:$0xff] %v7528
    %7593 = vst [vmem:[#allocation3 + $0x750] sm:$0xff] %v7529
    %7594 = vst [vmem:[#allocation3 + $0x798] sm:$0xff] %v7530
    %7595 = vst [vmem:[#allocation3 + $0x7e0] sm:$0xff] %v7531
    %7596 = vst [vmem:[#allocation3 + $0x828] sm:$0xff] %v7532
    %7597 = vst [vmem:[#allocation3 + $0x870] sm:$0xff] %v7533
    %7598 = vst [vmem:[#allocation3 + $0x8b8] sm:$0xff] %v7534
    %v7600 = vshrl.u32 %v7267, 16
    %v7602 = vrot.slane %v7600, 4
    %v7603 = vshll.u32 %v7267, 16
    %v7605 = vrot.slane %v7603, 5
    %v7606 = vor.u32 %v7602, %v7605
    %v7607 = vrot.slane %v7606, 4
    %v7609 = vshll.u32 %v7268, 16
    %v7611 = vrot.slane %v7609, 5
    %v7612 = vsel %vm1762, %v7607, %v7611
    %v7613 = vshrl.u32 %v7268, 16
    %v7615 = vrot.slane %v7613, 4
    %v7616 = vor.u32 %v7615, %v7611
    %v7617 = vrot.slane %v7616, 4
    %v7619 = vshll.u32 %v7269, 16
    %v7621 = vrot.slane %v7619, 5
    %v7622 = vsel %vm1762, %v7617, %v7621
    %v7624 = vshrl.u32 %v7270, 16
    %v7626 = vrot.slane %v7624, 4
    %v7627 = vshll.u32 %v7270, 16
    %v7629 = vrot.slane %v7627, 5
    %v7630 = vor.u32 %v7626, %v7629
    %v7631 = vrot.slane %v7630, 4
    %v7633 = vshll.u32 %v7271, 16
    %v7635 = vrot.slane %v7633, 5
    %v7636 = vsel %vm1762, %v7631, %v7635
    %v7637 = vshrl.u32 %v7271, 16
    %v7639 = vrot.slane %v7637, 4
    %v7640 = vor.u32 %v7639, %v7635
    %v7641 = vrot.slane %v7640, 4
    %v7643 = vshll.u32 %v7272, 16
    %v7645 = vrot.slane %v7643, 5
    %v7646 = vsel %vm1762, %v7641, %v7645
    %v7648 = vshrl.u32 %v7273, 16
    %v7650 = vrot.slane %v7648, 4
    %v7651 = vshll.u32 %v7273, 16
    %v7653 = vrot.slane %v7651, 5
    %v7654 = vor.u32 %v7650, %v7653
    %v7655 = vrot.slane %v7654, 4
    %v7657 = vshll.u32 %v7274, 16
    %v7659 = vrot.slane %v7657, 5
    %v7660 = vsel %vm1762, %v7655, %v7659
    %v7661 = vshrl.u32 %v7274, 16
    %v7663 = vrot.slane %v7661, 4
    %v7664 = vor.u32 %v7663, %v7659
    %v7665 = vrot.slane %v7664, 4
    %v7667 = vshll.u32 %v7275, 16
    %v7669 = vrot.slane %v7667, 5
    %v7670 = vsel %vm1762, %v7665, %v7669
    %v7672 = vshrl.u32 %v7276, 16
    %v7674 = vrot.slane %v7672, 4
    %v7675 = vshll.u32 %v7276, 16
    %v7677 = vrot.slane %v7675, 5
    %v7678 = vor.u32 %v7674, %v7677
    %v7679 = vrot.slane %v7678, 4
    %v7681 = vshll.u32 %v7277, 16
    %v7683 = vrot.slane %v7681, 5
    %v7684 = vsel %vm1762, %v7679, %v7683
    %v7685 = vshrl.u32 %v7277, 16
    %v7687 = vrot.slane %v7685, 4
    %v7688 = vor.u32 %v7687, %v7683
    %v7689 = vrot.slane %v7688, 4
    %v7691 = vshll.u32 %v7278, 16
    %v7693 = vrot.slane %v7691, 5
    %v7694 = vsel %vm1762, %v7689, %v7693
    %v7696 = vshrl.u32 %v7279, 16
    %v7698 = vrot.slane %v7696, 4
    %v7699 = vshll.u32 %v7279, 16
    %v7701 = vrot.slane %v7699, 5
    %v7702 = vor.u32 %v7698, %v7701
    %v7703 = vrot.slane %v7702, 4
    %v7705 = vshll.u32 %v7280, 16
    %v7707 = vrot.slane %v7705, 5
    %v7708 = vsel %vm1762, %v7703, %v7707
    %v7709 = vshrl.u32 %v7280, 16
    %v7711 = vrot.slane %v7709, 4
    %v7712 = vor.u32 %v7711, %v7707
    %v7713 = vrot.slane %v7712, 4
    %v7715 = vshll.u32 %v7281, 16
    %v7717 = vrot.slane %v7715, 5
    %v7718 = vsel %vm1762, %v7713, %v7717
    %v7720 = vshrl.u32 %v7282, 16
    %v7722 = vrot.slane %v7720, 4
    %v7723 = vshll.u32 %v7282, 16
    %v7725 = vrot.slane %v7723, 5
    %v7726 = vor.u32 %v7722, %v7725
    %v7727 = vrot.slane %v7726, 4
    %v7729 = vshll.u32 %v7283, 16
    %v7731 = vrot.slane %v7729, 5
    %v7732 = vsel %vm1762, %v7727, %v7731
    %v7733 = vshrl.u32 %v7283, 16
    %v7735 = vrot.slane %v7733, 4
    %v7736 = vor.u32 %v7735, %v7731
    %v7737 = vrot.slane %v7736, 4
    %v7739 = vshll.u32 %v7284, 16
    %v7741 = vrot.slane %v7739, 5
    %v7742 = vsel %vm1762, %v7737, %v7741
    %v7744 = vshrl.u32 %v7285, 16
    %v7746 = vrot.slane %v7744, 4
    %v7747 = vshll.u32 %v7285, 16
    %v7749 = vrot.slane %v7747, 5
    %v7750 = vor.u32 %v7746, %v7749
    %v7751 = vrot.slane %v7750, 4
    %v7753 = vshll.u32 %v7286, 16
    %v7755 = vrot.slane %v7753, 5
    %v7756 = vsel %vm1762, %v7751, %v7755
    %v7757 = vshrl.u32 %v7286, 16
    %v7759 = vrot.slane %v7757, 4
    %v7760 = vor.u32 %v7759, %v7755
    %v7761 = vrot.slane %v7760, 4
    %v7763 = vshll.u32 %v7287, 16
    %v7765 = vrot.slane %v7763, 5
    %v7766 = vsel %vm1762, %v7761, %v7765
    %v7768 = vshrl.u32 %v7288, 16
    %v7770 = vrot.slane %v7768, 4
    %v7771 = vshll.u32 %v7288, 16
    %v7773 = vrot.slane %v7771, 5
    %v7774 = vor.u32 %v7770, %v7773
    %v7775 = vrot.slane %v7774, 4
    %v7777 = vshll.u32 %v7289, 16
    %v7779 = vrot.slane %v7777, 5
    %v7780 = vsel %vm1762, %v7775, %v7779
    %v7781 = vshrl.u32 %v7289, 16
    %v7783 = vrot.slane %v7781, 4
    %v7784 = vor.u32 %v7783, %v7779
    %v7785 = vrot.slane %v7784, 4
    %v7787 = vshll.u32 %v7290, 16
    %v7789 = vrot.slane %v7787, 5
    %v7790 = vsel %vm1762, %v7785, %v7789
    %v7792 = vshrl.u32 %v7291, 16
    %v7794 = vrot.slane %v7792, 4
    %v7795 = vshll.u32 %v7291, 16
    %v7797 = vrot.slane %v7795, 5
    %v7798 = vor.u32 %v7794, %v7797
    %v7799 = vrot.slane %v7798, 4
    %v7801 = vshll.u32 %v7292, 16
    %v7803 = vrot.slane %v7801, 5
    %v7804 = vsel %vm1762, %v7799, %v7803
    %v7805 = vshrl.u32 %v7292, 16
    %v7807 = vrot.slane %v7805, 4
    %v7808 = vor.u32 %v7807, %v7803
    %v7809 = vrot.slane %v7808, 4
    %v7811 = vshll.u32 %v7293, 16
    %v7813 = vrot.slane %v7811, 5
    %v7814 = vsel %vm1762, %v7809, %v7813
    %v7816 = vshrl.u32 %v7294, 16
    %v7818 = vrot.slane %v7816, 4
    %v7819 = vshll.u32 %v7294, 16
    %v7821 = vrot.slane %v7819, 5
    %v7822 = vor.u32 %v7818, %v7821
    %v7823 = vrot.slane %v7822, 4
    %v7825 = vshll.u32 %v7295, 16
    %v7827 = vrot.slane %v7825, 5
    %v7828 = vsel %vm1762, %v7823, %v7827
    %v7829 = vshrl.u32 %v7295, 16
    %v7831 = vrot.slane %v7829, 4
    %v7832 = vor.u32 %v7831, %v7827
    %v7833 = vrot.slane %v7832, 4
    %v7835 = vshll.u32 %v7296, 16
    %v7837 = vrot.slane %v7835, 5
    %v7838 = vsel %vm1762, %v7833, %v7837
    %v7840 = vshrl.u32 %v7297, 16
    %v7842 = vrot.slane %v7840, 4
    %v7843 = vshll.u32 %v7297, 16
    %v7845 = vrot.slane %v7843, 5
    %v7846 = vor.u32 %v7842, %v7845
    %v7847 = vrot.slane %v7846, 4
    %v7849 = vshll.u32 %v7298, 16
    %v7851 = vrot.slane %v7849, 5
    %v7852 = vsel %vm1762, %v7847, %v7851
    %v7853 = vshrl.u32 %v7298, 16
    %v7855 = vrot.slane %v7853, 4
    %v7856 = vor.u32 %v7855, %v7851
    %v7857 = vrot.slane %v7856, 4
    %v7859 = vshll.u32 %v7299, 16
    %v7861 = vrot.slane %v7859, 5
    %v7862 = vsel %vm1762, %v7857, %v7861
    %v7864 = vshrl.u32 %v7300, 16
    %v7866 = vrot.slane %v7864, 4
    %v7867 = vshll.u32 %v7300, 16
    %v7869 = vrot.slane %v7867, 5
    %v7870 = vor.u32 %v7866, %v7869
    %v7871 = vrot.slane %v7870, 4
    %v7873 = vshll.u32 %v7301, 16
    %v7875 = vrot.slane %v7873, 5
    %v7876 = vsel %vm1762, %v7871, %v7875
    %v7877 = vshrl.u32 %v7301, 16
    %v7879 = vrot.slane %v7877, 4
    %v7880 = vor.u32 %v7879, %v7875
    %v7881 = vrot.slane %v7880, 4
    %v7883 = vshll.u32 %v7302, 16
    %v7885 = vrot.slane %v7883, 5
    %v7886 = vsel %vm1762, %v7881, %v7885
    %v7888 = vshrl.u32 %v7303, 16
    %v7890 = vrot.slane %v7888, 4
    %v7891 = vshll.u32 %v7303, 16
    %v7893 = vrot.slane %v7891, 5
    %v7894 = vor.u32 %v7890, %v7893
    %v7895 = vrot.slane %v7894, 4
    %v7897 = vshll.u32 %v7304, 16
    %v7899 = vrot.slane %v7897, 5
    %v7900 = vsel %vm1762, %v7895, %v7899
    %v7901 = vshrl.u32 %v7304, 16
    %v7903 = vrot.slane %v7901, 4
    %v7904 = vor.u32 %v7903, %v7899
    %v7905 = vrot.slane %v7904, 4
    %v7907 = vshll.u32 %v7305, 16
    %v7909 = vrot.slane %v7907, 5
    %v7910 = vsel %vm1762, %v7905, %v7909
    %v7912 = vshrl.u32 %v7306, 16
    %v7914 = vrot.slane %v7912, 4
    %v7915 = vshll.u32 %v7306, 16
    %v7917 = vrot.slane %v7915, 5
    %v7918 = vor.u32 %v7914, %v7917
    %v7919 = vrot.slane %v7918, 4
    %v7921 = vshll.u32 %v7307, 16
    %v7923 = vrot.slane %v7921, 5
    %v7924 = vsel %vm1762, %v7919, %v7923
    %v7925 = vshrl.u32 %v7307, 16
    %v7927 = vrot.slane %v7925, 4
    %v7928 = vor.u32 %v7927, %v7923
    %v7929 = vrot.slane %v7928, 4
    %v7931 = vshll.u32 %v7308, 16
    %v7933 = vrot.slane %v7931, 5
    %v7934 = vsel %vm1762, %v7929, %v7933
    %v7936 = vshrl.u32 %v7309, 16
    %v7938 = vrot.slane %v7936, 4
    %v7939 = vshll.u32 %v7309, 16
    %v7941 = vrot.slane %v7939, 5
    %v7942 = vor.u32 %v7938, %v7941
    %v7943 = vrot.slane %v7942, 4
    %v7945 = vshll.u32 %v7310, 16
    %v7947 = vrot.slane %v7945, 5
    %v7948 = vsel %vm1762, %v7943, %v7947
    %v7949 = vshrl.u32 %v7310, 16
    %v7951 = vrot.slane %v7949, 4
    %v7952 = vor.u32 %v7951, %v7947
    %v7953 = vrot.slane %v7952, 4
    %v7955 = vshll.u32 %v7311, 16
    %v7957 = vrot.slane %v7955, 5
    %v7958 = vsel %vm1762, %v7953, %v7957
    %v7960 = vshrl.u32 %v7312, 16
    %v7962 = vrot.slane %v7960, 4
    %v7963 = vshll.u32 %v7312, 16
    %v7965 = vrot.slane %v7963, 5
    %v7966 = vor.u32 %v7962, %v7965
    %v7967 = vrot.slane %v7966, 4
    %v7969 = vshll.u32 %v7313, 16
    %v7971 = vrot.slane %v7969, 5
    %v7972 = vsel %vm1762, %v7967, %v7971
    %v7973 = vshrl.u32 %v7313, 16
    %v7975 = vrot.slane %v7973, 4
    %v7976 = vor.u32 %v7975, %v7971
    %v7977 = vrot.slane %v7976, 4
    %v7979 = vshll.u32 %v7314, 16
    %v7981 = vrot.slane %v7979, 5
    %v7982 = vsel %vm1762, %v7977, %v7981
    %v7984 = vshrl.u32 %v7321, 16
    %v7986 = vrot.slane %v7984, 4
    %v7987 = vshll.u32 %v7321, 16
    %v7989 = vrot.slane %v7987, 5
    %v7990 = vor.u32 %v7986, %v7989
    %v7991 = vrot.slane %v7990, 4
    %v7993 = vshll.u32 %v7322, 16
    %v7995 = vrot.slane %v7993, 5
    %v7996 = vsel %vm1762, %v7991, %v7995
    %v7997 = vshrl.u32 %v7322, 16
    %v7999 = vrot.slane %v7997, 4
    %v8000 = vor.u32 %v7999, %v7995
    %v8001 = vrot.slane %v8000, 4
    %v8003 = vshll.u32 %v7323, 16
    %v8005 = vrot.slane %v8003, 5
    %v8006 = vsel %vm1762, %v8001, %v8005
    %v8008 = vshrl.u32 %v7324, 16
    %v8010 = vrot.slane %v8008, 4
    %v8011 = vshll.u32 %v7324, 16
    %v8013 = vrot.slane %v8011, 5
    %v8014 = vor.u32 %v8010, %v8013
    %v8015 = vrot.slane %v8014, 4
    %v8017 = vshll.u32 %v7325, 16
    %v8019 = vrot.slane %v8017, 5
    %v8020 = vsel %vm1762, %v8015, %v8019
    %v8021 = vshrl.u32 %v7325, 16
    %v8023 = vrot.slane %v8021, 4
    %v8024 = vor.u32 %v8023, %v8019
    %v8025 = vrot.slane %v8024, 4
    %v8027 = vshll.u32 %v7326, 16
    %v8029 = vrot.slane %v8027, 5
    %v8030 = vsel %vm1762, %v8025, %v8029
    %v8032 = vshrl.u32 %v7327, 16
    %v8034 = vrot.slane %v8032, 4
    %v8035 = vshll.u32 %v7327, 16
    %v8037 = vrot.slane %v8035, 5
    %v8038 = vor.u32 %v8034, %v8037
    %v8039 = vrot.slane %v8038, 4
    %v8041 = vshll.u32 %v7328, 16
    %v8043 = vrot.slane %v8041, 5
    %v8044 = vsel %vm1762, %v8039, %v8043
    %v8045 = vshrl.u32 %v7328, 16
    %v8047 = vrot.slane %v8045, 4
    %v8048 = vor.u32 %v8047, %v8043
    %v8049 = vrot.slane %v8048, 4
    %v8051 = vshll.u32 %v7329, 16
    %v8053 = vrot.slane %v8051, 5
    %v8054 = vsel %vm1762, %v8049, %v8053
    %v8056 = vshrl.u32 %v7330, 16
    %v8058 = vrot.slane %v8056, 4
    %v8059 = vshll.u32 %v7330, 16
    %v8061 = vrot.slane %v8059, 5
    %v8062 = vor.u32 %v8058, %v8061
    %v8063 = vrot.slane %v8062, 4
    %v8065 = vshll.u32 %v7331, 16
    %v8067 = vrot.slane %v8065, 5
    %v8068 = vsel %vm1762, %v8063, %v8067
    %v8069 = vshrl.u32 %v7331, 16
    %v8071 = vrot.slane %v8069, 4
    %v8072 = vor.u32 %v8071, %v8067
    %v8073 = vrot.slane %v8072, 4
    %v8075 = vshll.u32 %v7332, 16
    %v8077 = vrot.slane %v8075, 5
    %v8078 = vsel %vm1762, %v8073, %v8077
    %v8080 = vshrl.u32 %v7333, 16
    %v8082 = vrot.slane %v8080, 4
    %v8083 = vshll.u32 %v7333, 16
    %v8085 = vrot.slane %v8083, 5
    %v8086 = vor.u32 %v8082, %v8085
    %v8087 = vrot.slane %v8086, 4
    %v8089 = vshll.u32 %v7334, 16
    %v8091 = vrot.slane %v8089, 5
    %v8092 = vsel %vm1762, %v8087, %v8091
    %v8093 = vshrl.u32 %v7334, 16
    %v8095 = vrot.slane %v8093, 4
    %v8096 = vor.u32 %v8095, %v8091
    %v8097 = vrot.slane %v8096, 4
    %v8099 = vshll.u32 %v7335, 16
    %v8101 = vrot.slane %v8099, 5
    %v8102 = vsel %vm1762, %v8097, %v8101
    %v8104 = vshrl.u32 %v7336, 16
    %v8106 = vrot.slane %v8104, 4
    %v8107 = vshll.u32 %v7336, 16
    %v8109 = vrot.slane %v8107, 5
    %v8110 = vor.u32 %v8106, %v8109
    %v8111 = vrot.slane %v8110, 4
    %v8113 = vshll.u32 %v7337, 16
    %v8115 = vrot.slane %v8113, 5
    %v8116 = vsel %vm1762, %v8111, %v8115
    %v8117 = vshrl.u32 %v7337, 16
    %v8119 = vrot.slane %v8117, 4
    %v8120 = vor.u32 %v8119, %v8115
    %v8121 = vrot.slane %v8120, 4
    %v8123 = vshll.u32 %v7338, 16
    %v8125 = vrot.slane %v8123, 5
    %v8126 = vsel %vm1762, %v8121, %v8125
    %v8128 = vshrl.u32 %v7339, 16
    %v8130 = vrot.slane %v8128, 4
    %v8131 = vshll.u32 %v7339, 16
    %v8133 = vrot.slane %v8131, 5
    %v8134 = vor.u32 %v8130, %v8133
    %v8135 = vrot.slane %v8134, 4
    %v8137 = vshll.u32 %v7340, 16
    %v8139 = vrot.slane %v8137, 5
    %v8140 = vsel %vm1762, %v8135, %v8139
    %v8141 = vshrl.u32 %v7340, 16
    %v8143 = vrot.slane %v8141, 4
    %v8144 = vor.u32 %v8143, %v8139
    %v8145 = vrot.slane %v8144, 4
    %v8147 = vshll.u32 %v7341, 16
    %v8149 = vrot.slane %v8147, 5
    %v8150 = vsel %vm1762, %v8145, %v8149
    %v8152 = vshrl.u32 %v7342, 16
    %v8154 = vrot.slane %v8152, 4
    %v8155 = vshll.u32 %v7342, 16
    %v8157 = vrot.slane %v8155, 5
    %v8158 = vor.u32 %v8154, %v8157
    %v8159 = vrot.slane %v8158, 4
    %v8161 = vshll.u32 %v7343, 16
    %v8163 = vrot.slane %v8161, 5
    %v8164 = vsel %vm1762, %v8159, %v8163
    %v8165 = vshrl.u32 %v7343, 16
    %v8167 = vrot.slane %v8165, 4
    %v8168 = vor.u32 %v8167, %v8163
    %v8169 = vrot.slane %v8168, 4
    %v8171 = vshll.u32 %v7344, 16
    %v8173 = vrot.slane %v8171, 5
    %v8174 = vsel %vm1762, %v8169, %v8173
    %v8176 = vshrl.u32 %v7345, 16
    %v8178 = vrot.slane %v8176, 4
    %v8179 = vshll.u32 %v7345, 16
    %v8181 = vrot.slane %v8179, 5
    %v8182 = vor.u32 %v8178, %v8181
    %v8183 = vrot.slane %v8182, 4
    %v8185 = vshll.u32 %v7346, 16
    %v8187 = vrot.slane %v8185, 5
    %v8188 = vsel %vm1762, %v8183, %v8187
    %v8189 = vshrl.u32 %v7346, 16
    %v8191 = vrot.slane %v8189, 4
    %v8192 = vor.u32 %v8191, %v8187
    %v8193 = vrot.slane %v8192, 4
    %v8195 = vshll.u32 %v7347, 16
    %v8197 = vrot.slane %v8195, 5
    %v8198 = vsel %vm1762, %v8193, %v8197
    %v8200 = vshrl.u32 %v7348, 16
    %v8202 = vrot.slane %v8200, 4
    %v8203 = vshll.u32 %v7348, 16
    %v8205 = vrot.slane %v8203, 5
    %v8206 = vor.u32 %v8202, %v8205
    %v8207 = vrot.slane %v8206, 4
    %v8209 = vshll.u32 %v7349, 16
    %v8211 = vrot.slane %v8209, 5
    %v8212 = vsel %vm1762, %v8207, %v8211
    %v8213 = vshrl.u32 %v7349, 16
    %v8215 = vrot.slane %v8213, 4
    %v8216 = vor.u32 %v8215, %v8211
    %v8217 = vrot.slane %v8216, 4
    %v8219 = vshll.u32 %v7350, 16
    %v8221 = vrot.slane %v8219, 5
    %v8222 = vsel %vm1762, %v8217, %v8221
    %v8224 = vshrl.u32 %v7351, 16
    %v8226 = vrot.slane %v8224, 4
    %v8227 = vshll.u32 %v7351, 16
    %v8229 = vrot.slane %v8227, 5
    %v8230 = vor.u32 %v8226, %v8229
    %v8231 = vrot.slane %v8230, 4
    %v8233 = vshll.u32 %v7352, 16
    %v8235 = vrot.slane %v8233, 5
    %v8236 = vsel %vm1762, %v8231, %v8235
    %v8237 = vshrl.u32 %v7352, 16
    %v8239 = vrot.slane %v8237, 4
    %v8240 = vor.u32 %v8239, %v8235
    %v8241 = vrot.slane %v8240, 4
    %v8243 = vshll.u32 %v7353, 16
    %v8245 = vrot.slane %v8243, 5
    %v8246 = vsel %vm1762, %v8241, %v8245
    %v8248 = vshrl.u32 %v7354, 16
    %v8250 = vrot.slane %v8248, 4
    %v8251 = vshll.u32 %v7354, 16
    %v8253 = vrot.slane %v8251, 5
    %v8254 = vor.u32 %v8250, %v8253
    %v8255 = vrot.slane %v8254, 4
    %v8257 = vshll.u32 %v7355, 16
    %v8259 = vrot.slane %v8257, 5
    %v8260 = vsel %vm1762, %v8255, %v8259
    %v8261 = vshrl.u32 %v7355, 16
    %v8263 = vrot.slane %v8261, 4
    %v8264 = vor.u32 %v8263, %v8259
    %v8265 = vrot.slane %v8264, 4
    %v8267 = vshll.u32 %v7356, 16
    %v8269 = vrot.slane %v8267, 5
    %v8270 = vsel %vm1762, %v8265, %v8269
    %v8272 = vshrl.u32 %v7357, 16
    %v8274 = vrot.slane %v8272, 4
    %v8275 = vshll.u32 %v7357, 16
    %v8277 = vrot.slane %v8275, 5
    %v8278 = vor.u32 %v8274, %v8277
    %v8279 = vrot.slane %v8278, 4
    %v8281 = vshll.u32 %v7358, 16
    %v8283 = vrot.slane %v8281, 5
    %v8284 = vsel %vm1762, %v8279, %v8283
    %v8285 = vshrl.u32 %v7358, 16
    %v8287 = vrot.slane %v8285, 4
    %v8288 = vor.u32 %v8287, %v8283
    %v8289 = vrot.slane %v8288, 4
    %v8291 = vshll.u32 %v7359, 16
    %v8293 = vrot.slane %v8291, 5
    %v8294 = vsel %vm1762, %v8289, %v8293
    %v8296 = vshrl.u32 %v7360, 16
    %v8298 = vrot.slane %v8296, 4
    %v8299 = vshll.u32 %v7360, 16
    %v8301 = vrot.slane %v8299, 5
    %v8302 = vor.u32 %v8298, %v8301
    %v8303 = vrot.slane %v8302, 4
    %v8305 = vshll.u32 %v7361, 16
    %v8307 = vrot.slane %v8305, 5
    %v8308 = vsel %vm1762, %v8303, %v8307
    %v8309 = vshrl.u32 %v7361, 16
    %v8311 = vrot.slane %v8309, 4
    %v8312 = vor.u32 %v8311, %v8307
    %v8313 = vrot.slane %v8312, 4
    %v8315 = vshll.u32 %v7362, 16
    %v8317 = vrot.slane %v8315, 5
    %v8318 = vsel %vm1762, %v8313, %v8317
    %v8320 = vshrl.u32 %v7363, 16
    %v8322 = vrot.slane %v8320, 4
    %v8323 = vshll.u32 %v7363, 16
    %v8325 = vrot.slane %v8323, 5
    %v8326 = vor.u32 %v8322, %v8325
    %v8327 = vrot.slane %v8326, 4
    %v8329 = vshll.u32 %v7364, 16
    %v8331 = vrot.slane %v8329, 5
    %v8332 = vsel %vm1762, %v8327, %v8331
    %v8333 = vshrl.u32 %v7364, 16
    %v8335 = vrot.slane %v8333, 4
    %v8336 = vor.u32 %v8335, %v8331
    %v8337 = vrot.slane %v8336, 4
    %v8339 = vshll.u32 %v7365, 16
    %v8341 = vrot.slane %v8339, 5
    %v8342 = vsel %vm1762, %v8337, %v8341
    %v8344 = vshrl.u32 %v7366, 16
    %v8346 = vrot.slane %v8344, 4
    %v8347 = vshll.u32 %v7366, 16
    %v8349 = vrot.slane %v8347, 5
    %v8350 = vor.u32 %v8346, %v8349
    %v8351 = vrot.slane %v8350, 4
    %v8353 = vshll.u32 %v7367, 16
    %v8355 = vrot.slane %v8353, 5
    %v8356 = vsel %vm1762, %v8351, %v8355
    %v8357 = vshrl.u32 %v7367, 16
    %v8359 = vrot.slane %v8357, 4
    %v8360 = vor.u32 %v8359, %v8355
    %v8361 = vrot.slane %v8360, 4
    %v8363 = vshll.u32 %v7368, 16
    %v8365 = vrot.slane %v8363, 5
    %v8366 = vsel %vm1762, %v8361, %v8365
    %v8367 = vunpack.c.l.b16 %v7612
    %v8368 = vunpack.c.l.b16 %v7622
    %v8369 = vunpack.c.l.b16 %v7636
    %v8370 = vunpack.c.l.b16 %v7646
    %v8371 = vunpack.c.l.b16 %v7660
    %v8372 = vunpack.c.l.b16 %v7670
    %v8373 = vunpack.c.l.b16 %v7684
    %v8374 = vunpack.c.l.b16 %v7694
    %v8375 = vunpack.c.l.b16 %v7708
    %v8376 = vunpack.c.l.b16 %v7718
    %v8377 = vunpack.c.l.b16 %v7732
    %v8378 = vunpack.c.l.b16 %v7742
    %v8379 = vunpack.c.l.b16 %v7756
    %v8380 = vunpack.c.l.b16 %v7766
    %v8381 = vunpack.c.l.b16 %v7780
    %v8382 = vunpack.c.l.b16 %v7790
    %v8383 = vunpack.c.l.b16 %v7804
    %v8384 = vunpack.c.l.b16 %v7814
    %v8385 = vunpack.c.l.b16 %v7828
    %v8386 = vunpack.c.l.b16 %v7838
    %v8387 = vunpack.c.l.b16 %v7852
    %v8388 = vunpack.c.l.b16 %v7862
    %v8389 = vunpack.c.l.b16 %v7876
    %v8390 = vunpack.c.l.b16 %v7886
    %v8391 = vunpack.c.l.b16 %v7900
    %v8392 = vunpack.c.l.b16 %v7910
    %v8393 = vunpack.c.l.b16 %v7924
    %v8394 = vunpack.c.l.b16 %v7934
    %v8395 = vunpack.c.l.b16 %v7948
    %v8396 = vunpack.c.l.b16 %v7958
    %v8397 = vunpack.c.l.b16 %v7972
    %v8398 = vunpack.c.l.b16 %v7982
    %v8399 = vunpack.c.l.b16 %v7996
    %v8400 = vunpack.c.l.b16 %v8006
    %v8401 = vunpack.c.l.b16 %v8020
    %v8402 = vunpack.c.l.b16 %v8030
    %v8403 = vunpack.c.l.b16 %v8044
    %v8404 = vunpack.c.l.b16 %v8054
    %v8405 = vunpack.c.l.b16 %v8068
    %v8406 = vunpack.c.l.b16 %v8078
    %v8407 = vunpack.c.l.b16 %v8092
    %v8408 = vunpack.c.l.b16 %v8102
    %v8409 = vunpack.c.l.b16 %v8116
    %v8410 = vunpack.c.l.b16 %v8126
    %v8411 = vunpack.c.l.b16 %v8140
    %v8412 = vunpack.c.l.b16 %v8150
    %v8413 = vunpack.c.l.b16 %v8164
    %v8414 = vunpack.c.l.b16 %v8174
    %v8415 = vunpack.c.l.b16 %v8188
    %v8416 = vunpack.c.l.b16 %v8198
    %v8417 = vunpack.c.l.b16 %v8212
    %v8418 = vunpack.c.l.b16 %v8222
    %v8419 = vunpack.c.l.b16 %v8236
    %v8420 = vunpack.c.l.b16 %v8246
    %v8421 = vunpack.c.l.b16 %v8260
    %v8422 = vunpack.c.l.b16 %v8270
    %v8423 = vunpack.c.l.b16 %v8284
    %v8424 = vunpack.c.l.b16 %v8294
    %v8425 = vunpack.c.l.b16 %v8308
    %v8426 = vunpack.c.l.b16 %v8318
    %v8427 = vunpack.c.l.b16 %v8332
    %v8428 = vunpack.c.l.b16 %v8342
    %v8429 = vunpack.c.l.b16 %v8356
    %v8430 = vunpack.c.l.b16 %v8366
    %v8431 = vpack.c.b16 %v8368, %v8367
    %v8432 = vpack.c.b16 %v8370, %v8369
    %v8433 = vpack.c.b16 %v8372, %v8371
    %v8434 = vpack.c.b16 %v8374, %v8373
    %v8435 = vpack.c.b16 %v8376, %v8375
    %v8436 = vpack.c.b16 %v8378, %v8377
    %v8437 = vpack.c.b16 %v8380, %v8379
    %v8438 = vpack.c.b16 %v8382, %v8381
    %v8439 = vpack.c.b16 %v8384, %v8383
    %v8440 = vpack.c.b16 %v8386, %v8385
    %v8441 = vpack.c.b16 %v8388, %v8387
    %v8442 = vpack.c.b16 %v8390, %v8389
    %v8443 = vpack.c.b16 %v8392, %v8391
    %v8444 = vpack.c.b16 %v8394, %v8393
    %v8445 = vpack.c.b16 %v8396, %v8395
    %v8446 = vpack.c.b16 %v8398, %v8397
    %v8447 = vpack.c.b16 %v8400, %v8399
    %v8448 = vpack.c.b16 %v8402, %v8401
    %v8449 = vpack.c.b16 %v8404, %v8403
    %v8450 = vpack.c.b16 %v8406, %v8405
    %v8451 = vpack.c.b16 %v8408, %v8407
    %v8452 = vpack.c.b16 %v8410, %v8409
    %v8453 = vpack.c.b16 %v8412, %v8411
    %v8454 = vpack.c.b16 %v8414, %v8413
    %v8455 = vpack.c.b16 %v8416, %v8415
    %v8456 = vpack.c.b16 %v8418, %v8417
    %v8457 = vpack.c.b16 %v8420, %v8419
    %v8458 = vpack.c.b16 %v8422, %v8421
    %v8459 = vpack.c.b16 %v8424, %v8423
    %v8460 = vpack.c.b16 %v8426, %v8425
    %v8461 = vpack.c.b16 %v8428, %v8427
    %v8462 = vpack.c.b16 %v8430, %v8429
    %8495 = vst [vmem:[#allocation3 + $0x8] sm:$0xff] %v8431
    %8496 = vst [vmem:[#allocation3 + $0x50] sm:$0xff] %v8432
    %8497 = vst [vmem:[#allocation3 + $0x98] sm:$0xff] %v8433
    %8498 = vst [vmem:[#allocation3 + $0xe0] sm:$0xff] %v8434
    %8499 = vst [vmem:[#allocation3 + $0x128] sm:$0xff] %v8435
    %8500 = vst [vmem:[#allocation3 + $0x170] sm:$0xff] %v8436
    %8501 = vst [vmem:[#allocation3 + $0x1b8] sm:$0xff] %v8437
    %8502 = vst [vmem:[#allocation3 + $0x200] sm:$0xff] %v8438
    %8503 = vst [vmem:[#allocation3 + $0x248] sm:$0xff] %v8439
    %8504 = vst [vmem:[#allocation3 + $0x290] sm:$0xff] %v8440
    %8505 = vst [vmem:[#allocation3 + $0x2d8] sm:$0xff] %v8441
    %8506 = vst [vmem:[#allocation3 + $0x320] sm:$0xff] %v8442
    %8507 = vst [vmem:[#allocation3 + $0x368] sm:$0xff] %v8443
    %8508 = vst [vmem:[#allocation3 + $0x3b0] sm:$0xff] %v8444
    %8509 = vst [vmem:[#allocation3 + $0x3f8] sm:$0xff] %v8445
    %8510 = vst [vmem:[#allocation3 + $0x440] sm:$0xff] %v8446
    %8511 = vst [vmem:[#allocation3 + $0x488] sm:$0xff] %v8447
    %8512 = vst [vmem:[#allocation3 + $0x4d0] sm:$0xff] %v8448
    %8513 = vst [vmem:[#allocation3 + $0x518] sm:$0xff] %v8449
    %8514 = vst [vmem:[#allocation3 + $0x560] sm:$0xff] %v8450
    %8515 = vst [vmem:[#allocation3 + $0x5a8] sm:$0xff] %v8451
    %8516 = vst [vmem:[#allocation3 + $0x5f0] sm:$0xff] %v8452
    %8517 = vst [vmem:[#allocation3 + $0x638] sm:$0xff] %v8453
    %8518 = vst [vmem:[#allocation3 + $0x680] sm:$0xff] %v8454
    %8519 = vst [vmem:[#allocation3 + $0x6c8] sm:$0xff] %v8455
    %8520 = vst [vmem:[#allocation3 + $0x710] sm:$0xff] %v8456
    %8521 = vst [vmem:[#allocation3 + $0x758] sm:$0xff] %v8457
    %8522 = vst [vmem:[#allocation3 + $0x7a0] sm:$0xff] %v8458
    %8523 = vst [vmem:[#allocation3 + $0x7e8] sm:$0xff] %v8459
    %8524 = vst [vmem:[#allocation3 + $0x830] sm:$0xff] %v8460
    %8525 = vst [vmem:[#allocation3 + $0x878] sm:$0xff] %v8461
    %8526 = vst [vmem:[#allocation3 + $0x8c0] sm:$0xff] %v8462
    %v8559 = vrot.slane %v7267, 5
    %v8560 = vrot.slane %v8559, 4
    %v8561 = vrot.slane %v7268, 5
    %v8562 = vsel %vm2725, %v8560, %v8561
    %v8563 = vrot.slane %v8561, 4
    %v8564 = vrot.slane %v7269, 5
    %v8565 = vsel %vm2725, %v8563, %v8564
    %v8566 = vrot.slane %v7270, 5
    %v8567 = vrot.slane %v8566, 4
    %v8568 = vrot.slane %v7271, 5
    %v8569 = vsel %vm2725, %v8567, %v8568
    %v8570 = vrot.slane %v8568, 4
    %v8571 = vrot.slane %v7272, 5
    %v8572 = vsel %vm2725, %v8570, %v8571
    %v8573 = vrot.slane %v7273, 5
    %v8574 = vrot.slane %v8573, 4
    %v8575 = vrot.slane %v7274, 5
    %v8576 = vsel %vm2725, %v8574, %v8575
    %v8577 = vrot.slane %v8575, 4
    %v8578 = vrot.slane %v7275, 5
    %v8579 = vsel %vm2725, %v8577, %v8578
    %v8580 = vrot.slane %v7276, 5
    %v8581 = vrot.slane %v8580, 4
    %v8582 = vrot.slane %v7277, 5
    %v8583 = vsel %vm2725, %v8581, %v8582
    %v8584 = vrot.slane %v8582, 4
    %v8585 = vrot.slane %v7278, 5
    %v8586 = vsel %vm2725, %v8584, %v8585
    %v8587 = vrot.slane %v7279, 5
    %v8588 = vrot.slane %v8587, 4
    %v8589 = vrot.slane %v7280, 5
    %v8590 = vsel %vm2725, %v8588, %v8589
    %v8591 = vrot.slane %v8589, 4
    %v8592 = vrot.slane %v7281, 5
    %v8593 = vsel %vm2725, %v8591, %v8592
    %v8594 = vrot.slane %v7282, 5
    %v8595 = vrot.slane %v8594, 4
    %v8596 = vrot.slane %v7283, 5
    %v8597 = vsel %vm2725, %v8595, %v8596
    %v8598 = vrot.slane %v8596, 4
    %v8599 = vrot.slane %v7284, 5
    %v8600 = vsel %vm2725, %v8598, %v8599
    %v8601 = vrot.slane %v7285, 5
    %v8602 = vrot.slane %v8601, 4
    %v8603 = vrot.slane %v7286, 5
    %v8604 = vsel %vm2725, %v8602, %v8603
    %v8605 = vrot.slane %v8603, 4
    %v8606 = vrot.slane %v7287, 5
    %v8607 = vsel %vm2725, %v8605, %v8606
    %v8608 = vrot.slane %v7288, 5
    %v8609 = vrot.slane %v8608, 4
    %v8610 = vrot.slane %v7289, 5
    %v8611 = vsel %vm2725, %v8609, %v8610
    %v8612 = vrot.slane %v8610, 4
    %v8613 = vrot.slane %v7290, 5
    %v8614 = vsel %vm2725, %v8612, %v8613
    %v8615 = vrot.slane %v7291, 5
    %v8616 = vrot.slane %v8615, 4
    %v8617 = vrot.slane %v7292, 5
    %v8618 = vsel %vm2725, %v8616, %v8617
    %v8619 = vrot.slane %v8617, 4
    %v8620 = vrot.slane %v7293, 5
    %v8621 = vsel %vm2725, %v8619, %v8620
    %v8622 = vrot.slane %v7294, 5
    %v8623 = vrot.slane %v8622, 4
    %v8624 = vrot.slane %v7295, 5
    %v8625 = vsel %vm2725, %v8623, %v8624
    %v8626 = vrot.slane %v8624, 4
    %v8627 = vrot.slane %v7296, 5
    %v8628 = vsel %vm2725, %v8626, %v8627
    %v8629 = vrot.slane %v7297, 5
    %v8630 = vrot.slane %v8629, 4
    %v8631 = vrot.slane %v7298, 5
    %v8632 = vsel %vm2725, %v8630, %v8631
    %v8633 = vrot.slane %v8631, 4
    %v8634 = vrot.slane %v7299, 5
    %v8635 = vsel %vm2725, %v8633, %v8634
    %v8636 = vrot.slane %v7300, 5
    %v8637 = vrot.slane %v8636, 4
    %v8638 = vrot.slane %v7301, 5
    %v8639 = vsel %vm2725, %v8637, %v8638
    %v8640 = vrot.slane %v8638, 4
    %v8641 = vrot.slane %v7302, 5
    %v8642 = vsel %vm2725, %v8640, %v8641
    %v8643 = vrot.slane %v7303, 5
    %v8644 = vrot.slane %v8643, 4
    %v8645 = vrot.slane %v7304, 5
    %v8646 = vsel %vm2725, %v8644, %v8645
    %v8647 = vrot.slane %v8645, 4
    %v8648 = vrot.slane %v7305, 5
    %v8649 = vsel %vm2725, %v8647, %v8648
    %v8650 = vrot.slane %v7306, 5
    %v8651 = vrot.slane %v8650, 4
    %v8652 = vrot.slane %v7307, 5
    %v8653 = vsel %vm2725, %v8651, %v8652
    %v8654 = vrot.slane %v8652, 4
    %v8655 = vrot.slane %v7308, 5
    %v8656 = vsel %vm2725, %v8654, %v8655
    %v8657 = vrot.slane %v7309, 5
    %v8658 = vrot.slane %v8657, 4
    %v8659 = vrot.slane %v7310, 5
    %v8660 = vsel %vm2725, %v8658, %v8659
    %v8661 = vrot.slane %v8659, 4
    %v8662 = vrot.slane %v7311, 5
    %v8663 = vsel %vm2725, %v8661, %v8662
    %v8664 = vrot.slane %v7312, 5
    %v8665 = vrot.slane %v8664, 4
    %v8666 = vrot.slane %v7313, 5
    %v8667 = vsel %vm2725, %v8665, %v8666
    %v8668 = vrot.slane %v8666, 4
    %v8669 = vrot.slane %v7314, 5
    %v8670 = vsel %vm2725, %v8668, %v8669
    %v8671 = vrot.slane %v7321, 5
    %v8672 = vrot.slane %v8671, 4
    %v8673 = vrot.slane %v7322, 5
    %v8674 = vsel %vm2725, %v8672, %v8673
    %v8675 = vrot.slane %v8673, 4
    %v8676 = vrot.slane %v7323, 5
    %v8677 = vsel %vm2725, %v8675, %v8676
    %v8678 = vrot.slane %v7324, 5
    %v8679 = vrot.slane %v8678, 4
    %v8680 = vrot.slane %v7325, 5
    %v8681 = vsel %vm2725, %v8679, %v8680
    %v8682 = vrot.slane %v8680, 4
    %v8683 = vrot.slane %v7326, 5
    %v8684 = vsel %vm2725, %v8682, %v8683
    %v8685 = vrot.slane %v7327, 5
    %v8686 = vrot.slane %v8685, 4
    %v8687 = vrot.slane %v7328, 5
    %v8688 = vsel %vm2725, %v8686, %v8687
    %v8689 = vrot.slane %v8687, 4
    %v8690 = vrot.slane %v7329, 5
    %v8691 = vsel %vm2725, %v8689, %v8690
    %v8692 = vrot.slane %v7330, 5
    %v8693 = vrot.slane %v8692, 4
    %v8694 = vrot.slane %v7331, 5
    %v8695 = vsel %vm2725, %v8693, %v8694
    %v8696 = vrot.slane %v8694, 4
    %v8697 = vrot.slane %v7332, 5
    %v8698 = vsel %vm2725, %v8696, %v8697
    %v8699 = vrot.slane %v7333, 5
    %v8700 = vrot.slane %v8699, 4
    %v8701 = vrot.slane %v7334, 5
    %v8702 = vsel %vm2725, %v8700, %v8701
    %v8703 = vrot.slane %v8701, 4
    %v8704 = vrot.slane %v7335, 5
    %v8705 = vsel %vm2725, %v8703, %v8704
    %v8706 = vrot.slane %v7336, 5
    %v8707 = vrot.slane %v8706, 4
    %v8708 = vrot.slane %v7337, 5
    %v8709 = vsel %vm2725, %v8707, %v8708
    %v8710 = vrot.slane %v8708, 4
    %v8711 = vrot.slane %v7338, 5
    %v8712 = vsel %vm2725, %v8710, %v8711
    %v8713 = vrot.slane %v7339, 5
    %v8714 = vrot.slane %v8713, 4
    %v8715 = vrot.slane %v7340, 5
    %v8716 = vsel %vm2725, %v8714, %v8715
    %v8717 = vrot.slane %v8715, 4
    %v8718 = vrot.slane %v7341, 5
    %v8719 = vsel %vm2725, %v8717, %v8718
    %v8720 = vrot.slane %v7342, 5
    %v8721 = vrot.slane %v8720, 4
    %v8722 = vrot.slane %v7343, 5
    %v8723 = vsel %vm2725, %v8721, %v8722
    %v8724 = vrot.slane %v8722, 4
    %v8725 = vrot.slane %v7344, 5
    %v8726 = vsel %vm2725, %v8724, %v8725
    %v8727 = vrot.slane %v7345, 5
    %v8728 = vrot.slane %v8727, 4
    %v8729 = vrot.slane %v7346, 5
    %v8730 = vsel %vm2725, %v8728, %v8729
    %v8731 = vrot.slane %v8729, 4
    %v8732 = vrot.slane %v7347, 5
    %v8733 = vsel %vm2725, %v8731, %v8732
    %v8734 = vrot.slane %v7348, 5
    %v8735 = vrot.slane %v8734, 4
    %v8736 = vrot.slane %v7349, 5
    %v8737 = vsel %vm2725, %v8735, %v8736
    %v8738 = vrot.slane %v8736, 4
    %v8739 = vrot.slane %v7350, 5
    %v8740 = vsel %vm2725, %v8738, %v8739
    %v8741 = vrot.slane %v7351, 5
    %v8742 = vrot.slane %v8741, 4
    %v8743 = vrot.slane %v7352, 5
    %v8744 = vsel %vm2725, %v8742, %v8743
    %v8745 = vrot.slane %v8743, 4
    %v8746 = vrot.slane %v7353, 5
    %v8747 = vsel %vm2725, %v8745, %v8746
    %v8748 = vrot.slane %v7354, 5
    %v8749 = vrot.slane %v8748, 4
    %v8750 = vrot.slane %v7355, 5
    %v8751 = vsel %vm2725, %v8749, %v8750
    %v8752 = vrot.slane %v8750, 4
    %v8753 = vrot.slane %v7356, 5
    %v8754 = vsel %vm2725, %v8752, %v8753
    %v8755 = vrot.slane %v7357, 5
    %v8756 = vrot.slane %v8755, 4
    %v8757 = vrot.slane %v7358, 5
    %v8758 = vsel %vm2725, %v8756, %v8757
    %v8759 = vrot.slane %v8757, 4
    %v8760 = vrot.slane %v7359, 5
    %v8761 = vsel %vm2725, %v8759, %v8760
    %v8762 = vrot.slane %v7360, 5
    %v8763 = vrot.slane %v8762, 4
    %v8764 = vrot.slane %v7361, 5
    %v8765 = vsel %vm2725, %v8763, %v8764
    %v8766 = vrot.slane %v8764, 4
    %v8767 = vrot.slane %v7362, 5
    %v8768 = vsel %vm2725, %v8766, %v8767
    %v8769 = vrot.slane %v7363, 5
    %v8770 = vrot.slane %v8769, 4
    %v8771 = vrot.slane %v7364, 5
    %v8772 = vsel %vm2725, %v8770, %v8771
    %v8773 = vrot.slane %v8771, 4
    %v8774 = vrot.slane %v7365, 5
    %v8775 = vsel %vm2725, %v8773, %v8774
    %v8776 = vrot.slane %v7366, 5
    %v8777 = vrot.slane %v8776, 4
    %v8778 = vrot.slane %v7367, 5
    %v8779 = vsel %vm2725, %v8777, %v8778
    %v8780 = vrot.slane %v8778, 4
    %v8781 = vrot.slane %v7368, 5
    %v8782 = vsel %vm2725, %v8780, %v8781
    %v8783 = vunpack.c.l.b16 %v8562
    %v8784 = vunpack.c.l.b16 %v8565
    %v8785 = vunpack.c.l.b16 %v8569
    %v8786 = vunpack.c.l.b16 %v8572
    %v8787 = vunpack.c.l.b16 %v8576
    %v8788 = vunpack.c.l.b16 %v8579
    %v8789 = vunpack.c.l.b16 %v8583
    %v8790 = vunpack.c.l.b16 %v8586
    %v8791 = vunpack.c.l.b16 %v8590
    %v8792 = vunpack.c.l.b16 %v8593
    %v8793 = vunpack.c.l.b16 %v8597
    %v8794 = vunpack.c.l.b16 %v8600
    %v8795 = vunpack.c.l.b16 %v8604
    %v8796 = vunpack.c.l.b16 %v8607
    %v8797 = vunpack.c.l.b16 %v8611
    %v8798 = vunpack.c.l.b16 %v8614
    %v8799 = vunpack.c.l.b16 %v8618
    %v8800 = vunpack.c.l.b16 %v8621
    %v8801 = vunpack.c.l.b16 %v8625
    %v8802 = vunpack.c.l.b16 %v8628
    %v8803 = vunpack.c.l.b16 %v8632
    %v8804 = vunpack.c.l.b16 %v8635
    %v8805 = vunpack.c.l.b16 %v8639
    %v8806 = vunpack.c.l.b16 %v8642
    %v8807 = vunpack.c.l.b16 %v8646
    %v8808 = vunpack.c.l.b16 %v8649
    %v8809 = vunpack.c.l.b16 %v8653
    %v8810 = vunpack.c.l.b16 %v8656
    %v8811 = vunpack.c.l.b16 %v8660
    %v8812 = vunpack.c.l.b16 %v8663
    %v8813 = vunpack.c.l.b16 %v8667
    %v8814 = vunpack.c.l.b16 %v8670
    %v8815 = vunpack.c.l.b16 %v8674
    %v8816 = vunpack.c.l.b16 %v8677
    %v8817 = vunpack.c.l.b16 %v8681
    %v8818 = vunpack.c.l.b16 %v8684
    %v8819 = vunpack.c.l.b16 %v8688
    %v8820 = vunpack.c.l.b16 %v8691
    %v8821 = vunpack.c.l.b16 %v8695
    %v8822 = vunpack.c.l.b16 %v8698
    %v8823 = vunpack.c.l.b16 %v8702
    %v8824 = vunpack.c.l.b16 %v8705
    %v8825 = vunpack.c.l.b16 %v8709
    %v8826 = vunpack.c.l.b16 %v8712
    %v8827 = vunpack.c.l.b16 %v8716
    %v8828 = vunpack.c.l.b16 %v8719
    %v8829 = vunpack.c.l.b16 %v8723
    %v8830 = vunpack.c.l.b16 %v8726
    %v8831 = vunpack.c.l.b16 %v8730
    %v8832 = vunpack.c.l.b16 %v8733
    %v8833 = vunpack.c.l.b16 %v8737
    %v8834 = vunpack.c.l.b16 %v8740
    %v8835 = vunpack.c.l.b16 %v8744
    %v8836 = vunpack.c.l.b16 %v8747
    %v8837 = vunpack.c.l.b16 %v8751
    %v8838 = vunpack.c.l.b16 %v8754
    %v8839 = vunpack.c.l.b16 %v8758
    %v8840 = vunpack.c.l.b16 %v8761
    %v8841 = vunpack.c.l.b16 %v8765
    %v8842 = vunpack.c.l.b16 %v8768
    %v8843 = vunpack.c.l.b16 %v8772
    %v8844 = vunpack.c.l.b16 %v8775
    %v8845 = vunpack.c.l.b16 %v8779
    %v8846 = vunpack.c.l.b16 %v8782
    %v8847 = vpack.c.b16 %v8784, %v8783
    %v8848 = vpack.c.b16 %v8786, %v8785
    %v8849 = vpack.c.b16 %v8788, %v8787
    %v8850 = vpack.c.b16 %v8790, %v8789
    %v8851 = vpack.c.b16 %v8792, %v8791
    %v8852 = vpack.c.b16 %v8794, %v8793
    %v8853 = vpack.c.b16 %v8796, %v8795
    %v8854 = vpack.c.b16 %v8798, %v8797
    %v8855 = vpack.c.b16 %v8800, %v8799
    %v8856 = vpack.c.b16 %v8802, %v8801
    %v8857 = vpack.c.b16 %v8804, %v8803
    %v8858 = vpack.c.b16 %v8806, %v8805
    %v8859 = vpack.c.b16 %v8808, %v8807
    %v8860 = vpack.c.b16 %v8810, %v8809
    %v8861 = vpack.c.b16 %v8812, %v8811
    %v8862 = vpack.c.b16 %v8814, %v8813
    %v8863 = vpack.c.b16 %v8816, %v8815
    %v8864 = vpack.c.b16 %v8818, %v8817
    %v8865 = vpack.c.b16 %v8820, %v8819
    %v8866 = vpack.c.b16 %v8822, %v8821
    %v8867 = vpack.c.b16 %v8824, %v8823
    %v8868 = vpack.c.b16 %v8826, %v8825
    %v8869 = vpack.c.b16 %v8828, %v8827
    %v8870 = vpack.c.b16 %v8830, %v8829
    %v8871 = vpack.c.b16 %v8832, %v8831
    %v8872 = vpack.c.b16 %v8834, %v8833
    %v8873 = vpack.c.b16 %v8836, %v8835
    %v8874 = vpack.c.b16 %v8838, %v8837
    %v8875 = vpack.c.b16 %v8840, %v8839
    %v8876 = vpack.c.b16 %v8842, %v8841
    %v8877 = vpack.c.b16 %v8844, %v8843
    %v8878 = vpack.c.b16 %v8846, %v8845
    %8911 = vst [vmem:[#allocation3 + $0x10] sm:$0xff] %v8847
    %8912 = vst [vmem:[#allocation3 + $0x58] sm:$0xff] %v8848
    %8913 = vst [vmem:[#allocation3 + $0xa0] sm:$0xff] %v8849
    %8914 = vst [vmem:[#allocation3 + $0xe8] sm:$0xff] %v8850
    %8915 = vst [vmem:[#allocation3 + $0x130] sm:$0xff] %v8851
    %8916 = vst [vmem:[#allocation3 + $0x178] sm:$0xff] %v8852
    %8917 = vst [vmem:[#allocation3 + $0x1c0] sm:$0xff] %v8853
    %8918 = vst [vmem:[#allocation3 + $0x208] sm:$0xff] %v8854
    %8919 = vst [vmem:[#allocation3 + $0x250] sm:$0xff] %v8855
    %8920 = vst [vmem:[#allocation3 + $0x298] sm:$0xff] %v8856
    %8921 = vst [vmem:[#allocation3 + $0x2e0] sm:$0xff] %v8857
    %8922 = vst [vmem:[#allocation3 + $0x328] sm:$0xff] %v8858
    %8923 = vst [vmem:[#allocation3 + $0x370] sm:$0xff] %v8859
    %8924 = vst [vmem:[#allocation3 + $0x3b8] sm:$0xff] %v8860
    %8925 = vst [vmem:[#allocation3 + $0x400] sm:$0xff] %v8861
    %8926 = vst [vmem:[#allocation3 + $0x448] sm:$0xff] %v8862
    %8927 = vst [vmem:[#allocation3 + $0x490] sm:$0xff] %v8863
    %8928 = vst [vmem:[#allocation3 + $0x4d8] sm:$0xff] %v8864
    %8929 = vst [vmem:[#allocation3 + $0x520] sm:$0xff] %v8865
    %8930 = vst [vmem:[#allocation3 + $0x568] sm:$0xff] %v8866
    %8931 = vst [vmem:[#allocation3 + $0x5b0] sm:$0xff] %v8867
    %8932 = vst [vmem:[#allocation3 + $0x5f8] sm:$0xff] %v8868
    %8933 = vst [vmem:[#allocation3 + $0x640] sm:$0xff] %v8869
    %8934 = vst [vmem:[#allocation3 + $0x688] sm:$0xff] %v8870
    %8935 = vst [vmem:[#allocation3 + $0x6d0] sm:$0xff] %v8871
    %8936 = vst [vmem:[#allocation3 + $0x718] sm:$0xff] %v8872
    %8937 = vst [vmem:[#allocation3 + $0x760] sm:$0xff] %v8873
    %8938 = vst [vmem:[#allocation3 + $0x7a8] sm:$0xff] %v8874
    %8939 = vst [vmem:[#allocation3 + $0x7f0] sm:$0xff] %v8875
    %8940 = vst [vmem:[#allocation3 + $0x838] sm:$0xff] %v8876
    %8941 = vst [vmem:[#allocation3 + $0x880] sm:$0xff] %v8877
    %8942 = vst [vmem:[#allocation3 + $0x8c8] sm:$0xff] %v8878
    %v8947 = vunpack.c.l.b16 %v7315
    %v8948 = vunpack.c.l.b16 %v7316
    %v8949 = vunpack.c.l.b16 %v7369
    %v8950 = vunpack.c.l.b16 %v7370
    %v8951 = vpack.c.b16 %v8948, %v8947
    %v8952 = vpack.c.b16 %v8950, %v8949
    %8955 = vst [vmem:[#allocation3 + $0x18] sm:$0xff] %v7504
    %8956 = vst [vmem:[#allocation3 + $0x60] sm:$0xff] %v7505
    %8957 = vst [vmem:[#allocation3 + $0xa8] sm:$0xff] %v7506
    %8958 = vst [vmem:[#allocation3 + $0xf0] sm:$0xff] %v7507
    %8959 = vst [vmem:[#allocation3 + $0x138] sm:$0xff] %v7508
    %8960 = vst [vmem:[#allocation3 + $0x180] sm:$0xff] %v7509
    %8961 = vst [vmem:[#allocation3 + $0x1c8] sm:$0xff] %v7510
    %8962 = vst [vmem:[#allocation3 + $0x210] sm:$0xff] %v7511
    %8963 = vst [vmem:[#allocation3 + $0x258] sm:$0xff] %v7512
    %8964 = vst [vmem:[#allocation3 + $0x2a0] sm:$0xff] %v7513
    %8965 = vst [vmem:[#allocation3 + $0x2e8] sm:$0xff] %v7514
    %8966 = vst [vmem:[#allocation3 + $0x330] sm:$0xff] %v7515
    %8967 = vst [vmem:[#allocation3 + $0x378] sm:$0xff] %v7516
    %8968 = vst [vmem:[#allocation3 + $0x3c0] sm:$0xff] %v7517
    %8969 = vst [vmem:[#allocation3 + $0x408] sm:$0xff] %v7518
    %8970 = vst [vmem:[#allocation3 + $0x450] sm:$0xff] %v8951
    %8971 = vst [vmem:[#allocation3 + $0x498] sm:$0xff] %v7520
    %8972 = vst [vmem:[#allocation3 + $0x4e0] sm:$0xff] %v7521
    %8973 = vst [vmem:[#allocation3 + $0x528] sm:$0xff] %v7522
    %8974 = vst [vmem:[#allocation3 + $0x570] sm:$0xff] %v7523
    %8975 = vst [vmem:[#allocation3 + $0x5b8] sm:$0xff] %v7524
    %8976 = vst [vmem:[#allocation3 + $0x600] sm:$0xff] %v7525
    %8977 = vst [vmem:[#allocation3 + $0x648] sm:$0xff] %v7526
    %8978 = vst [vmem:[#allocation3 + $0x690] sm:$0xff] %v7527
    %8979 = vst [vmem:[#allocation3 + $0x6d8] sm:$0xff] %v7528
    %8980 = vst [vmem:[#allocation3 + $0x720] sm:$0xff] %v7529
    %8981 = vst [vmem:[#allocation3 + $0x768] sm:$0xff] %v7530
    %8982 = vst [vmem:[#allocation3 + $0x7b0] sm:$0xff] %v7531
    %8983 = vst [vmem:[#allocation3 + $0x7f8] sm:$0xff] %v7532
    %8984 = vst [vmem:[#allocation3 + $0x840] sm:$0xff] %v7533
    %8985 = vst [vmem:[#allocation3 + $0x888] sm:$0xff] %v7534
    %8986 = vst [vmem:[#allocation3 + $0x8d0] sm:$0xff] %v8952
    %v8988 = vshrl.u32 %v7315, 16
    %v8990 = vrot.slane %v8988, 4
    %v8991 = vshll.u32 %v7315, 16
    %v8993 = vrot.slane %v8991, 5
    %v8994 = vor.u32 %v8990, %v8993
    %v8995 = vrot.slane %v8994, 4
    %v8997 = vshll.u32 %v7316, 16
    %v8999 = vrot.slane %v8997, 5
    %v9000 = vsel %vm1762, %v8995, %v8999
    %v9001 = vshrl.u32 %v7316, 16
    %v9003 = vrot.slane %v9001, 4
    %v9004 = vor.u32 %v9003, %v8999
    %v9005 = vrot.slane %v9004, 4
    %v9007 = vshll.u32 %v7317, 16
    %v9009 = vrot.slane %v9007, 5
    %v9010 = vsel %vm1762, %v9005, %v9009
    %v9012 = vshrl.u32 %v7369, 16
    %v9014 = vrot.slane %v9012, 4
    %v9015 = vshll.u32 %v7369, 16
    %v9017 = vrot.slane %v9015, 5
    %v9018 = vor.u32 %v9014, %v9017
    %v9019 = vrot.slane %v9018, 4
    %v9021 = vshll.u32 %v7370, 16
    %v9023 = vrot.slane %v9021, 5
    %v9024 = vsel %vm1762, %v9019, %v9023
    %v9025 = vshrl.u32 %v7370, 16
    %v9027 = vrot.slane %v9025, 4
    %v9028 = vor.u32 %v9027, %v9023
    %v9029 = vrot.slane %v9028, 4
    %v9031 = vshll.u32 %v7371, 16
    %v9033 = vrot.slane %v9031, 5
    %v9034 = vsel %vm1762, %v9029, %v9033
    %v9035 = vunpack.c.l.b16 %v9000
    %v9036 = vunpack.c.l.b16 %v9010
    %v9037 = vunpack.c.l.b16 %v9024
    %v9038 = vunpack.c.l.b16 %v9034
    %v9039 = vpack.c.b16 %v9036, %v9035
    %v9040 = vpack.c.b16 %v9038, %v9037
    %9043 = vst [vmem:[#allocation3 + $0x20] sm:$0xff] %v8432
    %9044 = vst [vmem:[#allocation3 + $0x68] sm:$0xff] %v8433
    %9045 = vst [vmem:[#allocation3 + $0xb0] sm:$0xff] %v8434
    %9046 = vst [vmem:[#allocation3 + $0xf8] sm:$0xff] %v8435
    %9047 = vst [vmem:[#allocation3 + $0x140] sm:$0xff] %v8436
    %9048 = vst [vmem:[#allocation3 + $0x188] sm:$0xff] %v8437
    %9049 = vst [vmem:[#allocation3 + $0x1d0] sm:$0xff] %v8438
    %9050 = vst [vmem:[#allocation3 + $0x218] sm:$0xff] %v8439
    %9051 = vst [vmem:[#allocation3 + $0x260] sm:$0xff] %v8440
    %9052 = vst [vmem:[#allocation3 + $0x2a8] sm:$0xff] %v8441
    %9053 = vst [vmem:[#allocation3 + $0x2f0] sm:$0xff] %v8442
    %9054 = vst [vmem:[#allocation3 + $0x338] sm:$0xff] %v8443
    %9055 = vst [vmem:[#allocation3 + $0x380] sm:$0xff] %v8444
    %9056 = vst [vmem:[#allocation3 + $0x3c8] sm:$0xff] %v8445
    %9057 = vst [vmem:[#allocation3 + $0x410] sm:$0xff] %v8446
    %9058 = vst [vmem:[#allocation3 + $0x458] sm:$0xff] %v9039
    %9059 = vst [vmem:[#allocation3 + $0x4a0] sm:$0xff] %v8448
    %9060 = vst [vmem:[#allocation3 + $0x4e8] sm:$0xff] %v8449
    %9061 = vst [vmem:[#allocation3 + $0x530] sm:$0xff] %v8450
    %9062 = vst [vmem:[#allocation3 + $0x578] sm:$0xff] %v8451
    %9063 = vst [vmem:[#allocation3 + $0x5c0] sm:$0xff] %v8452
    %9064 = vst [vmem:[#allocation3 + $0x608] sm:$0xff] %v8453
    %9065 = vst [vmem:[#allocation3 + $0x650] sm:$0xff] %v8454
    %9066 = vst [vmem:[#allocation3 + $0x698] sm:$0xff] %v8455
    %9067 = vst [vmem:[#allocation3 + $0x6e0] sm:$0xff] %v8456
    %9068 = vst [vmem:[#allocation3 + $0x728] sm:$0xff] %v8457
    %9069 = vst [vmem:[#allocation3 + $0x770] sm:$0xff] %v8458
    %9070 = vst [vmem:[#allocation3 + $0x7b8] sm:$0xff] %v8459
    %9071 = vst [vmem:[#allocation3 + $0x800] sm:$0xff] %v8460
    %9072 = vst [vmem:[#allocation3 + $0x848] sm:$0xff] %v8461
    %9073 = vst [vmem:[#allocation3 + $0x890] sm:$0xff] %v8462
    %9074 = vst [vmem:[#allocation3 + $0x8d8] sm:$0xff] %v9040
    %v9077 = vrot.slane %v7315, 5
    %v9078 = vrot.slane %v9077, 4
    %v9079 = vrot.slane %v7316, 5
    %v9080 = vsel %vm2725, %v9078, %v9079
    %v9081 = vrot.slane %v9079, 4
    %v9082 = vrot.slane %v7317, 5
    %v9083 = vsel %vm2725, %v9081, %v9082
    %v9084 = vrot.slane %v7369, 5
    %v9085 = vrot.slane %v9084, 4
    %v9086 = vrot.slane %v7370, 5
    %v9087 = vsel %vm2725, %v9085, %v9086
    %v9088 = vrot.slane %v9086, 4
    %v9089 = vrot.slane %v7371, 5
    %v9090 = vsel %vm2725, %v9088, %v9089
    %v9091 = vunpack.c.l.b16 %v9080
    %v9092 = vunpack.c.l.b16 %v9083
    %v9093 = vunpack.c.l.b16 %v9087
    %v9094 = vunpack.c.l.b16 %v9090
    %v9095 = vpack.c.b16 %v9092, %v9091
    %v9096 = vpack.c.b16 %v9094, %v9093
    %9099 = vst [vmem:[#allocation3 + $0x28] sm:$0xff] %v8848
    %9100 = vst [vmem:[#allocation3 + $0x70] sm:$0xff] %v8849
    %9101 = vst [vmem:[#allocation3 + $0xb8] sm:$0xff] %v8850
    %9102 = vst [vmem:[#allocation3 + $0x100] sm:$0xff] %v8851
    %9103 = vst [vmem:[#allocation3 + $0x148] sm:$0xff] %v8852
    %9104 = vst [vmem:[#allocation3 + $0x190] sm:$0xff] %v8853
    %9105 = vst [vmem:[#allocation3 + $0x1d8] sm:$0xff] %v8854
    %9106 = vst [vmem:[#allocation3 + $0x220] sm:$0xff] %v8855
    %9107 = vst [vmem:[#allocation3 + $0x268] sm:$0xff] %v8856
    %9108 = vst [vmem:[#allocation3 + $0x2b0] sm:$0xff] %v8857
    %9109 = vst [vmem:[#allocation3 + $0x2f8] sm:$0xff] %v8858
    %9110 = vst [vmem:[#allocation3 + $0x340] sm:$0xff] %v8859
    %9111 = vst [vmem:[#allocation3 + $0x388] sm:$0xff] %v8860
    %9112 = vst [vmem:[#allocation3 + $0x3d0] sm:$0xff] %v8861
    %9113 = vst [vmem:[#allocation3 + $0x418] sm:$0xff] %v8862
    %9114 = vst [vmem:[#allocation3 + $0x460] sm:$0xff] %v9095
    %9115 = vst [vmem:[#allocation3 + $0x4a8] sm:$0xff] %v8864
    %9116 = vst [vmem:[#allocation3 + $0x4f0] sm:$0xff] %v8865
    %9117 = vst [vmem:[#allocation3 + $0x538] sm:$0xff] %v8866
    %9118 = vst [vmem:[#allocation3 + $0x580] sm:$0xff] %v8867
    %9119 = vst [vmem:[#allocation3 + $0x5c8] sm:$0xff] %v8868
    %9120 = vst [vmem:[#allocation3 + $0x610] sm:$0xff] %v8869
    %9121 = vst [vmem:[#allocation3 + $0x658] sm:$0xff] %v8870
    %9122 = vst [vmem:[#allocation3 + $0x6a0] sm:$0xff] %v8871
    %9123 = vst [vmem:[#allocation3 + $0x6e8] sm:$0xff] %v8872
    %9124 = vst [vmem:[#allocation3 + $0x730] sm:$0xff] %v8873
    %9125 = vst [vmem:[#allocation3 + $0x778] sm:$0xff] %v8874
    %9126 = vst [vmem:[#allocation3 + $0x7c0] sm:$0xff] %v8875
    %9127 = vst [vmem:[#allocation3 + $0x808] sm:$0xff] %v8876
    %9128 = vst [vmem:[#allocation3 + $0x850] sm:$0xff] %v8877
    %9129 = vst [vmem:[#allocation3 + $0x898] sm:$0xff] %v8878
    %9130 = vst [vmem:[#allocation3 + $0x8e0] sm:$0xff] %v9096
    %v9135 = vunpack.c.l.b16 %v7318
    %v9136 = vunpack.c.l.b16 %v7319
    %v9137 = vunpack.c.l.b16 %v7372
    %v9138 = vunpack.c.l.b16 %v7373
    %v9139 = vpack.c.b16 %v9136, %v9135
    %v9140 = vpack.c.b16 %v9138, %v9137
    %9143 = vst [vmem:[#allocation3 + $0x30] sm:$0xff] %v7505
    %9144 = vst [vmem:[#allocation3 + $0x78] sm:$0xff] %v7506
    %9145 = vst [vmem:[#allocation3 + $0xc0] sm:$0xff] %v7507
    %9146 = vst [vmem:[#allocation3 + $0x108] sm:$0xff] %v7508
    %9147 = vst [vmem:[#allocation3 + $0x150] sm:$0xff] %v7509
    %9148 = vst [vmem:[#allocation3 + $0x198] sm:$0xff] %v7510
    %9149 = vst [vmem:[#allocation3 + $0x1e0] sm:$0xff] %v7511
    %9150 = vst [vmem:[#allocation3 + $0x228] sm:$0xff] %v7512
    %9151 = vst [vmem:[#allocation3 + $0x270] sm:$0xff] %v7513
    %9152 = vst [vmem:[#allocation3 + $0x2b8] sm:$0xff] %v7514
    %9153 = vst [vmem:[#allocation3 + $0x300] sm:$0xff] %v7515
    %9154 = vst [vmem:[#allocation3 + $0x348] sm:$0xff] %v7516
    %9155 = vst [vmem:[#allocation3 + $0x390] sm:$0xff] %v7517
    %9156 = vst [vmem:[#allocation3 + $0x3d8] sm:$0xff] %v7518
    %9157 = vst [vmem:[#allocation3 + $0x420] sm:$0xff] %v8951
    %9158 = vst [vmem:[#allocation3 + $0x468] sm:$0xff] %v9139
    %9159 = vst [vmem:[#allocation3 + $0x4b0] sm:$0xff] %v7521
    %9160 = vst [vmem:[#allocation3 + $0x4f8] sm:$0xff] %v7522
    %9161 = vst [vmem:[#allocation3 + $0x540] sm:$0xff] %v7523
    %9162 = vst [vmem:[#allocation3 + $0x588] sm:$0xff] %v7524
    %9163 = vst [vmem:[#allocation3 + $0x5d0] sm:$0xff] %v7525
    %9164 = vst [vmem:[#allocation3 + $0x618] sm:$0xff] %v7526
    %9165 = vst [vmem:[#allocation3 + $0x660] sm:$0xff] %v7527
    %9166 = vst [vmem:[#allocation3 + $0x6a8] sm:$0xff] %v7528
    %9167 = vst [vmem:[#allocation3 + $0x6f0] sm:$0xff] %v7529
    %9168 = vst [vmem:[#allocation3 + $0x738] sm:$0xff] %v7530
    %9169 = vst [vmem:[#allocation3 + $0x780] sm:$0xff] %v7531
    %9170 = vst [vmem:[#allocation3 + $0x7c8] sm:$0xff] %v7532
    %9171 = vst [vmem:[#allocation3 + $0x810] sm:$0xff] %v7533
    %9172 = vst [vmem:[#allocation3 + $0x858] sm:$0xff] %v7534
    %9173 = vst [vmem:[#allocation3 + $0x8a0] sm:$0xff] %v8952
    %9174 = vst [vmem:[#allocation3 + $0x8e8] sm:$0xff] %v9140
    %v9176 = vshrl.u32 %v7318, 16
    %v9178 = vrot.slane %v9176, 4
    %v9179 = vshll.u32 %v7318, 16
    %v9181 = vrot.slane %v9179, 5
    %v9182 = vor.u32 %v9178, %v9181
    %v9183 = vrot.slane %v9182, 4
    %v9185 = vshll.u32 %v7319, 16
    %v9187 = vrot.slane %v9185, 5
    %v9188 = vsel %vm1762, %v9183, %v9187
    %v9189 = vshrl.u32 %v7319, 16
    %v9191 = vrot.slane %v9189, 4
    %v9192 = vor.u32 %v9191, %v9187
    %v9193 = vrot.slane %v9192, 4
    %v9195 = vshll.u32 %v7320, 16
    %v9197 = vrot.slane %v9195, 5
    %v9198 = vsel %vm1762, %v9193, %v9197
    %v9200 = vshrl.u32 %v7372, 16
    %v9202 = vrot.slane %v9200, 4
    %v9203 = vshll.u32 %v7372, 16
    %v9205 = vrot.slane %v9203, 5
    %v9206 = vor.u32 %v9202, %v9205
    %v9207 = vrot.slane %v9206, 4
    %v9209 = vshll.u32 %v7373, 16
    %v9211 = vrot.slane %v9209, 5
    %v9212 = vsel %vm1762, %v9207, %v9211
    %v9213 = vshrl.u32 %v7373, 16
    %v9215 = vrot.slane %v9213, 4
    %v9216 = vor.u32 %v9215, %v9211
    %v9217 = vrot.slane %v9216, 4
    %v9219 = vshll.u32 %v7374, 16
    %v9221 = vrot.slane %v9219, 5
    %v9222 = vsel %vm1762, %v9217, %v9221
    %v9223 = vunpack.c.l.b16 %v9188
    %v9224 = vunpack.c.l.b16 %v9198
    %v9225 = vunpack.c.l.b16 %v9212
    %v9226 = vunpack.c.l.b16 %v9222
    %v9227 = vpack.c.b16 %v9224, %v9223
    %v9228 = vpack.c.b16 %v9226, %v9225
    %9231 = vst [vmem:[#allocation3 + $0x38] sm:$0xff] %v8433
    %9232 = vst [vmem:[#allocation3 + $0x80] sm:$0xff] %v8434
    %9233 = vst [vmem:[#allocation3 + $0xc8] sm:$0xff] %v8435
    %9234 = vst [vmem:[#allocation3 + $0x110] sm:$0xff] %v8436
    %9235 = vst [vmem:[#allocation3 + $0x158] sm:$0xff] %v8437
    %9236 = vst [vmem:[#allocation3 + $0x1a0] sm:$0xff] %v8438
    %9237 = vst [vmem:[#allocation3 + $0x1e8] sm:$0xff] %v8439
    %9238 = vst [vmem:[#allocation3 + $0x230] sm:$0xff] %v8440
    %9239 = vst [vmem:[#allocation3 + $0x278] sm:$0xff] %v8441
    %9240 = vst [vmem:[#allocation3 + $0x2c0] sm:$0xff] %v8442
    %9241 = vst [vmem:[#allocation3 + $0x308] sm:$0xff] %v8443
    %9242 = vst [vmem:[#allocation3 + $0x350] sm:$0xff] %v8444
    %9243 = vst [vmem:[#allocation3 + $0x398] sm:$0xff] %v8445
    %9244 = vst [vmem:[#allocation3 + $0x3e0] sm:$0xff] %v8446
    %9245 = vst [vmem:[#allocation3 + $0x428] sm:$0xff] %v9039
    %9246 = vst [vmem:[#allocation3 + $0x470] sm:$0xff] %v9227
    %9247 = vst [vmem:[#allocation3 + $0x4b8] sm:$0xff] %v8449
    %9248 = vst [vmem:[#allocation3 + $0x500] sm:$0xff] %v8450
    %9249 = vst [vmem:[#allocation3 + $0x548] sm:$0xff] %v8451
    %9250 = vst [vmem:[#allocation3 + $0x590] sm:$0xff] %v8452
    %9251 = vst [vmem:[#allocation3 + $0x5d8] sm:$0xff] %v8453
    %9252 = vst [vmem:[#allocation3 + $0x620] sm:$0xff] %v8454
    %9253 = vst [vmem:[#allocation3 + $0x668] sm:$0xff] %v8455
    %9254 = vst [vmem:[#allocation3 + $0x6b0] sm:$0xff] %v8456
    %9255 = vst [vmem:[#allocation3 + $0x6f8] sm:$0xff] %v8457
    %9256 = vst [vmem:[#allocation3 + $0x740] sm:$0xff] %v8458
    %9257 = vst [vmem:[#allocation3 + $0x788] sm:$0xff] %v8459
    %9258 = vst [vmem:[#allocation3 + $0x7d0] sm:$0xff] %v8460
    %9259 = vst [vmem:[#allocation3 + $0x818] sm:$0xff] %v8461
    %9260 = vst [vmem:[#allocation3 + $0x860] sm:$0xff] %v8462
    %9261 = vst [vmem:[#allocation3 + $0x8a8] sm:$0xff] %v9040
    %9262 = vst [vmem:[#allocation3 + $0x8f0] sm:$0xff] %v9228
    %v9265 = vrot.slane %v7318, 5
    %v9266 = vrot.slane %v9265, 4
    %v9267 = vrot.slane %v7319, 5
    %v9268 = vsel %vm2725, %v9266, %v9267
    %v9269 = vrot.slane %v9267, 4
    %v9270 = vrot.slane %v7320, 5
    %v9271 = vsel %vm2725, %v9269, %v9270
    %v9272 = vrot.slane %v7372, 5
    %v9273 = vrot.slane %v9272, 4
    %v9274 = vrot.slane %v7373, 5
    %v9275 = vsel %vm2725, %v9273, %v9274
    %v9276 = vrot.slane %v9274, 4
    %v9277 = vrot.slane %v7374, 5
    %v9278 = vsel %vm2725, %v9276, %v9277
    %v9279 = vunpack.c.l.b16 %v9268
    %v9280 = vunpack.c.l.b16 %v9271
    %v9281 = vunpack.c.l.b16 %v9275
    %v9282 = vunpack.c.l.b16 %v9278
    %v9283 = vpack.c.b16 %v9280, %v9279
    %v9284 = vpack.c.b16 %v9282, %v9281
    %9287 = vst [vmem:[#allocation3 + $0x40] sm:$0xff] %v8849
    %9288 = vst [vmem:[#allocation3 + $0x88] sm:$0xff] %v8850
    %9289 = vst [vmem:[#allocation3 + $0xd0] sm:$0xff] %v8851
    %9290 = vst [vmem:[#allocation3 + $0x118] sm:$0xff] %v8852
    %9291 = vst [vmem:[#allocation3 + $0x160] sm:$0xff] %v8853
    %9292 = vst [vmem:[#allocation3 + $0x1a8] sm:$0xff] %v8854
    %9293 = vst [vmem:[#allocation3 + $0x1f0] sm:$0xff] %v8855
    %9294 = vst [vmem:[#allocation3 + $0x238] sm:$0xff] %v8856
    %9295 = vst [vmem:[#allocation3 + $0x280] sm:$0xff] %v8857
    %9296 = vst [vmem:[#allocation3 + $0x2c8] sm:$0xff] %v8858
    %9297 = vst [vmem:[#allocation3 + $0x310] sm:$0xff] %v8859
    %9298 = vst [vmem:[#allocation3 + $0x358] sm:$0xff] %v8860
    %9299 = vst [vmem:[#allocation3 + $0x3a0] sm:$0xff] %v8861
    %9300 = vst [vmem:[#allocation3 + $0x3e8] sm:$0xff] %v8862
    %9301 = vst [vmem:[#allocation3 + $0x430] sm:$0xff] %v9095
    %9302 = vst [vmem:[#allocation3 + $0x478] sm:$0xff] %v9283
    %9303 = vst [vmem:[#allocation3 + $0x4c0] sm:$0xff] %v8865
    %9304 = vst [vmem:[#allocation3 + $0x508] sm:$0xff] %v8866
    %9305 = vst [vmem:[#allocation3 + $0x550] sm:$0xff] %v8867
    %9306 = vst [vmem:[#allocation3 + $0x598] sm:$0xff] %v8868
    %9307 = vst [vmem:[#allocation3 + $0x5e0] sm:$0xff] %v8869
    %9308 = vst [vmem:[#allocation3 + $0x628] sm:$0xff] %v8870
    %9309 = vst [vmem:[#allocation3 + $0x670] sm:$0xff] %v8871
    %9310 = vst [vmem:[#allocation3 + $0x6b8] sm:$0xff] %v8872
    %9311 = vst [vmem:[#allocation3 + $0x700] sm:$0xff] %v8873
    %9312 = vst [vmem:[#allocation3 + $0x748] sm:$0xff] %v8874
    %9313 = vst [vmem:[#allocation3 + $0x790] sm:$0xff] %v8875
    %9314 = vst [vmem:[#allocation3 + $0x7d8] sm:$0xff] %v8876
    %9315 = vst [vmem:[#allocation3 + $0x820] sm:$0xff] %v8877
    %9316 = vst [vmem:[#allocation3 + $0x868] sm:$0xff] %v8878
    %9317 = vst [vmem:[#allocation3 + $0x8b0] sm:$0xff] %v9096
    %9318 = vst [vmem:[#allocation3 + $0x8f8] sm:$0xff] %v9284
    %v9319 = vld [vmem:[#allocation3] sm:$0xff]
    %v9320 = vld [vmem:[#allocation3 + $0x8] sm:$0xff]
    %v9321 = vld [vmem:[#allocation3 + $0x10] sm:$0xff]
    %v9322 = vld [vmem:[#allocation3 + $0x18] sm:$0xff]
    %v9323 = vld [vmem:[#allocation3 + $0x20] sm:$0xff]
    %v9324 = vld [vmem:[#allocation3 + $0x28] sm:$0xff]
    %v9325 = vld [vmem:[#allocation3 + $0x30] sm:$0xff]
    %v9326 = vld [vmem:[#allocation3 + $0x38] sm:$0xff]
    %v9327 = vld [vmem:[#allocation3 + $0x40] sm:$0xff]
    %v9328 = vld [vmem:[#allocation3 + $0x48] sm:$0xff]
    %v9329 = vld [vmem:[#allocation3 + $0x50] sm:$0xff]
    %v9330 = vld [vmem:[#allocation3 + $0x58] sm:$0xff]
    %v9331 = vld [vmem:[#allocation3 + $0x60] sm:$0xff]
    %v9332 = vld [vmem:[#allocation3 + $0x68] sm:$0xff]
    %v9333 = vld [vmem:[#allocation3 + $0x70] sm:$0xff]
    %v9334 = vld [vmem:[#allocation3 + $0x78] sm:$0xff]
    %v9335 = vld [vmem:[#allocation3 + $0x80] sm:$0xff]
    %v9336 = vld [vmem:[#allocation3 + $0x88] sm:$0xff]
    %v9337 = vld [vmem:[#allocation3 + $0x90] sm:$0xff]
    %v9338 = vld [vmem:[#allocation3 + $0x98] sm:$0xff]
    %v9339 = vld [vmem:[#allocation3 + $0xa0] sm:$0xff]
    %v9340 = vld [vmem:[#allocation3 + $0xa8] sm:$0xff]
    %v9341 = vld [vmem:[#allocation3 + $0xb0] sm:$0xff]
    %v9342 = vld [vmem:[#allocation3 + $0xb8] sm:$0xff]
    %v9343 = vld [vmem:[#allocation3 + $0xc0] sm:$0xff]
    %v9344 = vld [vmem:[#allocation3 + $0xc8] sm:$0xff]
    %v9345 = vld [vmem:[#allocation3 + $0xd0] sm:$0xff]
    %v9346 = vld [vmem:[#allocation3 + $0xd8] sm:$0xff]
    %v9347 = vld [vmem:[#allocation3 + $0xe0] sm:$0xff]
    %v9348 = vld [vmem:[#allocation3 + $0xe8] sm:$0xff]
    %v9349 = vld [vmem:[#allocation3 + $0xf0] sm:$0xff]
    %v9350 = vld [vmem:[#allocation3 + $0xf8] sm:$0xff]
    %v9351 = vld [vmem:[#allocation3 + $0x100] sm:$0xff]
    %v9352 = vld [vmem:[#allocation3 + $0x108] sm:$0xff]
    %v9353 = vld [vmem:[#allocation3 + $0x110] sm:$0xff]
    %v9354 = vld [vmem:[#allocation3 + $0x118] sm:$0xff]
    %v9355 = vld [vmem:[#allocation3 + $0x120] sm:$0xff]
    %v9356 = vld [vmem:[#allocation3 + $0x128] sm:$0xff]
    %v9357 = vld [vmem:[#allocation3 + $0x130] sm:$0xff]
    %v9358 = vld [vmem:[#allocation3 + $0x138] sm:$0xff]
    %v9359 = vld [vmem:[#allocation3 + $0x140] sm:$0xff]
    %v9360 = vld [vmem:[#allocation3 + $0x148] sm:$0xff]
    %v9361 = vld [vmem:[#allocation3 + $0x150] sm:$0xff]
    %v9362 = vld [vmem:[#allocation3 + $0x158] sm:$0xff]
    %v9363 = vld [vmem:[#allocation3 + $0x160] sm:$0xff]
    %v9364 = vld [vmem:[#allocation3 + $0x168] sm:$0xff]
    %v9365 = vld [vmem:[#allocation3 + $0x170] sm:$0xff]
    %v9366 = vld [vmem:[#allocation3 + $0x178] sm:$0xff]
    %v9367 = vld [vmem:[#allocation3 + $0x180] sm:$0xff]
    %v9368 = vld [vmem:[#allocation3 + $0x188] sm:$0xff]
    %v9369 = vld [vmem:[#allocation3 + $0x190] sm:$0xff]
    %v9370 = vld [vmem:[#allocation3 + $0x198] sm:$0xff]
    %v9371 = vld [vmem:[#allocation3 + $0x1a0] sm:$0xff]
    %v9372 = vld [vmem:[#allocation3 + $0x1a8] sm:$0xff]
    %v9373 = vld [vmem:[#allocation3 + $0x1b0] sm:$0xff]
    %v9374 = vld [vmem:[#allocation3 + $0x1b8] sm:$0xff]
    %v9375 = vld [vmem:[#allocation3 + $0x1c0] sm:$0xff]
    %v9376 = vld [vmem:[#allocation3 + $0x1c8] sm:$0xff]
    %v9377 = vld [vmem:[#allocation3 + $0x1d0] sm:$0xff]
    %v9378 = vld [vmem:[#allocation3 + $0x1d8] sm:$0xff]
    %v9379 = vld [vmem:[#allocation3 + $0x1e0] sm:$0xff]
    %v9380 = vld [vmem:[#allocation3 + $0x1e8] sm:$0xff]
    %v9381 = vld [vmem:[#allocation3 + $0x1f0] sm:$0xff]
    %v9382 = vld [vmem:[#allocation3 + $0x1f8] sm:$0xff]
    %v9383 = vld [vmem:[#allocation3 + $0x200] sm:$0xff]
    %v9384 = vld [vmem:[#allocation3 + $0x208] sm:$0xff]
    %v9385 = vld [vmem:[#allocation3 + $0x210] sm:$0xff]
    %v9386 = vld [vmem:[#allocation3 + $0x218] sm:$0xff]
    %v9387 = vld [vmem:[#allocation3 + $0x220] sm:$0xff]
    %v9388 = vld [vmem:[#allocation3 + $0x228] sm:$0xff]
    %v9389 = vld [vmem:[#allocation3 + $0x230] sm:$0xff]
    %v9390 = vld [vmem:[#allocation3 + $0x238] sm:$0xff]
    %v9391 = vld [vmem:[#allocation3 + $0x240] sm:$0xff]
    %v9392 = vld [vmem:[#allocation3 + $0x248] sm:$0xff]
    %v9393 = vld [vmem:[#allocation3 + $0x250] sm:$0xff]
    %v9394 = vld [vmem:[#allocation3 + $0x258] sm:$0xff]
    %v9395 = vld [vmem:[#allocation3 + $0x260] sm:$0xff]
    %v9396 = vld [vmem:[#allocation3 + $0x268] sm:$0xff]
    %v9397 = vld [vmem:[#allocation3 + $0x270] sm:$0xff]
    %v9398 = vld [vmem:[#allocation3 + $0x278] sm:$0xff]
    %v9399 = vld [vmem:[#allocation3 + $0x280] sm:$0xff]
    %v9400 = vld [vmem:[#allocation3 + $0x288] sm:$0xff]
    %v9401 = vld [vmem:[#allocation3 + $0x290] sm:$0xff]
    %v9402 = vld [vmem:[#allocation3 + $0x298] sm:$0xff]
    %v9403 = vld [vmem:[#allocation3 + $0x2a0] sm:$0xff]
    %v9404 = vld [vmem:[#allocation3 + $0x2a8] sm:$0xff]
    %v9405 = vld [vmem:[#allocation3 + $0x2b0] sm:$0xff]
    %v9406 = vld [vmem:[#allocation3 + $0x2b8] sm:$0xff]
    %v9407 = vld [vmem:[#allocation3 + $0x2c0] sm:$0xff]
    %v9408 = vld [vmem:[#allocation3 + $0x2c8] sm:$0xff]
    %v9409 = vld [vmem:[#allocation3 + $0x2d0] sm:$0xff]
    %v9410 = vld [vmem:[#allocation3 + $0x2d8] sm:$0xff]
    %v9411 = vld [vmem:[#allocation3 + $0x2e0] sm:$0xff]
    %v9412 = vld [vmem:[#allocation3 + $0x2e8] sm:$0xff]
    %v9413 = vld [vmem:[#allocation3 + $0x2f0] sm:$0xff]
    %v9414 = vld [vmem:[#allocation3 + $0x2f8] sm:$0xff]
    %v9415 = vld [vmem:[#allocation3 + $0x300] sm:$0xff]
    %v9416 = vld [vmem:[#allocation3 + $0x308] sm:$0xff]
    %v9417 = vld [vmem:[#allocation3 + $0x310] sm:$0xff]
    %v9418 = vld [vmem:[#allocation3 + $0x318] sm:$0xff]
    %v9419 = vld [vmem:[#allocation3 + $0x320] sm:$0xff]
    %v9420 = vld [vmem:[#allocation3 + $0x328] sm:$0xff]
    %v9421 = vld [vmem:[#allocation3 + $0x330] sm:$0xff]
    %v9422 = vld [vmem:[#allocation3 + $0x338] sm:$0xff]
    %v9423 = vld [vmem:[#allocation3 + $0x340] sm:$0xff]
    %v9424 = vld [vmem:[#allocation3 + $0x348] sm:$0xff]
    %v9425 = vld [vmem:[#allocation3 + $0x350] sm:$0xff]
    %v9426 = vld [vmem:[#allocation3 + $0x358] sm:$0xff]
    %v9427 = vld [vmem:[#allocation3 + $0x360] sm:$0xff]
    %v9428 = vld [vmem:[#allocation3 + $0x368] sm:$0xff]
    %v9429 = vld [vmem:[#allocation3 + $0x370] sm:$0xff]
    %v9430 = vld [vmem:[#allocation3 + $0x378] sm:$0xff]
    %v9431 = vld [vmem:[#allocation3 + $0x380] sm:$0xff]
    %v9432 = vld [vmem:[#allocation3 + $0x388] sm:$0xff]
    %v9433 = vld [vmem:[#allocation3 + $0x390] sm:$0xff]
    %v9434 = vld [vmem:[#allocation3 + $0x398] sm:$0xff]
    %v9435 = vld [vmem:[#allocation3 + $0x3a0] sm:$0xff]
    %v9436 = vld [vmem:[#allocation3 + $0x3a8] sm:$0xff]
    %v9437 = vld [vmem:[#allocation3 + $0x3b0] sm:$0xff]
    %v9438 = vld [vmem:[#allocation3 + $0x3b8] sm:$0xff]
    %v9439 = vld [vmem:[#allocation3 + $0x3c0] sm:$0xff]
    %v9440 = vld [vmem:[#allocation3 + $0x3c8] sm:$0xff]
    %v9441 = vld [vmem:[#allocation3 + $0x3d0] sm:$0xff]
    %v9442 = vld [vmem:[#allocation3 + $0x3d8] sm:$0xff]
    %v9443 = vld [vmem:[#allocation3 + $0x3e0] sm:$0xff]
    %v9444 = vld [vmem:[#allocation3 + $0x3e8] sm:$0xff]
    %v9445 = vld [vmem:[#allocation3 + $0x3f0] sm:$0xff]
    %v9446 = vld [vmem:[#allocation3 + $0x3f8] sm:$0xff]
    %v9447 = vld [vmem:[#allocation3 + $0x400] sm:$0xff]
    %v9448 = vld [vmem:[#allocation3 + $0x408] sm:$0xff]
    %v9449 = vld [vmem:[#allocation3 + $0x410] sm:$0xff]
    %v9450 = vld [vmem:[#allocation3 + $0x418] sm:$0xff]
    %v9451 = vld [vmem:[#allocation3 + $0x420] sm:$0xff]
    %v9452 = vld [vmem:[#allocation3 + $0x428] sm:$0xff]
    %v9453 = vld [vmem:[#allocation3 + $0x430] sm:$0xff]
    %v9454 = vld [vmem:[#allocation3 + $0x438] sm:$0xff]
    %v9455 = vld [vmem:[#allocation3 + $0x440] sm:$0xff]
    %v9456 = vld [vmem:[#allocation3 + $0x448] sm:$0xff]
    %v9457 = vld [vmem:[#allocation3 + $0x450] sm:$0xff]
    %v9458 = vld [vmem:[#allocation3 + $0x458] sm:$0xff]
    %v9459 = vld [vmem:[#allocation3 + $0x460] sm:$0xff]
    %v9460 = vld [vmem:[#allocation3 + $0x468] sm:$0xff]
    %v9461 = vld [vmem:[#allocation3 + $0x470] sm:$0xff]
    %v9462 = vld [vmem:[#allocation3 + $0x478] sm:$0xff]
    %v9463 = vld [vmem:[#allocation3 + $0x480] sm:$0xff]
    %v9464 = vld [vmem:[#allocation3 + $0x488] sm:$0xff]
    %v9465 = vld [vmem:[#allocation3 + $0x490] sm:$0xff]
    %v9466 = vld [vmem:[#allocation3 + $0x498] sm:$0xff]
    %v9467 = vld [vmem:[#allocation3 + $0x4a0] sm:$0xff]
    %v9468 = vld [vmem:[#allocation3 + $0x4a8] sm:$0xff]
    %v9469 = vld [vmem:[#allocation3 + $0x4b0] sm:$0xff]
    %v9470 = vld [vmem:[#allocation3 + $0x4b8] sm:$0xff]
    %v9471 = vld [vmem:[#allocation3 + $0x4c0] sm:$0xff]
    %v9472 = vld [vmem:[#allocation3 + $0x4c8] sm:$0xff]
    %v9473 = vld [vmem:[#allocation3 + $0x4d0] sm:$0xff]
    %v9474 = vld [vmem:[#allocation3 + $0x4d8] sm:$0xff]
    %v9475 = vld [vmem:[#allocation3 + $0x4e0] sm:$0xff]
    %v9476 = vld [vmem:[#allocation3 + $0x4e8] sm:$0xff]
    %v9477 = vld [vmem:[#allocation3 + $0x4f0] sm:$0xff]
    %v9478 = vld [vmem:[#allocation3 + $0x4f8] sm:$0xff]
    %v9479 = vld [vmem:[#allocation3 + $0x500] sm:$0xff]
    %v9480 = vld [vmem:[#allocation3 + $0x508] sm:$0xff]
    %v9481 = vld [vmem:[#allocation3 + $0x510] sm:$0xff]
    %v9482 = vld [vmem:[#allocation3 + $0x518] sm:$0xff]
    %v9483 = vld [vmem:[#allocation3 + $0x520] sm:$0xff]
    %v9484 = vld [vmem:[#allocation3 + $0x528] sm:$0xff]
    %v9485 = vld [vmem:[#allocation3 + $0x530] sm:$0xff]
    %v9486 = vld [vmem:[#allocation3 + $0x538] sm:$0xff]
    %v9487 = vld [vmem:[#allocation3 + $0x540] sm:$0xff]
    %v9488 = vld [vmem:[#allocation3 + $0x548] sm:$0xff]
    %v9489 = vld [vmem:[#allocation3 + $0x550] sm:$0xff]
    %v9490 = vld [vmem:[#allocation3 + $0x558] sm:$0xff]
    %v9491 = vld [vmem:[#allocation3 + $0x560] sm:$0xff]
    %v9492 = vld [vmem:[#allocation3 + $0x568] sm:$0xff]
    %v9493 = vld [vmem:[#allocation3 + $0x570] sm:$0xff]
    %v9494 = vld [vmem:[#allocation3 + $0x578] sm:$0xff]
    %v9495 = vld [vmem:[#allocation3 + $0x580] sm:$0xff]
    %v9496 = vld [vmem:[#allocation3 + $0x588] sm:$0xff]
    %v9497 = vld [vmem:[#allocation3 + $0x590] sm:$0xff]
    %v9498 = vld [vmem:[#allocation3 + $0x598] sm:$0xff]
    %v9499 = vld [vmem:[#allocation3 + $0x5a0] sm:$0xff]
    %v9500 = vld [vmem:[#allocation3 + $0x5a8] sm:$0xff]
    %v9501 = vld [vmem:[#allocation3 + $0x5b0] sm:$0xff]
    %v9502 = vld [vmem:[#allocation3 + $0x5b8] sm:$0xff]
    %v9503 = vld [vmem:[#allocation3 + $0x5c0] sm:$0xff]
    %v9504 = vld [vmem:[#allocation3 + $0x5c8] sm:$0xff]
    %v9505 = vld [vmem:[#allocation3 + $0x5d0] sm:$0xff]
    %v9506 = vld [vmem:[#allocation3 + $0x5d8] sm:$0xff]
    %v9507 = vld [vmem:[#allocation3 + $0x5e0] sm:$0xff]
    %v9508 = vld [vmem:[#allocation3 + $0x5e8] sm:$0xff]
    %v9509 = vld [vmem:[#allocation3 + $0x5f0] sm:$0xff]
    %v9510 = vld [vmem:[#allocation3 + $0x5f8] sm:$0xff]
    %v9511 = vld [vmem:[#allocation3 + $0x600] sm:$0xff]
    %v9512 = vld [vmem:[#allocation3 + $0x608] sm:$0xff]
    %v9513 = vld [vmem:[#allocation3 + $0x610] sm:$0xff]
    %v9514 = vld [vmem:[#allocation3 + $0x618] sm:$0xff]
    %v9515 = vld [vmem:[#allocation3 + $0x620] sm:$0xff]
    %v9516 = vld [vmem:[#allocation3 + $0x628] sm:$0xff]
    %v9517 = vld [vmem:[#allocation3 + $0x630] sm:$0xff]
    %v9518 = vld [vmem:[#allocation3 + $0x638] sm:$0xff]
    %v9519 = vld [vmem:[#allocation3 + $0x640] sm:$0xff]
    %v9520 = vld [vmem:[#allocation3 + $0x648] sm:$0xff]
    %v9521 = vld [vmem:[#allocation3 + $0x650] sm:$0xff]
    %v9522 = vld [vmem:[#allocation3 + $0x658] sm:$0xff]
    %v9523 = vld [vmem:[#allocation3 + $0x660] sm:$0xff]
    %v9524 = vld [vmem:[#allocation3 + $0x668] sm:$0xff]
    %v9525 = vld [vmem:[#allocation3 + $0x670] sm:$0xff]
    %v9526 = vld [vmem:[#allocation3 + $0x678] sm:$0xff]
    %v9527 = vld [vmem:[#allocation3 + $0x680] sm:$0xff]
    %v9528 = vld [vmem:[#allocation3 + $0x688] sm:$0xff]
    %v9529 = vld [vmem:[#allocation3 + $0x690] sm:$0xff]
    %v9530 = vld [vmem:[#allocation3 + $0x698] sm:$0xff]
    %v9531 = vld [vmem:[#allocation3 + $0x6a0] sm:$0xff]
    %v9532 = vld [vmem:[#allocation3 + $0x6a8] sm:$0xff]
    %v9533 = vld [vmem:[#allocation3 + $0x6b0] sm:$0xff]
    %v9534 = vld [vmem:[#allocation3 + $0x6b8] sm:$0xff]
    %v9535 = vld [vmem:[#allocation3 + $0x6c0] sm:$0xff]
    %v9536 = vld [vmem:[#allocation3 + $0x6c8] sm:$0xff]
    %v9537 = vld [vmem:[#allocation3 + $0x6d0] sm:$0xff]
    %v9538 = vld [vmem:[#allocation3 + $0x6d8] sm:$0xff]
    %v9539 = vld [vmem:[#allocation3 + $0x6e0] sm:$0xff]
    %v9540 = vld [vmem:[#allocation3 + $0x6e8] sm:$0xff]
    %v9541 = vld [vmem:[#allocation3 + $0x6f0] sm:$0xff]
    %v9542 = vld [vmem:[#allocation3 + $0x6f8] sm:$0xff]
    %v9543 = vld [vmem:[#allocation3 + $0x700] sm:$0xff]
    %v9544 = vld [vmem:[#allocation3 + $0x708] sm:$0xff]
    %v9545 = vld [vmem:[#allocation3 + $0x710] sm:$0xff]
    %v9546 = vld [vmem:[#allocation3 + $0x718] sm:$0xff]
    %v9547 = vld [vmem:[#allocation3 + $0x720] sm:$0xff]
    %v9548 = vld [vmem:[#allocation3 + $0x728] sm:$0xff]
    %v9549 = vld [vmem:[#allocation3 + $0x730] sm:$0xff]
    %v9550 = vld [vmem:[#allocation3 + $0x738] sm:$0xff]
    %v9551 = vld [vmem:[#allocation3 + $0x740] sm:$0xff]
    %v9552 = vld [vmem:[#allocation3 + $0x748] sm:$0xff]
    %v9553 = vld [vmem:[#allocation3 + $0x750] sm:$0xff]
    %v9554 = vld [vmem:[#allocation3 + $0x758] sm:$0xff]
    %v9555 = vld [vmem:[#allocation3 + $0x760] sm:$0xff]
    %v9556 = vld [vmem:[#allocation3 + $0x768] sm:$0xff]
    %v9557 = vld [vmem:[#allocation3 + $0x770] sm:$0xff]
    %v9558 = vld [vmem:[#allocation3 + $0x778] sm:$0xff]
    %v9559 = vld [vmem:[#allocation3 + $0x780] sm:$0xff]
    %v9560 = vld [vmem:[#allocation3 + $0x788] sm:$0xff]
    %v9561 = vld [vmem:[#allocation3 + $0x790] sm:$0xff]
    %v9562 = vld [vmem:[#allocation3 + $0x798] sm:$0xff]
    %v9563 = vld [vmem:[#allocation3 + $0x7a0] sm:$0xff]
    %v9564 = vld [vmem:[#allocation3 + $0x7a8] sm:$0xff]
    %v9565 = vld [vmem:[#allocation3 + $0x7b0] sm:$0xff]
    %v9566 = vld [vmem:[#allocation3 + $0x7b8] sm:$0xff]
    %v9567 = vld [vmem:[#allocation3 + $0x7c0] sm:$0xff]
    %v9568 = vld [vmem:[#allocation3 + $0x7c8] sm:$0xff]
    %v9569 = vld [vmem:[#allocation3 + $0x7d0] sm:$0xff]
    %v9570 = vld [vmem:[#allocation3 + $0x7d8] sm:$0xff]
    %v9571 = vld [vmem:[#allocation3 + $0x7e0] sm:$0xff]
    %v9572 = vld [vmem:[#allocation3 + $0x7e8] sm:$0xff]
    %v9573 = vld [vmem:[#allocation3 + $0x7f0] sm:$0xff]
    %v9574 = vld [vmem:[#allocation3 + $0x7f8] sm:$0xff]
    %v9575 = vld [vmem:[#allocation3 + $0x800] sm:$0xff]
    %v9576 = vld [vmem:[#allocation3 + $0x808] sm:$0xff]
    %v9577 = vld [vmem:[#allocation3 + $0x810] sm:$0xff]
    %v9578 = vld [vmem:[#allocation3 + $0x818] sm:$0xff]
    %v9579 = vld [vmem:[#allocation3 + $0x820] sm:$0xff]
    %v9580 = vld [vmem:[#allocation3 + $0x828] sm:$0xff]
    %v9581 = vld [vmem:[#allocation3 + $0x830] sm:$0xff]
    %v9582 = vld [vmem:[#allocation3 + $0x838] sm:$0xff]
    %v9583 = vld [vmem:[#allocation3 + $0x840] sm:$0xff]
    %v9584 = vld [vmem:[#allocation3 + $0x848] sm:$0xff]
    %v9585 = vld [vmem:[#allocation3 + $0x850] sm:$0xff]
    %v9586 = vld [vmem:[#allocation3 + $0x858] sm:$0xff]
    %v9587 = vld [vmem:[#allocation3 + $0x860] sm:$0xff]
    %v9588 = vld [vmem:[#allocation3 + $0x868] sm:$0xff]
    %v9589 = vld [vmem:[#allocation3 + $0x870] sm:$0xff]
    %v9590 = vld [vmem:[#allocation3 + $0x878] sm:$0xff]
    %v9591 = vld [vmem:[#allocation3 + $0x880] sm:$0xff]
    %v9592 = vld [vmem:[#allocation3 + $0x888] sm:$0xff]
    %v9593 = vld [vmem:[#allocation3 + $0x890] sm:$0xff]
    %v9594 = vld [vmem:[#allocation3 + $0x898] sm:$0xff]
    %v9595 = vld [vmem:[#allocation3 + $0x8a0] sm:$0xff]
    %v9596 = vld [vmem:[#allocation3 + $0x8a8] sm:$0xff]
    %v9597 = vld [vmem:[#allocation3 + $0x8b0] sm:$0xff]
    %v9598 = vld [vmem:[#allocation3 + $0x8b8] sm:$0xff]
    %v9599 = vld [vmem:[#allocation3 + $0x8c0] sm:$0xff]
    %v9600 = vld [vmem:[#allocation3 + $0x8c8] sm:$0xff]
    %v9601 = vld [vmem:[#allocation3 + $0x8d0] sm:$0xff]
    %v9602 = vld [vmem:[#allocation3 + $0x8d8] sm:$0xff]
    %v9603 = vld [vmem:[#allocation3 + $0x8e0] sm:$0xff]
    %v9604 = vld [vmem:[#allocation3 + $0x8e8] sm:$0xff]
    %v9605 = vld [vmem:[#allocation3 + $0x8f0] sm:$0xff]
    %v9606 = vld [vmem:[#allocation3 + $0x8f8] sm:$0xff]
    %v9607 = vld [vmem:[#allocation9] sm:$0xf]
    %v9608 = vld [vmem:[#allocation9 + $0x4] sm:$0xf]
    %v9609 = vld [vmem:[#allocation9 + $0x8] sm:$0xf]
    %v9610 = vld [vmem:[#allocation9 + $0xc] sm:$0xf]
    %v9611 = vld [vmem:[#allocation9 + $0x10] sm:$0xf]
    %v9612 = vld [vmem:[#allocation9 + $0x14] sm:$0xf]
    %v9613 = vld [vmem:[#allocation9 + $0x18] sm:$0xf]
    %v9614 = vld [vmem:[#allocation9 + $0x1c] sm:$0xf]
    %v9615 = vld [vmem:[#allocation9 + $0x20] sm:$0xf]
    %v9616 = vld [vmem:[#allocation9 + $0x24] sm:$0xf]
    %v9617 = vld [vmem:[#allocation9 + $0x28] sm:$0xf]
    %v9618 = vld [vmem:[#allocation9 + $0x2c] sm:$0xf]
    %v9619 = vld [vmem:[#allocation9 + $0x30] sm:$0xf]
    %v9620 = vld [vmem:[#allocation9 + $0x34] sm:$0xf]
    %v9621 = vld [vmem:[#allocation9 + $0x38] sm:$0xf]
    %v9622 = vld [vmem:[#allocation9 + $0x3c] sm:$0xf]
    %v9623 = vld [vmem:[#allocation9 + $0x40] sm:$0xf]
    %v9624 = vld [vmem:[#allocation9 + $0x44] sm:$0xf]
    %v9625 = vld [vmem:[#allocation9 + $0x48] sm:$0xf]
    %v9626 = vld [vmem:[#allocation9 + $0x4c] sm:$0xf]
    %v9627 = vld [vmem:[#allocation9 + $0x50] sm:$0xf]
    %v9628 = vld [vmem:[#allocation9 + $0x54] sm:$0xf]
    %v9629 = vld [vmem:[#allocation9 + $0x58] sm:$0xf]
    %v9630 = vld [vmem:[#allocation9 + $0x5c] sm:$0xf]
    %v9631 = vld [vmem:[#allocation9 + $0x60] sm:$0xf]
    %v9632 = vld [vmem:[#allocation9 + $0x64] sm:$0xf]
    %v9633 = vld [vmem:[#allocation9 + $0x68] sm:$0xf]
    %v9634 = vld [vmem:[#allocation9 + $0x6c] sm:$0xf]
    %v9635 = vld [vmem:[#allocation9 + $0x70] sm:$0xf]
    %v9636 = vld [vmem:[#allocation9 + $0x74] sm:$0xf]
    %v9637 = vld [vmem:[#allocation9 + $0x78] sm:$0xf]
    %v9638 = vld [vmem:[#allocation9 + $0x7c] sm:$0xf]
    %v9639 = vld [vmem:[#allocation9 + $0x80] sm:$0xf]
    %v9640 = vld [vmem:[#allocation9 + $0x84] sm:$0xf]
    %v9641 = vld [vmem:[#allocation9 + $0x88] sm:$0xf]
    %v9642 = vld [vmem:[#allocation9 + $0x8c] sm:$0xf]
    %v9643 = vld [vmem:[#allocation9 + $0x90] sm:$0xf]
    %v9644 = vld [vmem:[#allocation9 + $0x94] sm:$0xf]
    %v9645 = vld [vmem:[#allocation9 + $0x98] sm:$0xf]
    %v9646 = vld [vmem:[#allocation9 + $0x9c] sm:$0xf]
    %v9647 = vld [vmem:[#allocation9 + $0xa0] sm:$0xf]
    %v9648 = vld [vmem:[#allocation9 + $0xa4] sm:$0xf]
    %v9649 = vld [vmem:[#allocation9 + $0xa8] sm:$0xf]
    %v9650 = vld [vmem:[#allocation9 + $0xac] sm:$0xf]
    %v9651 = vld [vmem:[#allocation9 + $0xb0] sm:$0xf]
    %v9652 = vld [vmem:[#allocation9 + $0xb4] sm:$0xf]
    %v9653 = vld [vmem:[#allocation9 + $0xb8] sm:$0xf]
    %v9654 = vld [vmem:[#allocation9 + $0xbc] sm:$0xf]
    %v9655 = vld [vmem:[#allocation9 + $0xc0] sm:$0xf]
    %v9656 = vld [vmem:[#allocation9 + $0xc4] sm:$0xf]
    %v9657 = vld [vmem:[#allocation9 + $0xc8] sm:$0xf]
    %v9658 = vld [vmem:[#allocation9 + $0xcc] sm:$0xf]
    %v9659 = vld [vmem:[#allocation9 + $0xd0] sm:$0xf]
    %v9660 = vld [vmem:[#allocation9 + $0xd4] sm:$0xf]
    %v9661 = vld [vmem:[#allocation9 + $0xd8] sm:$0xf]
    %v9662 = vld [vmem:[#allocation9 + $0xdc] sm:$0xf]
    %v9663 = vld [vmem:[#allocation9 + $0xe0] sm:$0xf]
    %v9664 = vld [vmem:[#allocation9 + $0xe4] sm:$0xf]
    %v9665 = vld [vmem:[#allocation9 + $0xe8] sm:$0xf]
    %v9666 = vld [vmem:[#allocation9 + $0xec] sm:$0xf]
    %v9667 = vld [vmem:[#allocation9 + $0xf0] sm:$0xf]
    %v9668 = vld [vmem:[#allocation9 + $0xf4] sm:$0xf]
    %v9669 = vld [vmem:[#allocation9 + $0xf8] sm:$0xf]
    %v9670 = vld [vmem:[#allocation9 + $0xfc] sm:$0xf]
    %v9671 = vld [vmem:[#allocation9 + $0x100] sm:$0xf]
    %v9672 = vld [vmem:[#allocation9 + $0x104] sm:$0xf]
    %v9673 = vld [vmem:[#allocation9 + $0x108] sm:$0xf]
    %v9674 = vld [vmem:[#allocation9 + $0x10c] sm:$0xf]
    %v9675 = vld [vmem:[#allocation9 + $0x110] sm:$0xf]
    %v9676 = vld [vmem:[#allocation9 + $0x114] sm:$0xf]
    %v9677 = vld [vmem:[#allocation9 + $0x118] sm:$0xf]
    %v9678 = vld [vmem:[#allocation9 + $0x11c] sm:$0xf]
    %v9679 = vld [vmem:[#allocation9 + $0x120] sm:$0xf]
    %v9680 = vld [vmem:[#allocation9 + $0x124] sm:$0xf]
    %v9681 = vld [vmem:[#allocation9 + $0x128] sm:$0xf]
    %v9682 = vld [vmem:[#allocation9 + $0x12c] sm:$0xf]
    %v9683 = vld [vmem:[#allocation9 + $0x130] sm:$0xf]
    %v9684 = vld [vmem:[#allocation9 + $0x134] sm:$0xf]
    %v9685 = vld [vmem:[#allocation9 + $0x138] sm:$0xf]
    %v9686 = vld [vmem:[#allocation9 + $0x13c] sm:$0xf]
    %v9687 = vld [vmem:[#allocation9 + $0x140] sm:$0xf]
    %v9688 = vld [vmem:[#allocation9 + $0x144] sm:$0xf]
    %v9689 = vld [vmem:[#allocation9 + $0x148] sm:$0xf]
    %v9690 = vld [vmem:[#allocation9 + $0x14c] sm:$0xf]
    %v9691 = vld [vmem:[#allocation9 + $0x150] sm:$0xf]
    %v9692 = vld [vmem:[#allocation9 + $0x154] sm:$0xf]
    %v9693 = vld [vmem:[#allocation9 + $0x158] sm:$0xf]
    %v9694 = vld [vmem:[#allocation9 + $0x15c] sm:$0xf]
    %v9695 = vld [vmem:[#allocation9 + $0x160] sm:$0xf]
    %v9696 = vld [vmem:[#allocation9 + $0x164] sm:$0xf]
    %v9697 = vld [vmem:[#allocation9 + $0x168] sm:$0xf]
    %v9698 = vld [vmem:[#allocation9 + $0x16c] sm:$0xf]
    %v9699 = vld [vmem:[#allocation9 + $0x170] sm:$0xf]
    %v9700 = vld [vmem:[#allocation9 + $0x174] sm:$0xf]
    %v9701 = vld [vmem:[#allocation9 + $0x178] sm:$0xf]
    %v9702 = vld [vmem:[#allocation9 + $0x17c] sm:$0xf]
    %v9703 = vld [vmem:[#allocation9 + $0x180] sm:$0xf]
    %v9704 = vld [vmem:[#allocation9 + $0x184] sm:$0xf]
    %v9705 = vld [vmem:[#allocation9 + $0x188] sm:$0xf]
    %v9706 = vld [vmem:[#allocation9 + $0x18c] sm:$0xf]
    %v9707 = vld [vmem:[#allocation9 + $0x190] sm:$0xf]
    %v9708 = vld [vmem:[#allocation9 + $0x194] sm:$0xf]
    %v9709 = vld [vmem:[#allocation9 + $0x198] sm:$0xf]
    %v9710 = vld [vmem:[#allocation9 + $0x19c] sm:$0xf]
    %v9711 = vld [vmem:[#allocation9 + $0x1a0] sm:$0xf]
    %v9712 = vld [vmem:[#allocation9 + $0x1a4] sm:$0xf]
    %v9713 = vld [vmem:[#allocation9 + $0x1a8] sm:$0xf]
    %v9714 = vld [vmem:[#allocation9 + $0x1ac] sm:$0xf]
    %v9715 = vld [vmem:[#allocation9 + $0x1b0] sm:$0xf]
    %v9716 = vld [vmem:[#allocation9 + $0x1b4] sm:$0xf]
    %v9717 = vld [vmem:[#allocation9 + $0x1b8] sm:$0xf]
    %v9718 = vld [vmem:[#allocation9 + $0x1bc] sm:$0xf]
    %v9719 = vld [vmem:[#allocation9 + $0x1c0] sm:$0xf]
    %v9720 = vld [vmem:[#allocation9 + $0x1c4] sm:$0xf]
    %v9721 = vld [vmem:[#allocation9 + $0x1c8] sm:$0xf]
    %v9722 = vld [vmem:[#allocation9 + $0x1cc] sm:$0xf]
    %v9723 = vld [vmem:[#allocation9 + $0x1d0] sm:$0xf]
    %v9724 = vld [vmem:[#allocation9 + $0x1d4] sm:$0xf]
    %v9725 = vld [vmem:[#allocation9 + $0x1d8] sm:$0xf]
    %v9726 = vld [vmem:[#allocation9 + $0x1dc] sm:$0xf]
    %v9727 = vld [vmem:[#allocation9 + $0x1e0] sm:$0xf]
    %v9728 = vld [vmem:[#allocation9 + $0x1e4] sm:$0xf]
    %v9729 = vld [vmem:[#allocation9 + $0x1e8] sm:$0xf]
    %v9730 = vld [vmem:[#allocation9 + $0x1ec] sm:$0xf]
    %v9731 = vld [vmem:[#allocation9 + $0x1f0] sm:$0xf]
    %v9732 = vld [vmem:[#allocation9 + $0x1f4] sm:$0xf]
    %v9733 = vld [vmem:[#allocation9 + $0x1f8] sm:$0xf]
    %v9734 = vld [vmem:[#allocation9 + $0x1fc] sm:$0xf]
    %v9735 = vld [vmem:[#allocation9 + $0x200] sm:$0xf]
    %v9736 = vld [vmem:[#allocation9 + $0x204] sm:$0xf]
    %v9737 = vld [vmem:[#allocation9 + $0x208] sm:$0xf]
    %v9738 = vld [vmem:[#allocation9 + $0x20c] sm:$0xf]
    %v9739 = vld [vmem:[#allocation9 + $0x210] sm:$0xf]
    %v9740 = vld [vmem:[#allocation9 + $0x214] sm:$0xf]
    %v9741 = vld [vmem:[#allocation9 + $0x218] sm:$0xf]
    %v9742 = vld [vmem:[#allocation9 + $0x21c] sm:$0xf]
    %v9743 = vld [vmem:[#allocation9 + $0x220] sm:$0xf]
    %v9744 = vld [vmem:[#allocation9 + $0x224] sm:$0xf]
    %v9745 = vld [vmem:[#allocation9 + $0x228] sm:$0xf]
    %v9746 = vld [vmem:[#allocation9 + $0x22c] sm:$0xf]
    %v9747 = vld [vmem:[#allocation9 + $0x230] sm:$0xf]
    %v9748 = vld [vmem:[#allocation9 + $0x234] sm:$0xf]
    %v9749 = vld [vmem:[#allocation9 + $0x238] sm:$0xf]
    %v9750 = vld [vmem:[#allocation9 + $0x23c] sm:$0xf]
    %v9895 = vunpack.c.l.b16 %v9607
    %v9896 = vunpack.c.l.b16 %v9608
    %v9897 = vunpack.c.l.b16 %v9609
    %v9898 = vunpack.c.l.b16 %v9610
    %v9899 = vunpack.c.l.b16 %v9611
    %v9900 = vunpack.c.l.b16 %v9612
    %v9901 = vunpack.c.l.b16 %v9613
    %v9902 = vunpack.c.l.b16 %v9614
    %v9903 = vunpack.c.l.b16 %v9615
    %v9904 = vunpack.c.l.b16 %v9616
    %v9905 = vunpack.c.l.b16 %v9617
    %v9906 = vunpack.c.l.b16 %v9618
    %v9907 = vunpack.c.l.b16 %v9619
    %v9908 = vunpack.c.l.b16 %v9620
    %v9909 = vunpack.c.l.b16 %v9621
    %v9910 = vunpack.c.l.b16 %v9622
    %v9911 = vunpack.c.l.b16 %v9623
    %v9912 = vunpack.c.l.b16 %v9624
    %v9913 = vunpack.c.l.b16 %v9625
    %v9914 = vunpack.c.l.b16 %v9626
    %v9915 = vunpack.c.l.b16 %v9627
    %v9916 = vunpack.c.l.b16 %v9628
    %v9917 = vunpack.c.l.b16 %v9629
    %v9918 = vunpack.c.l.b16 %v9630
    %v9919 = vunpack.c.l.b16 %v9631
    %v9920 = vunpack.c.l.b16 %v9632
    %v9921 = vunpack.c.l.b16 %v9633
    %v9922 = vunpack.c.l.b16 %v9634
    %v9923 = vunpack.c.l.b16 %v9635
    %v9924 = vunpack.c.l.b16 %v9636
    %v9925 = vunpack.c.l.b16 %v9637
    %v9926 = vunpack.c.l.b16 %v9638
    %v9927 = vunpack.c.l.b16 %v9639
    %v9928 = vunpack.c.l.b16 %v9640
    %v9929 = vunpack.c.l.b16 %v9641
    %v9930 = vunpack.c.l.b16 %v9642
    %v9931 = vunpack.c.l.b16 %v9643
    %v9932 = vunpack.c.l.b16 %v9644
    %v9933 = vunpack.c.l.b16 %v9645
    %v9934 = vunpack.c.l.b16 %v9646
    %v9935 = vunpack.c.l.b16 %v9647
    %v9936 = vunpack.c.l.b16 %v9648
    %v9937 = vunpack.c.l.b16 %v9649
    %v9938 = vunpack.c.l.b16 %v9650
    %v9939 = vunpack.c.l.b16 %v9651
    %v9940 = vunpack.c.l.b16 %v9652
    %v9941 = vunpack.c.l.b16 %v9653
    %v9942 = vunpack.c.l.b16 %v9654
    %v9943 = vunpack.c.l.b16 %v9655
    %v9944 = vunpack.c.l.b16 %v9656
    %v9945 = vunpack.c.l.b16 %v9657
    %v9946 = vunpack.c.l.b16 %v9658
    %v9947 = vunpack.c.l.b16 %v9659
    %v9948 = vunpack.c.l.b16 %v9660
    %v9949 = vunpack.c.l.b16 %v9661
    %v9950 = vunpack.c.l.b16 %v9662
    %v9951 = vunpack.c.l.b16 %v9663
    %v9952 = vunpack.c.l.b16 %v9664
    %v9953 = vunpack.c.l.b16 %v9665
    %v9954 = vunpack.c.l.b16 %v9666
    %v9955 = vunpack.c.l.b16 %v9667
    %v9956 = vunpack.c.l.b16 %v9668
    %v9957 = vunpack.c.l.b16 %v9669
    %v9958 = vunpack.c.l.b16 %v9670
    %v9959 = vunpack.c.l.b16 %v9671
    %v9960 = vunpack.c.l.b16 %v9672
    %v9961 = vunpack.c.l.b16 %v9673
    %v9962 = vunpack.c.l.b16 %v9674
    %v9963 = vunpack.c.l.b16 %v9675
    %v9964 = vunpack.c.l.b16 %v9676
    %v9965 = vunpack.c.l.b16 %v9677
    %v9966 = vunpack.c.l.b16 %v9678
    %v9967 = vunpack.c.l.b16 %v9679
    %v9968 = vunpack.c.l.b16 %v9680
    %v9969 = vunpack.c.l.b16 %v9681
    %v9970 = vunpack.c.l.b16 %v9682
    %v9971 = vunpack.c.l.b16 %v9683
    %v9972 = vunpack.c.l.b16 %v9684
    %v9973 = vunpack.c.l.b16 %v9685
    %v9974 = vunpack.c.l.b16 %v9686
    %v9975 = vunpack.c.l.b16 %v9687
    %v9976 = vunpack.c.l.b16 %v9688
    %v9977 = vunpack.c.l.b16 %v9689
    %v9978 = vunpack.c.l.b16 %v9690
    %v9979 = vunpack.c.l.b16 %v9691
    %v9980 = vunpack.c.l.b16 %v9692
    %v9981 = vunpack.c.l.b16 %v9693
    %v9982 = vunpack.c.l.b16 %v9694
    %v9983 = vunpack.c.l.b16 %v9695
    %v9984 = vunpack.c.l.b16 %v9696
    %v9985 = vunpack.c.l.b16 %v9697
    %v9986 = vunpack.c.l.b16 %v9698
    %v9987 = vunpack.c.l.b16 %v9699
    %v9988 = vunpack.c.l.b16 %v9700
    %v9989 = vunpack.c.l.b16 %v9701
    %v9990 = vunpack.c.l.b16 %v9702
    %v9991 = vunpack.c.l.b16 %v9703
    %v9992 = vunpack.c.l.b16 %v9704
    %v9993 = vunpack.c.l.b16 %v9705
    %v9994 = vunpack.c.l.b16 %v9706
    %v9995 = vunpack.c.l.b16 %v9707
    %v9996 = vunpack.c.l.b16 %v9708
    %v9997 = vunpack.c.l.b16 %v9709
    %v9998 = vunpack.c.l.b16 %v9710
    %v9999 = vunpack.c.l.b16 %v9711
    %v10000 = vunpack.c.l.b16 %v9712
    %v10001 = vunpack.c.l.b16 %v9713
    %v10002 = vunpack.c.l.b16 %v9714
    %v10003 = vunpack.c.l.b16 %v9715
    %v10004 = vunpack.c.l.b16 %v9716
    %v10005 = vunpack.c.l.b16 %v9717
    %v10006 = vunpack.c.l.b16 %v9718
    %v10007 = vunpack.c.l.b16 %v9719
    %v10008 = vunpack.c.l.b16 %v9720
    %v10009 = vunpack.c.l.b16 %v9721
    %v10010 = vunpack.c.l.b16 %v9722
    %v10011 = vunpack.c.l.b16 %v9723
    %v10012 = vunpack.c.l.b16 %v9724
    %v10013 = vunpack.c.l.b16 %v9725
    %v10014 = vunpack.c.l.b16 %v9726
    %v10015 = vunpack.c.l.b16 %v9727
    %v10016 = vunpack.c.l.b16 %v9728
    %v10017 = vunpack.c.l.b16 %v9729
    %v10018 = vunpack.c.l.b16 %v9730
    %v10019 = vunpack.c.l.b16 %v9731
    %v10020 = vunpack.c.l.b16 %v9732
    %v10021 = vunpack.c.l.b16 %v9733
    %v10022 = vunpack.c.l.b16 %v9734
    %v10023 = vunpack.c.l.b16 %v9735
    %v10024 = vunpack.c.l.b16 %v9736
    %v10025 = vunpack.c.l.b16 %v9737
    %v10026 = vunpack.c.l.b16 %v9738
    %v10027 = vunpack.c.l.b16 %v9739
    %v10028 = vunpack.c.l.b16 %v9740
    %v10029 = vunpack.c.l.b16 %v9741
    %v10030 = vunpack.c.l.b16 %v9742
    %v10031 = vunpack.c.l.b16 %v9743
    %v10032 = vunpack.c.l.b16 %v9744
    %v10033 = vunpack.c.l.b16 %v9745
    %v10034 = vunpack.c.l.b16 %v9746
    %v10035 = vunpack.c.l.b16 %v9747
    %v10036 = vunpack.c.l.b16 %v9748
    %v10037 = vunpack.c.l.b16 %v9749
    %v10038 = vunpack.c.l.b16 %v9750
    %v10039 = vpack.c.b16 %v9896, %v9895
    %v10040 = vpack.c.b16 %v9898, %v9897
    %v10041 = vpack.c.b16 %v9900, %v9899
    %v10042 = vpack.c.b16 %v9902, %v9901
    %v10043 = vpack.c.b16 %v9904, %v9903
    %v10044 = vpack.c.b16 %v9906, %v9905
    %v10045 = vpack.c.b16 %v9908, %v9907
    %v10046 = vpack.c.b16 %v9910, %v9909
    %v10047 = vpack.c.b16 %v9912, %v9911
    %v10048 = vpack.c.b16 %v9914, %v9913
    %v10049 = vpack.c.b16 %v9916, %v9915
    %v10050 = vpack.c.b16 %v9918, %v9917
    %v10051 = vpack.c.b16 %v9920, %v9919
    %v10052 = vpack.c.b16 %v9922, %v9921
    %v10053 = vpack.c.b16 %v9924, %v9923
    %v10054 = vpack.c.b16 %v9926, %v9925
    %v10055 = vpack.c.b16 %v9928, %v9927
    %v10056 = vpack.c.b16 %v9930, %v9929
    %v10057 = vpack.c.b16 %v9932, %v9931
    %v10058 = vpack.c.b16 %v9934, %v9933
    %v10059 = vpack.c.b16 %v9936, %v9935
    %v10060 = vpack.c.b16 %v9938, %v9937
    %v10061 = vpack.c.b16 %v9940, %v9939
    %v10062 = vpack.c.b16 %v9942, %v9941
    %v10063 = vpack.c.b16 %v9944, %v9943
    %v10064 = vpack.c.b16 %v9946, %v9945
    %v10065 = vpack.c.b16 %v9948, %v9947
    %v10066 = vpack.c.b16 %v9950, %v9949
    %v10067 = vpack.c.b16 %v9952, %v9951
    %v10068 = vpack.c.b16 %v9954, %v9953
    %v10069 = vpack.c.b16 %v9956, %v9955
    %v10070 = vpack.c.b16 %v9958, %v9957
    %v10071 = vpack.c.b16 %v9960, %v9959
    %v10072 = vpack.c.b16 %v9962, %v9961
    %v10073 = vpack.c.b16 %v9964, %v9963
    %v10074 = vpack.c.b16 %v9966, %v9965
    %v10075 = vpack.c.b16 %v9968, %v9967
    %v10076 = vpack.c.b16 %v9970, %v9969
    %v10077 = vpack.c.b16 %v9972, %v9971
    %v10078 = vpack.c.b16 %v9974, %v9973
    %v10079 = vpack.c.b16 %v9976, %v9975
    %v10080 = vpack.c.b16 %v9978, %v9977
    %v10081 = vpack.c.b16 %v9980, %v9979
    %v10082 = vpack.c.b16 %v9982, %v9981
    %v10083 = vpack.c.b16 %v9984, %v9983
    %v10084 = vpack.c.b16 %v9986, %v9985
    %v10085 = vpack.c.b16 %v9988, %v9987
    %v10086 = vpack.c.b16 %v9990, %v9989
    %v10087 = vpack.c.b16 %v9992, %v9991
    %v10088 = vpack.c.b16 %v9994, %v9993
    %v10089 = vpack.c.b16 %v9996, %v9995
    %v10090 = vpack.c.b16 %v9998, %v9997
    %v10091 = vpack.c.b16 %v10000, %v9999
    %v10092 = vpack.c.b16 %v10002, %v10001
    %v10093 = vpack.c.b16 %v10004, %v10003
    %v10094 = vpack.c.b16 %v10006, %v10005
    %v10095 = vpack.c.b16 %v10008, %v10007
    %v10096 = vpack.c.b16 %v10010, %v10009
    %v10097 = vpack.c.b16 %v10012, %v10011
    %v10098 = vpack.c.b16 %v10014, %v10013
    %v10099 = vpack.c.b16 %v10016, %v10015
    %v10100 = vpack.c.b16 %v10018, %v10017
    %v10101 = vpack.c.b16 %v10020, %v10019
    %v10102 = vpack.c.b16 %v10022, %v10021
    %v10103 = vpack.c.b16 %v10024, %v10023
    %v10104 = vpack.c.b16 %v10026, %v10025
    %v10105 = vpack.c.b16 %v10028, %v10027
    %v10106 = vpack.c.b16 %v10030, %v10029
    %v10107 = vpack.c.b16 %v10032, %v10031
    %v10108 = vpack.c.b16 %v10034, %v10033
    %v10109 = vpack.c.b16 %v10036, %v10035
    %v10110 = vpack.c.b16 %v10038, %v10037
    %10183 = vmatprep.subr.bf16.mxu0 0
    %10184 = vmatpush1.bf16.msra.mxu0 %v10039
    %10185 = vmatprep.subr.bf16.mxu0 0
    %10186 = vmatpush1.bf16.msra.mxu0 %v10040
    %10187 = vmatprep.subr.bf16.mxu0 0
    %10188 = vmatpush1.bf16.msra.mxu0 %v10041
    %10189 = vmatprep.subr.bf16.mxu0 0
    %10190 = vmatpush1.bf16.msra.mxu0 %v10042
    %10191 = vmatprep.subr.bf16.mxu0 0
    %10192 = vmatpush1.bf16.msra.mxu0 %v10043
    %10193 = vmatprep.subr.bf16.mxu0 0
    %10194 = vmatpush1.bf16.msra.mxu0 %v10044
    %10195 = vmatprep.subr.bf16.mxu0 0
    %10196 = vmatpush1.bf16.msra.mxu0 %v10045
    %10197 = vmatprep.subr.bf16.mxu0 0
    %10198 = vmatpush1.bf16.msra.mxu0 %v10046
    %10199 = vmatprep.subr.bf16.mxu0 0
    %10200 = vmatpush1.bf16.msra.mxu0 %v10047
    %10201 = vmatprep.subr.bf16.mxu0 0
    %10202 = vmatpush1.bf16.msra.mxu0 %v10048
    %10203 = vmatprep.subr.bf16.mxu0 0
    %10204 = vmatpush1.bf16.msra.mxu0 %v10049
    %10205 = vmatprep.subr.bf16.mxu0 0
    %10206 = vmatpush1.bf16.msra.mxu0 %v10050
    %10207 = vmatprep.subr.bf16.mxu0 0
    %10208 = vmatpush1.bf16.msra.mxu0 %v10051
    %10209 = vmatprep.subr.bf16.mxu0 0
    %10210 = vmatpush1.bf16.msra.mxu0 %v10052
    %10211 = vmatprep.subr.bf16.mxu0 0
    %10212 = vmatpush1.bf16.msra.mxu0 %v10053
    %10213 = vmatprep.subr.bf16.mxu0 0
    %10214 = vmatpush1.bf16.msra.mxu0 %v10054
    %10215 = vmatprep.mubr.bf16.mxu0 %v9320
    %10216 = vmatmul.mubr.bf16.gmra.mrb[0].mxu0 %v9319
    %v10217 = vpop.f32.mrb[0].mxu0
    %v10218 = vadd.f32 0.0, %v10217
    %v10219 = vpop.f32.mrb[0].mxu0
    %v10220 = vpop.f32.mrb[0].mxu0
    %v10221 = vadd.f32 0.0, %v10220
    %v10222 = vpop.f32.mrb[0].mxu0
    %10223 = vmatprep.mubr.bf16.mxu0 %v9329
    %10224 = vmatmul.mubr.bf16.gmra.mrb[0].mxu0 %v9328
    %v10225 = vpop.f32.mrb[0].mxu0
    %v10226 = vadd.f32 0.0, %v10225
    %v10227 = vpop.f32.mrb[0].mxu0
    %v10228 = vpop.f32.mrb[0].mxu0
    %v10229 = vadd.f32 0.0, %v10228
    %v10230 = vpop.f32.mrb[0].mxu0
    %10231 = vmatprep.mubr.bf16.mxu0 %v9338
    %10232 = vmatmul.mubr.bf16.gmra.mrb[0].mxu0 %v9337
    %v10233 = vpop.f32.mrb[0].mxu0
    %v10234 = vadd.f32 0.0, %v10233
    %v10235 = vpop.f32.mrb[0].mxu0
    %v10236 = vpop.f32.mrb[0].mxu0
    %v10237 = vadd.f32 0.0, %v10236
    %v10238 = vpop.f32.mrb[0].mxu0
    %10239 = vmatprep.mubr.bf16.mxu0 %v9347
    %10240 = vmatmul.mubr.bf16.gmra.mrb[0].mxu0 %v9346
    %v10241 = vpop.f32.mrb[0].mxu0
    %v10242 = vadd.f32 0.0, %v10241
    %v10243 = vpop.f32.mrb[0].mxu0
    %v10244 = vpop.f32.mrb[0].mxu0
    %v10245 = vadd.f32 0.0, %v10244
    %v10246 = vpop.f32.mrb[0].mxu0
    %10247 = vmatprep.mubr.bf16.mxu0 %v9356
    %10248 = vmatmul.mubr.bf16.gmra.mrb[0].mxu0 %v9355
    %v10249 = vpop.f32.mrb[0].mxu0
    %v10250 = vadd.f32 0.0, %v10249
    %v10251 = vpop.f32.mrb[0].mxu0
    %v10252 = vpop.f32.mrb[0].mxu0
    %v10253 = vadd.f32 0.0, %v10252
    %v10254 = vpop.f32.mrb[0].mxu0
    %10255 = vmatprep.mubr.bf16.mxu0 %v9365
    %10256 = vmatmul.mubr.bf16.gmra.mrb[0].mxu0 %v9364
    %v10257 = vpop.f32.mrb[0].mxu0
    %v10258 = vadd.f32 0.0, %v10257
    %v10259 = vpop.f32.mrb[0].mxu0
    %v10260 = vpop.f32.mrb[0].mxu0
    %v10261 = vadd.f32 0.0, %v10260
    %v10262 = vpop.f32.mrb[0].mxu0
    %10263 = vmatprep.mubr.bf16.mxu0 %v9374
    %10264 = vmatmul.mubr.bf16.gmra.mrb[0].mxu0 %v9373
    %v10265 = vpop.f32.mrb[0].mxu0
    %v10266 = vadd.f32 0.0, %v10265
    %v10267 = vpop.f32.mrb[0].mxu0
    %v10268 = vpop.f32.mrb[0].mxu0
    %v10269 = vadd.f32 0.0, %v10268
    %v10270 = vpop.f32.mrb[0].mxu0
    %10271 = vmatprep.mubr.bf16.mxu0 %v9383
    %10272 = vmatmul.mubr.bf16.gmra.mrb[0].mxu0 %v9382
    %v10273 = vpop.f32.mrb[0].mxu0
    %v10274 = vadd.f32 0.0, %v10273
    %v10275 = vpop.f32.mrb[0].mxu0
    %v10276 = vpop.f32.mrb[0].mxu0
    %v10277 = vadd.f32 0.0, %v10276
    %v10278 = vpop.f32.mrb[0].mxu0
    %10279 = vmatprep.mubr.bf16.mxu0 %v9392
    %10280 = vmatmul.mubr.bf16.gmra.mrb[0].mxu0 %v9391
    %v10281 = vpop.f32.mrb[0].mxu0
    %v10282 = vadd.f32 0.0, %v10281
    %v10283 = vpop.f32.mrb[0].mxu0
    %v10284 = vpop.f32.mrb[0].mxu0
    %v10285 = vadd.f32 0.0, %v10284
    %v10286 = vpop.f32.mrb[0].mxu0
    %10287 = vmatprep.mubr.bf16.mxu0 %v9401
    %10288 = vmatmul.mubr.bf16.gmra.mrb[0].mxu0 %v9400
    %v10289 = vpop.f32.mrb[0].mxu0
    %v10290 = vadd.f32 0.0, %v10289
    %v10291 = vpop.f32.mrb[0].mxu0
    %v10292 = vpop.f32.mrb[0].mxu0
    %v10293 = vadd.f32 0.0, %v10292
    %v10294 = vpop.f32.mrb[0].mxu0
    %10295 = vmatprep.mubr.bf16.mxu0 %v9410
    %10296 = vmatmul.mubr.bf16.gmra.mrb[0].mxu0 %v9409
    %v10297 = vpop.f32.mrb[0].mxu0
    %v10298 = vadd.f32 0.0, %v10297
    %v10299 = vpop.f32.mrb[0].mxu0
    %v10300 = vpop.f32.mrb[0].mxu0
    %v10301 = vadd.f32 0.0, %v10300
    %v10302 = vpop.f32.mrb[0].mxu0
    %10303 = vmatprep.mubr.bf16.mxu0 %v9419
    %10304 = vmatmul.mubr.bf16.gmra.mrb[0].mxu0 %v9418
    %v10305 = vpop.f32.mrb[0].mxu0
    %v10306 = vadd.f32 0.0, %v10305
    %v10307 = vpop.f32.mrb[0].mxu0
    %v10308 = vpop.f32.mrb[0].mxu0
    %v10309 = vadd.f32 0.0, %v10308
    %v10310 = vpop.f32.mrb[0].mxu0
    %10311 = vmatprep.mubr.bf16.mxu0 %v9428
    %10312 = vmatmul.mubr.bf16.gmra.mrb[0].mxu0 %v9427
    %v10313 = vpop.f32.mrb[0].mxu0
    %v10314 = vadd.f32 0.0, %v10313
    %v10315 = vpop.f32.mrb[0].mxu0
    %v10316 = vpop.f32.mrb[0].mxu0
    %v10317 = vadd.f32 0.0, %v10316
    %v10318 = vpop.f32.mrb[0].mxu0
    %10319 = vmatprep.mubr.bf16.mxu0 %v9437
    %10320 = vmatmul.mubr.bf16.gmra.mrb[0].mxu0 %v9436
    %v10321 = vpop.f32.mrb[0].mxu0
    %v10322 = vadd.f32 0.0, %v10321
    %v10323 = vpop.f32.mrb[0].mxu0
    %v10324 = vpop.f32.mrb[0].mxu0
    %v10325 = vadd.f32 0.0, %v10324
    %v10326 = vpop.f32.mrb[0].mxu0
    %10327 = vmatprep.mubr.bf16.mxu0 %v9446
    %10328 = vmatmul.mubr.bf16.gmra.mrb[0].mxu0 %v9445
    %v10329 = vpop.f32.mrb[0].mxu0
    %v10330 = vadd.f32 0.0, %v10329
    %v10331 = vpop.f32.mrb[0].mxu0
    %v10332 = vpop.f32.mrb[0].mxu0
    %v10333 = vadd.f32 0.0, %v10332
    %v10334 = vpop.f32.mrb[0].mxu0
    %10335 = vmatprep.mubr.bf16.mxu0 %v9455
    %10336 = vmatmul.mubr.bf16.gmra.mrb[0].mxu0 %v9454
    %v10337 = vpop.f32.mrb[0].mxu0
    %v10338 = vadd.f32 0.0, %v10337
    %v10339 = vpop.f32.mrb[0].mxu0
    %v10340 = vpop.f32.mrb[0].mxu0
    %v10341 = vadd.f32 0.0, %v10340
    %v10342 = vpop.f32.mrb[0].mxu0
    %10343 = vmatprep.mubr.bf16.mxu0 %v9464
    %10344 = vmatmul.mubr.bf16.gmra.mrb[0].mxu0 %v9463
    %v10345 = vpop.f32.mrb[0].mxu0
    %v10346 = vadd.f32 0.0, %v10345
    %v10347 = vpop.f32.mrb[0].mxu0
    %v10348 = vpop.f32.mrb[0].mxu0
    %v10349 = vadd.f32 0.0, %v10348
    %v10350 = vpop.f32.mrb[0].mxu0
    %10351 = vmatprep.mubr.bf16.mxu0 %v9473
    %10352 = vmatmul.mubr.bf16.gmra.mrb[0].mxu0 %v9472
    %v10353 = vpop.f32.mrb[0].mxu0
    %v10354 = vadd.f32 0.0, %v10353
    %v10355 = vpop.f32.mrb[0].mxu0
    %v10356 = vpop.f32.mrb[0].mxu0
    %v10357 = vadd.f32 0.0, %v10356
    %v10358 = vpop.f32.mrb[0].mxu0
    %10359 = vmatprep.mubr.bf16.mxu0 %v9482
    %10360 = vmatmul.mubr.bf16.gmra.mrb[0].mxu0 %v9481
    %v10361 = vpop.f32.mrb[0].mxu0
    %v10362 = vadd.f32 0.0, %v10361
    %v10363 = vpop.f32.mrb[0].mxu0
    %v10364 = vpop.f32.mrb[0].mxu0
    %v10365 = vadd.f32 0.0, %v10364
    %v10366 = vpop.f32.mrb[0].mxu0
    %10367 = vmatprep.mubr.bf16.mxu0 %v9491
    %10368 = vmatmul.mubr.bf16.gmra.mrb[0].mxu0 %v9490
    %v10369 = vpop.f32.mrb[0].mxu0
    %v10370 = vadd.f32 0.0, %v10369
    %v10371 = vpop.f32.mrb[0].mxu0
    %v10372 = vpop.f32.mrb[0].mxu0
    %v10373 = vadd.f32 0.0, %v10372
    %v10374 = vpop.f32.mrb[0].mxu0
    %10375 = vmatprep.mubr.bf16.mxu0 %v9500
    %10376 = vmatmul.mubr.bf16.gmra.mrb[0].mxu0 %v9499
    %v10377 = vpop.f32.mrb[0].mxu0
    %v10378 = vadd.f32 0.0, %v10377
    %v10379 = vpop.f32.mrb[0].mxu0
    %v10380 = vpop.f32.mrb[0].mxu0
    %v10381 = vadd.f32 0.0, %v10380
    %v10382 = vpop.f32.mrb[0].mxu0
    %10383 = vmatprep.mubr.bf16.mxu0 %v9509
    %10384 = vmatmul.mubr.bf16.gmra.mrb[0].mxu0 %v9508
    %v10385 = vpop.f32.mrb[0].mxu0
    %v10386 = vadd.f32 0.0, %v10385
    %v10387 = vpop.f32.mrb[0].mxu0
    %v10388 = vpop.f32.mrb[0].mxu0
    %v10389 = vadd.f32 0.0, %v10388
    %v10390 = vpop.f32.mrb[0].mxu0
    %10391 = vmatprep.mubr.bf16.mxu0 %v9518
    %10392 = vmatmul.mubr.bf16.gmra.mrb[0].mxu0 %v9517
    %v10393 = vpop.f32.mrb[0].mxu0
    %v10394 = vadd.f32 0.0, %v10393
    %v10395 = vpop.f32.mrb[0].mxu0
    %v10396 = vpop.f32.mrb[0].mxu0
    %v10397 = vadd.f32 0.0, %v10396
    %v10398 = vpop.f32.mrb[0].mxu0
    %10399 = vmatprep.mubr.bf16.mxu0 %v9527
    %10400 = vmatmul.mubr.bf16.gmra.mrb[0].mxu0 %v9526
    %v10401 = vpop.f32.mrb[0].mxu0
    %v10402 = vadd.f32 0.0, %v10401
    %v10403 = vpop.f32.mrb[0].mxu0
    %v10404 = vpop.f32.mrb[0].mxu0
    %v10405 = vadd.f32 0.0, %v10404
    %v10406 = vpop.f32.mrb[0].mxu0
    %10407 = vmatprep.mubr.bf16.mxu0 %v9536
    %10408 = vmatmul.mubr.bf16.gmra.mrb[0].mxu0 %v9535
    %v10409 = vpop.f32.mrb[0].mxu0
    %v10410 = vadd.f32 0.0, %v10409
    %v10411 = vpop.f32.mrb[0].mxu0
    %v10412 = vpop.f32.mrb[0].mxu0
    %v10413 = vadd.f32 0.0, %v10412
    %v10414 = vpop.f32.mrb[0].mxu0
    %10415 = vmatprep.mubr.bf16.mxu0 %v9545
    %10416 = vmatmul.mubr.bf16.gmra.mrb[0].mxu0 %v9544
    %v10417 = vpop.f32.mrb[0].mxu0
    %v10418 = vadd.f32 0.0, %v10417
    %v10419 = vpop.f32.mrb[0].mxu0
    %v10420 = vpop.f32.mrb[0].mxu0
    %v10421 = vadd.f32 0.0, %v10420
    %v10422 = vpop.f32.mrb[0].mxu0
    %10423 = vmatprep.mubr.bf16.mxu0 %v9554
    %10424 = vmatmul.mubr.bf16.gmra.mrb[0].mxu0 %v9553
    %v10425 = vpop.f32.mrb[0].mxu0
    %v10426 = vadd.f32 0.0, %v10425
    %v10427 = vpop.f32.mrb[0].mxu0
    %v10428 = vpop.f32.mrb[0].mxu0
    %v10429 = vadd.f32 0.0, %v10428
    %v10430 = vpop.f32.mrb[0].mxu0
    %10431 = vmatprep.mubr.bf16.mxu0 %v9563
    %10432 = vmatmul.mubr.bf16.gmra.mrb[0].mxu0 %v9562
    %v10433 = vpop.f32.mrb[0].mxu0
    %v10434 = vadd.f32 0.0, %v10433
    %v10435 = vpop.f32.mrb[0].mxu0
    %v10436 = vpop.f32.mrb[0].mxu0
    %v10437 = vadd.f32 0.0, %v10436
    %v10438 = vpop.f32.mrb[0].mxu0
    %10439 = vmatprep.mubr.bf16.mxu0 %v9572
    %10440 = vmatmul.mubr.bf16.gmra.mrb[0].mxu0 %v9571
    %v10441 = vpop.f32.mrb[0].mxu0
    %v10442 = vadd.f32 0.0, %v10441
    %v10443 = vpop.f32.mrb[0].mxu0
    %v10444 = vpop.f32.mrb[0].mxu0
    %v10445 = vadd.f32 0.0, %v10444
    %v10446 = vpop.f32.mrb[0].mxu0
    %10447 = vmatprep.mubr.bf16.mxu0 %v9581
    %10448 = vmatmul.mubr.bf16.gmra.mrb[0].mxu0 %v9580
    %v10449 = vpop.f32.mrb[0].mxu0
    %v10450 = vadd.f32 0.0, %v10449
    %v10451 = vpop.f32.mrb[0].mxu0
    %v10452 = vpop.f32.mrb[0].mxu0
    %v10453 = vadd.f32 0.0, %v10452
    %v10454 = vpop.f32.mrb[0].mxu0
    %10455 = vmatprep.mubr.bf16.mxu0 %v9590
    %10456 = vmatmul.mubr.bf16.gmra.mrb[0].mxu0 %v9589
    %v10457 = vpop.f32.mrb[0].mxu0
    %v10458 = vadd.f32 0.0, %v10457
    %v10459 = vpop.f32.mrb[0].mxu0
    %v10460 = vpop.f32.mrb[0].mxu0
    %v10461 = vadd.f32 0.0, %v10460
    %v10462 = vpop.f32.mrb[0].mxu0
    %10463 = vmatprep.mubr.bf16.mxu0 %v9599
    %10464 = vmatmul.mubr.bf16.gmra.mrb[0].mxu0 %v9598
    %v10465 = vpop.f32.mrb[0].mxu0
    %v10466 = vadd.f32 0.0, %v10465
    %v10467 = vpop.f32.mrb[0].mxu0
    %v10468 = vpop.f32.mrb[0].mxu0
    %v10469 = vadd.f32 0.0, %v10468
    %v10470 = vpop.f32.mrb[0].mxu0
    %10471 = vdwg.mxu0
    %10472 = vmatprep.subr.bf16.mxu0 0
    %10473 = vmatpush1.bf16.msra.mxu0 %v10055
    %10474 = vmatprep.subr.bf16.mxu0 0
    %10475 = vmatpush1.bf16.msra.mxu0 %v10056
    %10476 = vmatprep.subr.bf16.mxu0 0
    %10477 = vmatpush1.bf16.msra.mxu0 %v10057
    %10478 = vmatprep.subr.bf16.mxu0 0
    %10479 = vmatpush1.bf16.msra.mxu0 %v10058
    %10480 = vmatprep.subr.bf16.mxu0 0
    %10481 = vmatpush1.bf16.msra.mxu0 %v10059
    %10482 = vmatprep.subr.bf16.mxu0 0
    %10483 = vmatpush1.bf16.msra.mxu0 %v10060
    %10484 = vmatprep.subr.bf16.mxu0 0
    %10485 = vmatpush1.bf16.msra.mxu0 %v10061
    %10486 = vmatprep.subr.bf16.mxu0 0
    %10487 = vmatpush1.bf16.msra.mxu0 %v10062
    %10488 = vmatprep.subr.bf16.mxu0 0
    %10489 = vmatpush1.bf16.msra.mxu0 %v10063
    %10490 = vmatprep.subr.bf16.mxu0 0
    %10491 = vmatpush1.bf16.msra.mxu0 %v10064
    %10492 = vmatprep.subr.bf16.mxu0 0
    %10493 = vmatpush1.bf16.msra.mxu0 %v10065
    %10494 = vmatprep.subr.bf16.mxu0 0
    %10495 = vmatpush1.bf16.msra.mxu0 %v10066
    %10496 = vmatprep.subr.bf16.mxu0 0
    %10497 = vmatpush1.bf16.msra.mxu0 %v10067
    %10498 = vmatprep.subr.bf16.mxu0 0
    %10499 = vmatpush1.bf16.msra.mxu0 %v10068
    %10500 = vmatprep.subr.bf16.mxu0 0
    %10501 = vmatpush1.bf16.msra.mxu0 %v10069
    %10502 = vmatprep.subr.bf16.mxu0 0
    %10503 = vmatpush1.bf16.msra.mxu0 %v10070
    %10504 = vmatprep.mubr.bf16.mxu0 %v9322
    %10505 = vmatmul.mubr.bf16.gmra.mrb[0].mxu0 %v9321
    %v10506 = vpop.f32.mrb[0].mxu0
    %v10507 = vadd.f32 %v10218, %v10506
    %v10508 = vpop.f32.mrb[0].mxu0
    %v10509 = vpop.f32.mrb[0].mxu0
    %v10510 = vadd.f32 %v10221, %v10509
    %v10511 = vpop.f32.mrb[0].mxu0
    %10512 = vmatprep.mubr.bf16.mxu0 %v9331
    %10513 = vmatmul.mubr.bf16.gmra.mrb[0].mxu0 %v9330
    %v10514 = vpop.f32.mrb[0].mxu0
    %v10515 = vadd.f32 %v10226, %v10514
    %v10516 = vpop.f32.mrb[0].mxu0
    %v10517 = vpop.f32.mrb[0].mxu0
    %v10518 = vadd.f32 %v10229, %v10517
    %v10519 = vpop.f32.mrb[0].mxu0
    %10520 = vmatprep.mubr.bf16.mxu0 %v9340
    %10521 = vmatmul.mubr.bf16.gmra.mrb[0].mxu0 %v9339
    %v10522 = vpop.f32.mrb[0].mxu0
    %v10523 = vadd.f32 %v10234, %v10522
    %v10524 = vpop.f32.mrb[0].mxu0
    %v10525 = vpop.f32.mrb[0].mxu0
    %v10526 = vadd.f32 %v10237, %v10525
    %v10527 = vpop.f32.mrb[0].mxu0
    %10528 = vmatprep.mubr.bf16.mxu0 %v9349
    %10529 = vmatmul.mubr.bf16.gmra.mrb[0].mxu0 %v9348
    %v10530 = vpop.f32.mrb[0].mxu0
    %v10531 = vadd.f32 %v10242, %v10530
    %v10532 = vpop.f32.mrb[0].mxu0
    %v10533 = vpop.f32.mrb[0].mxu0
    %v10534 = vadd.f32 %v10245, %v10533
    %v10535 = vpop.f32.mrb[0].mxu0
    %10536 = vmatprep.mubr.bf16.mxu0 %v9358
    %10537 = vmatmul.mubr.bf16.gmra.mrb[0].mxu0 %v9357
    %v10538 = vpop.f32.mrb[0].mxu0
    %v10539 = vadd.f32 %v10250, %v10538
    %v10540 = vpop.f32.mrb[0].mxu0
    %v10541 = vpop.f32.mrb[0].mxu0
    %v10542 = vadd.f32 %v10253, %v10541
    %v10543 = vpop.f32.mrb[0].mxu0
    %10544 = vmatprep.mubr.bf16.mxu0 %v9367
    %10545 = vmatmul.mubr.bf16.gmra.mrb[0].mxu0 %v9366
    %v10546 = vpop.f32.mrb[0].mxu0
    %v10547 = vadd.f32 %v10258, %v10546
    %v10548 = vpop.f32.mrb[0].mxu0
    %v10549 = vpop.f32.mrb[0].mxu0
    %v10550 = vadd.f32 %v10261, %v10549
    %v10551 = vpop.f32.mrb[0].mxu0
    %10552 = vmatprep.mubr.bf16.mxu0 %v9376
    %10553 = vmatmul.mubr.bf16.gmra.mrb[0].mxu0 %v9375
    %v10554 = vpop.f32.mrb[0].mxu0
    %v10555 = vadd.f32 %v10266, %v10554
    %v10556 = vpop.f32.mrb[0].mxu0
    %v10557 = vpop.f32.mrb[0].mxu0
    %v10558 = vadd.f32 %v10269, %v10557
    %v10559 = vpop.f32.mrb[0].mxu0
    %10560 = vmatprep.mubr.bf16.mxu0 %v9385
    %10561 = vmatmul.mubr.bf16.gmra.mrb[0].mxu0 %v9384
    %v10562 = vpop.f32.mrb[0].mxu0
    %v10563 = vadd.f32 %v10274, %v10562
    %v10564 = vpop.f32.mrb[0].mxu0
    %v10565 = vpop.f32.mrb[0].mxu0
    %v10566 = vadd.f32 %v10277, %v10565
    %v10567 = vpop.f32.mrb[0].mxu0
    %10568 = vmatprep.mubr.bf16.mxu0 %v9394
    %10569 = vmatmul.mubr.bf16.gmra.mrb[0].mxu0 %v9393
    %v10570 = vpop.f32.mrb[0].mxu0
    %v10571 = vadd.f32 %v10282, %v10570
    %v10572 = vpop.f32.mrb[0].mxu0
    %v10573 = vpop.f32.mrb[0].mxu0
    %v10574 = vadd.f32 %v10285, %v10573
    %v10575 = vpop.f32.mrb[0].mxu0
    %10576 = vmatprep.mubr.bf16.mxu0 %v9403
    %10577 = vmatmul.mubr.bf16.gmra.mrb[0].mxu0 %v9402
    %v10578 = vpop.f32.mrb[0].mxu0
    %v10579 = vadd.f32 %v10290, %v10578
    %v10580 = vpop.f32.mrb[0].mxu0
    %v10581 = vpop.f32.mrb[0].mxu0
    %v10582 = vadd.f32 %v10293, %v10581
    %v10583 = vpop.f32.mrb[0].mxu0
    %10584 = vmatprep.mubr.bf16.mxu0 %v9412
    %10585 = vmatmul.mubr.bf16.gmra.mrb[0].mxu0 %v9411
    %v10586 = vpop.f32.mrb[0].mxu0
    %v10587 = vadd.f32 %v10298, %v10586
    %v10588 = vpop.f32.mrb[0].mxu0
    %v10589 = vpop.f32.mrb[0].mxu0
    %v10590 = vadd.f32 %v10301, %v10589
    %v10591 = vpop.f32.mrb[0].mxu0
    %10592 = vmatprep.mubr.bf16.mxu0 %v9421
    %10593 = vmatmul.mubr.bf16.gmra.mrb[0].mxu0 %v9420
    %v10594 = vpop.f32.mrb[0].mxu0
    %v10595 = vadd.f32 %v10306, %v10594
    %v10596 = vpop.f32.mrb[0].mxu0
    %v10597 = vpop.f32.mrb[0].mxu0
    %v10598 = vadd.f32 %v10309, %v10597
    %v10599 = vpop.f32.mrb[0].mxu0
    %10600 = vmatprep.mubr.bf16.mxu0 %v9430
    %10601 = vmatmul.mubr.bf16.gmra.mrb[0].mxu0 %v9429
    %v10602 = vpop.f32.mrb[0].mxu0
    %v10603 = vadd.f32 %v10314, %v10602
    %v10604 = vpop.f32.mrb[0].mxu0
    %v10605 = vpop.f32.mrb[0].mxu0
    %v10606 = vadd.f32 %v10317, %v10605
    %v10607 = vpop.f32.mrb[0].mxu0
    %10608 = vmatprep.mubr.bf16.mxu0 %v9439
    %10609 = vmatmul.mubr.bf16.gmra.mrb[0].mxu0 %v9438
    %v10610 = vpop.f32.mrb[0].mxu0
    %v10611 = vadd.f32 %v10322, %v10610
    %v10612 = vpop.f32.mrb[0].mxu0
    %v10613 = vpop.f32.mrb[0].mxu0
    %v10614 = vadd.f32 %v10325, %v10613
    %v10615 = vpop.f32.mrb[0].mxu0
    %10616 = vmatprep.mubr.bf16.mxu0 %v9448
    %10617 = vmatmul.mubr.bf16.gmra.mrb[0].mxu0 %v9447
    %v10618 = vpop.f32.mrb[0].mxu0
    %v10619 = vadd.f32 %v10330, %v10618
    %v10620 = vpop.f32.mrb[0].mxu0
    %v10621 = vpop.f32.mrb[0].mxu0
    %v10622 = vadd.f32 %v10333, %v10621
    %v10623 = vpop.f32.mrb[0].mxu0
    %10624 = vmatprep.mubr.bf16.mxu0 %v9457
    %10625 = vmatmul.mubr.bf16.gmra.mrb[0].mxu0 %v9456
    %v10626 = vpop.f32.mrb[0].mxu0
    %v10627 = vadd.f32 %v10338, %v10626
    %v10628 = vpop.f32.mrb[0].mxu0
    %v10629 = vpop.f32.mrb[0].mxu0
    %v10630 = vadd.f32 %v10341, %v10629
    %v10631 = vpop.f32.mrb[0].mxu0
    %10632 = vmatprep.mubr.bf16.mxu0 %v9466
    %10633 = vmatmul.mubr.bf16.gmra.mrb[0].mxu0 %v9465
    %v10634 = vpop.f32.mrb[0].mxu0
    %v10635 = vadd.f32 %v10346, %v10634
    %v10636 = vpop.f32.mrb[0].mxu0
    %v10637 = vpop.f32.mrb[0].mxu0
    %v10638 = vadd.f32 %v10349, %v10637
    %v10639 = vpop.f32.mrb[0].mxu0
    %10640 = vmatprep.mubr.bf16.mxu0 %v9475
    %10641 = vmatmul.mubr.bf16.gmra.mrb[0].mxu0 %v9474
    %v10642 = vpop.f32.mrb[0].mxu0
    %v10643 = vadd.f32 %v10354, %v10642
    %v10644 = vpop.f32.mrb[0].mxu0
    %v10645 = vpop.f32.mrb[0].mxu0
    %v10646 = vadd.f32 %v10357, %v10645
    %v10647 = vpop.f32.mrb[0].mxu0
    %10648 = vmatprep.mubr.bf16.mxu0 %v9484
    %10649 = vmatmul.mubr.bf16.gmra.mrb[0].mxu0 %v9483
    %v10650 = vpop.f32.mrb[0].mxu0
    %v10651 = vadd.f32 %v10362, %v10650
    %v10652 = vpop.f32.mrb[0].mxu0
    %v10653 = vpop.f32.mrb[0].mxu0
    %v10654 = vadd.f32 %v10365, %v10653
    %v10655 = vpop.f32.mrb[0].mxu0
    %10656 = vmatprep.mubr.bf16.mxu0 %v9493
    %10657 = vmatmul.mubr.bf16.gmra.mrb[0].mxu0 %v9492
    %v10658 = vpop.f32.mrb[0].mxu0
    %v10659 = vadd.f32 %v10370, %v10658
    %v10660 = vpop.f32.mrb[0].mxu0
    %v10661 = vpop.f32.mrb[0].mxu0
    %v10662 = vadd.f32 %v10373, %v10661
    %v10663 = vpop.f32.mrb[0].mxu0
    %10664 = vmatprep.mubr.bf16.mxu0 %v9502
    %10665 = vmatmul.mubr.bf16.gmra.mrb[0].mxu0 %v9501
    %v10666 = vpop.f32.mrb[0].mxu0
    %v10667 = vadd.f32 %v10378, %v10666
    %v10668 = vpop.f32.mrb[0].mxu0
    %v10669 = vpop.f32.mrb[0].mxu0
    %v10670 = vadd.f32 %v10381, %v10669
    %v10671 = vpop.f32.mrb[0].mxu0
    %10672 = vmatprep.mubr.bf16.mxu0 %v9511
    %10673 = vmatmul.mubr.bf16.gmra.mrb[0].mxu0 %v9510
    %v10674 = vpop.f32.mrb[0].mxu0
    %v10675 = vadd.f32 %v10386, %v10674
    %v10676 = vpop.f32.mrb[0].mxu0
    %v10677 = vpop.f32.mrb[0].mxu0
    %v10678 = vadd.f32 %v10389, %v10677
    %v10679 = vpop.f32.mrb[0].mxu0
    %10680 = vmatprep.mubr.bf16.mxu0 %v9520
    %10681 = vmatmul.mubr.bf16.gmra.mrb[0].mxu0 %v9519
    %v10682 = vpop.f32.mrb[0].mxu0
    %v10683 = vadd.f32 %v10394, %v10682
    %v10684 = vpop.f32.mrb[0].mxu0
    %v10685 = vpop.f32.mrb[0].mxu0
    %v10686 = vadd.f32 %v10397, %v10685
    %v10687 = vpop.f32.mrb[0].mxu0
    %10688 = vmatprep.mubr.bf16.mxu0 %v9529
    %10689 = vmatmul.mubr.bf16.gmra.mrb[0].mxu0 %v9528
    %v10690 = vpop.f32.mrb[0].mxu0
    %v10691 = vadd.f32 %v10402, %v10690
    %v10692 = vpop.f32.mrb[0].mxu0
    %v10693 = vpop.f32.mrb[0].mxu0
    %v10694 = vadd.f32 %v10405, %v10693
    %v10695 = vpop.f32.mrb[0].mxu0
    %10696 = vmatprep.mubr.bf16.mxu0 %v9538
    %10697 = vmatmul.mubr.bf16.gmra.mrb[0].mxu0 %v9537
    %v10698 = vpop.f32.mrb[0].mxu0
    %v10699 = vadd.f32 %v10410, %v10698
    %v10700 = vpop.f32.mrb[0].mxu0
    %v10701 = vpop.f32.mrb[0].mxu0
    %v10702 = vadd.f32 %v10413, %v10701
    %v10703 = vpop.f32.mrb[0].mxu0
    %10704 = vmatprep.mubr.bf16.mxu0 %v9547
    %10705 = vmatmul.mubr.bf16.gmra.mrb[0].mxu0 %v9546
    %v10706 = vpop.f32.mrb[0].mxu0
    %v10707 = vadd.f32 %v10418, %v10706
    %v10708 = vpop.f32.mrb[0].mxu0
    %v10709 = vpop.f32.mrb[0].mxu0
    %v10710 = vadd.f32 %v10421, %v10709
    %v10711 = vpop.f32.mrb[0].mxu0
    %10712 = vmatprep.mubr.bf16.mxu0 %v9556
    %10713 = vmatmul.mubr.bf16.gmra.mrb[0].mxu0 %v9555
    %v10714 = vpop.f32.mrb[0].mxu0
    %v10715 = vadd.f32 %v10426, %v10714
    %v10716 = vpop.f32.mrb[0].mxu0
    %v10717 = vpop.f32.mrb[0].mxu0
    %v10718 = vadd.f32 %v10429, %v10717
    %v10719 = vpop.f32.mrb[0].mxu0
    %10720 = vmatprep.mubr.bf16.mxu0 %v9565
    %10721 = vmatmul.mubr.bf16.gmra.mrb[0].mxu0 %v9564
    %v10722 = vpop.f32.mrb[0].mxu0
    %v10723 = vadd.f32 %v10434, %v10722
    %v10724 = vpop.f32.mrb[0].mxu0
    %v10725 = vpop.f32.mrb[0].mxu0
    %v10726 = vadd.f32 %v10437, %v10725
    %v10727 = vpop.f32.mrb[0].mxu0
    %10728 = vmatprep.mubr.bf16.mxu0 %v9574
    %10729 = vmatmul.mubr.bf16.gmra.mrb[0].mxu0 %v9573
    %v10730 = vpop.f32.mrb[0].mxu0
    %v10731 = vadd.f32 %v10442, %v10730
    %v10732 = vpop.f32.mrb[0].mxu0
    %v10733 = vpop.f32.mrb[0].mxu0
    %v10734 = vadd.f32 %v10445, %v10733
    %v10735 = vpop.f32.mrb[0].mxu0
    %10736 = vmatprep.mubr.bf16.mxu0 %v9583
    %10737 = vmatmul.mubr.bf16.gmra.mrb[0].mxu0 %v9582
    %v10738 = vpop.f32.mrb[0].mxu0
    %v10739 = vadd.f32 %v10450, %v10738
    %v10740 = vpop.f32.mrb[0].mxu0
    %v10741 = vpop.f32.mrb[0].mxu0
    %v10742 = vadd.f32 %v10453, %v10741
    %v10743 = vpop.f32.mrb[0].mxu0
    %10744 = vmatprep.mubr.bf16.mxu0 %v9592
    %10745 = vmatmul.mubr.bf16.gmra.mrb[0].mxu0 %v9591
    %v10746 = vpop.f32.mrb[0].mxu0
    %v10747 = vadd.f32 %v10458, %v10746
    %v10748 = vpop.f32.mrb[0].mxu0
    %v10749 = vpop.f32.mrb[0].mxu0
    %v10750 = vadd.f32 %v10461, %v10749
    %v10751 = vpop.f32.mrb[0].mxu0
    %10752 = vmatprep.mubr.bf16.mxu0 %v9601
    %10753 = vmatmul.mubr.bf16.gmra.mrb[0].mxu0 %v9600
    %v10754 = vpop.f32.mrb[0].mxu0
    %v10755 = vadd.f32 %v10466, %v10754
    %v10756 = vpop.f32.mrb[0].mxu0
    %v10757 = vpop.f32.mrb[0].mxu0
    %v10758 = vadd.f32 %v10469, %v10757
    %v10759 = vpop.f32.mrb[0].mxu0
    %10760 = vdwg.mxu0
    %10761 = vmatprep.subr.bf16.mxu0 0
    %10762 = vmatpush1.bf16.msra.mxu0 %v10071
    %10763 = vmatprep.subr.bf16.mxu0 0
    %10764 = vmatpush1.bf16.msra.mxu0 %v10072
    %10765 = vmatprep.subr.bf16.mxu0 0
    %10766 = vmatpush1.bf16.msra.mxu0 %v10073
    %10767 = vmatprep.subr.bf16.mxu0 0
    %10768 = vmatpush1.bf16.msra.mxu0 %v10074
    %10769 = vmatprep.subr.bf16.mxu0 0
    %10770 = vmatpush1.bf16.msra.mxu0 %v10075
    %10771 = vmatprep.subr.bf16.mxu0 0
    %10772 = vmatpush1.bf16.msra.mxu0 %v10076
    %10773 = vmatprep.subr.bf16.mxu0 0
    %10774 = vmatpush1.bf16.msra.mxu0 %v10077
    %10775 = vmatprep.subr.bf16.mxu0 0
    %10776 = vmatpush1.bf16.msra.mxu0 %v10078
    %10777 = vmatprep.subr.bf16.mxu0 0
    %10778 = vmatpush1.bf16.msra.mxu0 %v10079
    %10779 = vmatprep.subr.bf16.mxu0 0
    %10780 = vmatpush1.bf16.msra.mxu0 %v10080
    %10781 = vmatprep.subr.bf16.mxu0 0
    %10782 = vmatpush1.bf16.msra.mxu0 %v10081
    %10783 = vmatprep.subr.bf16.mxu0 0
    %10784 = vmatpush1.bf16.msra.mxu0 %v10082
    %10785 = vmatprep.subr.bf16.mxu0 0
    %10786 = vmatpush1.bf16.msra.mxu0 %v10083
    %10787 = vmatprep.subr.bf16.mxu0 0
    %10788 = vmatpush1.bf16.msra.mxu0 %v10084
    %10789 = vmatprep.subr.bf16.mxu0 0
    %10790 = vmatpush1.bf16.msra.mxu0 %v10085
    %10791 = vmatprep.subr.bf16.mxu0 0
    %10792 = vmatpush1.bf16.msra.mxu0 %v10086
    %10793 = vmatprep.mubr.bf16.mxu0 %v9324
    %10794 = vmatmul.mubr.bf16.gmra.mrb[0].mxu0 %v9323
    %v10795 = vpop.f32.mrb[0].mxu0
    %v10796 = vadd.f32 %v10507, %v10795
    %v10797 = vpop.f32.mrb[0].mxu0
    %v10798 = vpop.f32.mrb[0].mxu0
    %v10799 = vadd.f32 %v10510, %v10798
    %v10800 = vpop.f32.mrb[0].mxu0
    %10801 = vmatprep.mubr.bf16.mxu0 %v9333
    %10802 = vmatmul.mubr.bf16.gmra.mrb[0].mxu0 %v9332
    %v10803 = vpop.f32.mrb[0].mxu0
    %v10804 = vadd.f32 %v10515, %v10803
    %v10805 = vpop.f32.mrb[0].mxu0
    %v10806 = vpop.f32.mrb[0].mxu0
    %v10807 = vadd.f32 %v10518, %v10806
    %v10808 = vpop.f32.mrb[0].mxu0
    %10809 = vmatprep.mubr.bf16.mxu0 %v9342
    %10810 = vmatmul.mubr.bf16.gmra.mrb[0].mxu0 %v9341
    %v10811 = vpop.f32.mrb[0].mxu0
    %v10812 = vadd.f32 %v10523, %v10811
    %v10813 = vpop.f32.mrb[0].mxu0
    %v10814 = vpop.f32.mrb[0].mxu0
    %v10815 = vadd.f32 %v10526, %v10814
    %v10816 = vpop.f32.mrb[0].mxu0
    %10817 = vmatprep.mubr.bf16.mxu0 %v9351
    %10818 = vmatmul.mubr.bf16.gmra.mrb[0].mxu0 %v9350
    %v10819 = vpop.f32.mrb[0].mxu0
    %v10820 = vadd.f32 %v10531, %v10819
    %v10821 = vpop.f32.mrb[0].mxu0
    %v10822 = vpop.f32.mrb[0].mxu0
    %v10823 = vadd.f32 %v10534, %v10822
    %v10824 = vpop.f32.mrb[0].mxu0
    %10825 = vmatprep.mubr.bf16.mxu0 %v9360
    %10826 = vmatmul.mubr.bf16.gmra.mrb[0].mxu0 %v9359
    %v10827 = vpop.f32.mrb[0].mxu0
    %v10828 = vadd.f32 %v10539, %v10827
    %v10829 = vpop.f32.mrb[0].mxu0
    %v10830 = vpop.f32.mrb[0].mxu0
    %v10831 = vadd.f32 %v10542, %v10830
    %v10832 = vpop.f32.mrb[0].mxu0
    %10833 = vmatprep.mubr.bf16.mxu0 %v9369
    %10834 = vmatmul.mubr.bf16.gmra.mrb[0].mxu0 %v9368
    %v10835 = vpop.f32.mrb[0].mxu0
    %v10836 = vadd.f32 %v10547, %v10835
    %v10837 = vpop.f32.mrb[0].mxu0
    %v10838 = vpop.f32.mrb[0].mxu0
    %v10839 = vadd.f32 %v10550, %v10838
    %v10840 = vpop.f32.mrb[0].mxu0
    %10841 = vmatprep.mubr.bf16.mxu0 %v9378
    %10842 = vmatmul.mubr.bf16.gmra.mrb[0].mxu0 %v9377
    %v10843 = vpop.f32.mrb[0].mxu0
    %v10844 = vadd.f32 %v10555, %v10843
    %v10845 = vpop.f32.mrb[0].mxu0
    %v10846 = vpop.f32.mrb[0].mxu0
    %v10847 = vadd.f32 %v10558, %v10846
    %v10848 = vpop.f32.mrb[0].mxu0
    %10849 = vmatprep.mubr.bf16.mxu0 %v9387
    %10850 = vmatmul.mubr.bf16.gmra.mrb[0].mxu0 %v9386
    %v10851 = vpop.f32.mrb[0].mxu0
    %v10852 = vadd.f32 %v10563, %v10851
    %v10853 = vpop.f32.mrb[0].mxu0
    %v10854 = vpop.f32.mrb[0].mxu0
    %v10855 = vadd.f32 %v10566, %v10854
    %v10856 = vpop.f32.mrb[0].mxu0
    %10857 = vmatprep.mubr.bf16.mxu0 %v9396
    %10858 = vmatmul.mubr.bf16.gmra.mrb[0].mxu0 %v9395
    %v10859 = vpop.f32.mrb[0].mxu0
    %v10860 = vadd.f32 %v10571, %v10859
    %v10861 = vpop.f32.mrb[0].mxu0
    %v10862 = vpop.f32.mrb[0].mxu0
    %v10863 = vadd.f32 %v10574, %v10862
    %v10864 = vpop.f32.mrb[0].mxu0
    %10865 = vmatprep.mubr.bf16.mxu0 %v9405
    %10866 = vmatmul.mubr.bf16.gmra.mrb[0].mxu0 %v9404
    %v10867 = vpop.f32.mrb[0].mxu0
    %v10868 = vadd.f32 %v10579, %v10867
    %v10869 = vpop.f32.mrb[0].mxu0
    %v10870 = vpop.f32.mrb[0].mxu0
    %v10871 = vadd.f32 %v10582, %v10870
    %v10872 = vpop.f32.mrb[0].mxu0
    %10873 = vmatprep.mubr.bf16.mxu0 %v9414
    %10874 = vmatmul.mubr.bf16.gmra.mrb[0].mxu0 %v9413
    %v10875 = vpop.f32.mrb[0].mxu0
    %v10876 = vadd.f32 %v10587, %v10875
    %v10877 = vpop.f32.mrb[0].mxu0
    %v10878 = vpop.f32.mrb[0].mxu0
    %v10879 = vadd.f32 %v10590, %v10878
    %v10880 = vpop.f32.mrb[0].mxu0
    %10881 = vmatprep.mubr.bf16.mxu0 %v9423
    %10882 = vmatmul.mubr.bf16.gmra.mrb[0].mxu0 %v9422
    %v10883 = vpop.f32.mrb[0].mxu0
    %v10884 = vadd.f32 %v10595, %v10883
    %v10885 = vpop.f32.mrb[0].mxu0
    %v10886 = vpop.f32.mrb[0].mxu0
    %v10887 = vadd.f32 %v10598, %v10886
    %v10888 = vpop.f32.mrb[0].mxu0
    %10889 = vmatprep.mubr.bf16.mxu0 %v9432
    %10890 = vmatmul.mubr.bf16.gmra.mrb[0].mxu0 %v9431
    %v10891 = vpop.f32.mrb[0].mxu0
    %v10892 = vadd.f32 %v10603, %v10891
    %v10893 = vpop.f32.mrb[0].mxu0
    %v10894 = vpop.f32.mrb[0].mxu0
    %v10895 = vadd.f32 %v10606, %v10894
    %v10896 = vpop.f32.mrb[0].mxu0
    %10897 = vmatprep.mubr.bf16.mxu0 %v9441
    %10898 = vmatmul.mubr.bf16.gmra.mrb[0].mxu0 %v9440
    %v10899 = vpop.f32.mrb[0].mxu0
    %v10900 = vadd.f32 %v10611, %v10899
    %v10901 = vpop.f32.mrb[0].mxu0
    %v10902 = vpop.f32.mrb[0].mxu0
    %v10903 = vadd.f32 %v10614, %v10902
    %v10904 = vpop.f32.mrb[0].mxu0
    %10905 = vmatprep.mubr.bf16.mxu0 %v9450
    %10906 = vmatmul.mubr.bf16.gmra.mrb[0].mxu0 %v9449
    %v10907 = vpop.f32.mrb[0].mxu0
    %v10908 = vadd.f32 %v10619, %v10907
    %v10909 = vpop.f32.mrb[0].mxu0
    %v10910 = vpop.f32.mrb[0].mxu0
    %v10911 = vadd.f32 %v10622, %v10910
    %v10912 = vpop.f32.mrb[0].mxu0
    %10913 = vmatprep.mubr.bf16.mxu0 %v9459
    %10914 = vmatmul.mubr.bf16.gmra.mrb[0].mxu0 %v9458
    %v10915 = vpop.f32.mrb[0].mxu0
    %v10916 = vadd.f32 %v10627, %v10915
    %v10917 = vpop.f32.mrb[0].mxu0
    %v10918 = vpop.f32.mrb[0].mxu0
    %v10919 = vadd.f32 %v10630, %v10918
    %v10920 = vpop.f32.mrb[0].mxu0
    %10921 = vmatprep.mubr.bf16.mxu0 %v9468
    %10922 = vmatmul.mubr.bf16.gmra.mrb[0].mxu0 %v9467
    %v10923 = vpop.f32.mrb[0].mxu0
    %v10924 = vadd.f32 %v10635, %v10923
    %v10925 = vpop.f32.mrb[0].mxu0
    %v10926 = vpop.f32.mrb[0].mxu0
    %v10927 = vadd.f32 %v10638, %v10926
    %v10928 = vpop.f32.mrb[0].mxu0
    %10929 = vmatprep.mubr.bf16.mxu0 %v9477
    %10930 = vmatmul.mubr.bf16.gmra.mrb[0].mxu0 %v9476
    %v10931 = vpop.f32.mrb[0].mxu0
    %v10932 = vadd.f32 %v10643, %v10931
    %v10933 = vpop.f32.mrb[0].mxu0
    %v10934 = vpop.f32.mrb[0].mxu0
    %v10935 = vadd.f32 %v10646, %v10934
    %v10936 = vpop.f32.mrb[0].mxu0
    %10937 = vmatprep.mubr.bf16.mxu0 %v9486
    %10938 = vmatmul.mubr.bf16.gmra.mrb[0].mxu0 %v9485
    %v10939 = vpop.f32.mrb[0].mxu0
    %v10940 = vadd.f32 %v10651, %v10939
    %v10941 = vpop.f32.mrb[0].mxu0
    %v10942 = vpop.f32.mrb[0].mxu0
    %v10943 = vadd.f32 %v10654, %v10942
    %v10944 = vpop.f32.mrb[0].mxu0
    %10945 = vmatprep.mubr.bf16.mxu0 %v9495
    %10946 = vmatmul.mubr.bf16.gmra.mrb[0].mxu0 %v9494
    %v10947 = vpop.f32.mrb[0].mxu0
    %v10948 = vadd.f32 %v10659, %v10947
    %v10949 = vpop.f32.mrb[0].mxu0
    %v10950 = vpop.f32.mrb[0].mxu0
    %v10951 = vadd.f32 %v10662, %v10950
    %v10952 = vpop.f32.mrb[0].mxu0
    %10953 = vmatprep.mubr.bf16.mxu0 %v9504
    %10954 = vmatmul.mubr.bf16.gmra.mrb[0].mxu0 %v9503
    %v10955 = vpop.f32.mrb[0].mxu0
    %v10956 = vadd.f32 %v10667, %v10955
    %v10957 = vpop.f32.mrb[0].mxu0
    %v10958 = vpop.f32.mrb[0].mxu0
    %v10959 = vadd.f32 %v10670, %v10958
    %v10960 = vpop.f32.mrb[0].mxu0
    %10961 = vmatprep.mubr.bf16.mxu0 %v9513
    %10962 = vmatmul.mubr.bf16.gmra.mrb[0].mxu0 %v9512
    %v10963 = vpop.f32.mrb[0].mxu0
    %v10964 = vadd.f32 %v10675, %v10963
    %v10965 = vpop.f32.mrb[0].mxu0
    %v10966 = vpop.f32.mrb[0].mxu0
    %v10967 = vadd.f32 %v10678, %v10966
    %v10968 = vpop.f32.mrb[0].mxu0
    %10969 = vmatprep.mubr.bf16.mxu0 %v9522
    %10970 = vmatmul.mubr.bf16.gmra.mrb[0].mxu0 %v9521
    %v10971 = vpop.f32.mrb[0].mxu0
    %v10972 = vadd.f32 %v10683, %v10971
    %v10973 = vpop.f32.mrb[0].mxu0
    %v10974 = vpop.f32.mrb[0].mxu0
    %v10975 = vadd.f32 %v10686, %v10974
    %v10976 = vpop.f32.mrb[0].mxu0
    %10977 = vmatprep.mubr.bf16.mxu0 %v9531
    %10978 = vmatmul.mubr.bf16.gmra.mrb[0].mxu0 %v9530
    %v10979 = vpop.f32.mrb[0].mxu0
    %v10980 = vadd.f32 %v10691, %v10979
    %v10981 = vpop.f32.mrb[0].mxu0
    %v10982 = vpop.f32.mrb[0].mxu0
    %v10983 = vadd.f32 %v10694, %v10982
    %v10984 = vpop.f32.mrb[0].mxu0
    %10985 = vmatprep.mubr.bf16.mxu0 %v9540
    %10986 = vmatmul.mubr.bf16.gmra.mrb[0].mxu0 %v9539
    %v10987 = vpop.f32.mrb[0].mxu0
    %v10988 = vadd.f32 %v10699, %v10987
    %v10989 = vpop.f32.mrb[0].mxu0
    %v10990 = vpop.f32.mrb[0].mxu0
    %v10991 = vadd.f32 %v10702, %v10990
    %v10992 = vpop.f32.mrb[0].mxu0
    %10993 = vmatprep.mubr.bf16.mxu0 %v9549
    %10994 = vmatmul.mubr.bf16.gmra.mrb[0].mxu0 %v9548
    %v10995 = vpop.f32.mrb[0].mxu0
    %v10996 = vadd.f32 %v10707, %v10995
    %v10997 = vpop.f32.mrb[0].mxu0
    %v10998 = vpop.f32.mrb[0].mxu0
    %v10999 = vadd.f32 %v10710, %v10998
    %v11000 = vpop.f32.mrb[0].mxu0
    %11001 = vmatprep.mubr.bf16.mxu0 %v9558
    %11002 = vmatmul.mubr.bf16.gmra.mrb[0].mxu0 %v9557
    %v11003 = vpop.f32.mrb[0].mxu0
    %v11004 = vadd.f32 %v10715, %v11003
    %v11005 = vpop.f32.mrb[0].mxu0
    %v11006 = vpop.f32.mrb[0].mxu0
    %v11007 = vadd.f32 %v10718, %v11006
    %v11008 = vpop.f32.mrb[0].mxu0
    %11009 = vmatprep.mubr.bf16.mxu0 %v9567
    %11010 = vmatmul.mubr.bf16.gmra.mrb[0].mxu0 %v9566
    %v11011 = vpop.f32.mrb[0].mxu0
    %v11012 = vadd.f32 %v10723, %v11011
    %v11013 = vpop.f32.mrb[0].mxu0
    %v11014 = vpop.f32.mrb[0].mxu0
    %v11015 = vadd.f32 %v10726, %v11014
    %v11016 = vpop.f32.mrb[0].mxu0
    %11017 = vmatprep.mubr.bf16.mxu0 %v9576
    %11018 = vmatmul.mubr.bf16.gmra.mrb[0].mxu0 %v9575
    %v11019 = vpop.f32.mrb[0].mxu0
    %v11020 = vadd.f32 %v10731, %v11019
    %v11021 = vpop.f32.mrb[0].mxu0
    %v11022 = vpop.f32.mrb[0].mxu0
    %v11023 = vadd.f32 %v10734, %v11022
    %v11024 = vpop.f32.mrb[0].mxu0
    %11025 = vmatprep.mubr.bf16.mxu0 %v9585
    %11026 = vmatmul.mubr.bf16.gmra.mrb[0].mxu0 %v9584
    %v11027 = vpop.f32.mrb[0].mxu0
    %v11028 = vadd.f32 %v10739, %v11027
    %v11029 = vpop.f32.mrb[0].mxu0
    %v11030 = vpop.f32.mrb[0].mxu0
    %v11031 = vadd.f32 %v10742, %v11030
    %v11032 = vpop.f32.mrb[0].mxu0
    %11033 = vmatprep.mubr.bf16.mxu0 %v9594
    %11034 = vmatmul.mubr.bf16.gmra.mrb[0].mxu0 %v9593
    %v11035 = vpop.f32.mrb[0].mxu0
    %v11036 = vadd.f32 %v10747, %v11035
    %v11037 = vpop.f32.mrb[0].mxu0
    %v11038 = vpop.f32.mrb[0].mxu0
    %v11039 = vadd.f32 %v10750, %v11038
    %v11040 = vpop.f32.mrb[0].mxu0
    %11041 = vmatprep.mubr.bf16.mxu0 %v9603
    %11042 = vmatmul.mubr.bf16.gmra.mrb[0].mxu0 %v9602
    %v11043 = vpop.f32.mrb[0].mxu0
    %v11044 = vadd.f32 %v10755, %v11043
    %v11045 = vpop.f32.mrb[0].mxu0
    %v11046 = vpop.f32.mrb[0].mxu0
    %v11047 = vadd.f32 %v10758, %v11046
    %v11048 = vpop.f32.mrb[0].mxu0
    %11049 = vdwg.mxu0
    %11050 = vmatprep.subr.bf16.mxu0 0
    %11051 = vmatpush1.bf16.msra.mxu0 %v10087
    %11052 = vmatprep.subr.bf16.mxu0 0
    %11053 = vmatpush1.bf16.msra.mxu0 %v10088
    %11054 = vmatprep.subr.bf16.mxu0 0
    %11055 = vmatpush1.bf16.msra.mxu0 %v10089
    %11056 = vmatprep.subr.bf16.mxu0 0
    %11057 = vmatpush1.bf16.msra.mxu0 %v10090
    %11058 = vmatprep.subr.bf16.mxu0 0
    %11059 = vmatpush1.bf16.msra.mxu0 %v10091
    %11060 = vmatprep.subr.bf16.mxu0 0
    %11061 = vmatpush1.bf16.msra.mxu0 %v10092
    %11062 = vmatprep.subr.bf16.mxu0 0
    %11063 = vmatpush1.bf16.msra.mxu0 %v10093
    %11064 = vmatprep.subr.bf16.mxu0 0
    %11065 = vmatpush1.bf16.msra.mxu0 %v10094
    %11066 = vmatprep.subr.bf16.mxu0 0
    %11067 = vmatpush1.bf16.msra.mxu0 %v10095
    %11068 = vmatprep.subr.bf16.mxu0 0
    %11069 = vmatpush1.bf16.msra.mxu0 %v10096
    %11070 = vmatprep.subr.bf16.mxu0 0
    %11071 = vmatpush1.bf16.msra.mxu0 %v10097
    %11072 = vmatprep.subr.bf16.mxu0 0
    %11073 = vmatpush1.bf16.msra.mxu0 %v10098
    %11074 = vmatprep.subr.bf16.mxu0 0
    %11075 = vmatpush1.bf16.msra.mxu0 %v10099
    %11076 = vmatprep.subr.bf16.mxu0 0
    %11077 = vmatpush1.bf16.msra.mxu0 %v10100
    %11078 = vmatprep.subr.bf16.mxu0 0
    %11079 = vmatpush1.bf16.msra.mxu0 %v10101
    %11080 = vmatprep.subr.bf16.mxu0 0
    %11081 = vmatpush1.bf16.msra.mxu0 %v10102
    %11082 = vmatprep.mubr.bf16.mxu0 %v9326
    %11083 = vmatmul.mubr.bf16.gmra.mrb[0].mxu0 %v9325
    %v11084 = vpop.f32.mrb[0].mxu0
    %v11085 = vadd.f32 %v10796, %v11084
    %v11086 = vpop.f32.mrb[0].mxu0
    %v11087 = vpop.f32.mrb[0].mxu0
    %v11088 = vadd.f32 %v10799, %v11087
    %v11089 = vpop.f32.mrb[0].mxu0
    %11090 = vmatprep.mubr.bf16.mxu0 %v9335
    %11091 = vmatmul.mubr.bf16.gmra.mrb[0].mxu0 %v9334
    %v11092 = vpop.f32.mrb[0].mxu0
    %v11093 = vadd.f32 %v10804, %v11092
    %v11094 = vpop.f32.mrb[0].mxu0
    %v11095 = vpop.f32.mrb[0].mxu0
    %v11096 = vadd.f32 %v10807, %v11095
    %v11097 = vpop.f32.mrb[0].mxu0
    %11098 = vmatprep.mubr.bf16.mxu0 %v9344
    %11099 = vmatmul.mubr.bf16.gmra.mrb[0].mxu0 %v9343
    %v11100 = vpop.f32.mrb[0].mxu0
    %v11101 = vadd.f32 %v10812, %v11100
    %v11102 = vpop.f32.mrb[0].mxu0
    %v11103 = vpop.f32.mrb[0].mxu0
    %v11104 = vadd.f32 %v10815, %v11103
    %v11105 = vpop.f32.mrb[0].mxu0
    %11106 = vmatprep.mubr.bf16.mxu0 %v9353
    %11107 = vmatmul.mubr.bf16.gmra.mrb[0].mxu0 %v9352
    %v11108 = vpop.f32.mrb[0].mxu0
    %v11109 = vadd.f32 %v10820, %v11108
    %v11110 = vpop.f32.mrb[0].mxu0
    %v11111 = vpop.f32.mrb[0].mxu0
    %v11112 = vadd.f32 %v10823, %v11111
    %v11113 = vpop.f32.mrb[0].mxu0
    %11114 = vmatprep.mubr.bf16.mxu0 %v9362
    %11115 = vmatmul.mubr.bf16.gmra.mrb[0].mxu0 %v9361
    %v11116 = vpop.f32.mrb[0].mxu0
    %v11117 = vadd.f32 %v10828, %v11116
    %v11118 = vpop.f32.mrb[0].mxu0
    %v11119 = vpop.f32.mrb[0].mxu0
    %v11120 = vadd.f32 %v10831, %v11119
    %v11121 = vpop.f32.mrb[0].mxu0
    %11122 = vmatprep.mubr.bf16.mxu0 %v9371
    %11123 = vmatmul.mubr.bf16.gmra.mrb[0].mxu0 %v9370
    %v11124 = vpop.f32.mrb[0].mxu0
    %v11125 = vadd.f32 %v10836, %v11124
    %v11126 = vpop.f32.mrb[0].mxu0
    %v11127 = vpop.f32.mrb[0].mxu0
    %v11128 = vadd.f32 %v10839, %v11127
    %v11129 = vpop.f32.mrb[0].mxu0
    %11130 = vmatprep.mubr.bf16.mxu0 %v9380
    %11131 = vmatmul.mubr.bf16.gmra.mrb[0].mxu0 %v9379
    %v11132 = vpop.f32.mrb[0].mxu0
    %v11133 = vadd.f32 %v10844, %v11132
    %v11134 = vpop.f32.mrb[0].mxu0
    %v11135 = vpop.f32.mrb[0].mxu0
    %v11136 = vadd.f32 %v10847, %v11135
    %v11137 = vpop.f32.mrb[0].mxu0
    %11138 = vmatprep.mubr.bf16.mxu0 %v9389
    %11139 = vmatmul.mubr.bf16.gmra.mrb[0].mxu0 %v9388
    %v11140 = vpop.f32.mrb[0].mxu0
    %v11141 = vadd.f32 %v10852, %v11140
    %v11142 = vpop.f32.mrb[0].mxu0
    %v11143 = vpop.f32.mrb[0].mxu0
    %v11144 = vadd.f32 %v10855, %v11143
    %v11145 = vpop.f32.mrb[0].mxu0
    %11146 = vmatprep.mubr.bf16.mxu0 %v9398
    %11147 = vmatmul.mubr.bf16.gmra.mrb[0].mxu0 %v9397
    %v11148 = vpop.f32.mrb[0].mxu0
    %v11149 = vadd.f32 %v10860, %v11148
    %v11150 = vpop.f32.mrb[0].mxu0
    %v11151 = vpop.f32.mrb[0].mxu0
    %v11152 = vadd.f32 %v10863, %v11151
    %v11153 = vpop.f32.mrb[0].mxu0
    %11154 = vmatprep.mubr.bf16.mxu0 %v9407
    %11155 = vmatmul.mubr.bf16.gmra.mrb[0].mxu0 %v9406
    %v11156 = vpop.f32.mrb[0].mxu0
    %v11157 = vadd.f32 %v10868, %v11156
    %v11158 = vpop.f32.mrb[0].mxu0
    %v11159 = vpop.f32.mrb[0].mxu0
    %v11160 = vadd.f32 %v10871, %v11159
    %v11161 = vpop.f32.mrb[0].mxu0
    %11162 = vmatprep.mubr.bf16.mxu0 %v9416
    %11163 = vmatmul.mubr.bf16.gmra.mrb[0].mxu0 %v9415
    %v11164 = vpop.f32.mrb[0].mxu0
    %v11165 = vadd.f32 %v10876, %v11164
    %v11166 = vpop.f32.mrb[0].mxu0
    %v11167 = vpop.f32.mrb[0].mxu0
    %v11168 = vadd.f32 %v10879, %v11167
    %v11169 = vpop.f32.mrb[0].mxu0
    %11170 = vmatprep.mubr.bf16.mxu0 %v9425
    %11171 = vmatmul.mubr.bf16.gmra.mrb[0].mxu0 %v9424
    %v11172 = vpop.f32.mrb[0].mxu0
    %v11173 = vadd.f32 %v10884, %v11172
    %v11174 = vpop.f32.mrb[0].mxu0
    %v11175 = vpop.f32.mrb[0].mxu0
    %v11176 = vadd.f32 %v10887, %v11175
    %v11177 = vpop.f32.mrb[0].mxu0
    %11178 = vmatprep.mubr.bf16.mxu0 %v9434
    %11179 = vmatmul.mubr.bf16.gmra.mrb[0].mxu0 %v9433
    %v11180 = vpop.f32.mrb[0].mxu0
    %v11181 = vadd.f32 %v10892, %v11180
    %v11182 = vpop.f32.mrb[0].mxu0
    %v11183 = vpop.f32.mrb[0].mxu0
    %v11184 = vadd.f32 %v10895, %v11183
    %v11185 = vpop.f32.mrb[0].mxu0
    %11186 = vmatprep.mubr.bf16.mxu0 %v9443
    %11187 = vmatmul.mubr.bf16.gmra.mrb[0].mxu0 %v9442
    %v11188 = vpop.f32.mrb[0].mxu0
    %v11189 = vadd.f32 %v10900, %v11188
    %v11190 = vpop.f32.mrb[0].mxu0
    %v11191 = vpop.f32.mrb[0].mxu0
    %v11192 = vadd.f32 %v10903, %v11191
    %v11193 = vpop.f32.mrb[0].mxu0
    %11194 = vmatprep.mubr.bf16.mxu0 %v9452
    %11195 = vmatmul.mubr.bf16.gmra.mrb[0].mxu0 %v9451
    %v11196 = vpop.f32.mrb[0].mxu0
    %v11197 = vadd.f32 %v10908, %v11196
    %v11198 = vpop.f32.mrb[0].mxu0
    %v11199 = vpop.f32.mrb[0].mxu0
    %v11200 = vadd.f32 %v10911, %v11199
    %v11201 = vpop.f32.mrb[0].mxu0
    %11202 = vmatprep.mubr.bf16.mxu0 %v9461
    %11203 = vmatmul.mubr.bf16.gmra.mrb[0].mxu0 %v9460
    %v11204 = vpop.f32.mrb[0].mxu0
    %v11205 = vadd.f32 %v10916, %v11204
    %v11206 = vpop.f32.mrb[0].mxu0
    %v11207 = vpop.f32.mrb[0].mxu0
    %v11208 = vadd.f32 %v10919, %v11207
    %v11209 = vpop.f32.mrb[0].mxu0
    %11210 = vmatprep.mubr.bf16.mxu0 %v9470
    %11211 = vmatmul.mubr.bf16.gmra.mrb[0].mxu0 %v9469
    %v11212 = vpop.f32.mrb[0].mxu0
    %v11213 = vadd.f32 %v10924, %v11212
    %v11214 = vpop.f32.mrb[0].mxu0
    %v11215 = vpop.f32.mrb[0].mxu0
    %v11216 = vadd.f32 %v10927, %v11215
    %v11217 = vpop.f32.mrb[0].mxu0
    %11218 = vmatprep.mubr.bf16.mxu0 %v9479
    %11219 = vmatmul.mubr.bf16.gmra.mrb[0].mxu0 %v9478
    %v11220 = vpop.f32.mrb[0].mxu0
    %v11221 = vadd.f32 %v10932, %v11220
    %v11222 = vpop.f32.mrb[0].mxu0
    %v11223 = vpop.f32.mrb[0].mxu0
    %v11224 = vadd.f32 %v10935, %v11223
    %v11225 = vpop.f32.mrb[0].mxu0
    %11226 = vmatprep.mubr.bf16.mxu0 %v9488
    %11227 = vmatmul.mubr.bf16.gmra.mrb[0].mxu0 %v9487
    %v11228 = vpop.f32.mrb[0].mxu0
    %v11229 = vadd.f32 %v10940, %v11228
    %v11230 = vpop.f32.mrb[0].mxu0
    %v11231 = vpop.f32.mrb[0].mxu0
    %v11232 = vadd.f32 %v10943, %v11231
    %v11233 = vpop.f32.mrb[0].mxu0
    %11234 = vmatprep.mubr.bf16.mxu0 %v9497
    %11235 = vmatmul.mubr.bf16.gmra.mrb[0].mxu0 %v9496
    %v11236 = vpop.f32.mrb[0].mxu0
    %v11237 = vadd.f32 %v10948, %v11236
    %v11238 = vpop.f32.mrb[0].mxu0
    %v11239 = vpop.f32.mrb[0].mxu0
    %v11240 = vadd.f32 %v10951, %v11239
    %v11241 = vpop.f32.mrb[0].mxu0
    %11242 = vmatprep.mubr.bf16.mxu0 %v9506
    %11243 = vmatmul.mubr.bf16.gmra.mrb[0].mxu0 %v9505
    %v11244 = vpop.f32.mrb[0].mxu0
    %v11245 = vadd.f32 %v10956, %v11244
    %v11246 = vpop.f32.mrb[0].mxu0
    %v11247 = vpop.f32.mrb[0].mxu0
    %v11248 = vadd.f32 %v10959, %v11247
    %v11249 = vpop.f32.mrb[0].mxu0
    %11250 = vmatprep.mubr.bf16.mxu0 %v9515
    %11251 = vmatmul.mubr.bf16.gmra.mrb[0].mxu0 %v9514
    %v11252 = vpop.f32.mrb[0].mxu0
    %v11253 = vadd.f32 %v10964, %v11252
    %v11254 = vpop.f32.mrb[0].mxu0
    %v11255 = vpop.f32.mrb[0].mxu0
    %v11256 = vadd.f32 %v10967, %v11255
    %v11257 = vpop.f32.mrb[0].mxu0
    %11258 = vmatprep.mubr.bf16.mxu0 %v9524
    %11259 = vmatmul.mubr.bf16.gmra.mrb[0].mxu0 %v9523
    %v11260 = vpop.f32.mrb[0].mxu0
    %v11261 = vadd.f32 %v10972, %v11260
    %v11262 = vpop.f32.mrb[0].mxu0
    %v11263 = vpop.f32.mrb[0].mxu0
    %v11264 = vadd.f32 %v10975, %v11263
    %v11265 = vpop.f32.mrb[0].mxu0
    %11266 = vmatprep.mubr.bf16.mxu0 %v9533
    %11267 = vmatmul.mubr.bf16.gmra.mrb[0].mxu0 %v9532
    %v11268 = vpop.f32.mrb[0].mxu0
    %v11269 = vadd.f32 %v10980, %v11268
    %v11270 = vpop.f32.mrb[0].mxu0
    %v11271 = vpop.f32.mrb[0].mxu0
    %v11272 = vadd.f32 %v10983, %v11271
    %v11273 = vpop.f32.mrb[0].mxu0
    %11274 = vmatprep.mubr.bf16.mxu0 %v9542
    %11275 = vmatmul.mubr.bf16.gmra.mrb[0].mxu0 %v9541
    %v11276 = vpop.f32.mrb[0].mxu0
    %v11277 = vadd.f32 %v10988, %v11276
    %v11278 = vpop.f32.mrb[0].mxu0
    %v11279 = vpop.f32.mrb[0].mxu0
    %v11280 = vadd.f32 %v10991, %v11279
    %v11281 = vpop.f32.mrb[0].mxu0
    %11282 = vmatprep.mubr.bf16.mxu0 %v9551
    %11283 = vmatmul.mubr.bf16.gmra.mrb[0].mxu0 %v9550
    %v11284 = vpop.f32.mrb[0].mxu0
    %v11285 = vadd.f32 %v10996, %v11284
    %v11286 = vpop.f32.mrb[0].mxu0
    %v11287 = vpop.f32.mrb[0].mxu0
    %v11288 = vadd.f32 %v10999, %v11287
    %v11289 = vpop.f32.mrb[0].mxu0
    %11290 = vmatprep.mubr.bf16.mxu0 %v9560
    %11291 = vmatmul.mubr.bf16.gmra.mrb[0].mxu0 %v9559
    %v11292 = vpop.f32.mrb[0].mxu0
    %v11293 = vadd.f32 %v11004, %v11292
    %v11294 = vpop.f32.mrb[0].mxu0
    %v11295 = vpop.f32.mrb[0].mxu0
    %v11296 = vadd.f32 %v11007, %v11295
    %v11297 = vpop.f32.mrb[0].mxu0
    %11298 = vmatprep.mubr.bf16.mxu0 %v9569
    %11299 = vmatmul.mubr.bf16.gmra.mrb[0].mxu0 %v9568
    %v11300 = vpop.f32.mrb[0].mxu0
    %v11301 = vadd.f32 %v11012, %v11300
    %v11302 = vpop.f32.mrb[0].mxu0
    %v11303 = vpop.f32.mrb[0].mxu0
    %v11304 = vadd.f32 %v11015, %v11303
    %v11305 = vpop.f32.mrb[0].mxu0
    %11306 = vmatprep.mubr.bf16.mxu0 %v9578
    %11307 = vmatmul.mubr.bf16.gmra.mrb[0].mxu0 %v9577
    %v11308 = vpop.f32.mrb[0].mxu0
    %v11309 = vadd.f32 %v11020, %v11308
    %v11310 = vpop.f32.mrb[0].mxu0
    %v11311 = vpop.f32.mrb[0].mxu0
    %v11312 = vadd.f32 %v11023, %v11311
    %v11313 = vpop.f32.mrb[0].mxu0
    %11314 = vmatprep.mubr.bf16.mxu0 %v9587
    %11315 = vmatmul.mubr.bf16.gmra.mrb[0].mxu0 %v9586
    %v11316 = vpop.f32.mrb[0].mxu0
    %v11317 = vadd.f32 %v11028, %v11316
    %v11318 = vpop.f32.mrb[0].mxu0
    %v11319 = vpop.f32.mrb[0].mxu0
    %v11320 = vadd.f32 %v11031, %v11319
    %v11321 = vpop.f32.mrb[0].mxu0
    %11322 = vmatprep.mubr.bf16.mxu0 %v9596
    %11323 = vmatmul.mubr.bf16.gmra.mrb[0].mxu0 %v9595
    %v11324 = vpop.f32.mrb[0].mxu0
    %v11325 = vadd.f32 %v11036, %v11324
    %v11326 = vpop.f32.mrb[0].mxu0
    %v11327 = vpop.f32.mrb[0].mxu0
    %v11328 = vadd.f32 %v11039, %v11327
    %v11329 = vpop.f32.mrb[0].mxu0
    %11330 = vmatprep.mubr.bf16.mxu0 %v9605
    %11331 = vmatmul.mubr.bf16.gmra.mrb[0].mxu0 %v9604
    %v11332 = vpop.f32.mrb[0].mxu0
    %v11333 = vadd.f32 %v11044, %v11332
    %v11334 = vpop.f32.mrb[0].mxu0
    %v11335 = vpop.f32.mrb[0].mxu0
    %v11336 = vadd.f32 %v11047, %v11335
    %v11337 = vpop.f32.mrb[0].mxu0
    %11338 = vdwg.mxu0
    %11339 = vmatprep.subr.bf16.mxu0 0
    %11340 = vmatpush1.bf16.msra.mxu0 %v10103
    %11341 = vmatprep.subr.bf16.mxu0 0
    %11342 = vmatpush1.bf16.msra.mxu0 %v10104
    %11343 = vmatprep.subr.bf16.mxu0 0
    %11344 = vmatpush1.bf16.msra.mxu0 %v10105
    %11345 = vmatprep.subr.bf16.mxu0 0
    %11346 = vmatpush1.bf16.msra.mxu0 %v10106
    %11347 = vmatprep.subr.bf16.mxu0 0
    %11348 = vmatpush1.bf16.msra.mxu0 %v10107
    %11349 = vmatprep.subr.bf16.mxu0 0
    %11350 = vmatpush1.bf16.msra.mxu0 %v10108
    %11351 = vmatprep.subr.bf16.mxu0 0
    %11352 = vmatpush1.bf16.msra.mxu0 %v10109
    %11353 = vmatprep.subr.bf16.mxu0 0
    %11354 = vmatpush1.bf16.msra.mxu0 %v10110
    %11355 = vmatprep.subr.bf16.mxu0 0
    %11356 = vmatpush1.bf16.msra.mxu0 0
    %11357 = vmatprep.subr.bf16.mxu0 0
    %11358 = vmatpush1.bf16.msra.mxu0 0
    %11359 = vmatprep.subr.bf16.mxu0 0
    %11360 = vmatpush1.bf16.msra.mxu0 0
    %11361 = vmatprep.subr.bf16.mxu0 0
    %11362 = vmatpush1.bf16.msra.mxu0 0
    %11363 = vmatprep.subr.bf16.mxu0 0
    %11364 = vmatpush1.bf16.msra.mxu0 0
    %11365 = vmatprep.subr.bf16.mxu0 0
    %11366 = vmatpush1.bf16.msra.mxu0 0
    %11367 = vmatprep.subr.bf16.mxu0 0
    %11368 = vmatpush1.bf16.msra.mxu0 0
    %11369 = vmatprep.subr.bf16.mxu0 0
    %11370 = vmatpush1.bf16.msra.mxu0 0
    %11371 = vmatprep.mubr.bf16.mxu0 0
    %11372 = vmatmul.mubr.bf16.gmra.mrb[0].mxu0 %v9327
    %v11373 = vpop.f32.mrb[0].mxu0
    %v11374 = vadd.f32 %v11085, %v11373
    %v11375 = vpop.f32.mrb[0].mxu0
    %v11376 = vpop.f32.mrb[0].mxu0
    %v11377 = vadd.f32 %v11088, %v11376
    %v11378 = vpop.f32.mrb[0].mxu0
    %11379 = vmatprep.mubr.bf16.mxu0 0
    %11380 = vmatmul.mubr.bf16.gmra.mrb[0].mxu0 %v9336
    %v11381 = vpop.f32.mrb[0].mxu0
    %v11382 = vadd.f32 %v11093, %v11381
    %v11383 = vpop.f32.mrb[0].mxu0
    %v11384 = vpop.f32.mrb[0].mxu0
    %v11385 = vadd.f32 %v11096, %v11384
    %v11386 = vpop.f32.mrb[0].mxu0
    %11387 = vmatprep.mubr.bf16.mxu0 0
    %11388 = vmatmul.mubr.bf16.gmra.mrb[0].mxu0 %v9345
    %v11389 = vpop.f32.mrb[0].mxu0
    %v11390 = vadd.f32 %v11101, %v11389
    %v11391 = vpop.f32.mrb[0].mxu0
    %v11392 = vpop.f32.mrb[0].mxu0
    %v11393 = vadd.f32 %v11104, %v11392
    %v11394 = vpop.f32.mrb[0].mxu0
    %11395 = vmatprep.mubr.bf16.mxu0 0
    %11396 = vmatmul.mubr.bf16.gmra.mrb[0].mxu0 %v9354
    %v11397 = vpop.f32.mrb[0].mxu0
    %v11398 = vadd.f32 %v11109, %v11397
    %v11399 = vpop.f32.mrb[0].mxu0
    %v11400 = vpop.f32.mrb[0].mxu0
    %v11401 = vadd.f32 %v11112, %v11400
    %v11402 = vpop.f32.mrb[0].mxu0
    %11403 = vmatprep.mubr.bf16.mxu0 0
    %11404 = vmatmul.mubr.bf16.gmra.mrb[0].mxu0 %v9363
    %v11405 = vpop.f32.mrb[0].mxu0
    %v11406 = vadd.f32 %v11117, %v11405
    %v11407 = vpop.f32.mrb[0].mxu0
    %v11408 = vpop.f32.mrb[0].mxu0
    %v11409 = vadd.f32 %v11120, %v11408
    %v11410 = vpop.f32.mrb[0].mxu0
    %11411 = vmatprep.mubr.bf16.mxu0 0
    %11412 = vmatmul.mubr.bf16.gmra.mrb[0].mxu0 %v9372
    %v11413 = vpop.f32.mrb[0].mxu0
    %v11414 = vadd.f32 %v11125, %v11413
    %v11415 = vpop.f32.mrb[0].mxu0
    %v11416 = vpop.f32.mrb[0].mxu0
    %v11417 = vadd.f32 %v11128, %v11416
    %v11418 = vpop.f32.mrb[0].mxu0
    %11419 = vmatprep.mubr.bf16.mxu0 0
    %11420 = vmatmul.mubr.bf16.gmra.mrb[0].mxu0 %v9381
    %v11421 = vpop.f32.mrb[0].mxu0
    %v11422 = vadd.f32 %v11133, %v11421
    %v11423 = vpop.f32.mrb[0].mxu0
    %v11424 = vpop.f32.mrb[0].mxu0
    %v11425 = vadd.f32 %v11136, %v11424
    %v11426 = vpop.f32.mrb[0].mxu0
    %11427 = vmatprep.mubr.bf16.mxu0 0
    %11428 = vmatmul.mubr.bf16.gmra.mrb[0].mxu0 %v9390
    %v11429 = vpop.f32.mrb[0].mxu0
    %v11430 = vadd.f32 %v11141, %v11429
    %v11431 = vpop.f32.mrb[0].mxu0
    %v11432 = vpop.f32.mrb[0].mxu0
    %v11433 = vadd.f32 %v11144, %v11432
    %v11434 = vpop.f32.mrb[0].mxu0
    %11435 = vmatprep.mubr.bf16.mxu0 0
    %11436 = vmatmul.mubr.bf16.gmra.mrb[0].mxu0 %v9399
    %v11437 = vpop.f32.mrb[0].mxu0
    %v11438 = vadd.f32 %v11149, %v11437
    %v11439 = vpop.f32.mrb[0].mxu0
    %v11440 = vpop.f32.mrb[0].mxu0
    %v11441 = vadd.f32 %v11152, %v11440
    %v11442 = vpop.f32.mrb[0].mxu0
    %11443 = vmatprep.mubr.bf16.mxu0 0
    %11444 = vmatmul.mubr.bf16.gmra.mrb[0].mxu0 %v9408
    %v11445 = vpop.f32.mrb[0].mxu0
    %v11446 = vadd.f32 %v11157, %v11445
    %v11447 = vpop.f32.mrb[0].mxu0
    %v11448 = vpop.f32.mrb[0].mxu0
    %v11449 = vadd.f32 %v11160, %v11448
    %v11450 = vpop.f32.mrb[0].mxu0
    %11451 = vmatprep.mubr.bf16.mxu0 0
    %11452 = vmatmul.mubr.bf16.gmra.mrb[0].mxu0 %v9417
    %v11453 = vpop.f32.mrb[0].mxu0
    %v11454 = vadd.f32 %v11165, %v11453
    %v11455 = vpop.f32.mrb[0].mxu0
    %v11456 = vpop.f32.mrb[0].mxu0
    %v11457 = vadd.f32 %v11168, %v11456
    %v11458 = vpop.f32.mrb[0].mxu0
    %11459 = vmatprep.mubr.bf16.mxu0 0
    %11460 = vmatmul.mubr.bf16.gmra.mrb[0].mxu0 %v9426
    %v11461 = vpop.f32.mrb[0].mxu0
    %v11462 = vadd.f32 %v11173, %v11461
    %v11463 = vpop.f32.mrb[0].mxu0
    %v11464 = vpop.f32.mrb[0].mxu0
    %v11465 = vadd.f32 %v11176, %v11464
    %v11466 = vpop.f32.mrb[0].mxu0
    %11467 = vmatprep.mubr.bf16.mxu0 0
    %11468 = vmatmul.mubr.bf16.gmra.mrb[0].mxu0 %v9435
    %v11469 = vpop.f32.mrb[0].mxu0
    %v11470 = vadd.f32 %v11181, %v11469
    %v11471 = vpop.f32.mrb[0].mxu0
    %v11472 = vpop.f32.mrb[0].mxu0
    %v11473 = vadd.f32 %v11184, %v11472
    %v11474 = vpop.f32.mrb[0].mxu0
    %11475 = vmatprep.mubr.bf16.mxu0 0
    %11476 = vmatmul.mubr.bf16.gmra.mrb[0].mxu0 %v9444
    %v11477 = vpop.f32.mrb[0].mxu0
    %v11478 = vadd.f32 %v11189, %v11477
    %v11479 = vpop.f32.mrb[0].mxu0
    %v11480 = vpop.f32.mrb[0].mxu0
    %v11481 = vadd.f32 %v11192, %v11480
    %v11482 = vpop.f32.mrb[0].mxu0
    %11483 = vmatprep.mubr.bf16.mxu0 0
    %11484 = vmatmul.mubr.bf16.gmra.mrb[0].mxu0 %v9453
    %v11485 = vpop.f32.mrb[0].mxu0
    %v11486 = vadd.f32 %v11197, %v11485
    %v11487 = vpop.f32.mrb[0].mxu0
    %v11488 = vpop.f32.mrb[0].mxu0
    %v11489 = vadd.f32 %v11200, %v11488
    %v11490 = vpop.f32.mrb[0].mxu0
    %11491 = vmatprep.mubr.bf16.mxu0 0
    %11492 = vmatmul.mubr.bf16.gmra.mrb[0].mxu0 %v9462
    %v11493 = vpop.f32.mrb[0].mxu0
    %v11494 = vadd.f32 %v11205, %v11493
    %v11495 = vpop.f32.mrb[0].mxu0
    %v11496 = vpop.f32.mrb[0].mxu0
    %v11497 = vadd.f32 %v11208, %v11496
    %v11498 = vpop.f32.mrb[0].mxu0
    %11499 = vmatprep.mubr.bf16.mxu0 0
    %11500 = vmatmul.mubr.bf16.gmra.mrb[0].mxu0 %v9471
    %v11501 = vpop.f32.mrb[0].mxu0
    %v11502 = vadd.f32 %v11213, %v11501
    %v11503 = vpop.f32.mrb[0].mxu0
    %v11504 = vpop.f32.mrb[0].mxu0
    %v11505 = vadd.f32 %v11216, %v11504
    %v11506 = vpop.f32.mrb[0].mxu0
    %11507 = vmatprep.mubr.bf16.mxu0 0
    %11508 = vmatmul.mubr.bf16.gmra.mrb[0].mxu0 %v9480
    %v11509 = vpop.f32.mrb[0].mxu0
    %v11510 = vadd.f32 %v11221, %v11509
    %v11511 = vpop.f32.mrb[0].mxu0
    %v11512 = vpop.f32.mrb[0].mxu0
    %v11513 = vadd.f32 %v11224, %v11512
    %v11514 = vpop.f32.mrb[0].mxu0
    %11515 = vmatprep.mubr.bf16.mxu0 0
    %11516 = vmatmul.mubr.bf16.gmra.mrb[0].mxu0 %v9489
    %v11517 = vpop.f32.mrb[0].mxu0
    %v11518 = vadd.f32 %v11229, %v11517
    %v11519 = vpop.f32.mrb[0].mxu0
    %v11520 = vpop.f32.mrb[0].mxu0
    %v11521 = vadd.f32 %v11232, %v11520
    %v11522 = vpop.f32.mrb[0].mxu0
    %11523 = vmatprep.mubr.bf16.mxu0 0
    %11524 = vmatmul.mubr.bf16.gmra.mrb[0].mxu0 %v9498
    %v11525 = vpop.f32.mrb[0].mxu0
    %v11526 = vadd.f32 %v11237, %v11525
    %v11527 = vpop.f32.mrb[0].mxu0
    %v11528 = vpop.f32.mrb[0].mxu0
    %v11529 = vadd.f32 %v11240, %v11528
    %v11530 = vpop.f32.mrb[0].mxu0
    %11531 = vmatprep.mubr.bf16.mxu0 0
    %11532 = vmatmul.mubr.bf16.gmra.mrb[0].mxu0 %v9507
    %v11533 = vpop.f32.mrb[0].mxu0
    %v11534 = vadd.f32 %v11245, %v11533
    %v11535 = vpop.f32.mrb[0].mxu0
    %v11536 = vpop.f32.mrb[0].mxu0
    %v11537 = vadd.f32 %v11248, %v11536
    %v11538 = vpop.f32.mrb[0].mxu0
    %11539 = vmatprep.mubr.bf16.mxu0 0
    %11540 = vmatmul.mubr.bf16.gmra.mrb[0].mxu0 %v9516
    %v11541 = vpop.f32.mrb[0].mxu0
    %v11542 = vadd.f32 %v11253, %v11541
    %v11543 = vpop.f32.mrb[0].mxu0
    %v11544 = vpop.f32.mrb[0].mxu0
    %v11545 = vadd.f32 %v11256, %v11544
    %v11546 = vpop.f32.mrb[0].mxu0
    %11547 = vmatprep.mubr.bf16.mxu0 0
    %11548 = vmatmul.mubr.bf16.gmra.mrb[0].mxu0 %v9525
    %v11549 = vpop.f32.mrb[0].mxu0
    %v11550 = vadd.f32 %v11261, %v11549
    %v11551 = vpop.f32.mrb[0].mxu0
    %v11552 = vpop.f32.mrb[0].mxu0
    %v11553 = vadd.f32 %v11264, %v11552
    %v11554 = vpop.f32.mrb[0].mxu0
    %11555 = vmatprep.mubr.bf16.mxu0 0
    %11556 = vmatmul.mubr.bf16.gmra.mrb[0].mxu0 %v9534
    %v11557 = vpop.f32.mrb[0].mxu0
    %v11558 = vadd.f32 %v11269, %v11557
    %v11559 = vpop.f32.mrb[0].mxu0
    %v11560 = vpop.f32.mrb[0].mxu0
    %v11561 = vadd.f32 %v11272, %v11560
    %v11562 = vpop.f32.mrb[0].mxu0
    %11563 = vmatprep.mubr.bf16.mxu0 0
    %11564 = vmatmul.mubr.bf16.gmra.mrb[0].mxu0 %v9543
    %v11565 = vpop.f32.mrb[0].mxu0
    %v11566 = vadd.f32 %v11277, %v11565
    %v11567 = vpop.f32.mrb[0].mxu0
    %v11568 = vpop.f32.mrb[0].mxu0
    %v11569 = vadd.f32 %v11280, %v11568
    %v11570 = vpop.f32.mrb[0].mxu0
    %11571 = vmatprep.mubr.bf16.mxu0 0
    %11572 = vmatmul.mubr.bf16.gmra.mrb[0].mxu0 %v9552
    %v11573 = vpop.f32.mrb[0].mxu0
    %v11574 = vadd.f32 %v11285, %v11573
    %v11575 = vpop.f32.mrb[0].mxu0
    %v11576 = vpop.f32.mrb[0].mxu0
    %v11577 = vadd.f32 %v11288, %v11576
    %v11578 = vpop.f32.mrb[0].mxu0
    %11579 = vmatprep.mubr.bf16.mxu0 0
    %11580 = vmatmul.mubr.bf16.gmra.mrb[0].mxu0 %v9561
    %v11581 = vpop.f32.mrb[0].mxu0
    %v11582 = vadd.f32 %v11293, %v11581
    %v11583 = vpop.f32.mrb[0].mxu0
    %v11584 = vpop.f32.mrb[0].mxu0
    %v11585 = vadd.f32 %v11296, %v11584
    %v11586 = vpop.f32.mrb[0].mxu0
    %11587 = vmatprep.mubr.bf16.mxu0 0
    %11588 = vmatmul.mubr.bf16.gmra.mrb[0].mxu0 %v9570
    %v11589 = vpop.f32.mrb[0].mxu0
    %v11590 = vadd.f32 %v11301, %v11589
    %v11591 = vpop.f32.mrb[0].mxu0
    %v11592 = vpop.f32.mrb[0].mxu0
    %v11593 = vadd.f32 %v11304, %v11592
    %v11594 = vpop.f32.mrb[0].mxu0
    %11595 = vmatprep.mubr.bf16.mxu0 0
    %11596 = vmatmul.mubr.bf16.gmra.mrb[0].mxu0 %v9579
    %v11597 = vpop.f32.mrb[0].mxu0
    %v11598 = vadd.f32 %v11309, %v11597
    %v11599 = vpop.f32.mrb[0].mxu0
    %v11600 = vpop.f32.mrb[0].mxu0
    %v11601 = vadd.f32 %v11312, %v11600
    %v11602 = vpop.f32.mrb[0].mxu0
    %11603 = vmatprep.mubr.bf16.mxu0 0
    %11604 = vmatmul.mubr.bf16.gmra.mrb[0].mxu0 %v9588
    %v11605 = vpop.f32.mrb[0].mxu0
    %v11606 = vadd.f32 %v11317, %v11605
    %v11607 = vpop.f32.mrb[0].mxu0
    %v11608 = vpop.f32.mrb[0].mxu0
    %v11609 = vadd.f32 %v11320, %v11608
    %v11610 = vpop.f32.mrb[0].mxu0
    %11611 = vmatprep.mubr.bf16.mxu0 0
    %11612 = vmatmul.mubr.bf16.gmra.mrb[0].mxu0 %v9597
    %v11613 = vpop.f32.mrb[0].mxu0
    %v11614 = vadd.f32 %v11325, %v11613
    %v11615 = vpop.f32.mrb[0].mxu0
    %v11616 = vpop.f32.mrb[0].mxu0
    %v11617 = vadd.f32 %v11328, %v11616
    %v11618 = vpop.f32.mrb[0].mxu0
    %11619 = vmatprep.mubr.bf16.mxu0 0
    %11620 = vmatmul.mubr.bf16.gmra.mrb[0].mxu0 %v9606
    %v11621 = vpop.f32.mrb[0].mxu0
    %v11622 = vadd.f32 %v11333, %v11621
    %v11623 = vpop.f32.mrb[0].mxu0
    %v11624 = vpop.f32.mrb[0].mxu0
    %v11625 = vadd.f32 %v11336, %v11624
    %v11626 = vpop.f32.mrb[0].mxu0
    %11627 = vdwg.mxu0
    %v11628 = vadd.f32 %v11374, %v11377
    %v11629 = vadd.f32 %v11628, %v11382
    %v11630 = vadd.f32 %v11629, %v11385
    %v11631 = vadd.f32 %v11630, %v11390
    %v11632 = vadd.f32 %v11631, %v11393
    %v11633 = vadd.f32 %v11632, %v11398
    %v11634 = vadd.f32 %v11633, %v11401
    %v11635 = vadd.f32 %v11634, %v11406
    %v11636 = vadd.f32 %v11635, %v11409
    %v11637 = vadd.f32 %v11636, %v11414
    %v11638 = vadd.f32 %v11637, %v11417
    %v11639 = vadd.f32 %v11638, %v11422
    %v11640 = vadd.f32 %v11639, %v11425
    %v11641 = vadd.f32 %v11640, %v11430
    %v11642 = vadd.f32 %v11641, %v11433
    %v11643 = vadd.f32 %v11642, %v11438
    %v11644 = vadd.f32 %v11643, %v11441
    %v11645 = vadd.f32 %v11644, %v11446
    %v11646 = vadd.f32 %v11645, %v11449
    %v11647 = vadd.f32 %v11646, %v11454
    %v11648 = vadd.f32 %v11647, %v11457
    %v11649 = vadd.f32 %v11648, %v11462
    %v11650 = vadd.f32 %v11649, %v11465
    %v11651 = vadd.f32 %v11650, %v11470
    %v11652 = vadd.f32 %v11651, %v11473
    %v11653 = vadd.f32 %v11652, %v11478
    %v11654 = vadd.f32 %v11653, %v11481
    %v11655 = vadd.f32 %v11654, %v11486
    %v11656 = vadd.f32 %v11655, %v11489
    %v11657 = vadd.f32 %v11656, %v11494
    %v11658 = vadd.f32 %v11657, %v11497
    %v11659 = vadd.f32 %v11658, %v11502
    %v11660 = vadd.f32 %v11659, %v11505
    %v11661 = vadd.f32 %v11660, %v11510
    %v11662 = vadd.f32 %v11661, %v11513
    %v11663 = vadd.f32 %v11662, %v11518
    %v11664 = vadd.f32 %v11663, %v11521
    %v11665 = vadd.f32 %v11664, %v11526
    %v11666 = vadd.f32 %v11665, %v11529
    %v11667 = vadd.f32 %v11666, %v11534
    %v11668 = vadd.f32 %v11667, %v11537
    %v11669 = vadd.f32 %v11668, %v11542
    %v11670 = vadd.f32 %v11669, %v11545
    %v11671 = vadd.f32 %v11670, %v11550
    %v11672 = vadd.f32 %v11671, %v11553
    %v11673 = vadd.f32 %v11672, %v11558
    %v11674 = vadd.f32 %v11673, %v11561
    %v11675 = vadd.f32 %v11674, %v11566
    %v11676 = vadd.f32 %v11675, %v11569
    %v11677 = vadd.f32 %v11676, %v11574
    %v11678 = vadd.f32 %v11677, %v11577
    %v11679 = vadd.f32 %v11678, %v11582
    %v11680 = vadd.f32 %v11679, %v11585
    %v11681 = vadd.f32 %v11680, %v11590
    %v11682 = vadd.f32 %v11681, %v11593
    %v11683 = vadd.f32 %v11682, %v11598
    %v11684 = vadd.f32 %v11683, %v11601
    %v11685 = vadd.f32 %v11684, %v11606
    %v11686 = vadd.f32 %v11685, %v11609
    %v11687 = vadd.f32 %v11686, %v11614
    %v11688 = vadd.f32 %v11687, %v11617
    %v11689 = vadd.f32 %v11688, %v11622
    %v11690 = vadd.f32 %v11689, %v11625
    %v11691 = vrot.slane %v11690, 4
    %v11692 = vadd.f32 %v11690, %v11691
    %v11693 = vrot.slane %v11692, 2
    %v11694 = vadd.f32 %v11692, %v11693
    %v11695 = vrot.slane %v11694, 1
    %v11696 = vadd.f32 %v11694, %v11695
    %v11697 = vmul.f32 %v11696, %v5864
    %v11698 = vmul.f32 %v11374, %v11374
    %v11699 = vmul.f32 %v11377, %v11377
    %v11700 = vmul.f32 %v11382, %v11382
    %v11701 = vmul.f32 %v11385, %v11385
    %v11702 = vmul.f32 %v11390, %v11390
    %v11703 = vmul.f32 %v11393, %v11393
    %v11704 = vmul.f32 %v11398, %v11398
    %v11705 = vmul.f32 %v11401, %v11401
    %v11706 = vmul.f32 %v11406, %v11406
    %v11707 = vmul.f32 %v11409, %v11409
    %v11708 = vmul.f32 %v11414, %v11414
    %v11709 = vmul.f32 %v11417, %v11417
    %v11710 = vmul.f32 %v11422, %v11422
    %v11711 = vmul.f32 %v11425, %v11425
    %v11712 = vmul.f32 %v11430, %v11430
    %v11713 = vmul.f32 %v11433, %v11433
    %v11714 = vmul.f32 %v11438, %v11438
    %v11715 = vmul.f32 %v11441, %v11441
    %v11716 = vmul.f32 %v11446, %v11446
    %v11717 = vmul.f32 %v11449, %v11449
    %v11718 = vmul.f32 %v11454, %v11454
    %v11719 = vmul.f32 %v11457, %v11457
    %v11720 = vmul.f32 %v11462, %v11462
    %v11721 = vmul.f32 %v11465, %v11465
    %v11722 = vmul.f32 %v11470, %v11470
    %v11723 = vmul.f32 %v11473, %v11473
    %v11724 = vmul.f32 %v11478, %v11478
    %v11725 = vmul.f32 %v11481, %v11481
    %v11726 = vmul.f32 %v11486, %v11486
    %v11727 = vmul.f32 %v11489, %v11489
    %v11728 = vmul.f32 %v11494, %v11494
    %v11729 = vmul.f32 %v11497, %v11497
    %v11730 = vmul.f32 %v11502, %v11502
    %v11731 = vmul.f32 %v11505, %v11505
    %v11732 = vmul.f32 %v11510, %v11510
    %v11733 = vmul.f32 %v11513, %v11513
    %v11734 = vmul.f32 %v11518, %v11518
    %v11735 = vmul.f32 %v11521, %v11521
    %v11736 = vmul.f32 %v11526, %v11526
    %v11737 = vmul.f32 %v11529, %v11529
    %v11738 = vmul.f32 %v11534, %v11534
    %v11739 = vmul.f32 %v11537, %v11537
    %v11740 = vmul.f32 %v11542, %v11542
    %v11741 = vmul.f32 %v11545, %v11545
    %v11742 = vmul.f32 %v11550, %v11550
    %v11743 = vmul.f32 %v11553, %v11553
    %v11744 = vmul.f32 %v11558, %v11558
    %v11745 = vmul.f32 %v11561, %v11561
    %v11746 = vmul.f32 %v11566, %v11566
    %v11747 = vmul.f32 %v11569, %v11569
    %v11748 = vmul.f32 %v11574, %v11574
    %v11749 = vmul.f32 %v11577, %v11577
    %v11750 = vmul.f32 %v11582, %v11582
    %v11751 = vmul.f32 %v11585, %v11585
    %v11752 = vmul.f32 %v11590, %v11590
    %v11753 = vmul.f32 %v11593, %v11593
    %v11754 = vmul.f32 %v11598, %v11598
    %v11755 = vmul.f32 %v11601, %v11601
    %v11756 = vmul.f32 %v11606, %v11606
    %v11757 = vmul.f32 %v11609, %v11609
    %v11758 = vmul.f32 %v11614, %v11614
    %v11759 = vmul.f32 %v11617, %v11617
    %v11760 = vmul.f32 %v11622, %v11622
    %v11761 = vmul.f32 %v11625, %v11625
    %v11762 = vadd.f32 %v11698, %v11699
    %v11763 = vadd.f32 %v11762, %v11700
    %v11764 = vadd.f32 %v11763, %v11701
    %v11765 = vadd.f32 %v11764, %v11702
    %v11766 = vadd.f32 %v11765, %v11703
    %v11767 = vadd.f32 %v11766, %v11704
    %v11768 = vadd.f32 %v11767, %v11705
    %v11769 = vadd.f32 %v11768, %v11706
    %v11770 = vadd.f32 %v11769, %v11707
    %v11771 = vadd.f32 %v11770, %v11708
    %v11772 = vadd.f32 %v11771, %v11709
    %v11773 = vadd.f32 %v11772, %v11710
    %v11774 = vadd.f32 %v11773, %v11711
    %v11775 = vadd.f32 %v11774, %v11712
    %v11776 = vadd.f32 %v11775, %v11713
    %v11777 = vadd.f32 %v11776, %v11714
    %v11778 = vadd.f32 %v11777, %v11715
    %v11779 = vadd.f32 %v11778, %v11716
    %v11780 = vadd.f32 %v11779, %v11717
    %v11781 = vadd.f32 %v11780, %v11718
    %v11782 = vadd.f32 %v11781, %v11719
    %v11783 = vadd.f32 %v11782, %v11720
    %v11784 = vadd.f32 %v11783, %v11721
    %v11785 = vadd.f32 %v11784, %v11722
    %v11786 = vadd.f32 %v11785, %v11723
    %v11787 = vadd.f32 %v11786, %v11724
    %v11788 = vadd.f32 %v11787, %v11725
    %v11789 = vadd.f32 %v11788, %v11726
    %v11790 = vadd.f32 %v11789, %v11727
    %v11791 = vadd.f32 %v11790, %v11728
    %v11792 = vadd.f32 %v11791, %v11729
    %v11793 = vadd.f32 %v11792, %v11730
    %v11794 = vadd.f32 %v11793, %v11731
    %v11795 = vadd.f32 %v11794, %v11732
    %v11796 = vadd.f32 %v11795, %v11733
    %v11797 = vadd.f32 %v11796, %v11734
    %v11798 = vadd.f32 %v11797, %v11735
    %v11799 = vadd.f32 %v11798, %v11736
    %v11800 = vadd.f32 %v11799, %v11737
    %v11801 = vadd.f32 %v11800, %v11738
    %v11802 = vadd.f32 %v11801, %v11739
    %v11803 = vadd.f32 %v11802, %v11740
    %v11804 = vadd.f32 %v11803, %v11741
    %v11805 = vadd.f32 %v11804, %v11742
    %v11806 = vadd.f32 %v11805, %v11743
    %v11807 = vadd.f32 %v11806, %v11744
    %v11808 = vadd.f32 %v11807, %v11745
    %v11809 = vadd.f32 %v11808, %v11746
    %v11810 = vadd.f32 %v11809, %v11747
    %v11811 = vadd.f32 %v11810, %v11748
    %v11812 = vadd.f32 %v11811, %v11749
    %v11813 = vadd.f32 %v11812, %v11750
    %v11814 = vadd.f32 %v11813, %v11751
    %v11815 = vadd.f32 %v11814, %v11752
    %v11816 = vadd.f32 %v11815, %v11753
    %v11817 = vadd.f32 %v11816, %v11754
    %v11818 = vadd.f32 %v11817, %v11755
    %v11819 = vadd.f32 %v11818, %v11756
    %v11820 = vadd.f32 %v11819, %v11757
    %v11821 = vadd.f32 %v11820, %v11758
    %v11822 = vadd.f32 %v11821, %v11759
    %v11823 = vadd.f32 %v11822, %v11760
    %v11824 = vadd.f32 %v11823, %v11761
    %v11825 = vrot.slane %v11824, 4
    %v11826 = vadd.f32 %v11824, %v11825
    %v11827 = vrot.slane %v11826, 2
    %v11828 = vadd.f32 %v11826, %v11827
    %v11829 = vrot.slane %v11828, 1
    %v11830 = vadd.f32 %v11828, %v11829
    %v11831 = vmul.f32 %v11830, %v5864
    %v11832 = vmul.f32 %v11697, %v11697
    %v11833 = vsub.f32 %v11831, %v11832
    %v11834 = vadd.f32 %v11833, 1e-05
    %v11835 = vrsqrt.pop %v11834
    %v11836 = vld [vmem:[%s5] sm:$0x1]
    %v11837 = vmul.f32 %v11835, %v11836
    %v11838 = vlaneseq
    %v11839 = vshrl.u32 %v11838, 7
    %v11840 = vsub.s32 0, %v11839
    %v11841 = vrot.slane %v11837, %v11840
    %v11842 = vmul.f32 %v11374, %v11841
    %v11843 = vmul.f32 %v11377, %v11841
    %v11844 = vmul.f32 %v11382, %v11841
    %v11845 = vmul.f32 %v11385, %v11841
    %v11846 = vmul.f32 %v11390, %v11841
    %v11847 = vmul.f32 %v11393, %v11841
    %v11848 = vmul.f32 %v11398, %v11841
    %v11849 = vmul.f32 %v11401, %v11841
    %v11850 = vmul.f32 %v11406, %v11841
    %v11851 = vmul.f32 %v11409, %v11841
    %v11852 = vmul.f32 %v11414, %v11841
    %v11853 = vmul.f32 %v11417, %v11841
    %v11854 = vmul.f32 %v11422, %v11841
    %v11855 = vmul.f32 %v11425, %v11841
    %v11856 = vmul.f32 %v11430, %v11841
    %v11857 = vmul.f32 %v11433, %v11841
    %v11858 = vmul.f32 %v11438, %v11841
    %v11859 = vmul.f32 %v11441, %v11841
    %v11860 = vmul.f32 %v11446, %v11841
    %v11861 = vmul.f32 %v11449, %v11841
    %v11862 = vmul.f32 %v11454, %v11841
    %v11863 = vmul.f32 %v11457, %v11841
    %v11864 = vmul.f32 %v11462, %v11841
    %v11865 = vmul.f32 %v11465, %v11841
    %v11866 = vmul.f32 %v11470, %v11841
    %v11867 = vmul.f32 %v11473, %v11841
    %v11868 = vmul.f32 %v11478, %v11841
    %v11869 = vmul.f32 %v11481, %v11841
    %v11870 = vmul.f32 %v11486, %v11841
    %v11871 = vmul.f32 %v11489, %v11841
    %v11872 = vmul.f32 %v11494, %v11841
    %v11873 = vmul.f32 %v11497, %v11841
    %v11874 = vmul.f32 %v11502, %v11841
    %v11875 = vmul.f32 %v11505, %v11841
    %v11876 = vmul.f32 %v11510, %v11841
    %v11877 = vmul.f32 %v11513, %v11841
    %v11878 = vmul.f32 %v11518, %v11841
    %v11879 = vmul.f32 %v11521, %v11841
    %v11880 = vmul.f32 %v11526, %v11841
    %v11881 = vmul.f32 %v11529, %v11841
    %v11882 = vmul.f32 %v11534, %v11841
    %v11883 = vmul.f32 %v11537, %v11841
    %v11884 = vmul.f32 %v11542, %v11841
    %v11885 = vmul.f32 %v11545, %v11841
    %v11886 = vmul.f32 %v11550, %v11841
    %v11887 = vmul.f32 %v11553, %v11841
    %v11888 = vmul.f32 %v11558, %v11841
    %v11889 = vmul.f32 %v11561, %v11841
    %v11890 = vmul.f32 %v11566, %v11841
    %v11891 = vmul.f32 %v11569, %v11841
    %v11892 = vmul.f32 %v11574, %v11841
    %v11893 = vmul.f32 %v11577, %v11841
    %v11894 = vmul.f32 %v11582, %v11841
    %v11895 = vmul.f32 %v11585, %v11841
    %v11896 = vmul.f32 %v11590, %v11841
    %v11897 = vmul.f32 %v11593, %v11841
    %v11898 = vmul.f32 %v11598, %v11841
    %v11899 = vmul.f32 %v11601, %v11841
    %v11900 = vmul.f32 %v11606, %v11841
    %v11901 = vmul.f32 %v11609, %v11841
    %v11902 = vmul.f32 %v11614, %v11841
    %v11903 = vmul.f32 %v11617, %v11841
    %v11904 = vmul.f32 %v11622, %v11841
    %v11905 = vmul.f32 %v11625, %v11841
    %v11906 = vld [vmem:[%s6] sm:$0x1]
    %v11907 = vmul.f32 %v11697, %v11837
    %v11908 = vsub.f32 %v11906, %v11907
    %v11910 = vlaneseq
    %v11911 = vshrl.u32 %v11910, 7
    %v11912 = vsub.s32 0, %v11911
    %v11913 = vrot.slane %v11908, %v11912
    %v11915 = vadd.f32 %v11842, %v11913
    %v11916 = vadd.f32 %v11843, %v11913
    %v11917 = vadd.f32 %v11844, %v11913
    %v11918 = vadd.f32 %v11845, %v11913
    %v11919 = vadd.f32 %v11846, %v11913
    %v11920 = vadd.f32 %v11847, %v11913
    %v11921 = vadd.f32 %v11848, %v11913
    %v11922 = vadd.f32 %v11849, %v11913
    %v11923 = vadd.f32 %v11850, %v11913
    %v11924 = vadd.f32 %v11851, %v11913
    %v11925 = vadd.f32 %v11852, %v11913
    %v11926 = vadd.f32 %v11853, %v11913
    %v11927 = vadd.f32 %v11854, %v11913
    %v11928 = vadd.f32 %v11855, %v11913
    %v11929 = vadd.f32 %v11856, %v11913
    %v11930 = vadd.f32 %v11857, %v11913
    %v11931 = vadd.f32 %v11858, %v11913
    %v11932 = vadd.f32 %v11859, %v11913
    %v11933 = vadd.f32 %v11860, %v11913
    %v11934 = vadd.f32 %v11861, %v11913
    %v11935 = vadd.f32 %v11862, %v11913
    %v11936 = vadd.f32 %v11863, %v11913
    %v11937 = vadd.f32 %v11864, %v11913
    %v11938 = vadd.f32 %v11865, %v11913
    %v11939 = vadd.f32 %v11866, %v11913
    %v11940 = vadd.f32 %v11867, %v11913
    %v11941 = vadd.f32 %v11868, %v11913
    %v11942 = vadd.f32 %v11869, %v11913
    %v11943 = vadd.f32 %v11870, %v11913
    %v11944 = vadd.f32 %v11871, %v11913
    %v11945 = vadd.f32 %v11872, %v11913
    %v11946 = vadd.f32 %v11873, %v11913
    %v11947 = vadd.f32 %v11874, %v11913
    %v11948 = vadd.f32 %v11875, %v11913
    %v11949 = vadd.f32 %v11876, %v11913
    %v11950 = vadd.f32 %v11877, %v11913
    %v11951 = vadd.f32 %v11878, %v11913
    %v11952 = vadd.f32 %v11879, %v11913
    %v11953 = vadd.f32 %v11880, %v11913
    %v11954 = vadd.f32 %v11881, %v11913
    %v11955 = vadd.f32 %v11882, %v11913
    %v11956 = vadd.f32 %v11883, %v11913
    %v11957 = vadd.f32 %v11884, %v11913
    %v11958 = vadd.f32 %v11885, %v11913
    %v11959 = vadd.f32 %v11886, %v11913
    %v11960 = vadd.f32 %v11887, %v11913
    %v11961 = vadd.f32 %v11888, %v11913
    %v11962 = vadd.f32 %v11889, %v11913
    %v11963 = vadd.f32 %v11890, %v11913
    %v11964 = vadd.f32 %v11891, %v11913
    %v11965 = vadd.f32 %v11892, %v11913
    %v11966 = vadd.f32 %v11893, %v11913
    %v11967 = vadd.f32 %v11894, %v11913
    %v11968 = vadd.f32 %v11895, %v11913
    %v11969 = vadd.f32 %v11896, %v11913
    %v11970 = vadd.f32 %v11897, %v11913
    %v11971 = vadd.f32 %v11898, %v11913
    %v11972 = vadd.f32 %v11899, %v11913
    %v11973 = vadd.f32 %v11900, %v11913
    %v11974 = vadd.f32 %v11901, %v11913
    %v11975 = vadd.f32 %v11902, %v11913
    %v11976 = vadd.f32 %v11903, %v11913
    %v11977 = vadd.f32 %v11904, %v11913
    %v11978 = vadd.f32 %v11905, %v11913
    %v11979 = vld [vmem:[#allocation4] sm:$0xff]
    %v11980 = vld [vmem:[#allocation4 + $0x8] sm:$0xff]
    %v11981 = vld [vmem:[#allocation4 + $0x10] sm:$0xff]
    %v11982 = vld [vmem:[#allocation4 + $0x18] sm:$0xff]
    %v11983 = vld [vmem:[#allocation4 + $0x20] sm:$0xff]
    %v11984 = vld [vmem:[#allocation4 + $0x28] sm:$0xff]
    %v11985 = vld [vmem:[#allocation4 + $0x30] sm:$0xff]
    %v11986 = vld [vmem:[#allocation4 + $0x38] sm:$0xff]
    %v11987 = vld [vmem:[#allocation4 + $0x40] sm:$0xff]
    %v11988 = vld [vmem:[#allocation4 + $0x48] sm:$0xff]
    %v11989 = vld [vmem:[#allocation4 + $0x50] sm:$0xff]
    %v11990 = vld [vmem:[#allocation4 + $0x58] sm:$0xff]
    %v11991 = vld [vmem:[#allocation4 + $0x60] sm:$0xff]
    %v11992 = vld [vmem:[#allocation4 + $0x68] sm:$0xff]
    %v11993 = vld [vmem:[#allocation4 + $0x70] sm:$0xff]
    %v11994 = vld [vmem:[#allocation4 + $0x78] sm:$0xff]
    %v11995 = vld [vmem:[#allocation4 + $0x80] sm:$0xff]
    %v11996 = vld [vmem:[#allocation4 + $0x88] sm:$0xff]
    %v11997 = vld [vmem:[#allocation4 + $0x90] sm:$0xff]
    %v11998 = vld [vmem:[#allocation4 + $0x98] sm:$0xff]
    %v11999 = vld [vmem:[#allocation4 + $0xa0] sm:$0xff]
    %v12000 = vld [vmem:[#allocation4 + $0xa8] sm:$0xff]
    %v12001 = vld [vmem:[#allocation4 + $0xb0] sm:$0xff]
    %v12002 = vld [vmem:[#allocation4 + $0xb8] sm:$0xff]
    %v12003 = vld [vmem:[#allocation4 + $0xc0] sm:$0xff]
    %v12004 = vld [vmem:[#allocation4 + $0xc8] sm:$0xff]
    %v12005 = vld [vmem:[#allocation4 + $0xd0] sm:$0xff]
    %v12006 = vld [vmem:[#allocation4 + $0xd8] sm:$0xff]
    %v12007 = vld [vmem:[#allocation4 + $0xe0] sm:$0xff]
    %v12008 = vld [vmem:[#allocation4 + $0xe8] sm:$0xff]
    %v12009 = vld [vmem:[#allocation4 + $0xf0] sm:$0xff]
    %v12010 = vld [vmem:[#allocation4 + $0xf8] sm:$0xff]
    %v12011 = vld [vmem:[#allocation4 + $0x100] sm:$0xff]
    %v12012 = vld [vmem:[#allocation4 + $0x108] sm:$0xff]
    %v12013 = vld [vmem:[#allocation4 + $0x110] sm:$0xff]
    %v12014 = vld [vmem:[#allocation4 + $0x118] sm:$0xff]
    %v12015 = vld [vmem:[#allocation4 + $0x120] sm:$0xff]
    %v12016 = vld [vmem:[#allocation4 + $0x128] sm:$0xff]
    %v12017 = vld [vmem:[#allocation4 + $0x130] sm:$0xff]
    %v12018 = vld [vmem:[#allocation4 + $0x138] sm:$0xff]
    %v12019 = vld [vmem:[#allocation4 + $0x140] sm:$0xff]
    %v12020 = vld [vmem:[#allocation4 + $0x148] sm:$0xff]
    %v12021 = vld [vmem:[#allocation4 + $0x150] sm:$0xff]
    %v12022 = vld [vmem:[#allocation4 + $0x158] sm:$0xff]
    %v12023 = vld [vmem:[#allocation4 + $0x160] sm:$0xff]
    %v12024 = vld [vmem:[#allocation4 + $0x168] sm:$0xff]
    %v12025 = vld [vmem:[#allocation4 + $0x170] sm:$0xff]
    %v12026 = vld [vmem:[#allocation4 + $0x178] sm:$0xff]
    %v12027 = vld [vmem:[#allocation4 + $0x180] sm:$0xff]
    %v12028 = vld [vmem:[#allocation4 + $0x188] sm:$0xff]
    %v12029 = vld [vmem:[#allocation4 + $0x190] sm:$0xff]
    %v12030 = vld [vmem:[#allocation4 + $0x198] sm:$0xff]
    %v12031 = vld [vmem:[#allocation4 + $0x1a0] sm:$0xff]
    %v12032 = vld [vmem:[#allocation4 + $0x1a8] sm:$0xff]
    %v12033 = vld [vmem:[#allocation4 + $0x1b0] sm:$0xff]
    %v12034 = vld [vmem:[#allocation4 + $0x1b8] sm:$0xff]
    %v12035 = vld [vmem:[#allocation4 + $0x1c0] sm:$0xff]
    %v12036 = vld [vmem:[#allocation4 + $0x1c8] sm:$0xff]
    %v12037 = vld [vmem:[#allocation4 + $0x1d0] sm:$0xff]
    %v12038 = vld [vmem:[#allocation4 + $0x1d8] sm:$0xff]
    %v12039 = vld [vmem:[#allocation4 + $0x1e0] sm:$0xff]
    %v12040 = vld [vmem:[#allocation4 + $0x1e8] sm:$0xff]
    %v12041 = vld [vmem:[#allocation4 + $0x1f0] sm:$0xff]
    %v12042 = vld [vmem:[#allocation4 + $0x1f8] sm:$0xff]
    %v12043 = vadd.f32 %v11915, %v11979
    %v12044 = vadd.f32 %v11916, %v11980
    %v12045 = vadd.f32 %v11917, %v11981
    %v12046 = vadd.f32 %v11918, %v11982
    %v12047 = vadd.f32 %v11919, %v11983
    %v12048 = vadd.f32 %v11920, %v11984
    %v12049 = vadd.f32 %v11921, %v11985
    %v12050 = vadd.f32 %v11922, %v11986
    %v12051 = vadd.f32 %v11923, %v11987
    %v12052 = vadd.f32 %v11924, %v11988
    %v12053 = vadd.f32 %v11925, %v11989
    %v12054 = vadd.f32 %v11926, %v11990
    %v12055 = vadd.f32 %v11927, %v11991
    %v12056 = vadd.f32 %v11928, %v11992
    %v12057 = vadd.f32 %v11929, %v11993
    %v12058 = vadd.f32 %v11930, %v11994
    %v12059 = vadd.f32 %v11931, %v11995
    %v12060 = vadd.f32 %v11932, %v11996
    %v12061 = vadd.f32 %v11933, %v11997
    %v12062 = vadd.f32 %v11934, %v11998
    %v12063 = vadd.f32 %v11935, %v11999
    %v12064 = vadd.f32 %v11936, %v12000
    %v12065 = vadd.f32 %v11937, %v12001
    %v12066 = vadd.f32 %v11938, %v12002
    %v12067 = vadd.f32 %v11939, %v12003
    %v12068 = vadd.f32 %v11940, %v12004
    %v12069 = vadd.f32 %v11941, %v12005
    %v12070 = vadd.f32 %v11942, %v12006
    %v12071 = vadd.f32 %v11943, %v12007
    %v12072 = vadd.f32 %v11944, %v12008
    %v12073 = vadd.f32 %v11945, %v12009
    %v12074 = vadd.f32 %v11946, %v12010
    %v12075 = vadd.f32 %v11947, %v12011
    %v12076 = vadd.f32 %v11948, %v12012
    %v12077 = vadd.f32 %v11949, %v12013
    %v12078 = vadd.f32 %v11950, %v12014
    %v12079 = vadd.f32 %v11951, %v12015
    %v12080 = vadd.f32 %v11952, %v12016
    %v12081 = vadd.f32 %v11953, %v12017
    %v12082 = vadd.f32 %v11954, %v12018
    %v12083 = vadd.f32 %v11955, %v12019
    %v12084 = vadd.f32 %v11956, %v12020
    %v12085 = vadd.f32 %v11957, %v12021
    %v12086 = vadd.f32 %v11958, %v12022
    %v12087 = vadd.f32 %v11959, %v12023
    %v12088 = vadd.f32 %v11960, %v12024
    %v12089 = vadd.f32 %v11961, %v12025
    %v12090 = vadd.f32 %v11962, %v12026
    %v12091 = vadd.f32 %v11963, %v12027
    %v12092 = vadd.f32 %v11964, %v12028
    %v12093 = vadd.f32 %v11965, %v12029
    %v12094 = vadd.f32 %v11966, %v12030
    %v12095 = vadd.f32 %v11967, %v12031
    %v12096 = vadd.f32 %v11968, %v12032
    %v12097 = vadd.f32 %v11969, %v12033
    %v12098 = vadd.f32 %v11970, %v12034
    %v12099 = vadd.f32 %v11971, %v12035
    %v12100 = vadd.f32 %v11972, %v12036
    %v12101 = vadd.f32 %v11973, %v12037
    %v12102 = vadd.f32 %v11974, %v12038
    %v12103 = vadd.f32 %v11975, %v12039
    %v12104 = vadd.f32 %v11976, %v12040
    %v12105 = vadd.f32 %v11977, %v12041
    %v12106 = vadd.f32 %v11978, %v12042
    %v12107 = vmax.f32 %v12043, 0.0
    %v12108 = vmax.f32 %v12044, 0.0
    %v12109 = vmax.f32 %v12045, 0.0
    %v12110 = vmax.f32 %v12046, 0.0
    %v12111 = vmax.f32 %v12047, 0.0
    %v12112 = vmax.f32 %v12048, 0.0
    %v12113 = vmax.f32 %v12049, 0.0
    %v12114 = vmax.f32 %v12050, 0.0
    %v12115 = vmax.f32 %v12051, 0.0
    %v12116 = vmax.f32 %v12052, 0.0
    %v12117 = vmax.f32 %v12053, 0.0
    %v12118 = vmax.f32 %v12054, 0.0
    %v12119 = vmax.f32 %v12055, 0.0
    %v12120 = vmax.f32 %v12056, 0.0
    %v12121 = vmax.f32 %v12057, 0.0
    %v12122 = vmax.f32 %v12058, 0.0
    %v12123 = vmax.f32 %v12059, 0.0
    %v12124 = vmax.f32 %v12060, 0.0
    %v12125 = vmax.f32 %v12061, 0.0
    %v12126 = vmax.f32 %v12062, 0.0
    %v12127 = vmax.f32 %v12063, 0.0
    %v12128 = vmax.f32 %v12064, 0.0
    %v12129 = vmax.f32 %v12065, 0.0
    %v12130 = vmax.f32 %v12066, 0.0
    %v12131 = vmax.f32 %v12067, 0.0
    %v12132 = vmax.f32 %v12068, 0.0
    %v12133 = vmax.f32 %v12069, 0.0
    %v12134 = vmax.f32 %v12070, 0.0
    %v12135 = vmax.f32 %v12071, 0.0
    %v12136 = vmax.f32 %v12072, 0.0
    %v12137 = vmax.f32 %v12073, 0.0
    %v12138 = vmax.f32 %v12074, 0.0
    %v12139 = vmax.f32 %v12075, 0.0
    %v12140 = vmax.f32 %v12076, 0.0
    %v12141 = vmax.f32 %v12077, 0.0
    %v12142 = vmax.f32 %v12078, 0.0
    %v12143 = vmax.f32 %v12079, 0.0
    %v12144 = vmax.f32 %v12080, 0.0
    %v12145 = vmax.f32 %v12081, 0.0
    %v12146 = vmax.f32 %v12082, 0.0
    %v12147 = vmax.f32 %v12083, 0.0
    %v12148 = vmax.f32 %v12084, 0.0
    %v12149 = vmax.f32 %v12085, 0.0
    %v12150 = vmax.f32 %v12086, 0.0
    %v12151 = vmax.f32 %v12087, 0.0
    %v12152 = vmax.f32 %v12088, 0.0
    %v12153 = vmax.f32 %v12089, 0.0
    %v12154 = vmax.f32 %v12090, 0.0
    %v12155 = vmax.f32 %v12091, 0.0
    %v12156 = vmax.f32 %v12092, 0.0
    %v12157 = vmax.f32 %v12093, 0.0
    %v12158 = vmax.f32 %v12094, 0.0
    %v12159 = vmax.f32 %v12095, 0.0
    %v12160 = vmax.f32 %v12096, 0.0
    %v12161 = vmax.f32 %v12097, 0.0
    %v12162 = vmax.f32 %v12098, 0.0
    %v12163 = vmax.f32 %v12099, 0.0
    %v12164 = vmax.f32 %v12100, 0.0
    %v12165 = vmax.f32 %v12101, 0.0
    %v12166 = vmax.f32 %v12102, 0.0
    %v12167 = vmax.f32 %v12103, 0.0
    %v12168 = vmax.f32 %v12104, 0.0
    %v12169 = vmax.f32 %v12105, 0.0
    %v12170 = vmax.f32 %v12106, 0.0
    %12171 = vst [vmem:[#allocation10] sm:$0xff] %v12107
    %12172 = vst [vmem:[#allocation10 + $0x8] sm:$0xff] %v12108
    %12173 = vst [vmem:[#allocation10 + $0x10] sm:$0xff] %v12109
    %12174 = vst [vmem:[#allocation10 + $0x18] sm:$0xff] %v12110
    %12175 = vst [vmem:[#allocation10 + $0x20] sm:$0xff] %v12111
    %12176 = vst [vmem:[#allocation10 + $0x28] sm:$0xff] %v12112
    %12177 = vst [vmem:[#allocation10 + $0x30] sm:$0xff] %v12113
    %12178 = vst [vmem:[#allocation10 + $0x38] sm:$0xff] %v12114
    %12179 = vst [vmem:[#allocation10 + $0x40] sm:$0xff] %v12115
    %12180 = vst [vmem:[#allocation10 + $0x48] sm:$0xff] %v12116
    %12181 = vst [vmem:[#allocation10 + $0x50] sm:$0xff] %v12117
    %12182 = vst [vmem:[#allocation10 + $0x58] sm:$0xff] %v12118
    %12183 = vst [vmem:[#allocation10 + $0x60] sm:$0xff] %v12119
    %12184 = vst [vmem:[#allocation10 + $0x68] sm:$0xff] %v12120
    %12185 = vst [vmem:[#allocation10 + $0x70] sm:$0xff] %v12121
    %12186 = vst [vmem:[#allocation10 + $0x78] sm:$0xff] %v12122
    %12187 = vst [vmem:[#allocation10 + $0x80] sm:$0xff] %v12123
    %12188 = vst [vmem:[#allocation10 + $0x88] sm:$0xff] %v12124
    %12189 = vst [vmem:[#allocation10 + $0x90] sm:$0xff] %v12125
    %12190 = vst [vmem:[#allocation10 + $0x98] sm:$0xff] %v12126
    %12191 = vst [vmem:[#allocation10 + $0xa0] sm:$0xff] %v12127
    %12192 = vst [vmem:[#allocation10 + $0xa8] sm:$0xff] %v12128
    %12193 = vst [vmem:[#allocation10 + $0xb0] sm:$0xff] %v12129
    %12194 = vst [vmem:[#allocation10 + $0xb8] sm:$0xff] %v12130
    %12195 = vst [vmem:[#allocation10 + $0xc0] sm:$0xff] %v12131
    %12196 = vst [vmem:[#allocation10 + $0xc8] sm:$0xff] %v12132
    %12197 = vst [vmem:[#allocation10 + $0xd0] sm:$0xff] %v12133
    %12198 = vst [vmem:[#allocation10 + $0xd8] sm:$0xff] %v12134
    %12199 = vst [vmem:[#allocation10 + $0xe0] sm:$0xff] %v12135
    %12200 = vst [vmem:[#allocation10 + $0xe8] sm:$0xff] %v12136
    %12201 = vst [vmem:[#allocation10 + $0xf0] sm:$0xff] %v12137
    %12202 = vst [vmem:[#allocation10 + $0xf8] sm:$0xff] %v12138
    %12203 = vst [vmem:[#allocation10 + $0x100] sm:$0xff] %v12139
    %12204 = vst [vmem:[#allocation10 + $0x108] sm:$0xff] %v12140
    %12205 = vst [vmem:[#allocation10 + $0x110] sm:$0xff] %v12141
    %12206 = vst [vmem:[#allocation10 + $0x118] sm:$0xff] %v12142
    %12207 = vst [vmem:[#allocation10 + $0x120] sm:$0xff] %v12143
    %12208 = vst [vmem:[#allocation10 + $0x128] sm:$0xff] %v12144
    %12209 = vst [vmem:[#allocation10 + $0x130] sm:$0xff] %v12145
    %12210 = vst [vmem:[#allocation10 + $0x138] sm:$0xff] %v12146
    %12211 = vst [vmem:[#allocation10 + $0x140] sm:$0xff] %v12147
    %12212 = vst [vmem:[#allocation10 + $0x148] sm:$0xff] %v12148
    %12213 = vst [vmem:[#allocation10 + $0x150] sm:$0xff] %v12149
    %12214 = vst [vmem:[#allocation10 + $0x158] sm:$0xff] %v12150
    %12215 = vst [vmem:[#allocation10 + $0x160] sm:$0xff] %v12151
    %12216 = vst [vmem:[#allocation10 + $0x168] sm:$0xff] %v12152
    %12217 = vst [vmem:[#allocation10 + $0x170] sm:$0xff] %v12153
    %12218 = vst [vmem:[#allocation10 + $0x178] sm:$0xff] %v12154
    %12219 = vst [vmem:[#allocation10 + $0x180] sm:$0xff] %v12155
    %12220 = vst [vmem:[#allocation10 + $0x188] sm:$0xff] %v12156
    %12221 = vst [vmem:[#allocation10 + $0x190] sm:$0xff] %v12157
    %12222 = vst [vmem:[#allocation10 + $0x198] sm:$0xff] %v12158
    %12223 = vst [vmem:[#allocation10 + $0x1a0] sm:$0xff] %v12159
    %12224 = vst [vmem:[#allocation10 + $0x1a8] sm:$0xff] %v12160
    %12225 = vst [vmem:[#allocation10 + $0x1b0] sm:$0xff] %v12161
    %12226 = vst [vmem:[#allocation10 + $0x1b8] sm:$0xff] %v12162
    %12227 = vst [vmem:[#allocation10 + $0x1c0] sm:$0xff] %v12163
    %12228 = vst [vmem:[#allocation10 + $0x1c8] sm:$0xff] %v12164
    %12229 = vst [vmem:[#allocation10 + $0x1d0] sm:$0xff] %v12165
    %12230 = vst [vmem:[#allocation10 + $0x1d8] sm:$0xff] %v12166
    %12231 = vst [vmem:[#allocation10 + $0x1e0] sm:$0xff] %v12167
    %12232 = vst [vmem:[#allocation10 + $0x1e8] sm:$0xff] %v12168
    %12233 = vst [vmem:[#allocation10 + $0x1f0] sm:$0xff] %v12169
    %12234 = vst [vmem:[#allocation10 + $0x1f8] sm:$0xff] %v12170
    // Predicated region
    $region42: #{tpu_custom_call.1} parent=1 // pred_check
      _
    $region43: #{tpu_custom_call.1} parent=1 // pred_check_branch
      %12236 = sbr.rel (0) target = $region45
    $region44: #{tpu_custom_call.1} parent=1 // pred_region
      %s12238 = ssub.s32 8192, 8192
      %12239 = vsyncadd [#allocation6], %s12238
      %s12240 = sshll.u32 [#allocation10], 4
      %s12241 = int_to_ptr.vmem [resolvable:$true] %s12240
      %12246 = dma.vmem_to_hbm [thread:$0]  %s12241, 8192, %s7, [#allocation6], 128, 128, 8
    $region45: #{tpu_custom_call.1} parent=1 // pred_fallthru
      _
    // Predicated region
    $region46: #{tpu_custom_call.1} parent=1 // pred_check
      _
    $region47: #{tpu_custom_call.1} parent=1 // pred_check_branch
      %12248 = sbr.rel (0) target = $region49
    $region48: #{tpu_custom_call.1} parent=1 // pred_region
      %12249 = dma.done [#allocation6], 8192
    $region49: #{tpu_custom_call.1} parent=1 // pred_fallthru
      _
    %12250 = vsyncpa [#allocation5], 1
    %12251 = vsyncpa [#allocation8], 1
    %12252 = vsyncpa [#allocation6], 1

</llo_original>
